<compile_context>
chip_gen: v7x
topology: tpu7x:2x2x1
jax: 0.10.0
libtpu: 0.0.40
codegen_flags: <defaults>
</compile_context>

<pallas_src>
import numpy as np
import jax
import jax.numpy as jnp
from jax import lax
from jax.experimental import pallas as pl
from jax.experimental.pallas import tpu as pltpu

# ----------------------------- model hyper-parameters -----------------------------
BATCH = 2
NUMVERTS = 2500          # >= 409 + 348*6 so both convs are valid
NUM_FEATURES = 128       # (module default 1024, reduced for a small runnable example)
INPUT_SIZE = 9
NUM_HEADS = 2
HIDDEN = 4
HEAD_SIZE = HIDDEN // NUM_HEADS
HEAD_OUT = 128           # head_out_features (module default 1024, reduced)
FINAL = 48

KH1, KH2, KW = 409, 330, 3
STRIDE1, STRIDE2 = 6, 1
H1 = (NUMVERTS - KH1) // STRIDE1 + 1          # 349
H2 = (H1 - KH2) // STRIDE2 + 1                # 20
POOL_OUT = NUM_FEATURES * INPUT_SIZE // 3     # 384
BN_EPS = 1e-5

assert POOL_OUT % KW == 0 and POOL_OUT // KW == NUM_FEATURES


# ----------------------------------- Pallas kernel ---------------------------------
def gmw_kernel(pat_ref, w1_ref, c1_ref, k2_ref, c2_ref, pool_ref, a_ref,
               wqkv_ref, bqkv_ref, wfc_ref, bfc_ref, wff0_ref, cff0_ref,
               wff1_ref, bff1_ref, o_ref):
    f32 = jnp.float32
    nt = (((1,), (1,)), ((), ()))        # contract last dims of both operands

    # ---- convBlock1: Conv2d(1->3,(409,3),stride(6,1)) + BN2d (folded) ----
    # pat: [H1, KH1*KW] im2col patches, w1: [3, KH1*KW] (BN scale folded in)
    y1 = lax.dot_general(pat_ref[...], w1_ref[...], nt,
                         preferred_element_type=f32) + c1_ref[...]       # [H1, 3]

    # ---- convBlock2 + BN2d + torch's channel-interleaving views, folded into a
    #      composite matrix acting on y1's columns:  x2c[w][j] == X2[j, w]  ----
    c2 = c2_ref[...]                                                     # [H2, 3]
    x2c = []
    for w in range(KW):
        acc = c2[:, w:w + 1]                                             # [H2, 1]
        for c1 in range(KW):
            acc = acc + jnp.dot(k2_ref[w * KW + c1], y1[:, c1:c1 + 1],
                                preferred_element_type=f32)
        x2c.append(acc)

    # ---- AdaptiveAvgPool2d((384, 3)) + PReLU, regrouped straight into the
    #      [num_features=128, input_size=9] attention-input columns ----
    a = a_ref[0, 0]
    zc = []
    for u in range(INPUT_SIZE):
        col = jnp.dot(pool_ref[u // KW], x2c[u % KW],
                      preferred_element_type=f32)                        # [128, 1]
        zc.append(jnp.where(col > 0.0, col, a * col))                    # PReLU

    # ---- fused Q/K/V projection: qkv = x @ [Wq|Wk|Wv] + b  ([128, 12]) ----
    wqkv = wqkv_ref[...]                                                 # [9, 12]
    qkv = bqkv_ref[...]                                                  # [1, 12]
    for u in range(INPUT_SIZE):
        qkv = qkv + zc[u] * wqkv[u:u + 1, :]                             # rank-1 update

    # ---- multi-head attention (2 heads, head_size 2) + fc_out ----
    out_c = bfc_ref[...]                                                 # [128, 1]
    scale = 1.0 / float(HEAD_SIZE) ** 0.5
    for h in range(NUM_HEADS):
        q = qkv[:, h * HEAD_SIZE:(h + 1) * HEAD_SIZE]                    # [128, 2]
        k = qkv[:, HIDDEN + h * HEAD_SIZE:HIDDEN + (h + 1) * HEAD_SIZE]
        v = qkv[:, 2 * HIDDEN + h * HEAD_SIZE:2 * HIDDEN + (h + 1) * HEAD_SIZE]
        s = lax.dot_general(q, k, nt, preferred_element_type=f32) * scale  # [128, 128]
        s = s - jnp.max(s, axis=-1, keepdims=True)
        p = jnp.exp(s)
        p = p * pl.reciprocal(jnp.sum(p, axis=-1, keepdims=True), approx=True)
        att_h = jnp.dot(p, v, preferred_element_type=f32)                # [128, 2]
        # merged-head column t = h*head_size + e feeds fc_out directly
        for e in range(HEAD_SIZE):
            out_c = out_c + jnp.dot(wfc_ref[h * HEAD_SIZE + e],
                                    att_h[:, e:e + 1],
                                    preferred_element_type=f32)          # [128, 1]

    # ---- feed_forward[0]: Linear + BN1d (folded) + ELU (+Dropout=id), residual ----
    y = jnp.dot(wff0_ref[...], out_c, preferred_element_type=f32) + cff0_ref[...]
    y = jnp.where(y > 0.0, y, jnp.exp(jnp.minimum(y, 0.0)) - 1.0)        # ELU(alpha=1)
    x = out_c + y

    # ---- feed_forward[1]: Linear(head_out -> final) ----
    o_ref[...] = jnp.dot(wff1_ref[...], x, preferred_element_type=f32) + bff1_ref[...]


# ----------------------------------- forward pass -----------------------------------
def gmw_forward(mesh, p):
    B = mesh.shape[0]

    # im2col patch gather for conv1 (the only XLA-side compute)
    idx = jnp.arange(H1)[:, None] * STRIDE1 + jnp.arange(KH1)[None, :]   # [H1, KH1]
    pat = mesh[:, idx, :].reshape(B, H1, KH1 * KW).astype(jnp.float32)   # [B, H1, 1227]

    def full(shape):
        n = len(shape)
        return pl.BlockSpec(shape, lambda b, n=n: (0,) * n)

    out = pl.pallas_call(
        gmw_kernel,
        grid=(B,),
        in_specs=[
            pl.BlockSpec((None, H1, KH1 * KW), lambda b: (b, 0, 0)),  # patches (per b)
            full((KW, KH1 * KW)),              # conv1 weight (BN1-scaled, transposed)
            full((1, KW)),                     # conv1 bias + BN1 shift
            full((KW * KW, H2, H1)),           # conv2/BN2 composite
            full((H2, KW)),                    # conv2 bias + BN2 shift (pos-major view)
            full((KW, NUM_FEATURES, H2)),      # adaptive-pool matrices
            full((1, 1)),                      # PReLU alpha
            full((INPUT_SIZE, 3 * HIDDEN)),    # fused Q/K/V weight
            full((1, 3 * HIDDEN)),             # fused Q/K/V bias
            full((HIDDEN, HEAD_OUT, NUM_FEATURES)),  # fc_out weight (per merged column)
            full((HEAD_OUT, 1)),               # fc_out bias
            full((HEAD_OUT, HEAD_OUT)),        # ff0 weight (BN3-scaled)
            full((HEAD_OUT, 1)),               # ff0 bias + BN3 shift
            full((FINAL, HEAD_OUT)),           # ff1 weight
            full((FINAL, 1)),                  # ff1 bias
        ],
        out_specs=pl.BlockSpec((None, FINAL, 1), lambda b: (b, 0, 0)),
        out_shape=jax.ShapeDtypeStruct((B, FINAL, 1), jnp.float32),
        compiler_params=pltpu.CompilerParams(dimension_semantics=("parallel",)),
    )(pat, p["w1"], p["c1"], p["k2"], p["c2"], p["pool"], p["prelu_a"],
      p["wqkv"], p["bqkv"], p["wfc"], p["bfc"], p["wff0"], p["cff0"],
      p["wff1"], p["bff1"])
    return out.reshape(B, FINAL)


# ------------------------------- parameter construction -----------------------------
def build_params(key):
    ks = jax.random.split(key, 24)
    kit = iter(ks)

    def uni(fan_in, shape):
        b = 1.0 / np.sqrt(fan_in)
        return np.asarray(jax.random.uniform(next(kit), shape, jnp.float32, -b, b))

    def nrm(shape, scl=0.1, off=0.0):
        return np.asarray(off + scl * jax.random.normal(next(kit), shape, jnp.float32))

    # --- raw torch-layout parameters ---------------------------------------------
    W1 = uni(KH1 * KW, (3, KH1, KW));  b1 = uni(KH1 * KW, (3,))
    g1 = nrm((3,), 0.1, 1.0); beta1 = nrm((3,), 0.1)
    m1 = np.zeros(3, np.float32); v1 = np.ones(3, np.float32)        # running stats

    W2 = uni(KH2 * KW, (3, KH2, KW));  b2 = uni(KH2 * KW, (3,))
    g2 = nrm((3,), 0.1, 1.0); beta2 = nrm((3,), 0.1)
    m2 = np.zeros(3, np.float32); v2 = np.ones(3, np.float32)

    Wq = uni(INPUT_SIZE, (HIDDEN, INPUT_SIZE)); bq = uni(INPUT_SIZE, (HIDDEN,))
    Wk = uni(INPUT_SIZE, (HIDDEN, INPUT_SIZE)); bk = uni(INPUT_SIZE, (HIDDEN,))
    Wv = uni(INPUT_SIZE, (HIDDEN, INPUT_SIZE)); bv = uni(INPUT_SIZE, (HIDDEN,))

    Wfc = uni(NUM_FEATURES * HIDDEN, (HEAD_OUT, NUM_FEATURES * HIDDEN))
    bfc_raw = uni(NUM_FEATURES * HIDDEN, (HEAD_OUT,))

    Wf0 = uni(HEAD_OUT, (HEAD_OUT, HEAD_OUT)); bf0 = uni(HEAD_OUT, (HEAD_OUT,))
    g3 = nrm((HEAD_OUT,), 0.1, 1.0); beta3 = nrm((HEAD_OUT,), 0.1)
    m3 = np.zeros(HEAD_OUT, np.float32); v3 = np.ones(HEAD_OUT, np.float32)

    Wf1 = uni(HEAD_OUT, (FINAL, HEAD_OUT)); bf1 = uni(HEAD_OUT, (FINAL,))

    # --- eval-mode BatchNorm folds (general running mean/var handling) ------------
    def bn_fold(g, beta, mean, var):
        s = g / np.sqrt(var + BN_EPS)
        return s, beta - mean * s

    s1, t1 = bn_fold(g1, beta1, m1, v1)
    s2, t2 = bn_fold(g2, beta2, m2, v2)
    s3, t3 = bn_fold(g3, beta3, m3, v3)

    # conv1: weight transposed + BN scale folded, bias folded into shift row
    w1 = (W1.reshape(3, KH1 * KW) * s1[:, None]).astype(np.float32)      # [3, 1227]
    c1 = (b1 * s1 + t1)[None, :].astype(np.float32)                      # [1, 3]

    # conv2 + BN2 + torch's `.view(B,1,-1,3)` channel interleaving, folded into:
    #   X2[j, w] = c2[j, w] + sum_{c1, i1} k2[w*3+c1, j, i1] * y1[i1, c1]
    W2f = W2.reshape(3, KH2 * KW)
    k2 = np.zeros((KW, KW, H2, H1), np.float32)                          # [w, c1, j, i1]
    c2 = np.zeros((H2, KW), np.float32)
    t2i = np.arange(KH2 * KW)
    for j in range(H2):
        for w in range(KW):
            kk = KW * j + w              # conv2-output channel-major flat index
            c = kk // H2                 # conv2 output channel
            jj = kk % H2                 # conv2 output row
            c2[j, w] = s2[c] * b2[c] + t2[c]
            m = KW * jj + t2i            # conv1-output channel-major flat indices
            k2[w, m // H1, j, m % H1] = s2[c] * W2f[c, :]
    k2 = k2.reshape(KW * KW, H2, H1)

    # AdaptiveAvgPool2d((384, 3)) over rows (width pool is identity); pool[d] maps
    # the 20 conv2 rows to attention-input column u = 3*d + w.
    P = np.zeros((POOL_OUT, H2), np.float32)
    for i in range(POOL_OUT):
        s_ = (i * H2) // POOL_OUT
        e_ = -((-(i + 1) * H2) // POOL_OUT)
        P[i, s_:e_] = 1.0 / float(e_ - s_)
    pool = np.stack([P[d::KW, :] for d in range(KW)], axis=0)            # [3, 128, 20]

    wqkv = np.concatenate([Wq.T, Wk.T, Wv.T], axis=1).astype(np.float32)  # [9, 12]
    bqkv = np.concatenate([bq, bk, bv])[None, :].astype(np.float32)       # [1, 12]

    wfc = np.stack([Wfc[:, t::HIDDEN] for t in range(HIDDEN)], 0).astype(np.float32)
    bfc = bfc_raw[:, None].astype(np.float32)                             # [128, 1]

    wff0 = (Wf0 * s3[:, None]).astype(np.float32)                         # [128, 128]
    cff0 = (bf0 * s3 + t3)[:, None].astype(np.float32)                    # [128, 1]
    wff1 = Wf1.astype(np.float32)                                         # [48, 128]
    bff1 = bf1[:, None].astype(np.float32)                                # [48, 1]

    prelu_a = np.full((1, 1), 0.25, np.float32)                           # torch default

    p = dict(w1=w1, c1=c1, k2=k2, c2=c2, pool=pool, prelu_a=prelu_a,
             wqkv=wqkv, bqkv=bqkv, wfc=wfc, bfc=bfc, wff0=wff0, cff0=cff0,
             wff1=wff1, bff1=bff1)
    return {k: jnp.asarray(v) for k, v in p.items()}


# --------------------------------------- main ---------------------------------------
if __name__ == "__main__":
    key = jax.random.PRNGKey(0)
    k_mesh, k_par = jax.random.split(key)

    mesh = jax.random.normal(k_mesh, (BATCH, NUMVERTS, 3), jnp.float32)
    params = build_params(k_par)

    fwd = jax.jit(gmw_forward)
    out = jax.block_until_ready(fwd(mesh, params))

    assert out.shape == (BATCH, FINAL), out.shape
    assert out.dtype == jnp.float32
    assert bool(jnp.all(jnp.isfinite(out)))
    print("KERNEL_OK")
</pallas_src>

<mosaic_0001>
module attributes {stable_mosaic.version = 11 : i64} {
  func.func @gmw_kernel(%arg0: i32, %arg1: memref<1x349x1227xf32, #tpu.memory_space<vmem>>, %arg2: memref<3x1227xf32, #tpu.memory_space<vmem>>, %arg3: memref<1x3xf32, #tpu.memory_space<vmem>>, %arg4: memref<9x20x349xf32, #tpu.memory_space<vmem>>, %arg5: memref<20x3xf32, #tpu.memory_space<vmem>>, %arg6: memref<3x128x20xf32, #tpu.memory_space<vmem>>, %arg7: memref<1x1xf32, #tpu.memory_space<vmem>>, %arg8: memref<9x12xf32, #tpu.memory_space<vmem>>, %arg9: memref<1x12xf32, #tpu.memory_space<vmem>>, %arg10: memref<4x128x128xf32, #tpu.memory_space<vmem>>, %arg11: memref<128x1xf32, #tpu.memory_space<vmem>>, %arg12: memref<128x128xf32, #tpu.memory_space<vmem>>, %arg13: memref<128x1xf32, #tpu.memory_space<vmem>>, %arg14: memref<48x128xf32, #tpu.memory_space<vmem>>, %arg15: memref<48x1xf32, #tpu.memory_space<vmem>>, %arg16: memref<1x48x1xf32, #tpu.memory_space<vmem>>) attributes {dimension_semantics = [#tpu.dimension_semantics<parallel>], iteration_bounds = array<i64: 2>, scalar_prefetch = 0 : i64, scratch_operands = 0 : i64, tpu.core_type = #tpu.core_type<tc>, window_params = [{transform_indices = @transform_0, window_bounds = array<i64: 1, 349, 1227>}, {pipeline_mode = #tpu.pipeline_mode<synchronous>, transform_indices = @transform_1, window_bounds = array<i64: 3, 1227>}, {pipeline_mode = #tpu.pipeline_mode<synchronous>, transform_indices = @transform_2, window_bounds = array<i64: 1, 3>}, {pipeline_mode = #tpu.pipeline_mode<synchronous>, transform_indices = @transform_3, window_bounds = array<i64: 9, 20, 349>}, {pipeline_mode = #tpu.pipeline_mode<synchronous>, transform_indices = @transform_4, window_bounds = array<i64: 20, 3>}, {pipeline_mode = #tpu.pipeline_mode<synchronous>, transform_indices = @transform_5, window_bounds = array<i64: 3, 128, 20>}, {pipeline_mode = #tpu.pipeline_mode<synchronous>, transform_indices = @transform_6, window_bounds = array<i64: 1, 1>}, {pipeline_mode = #tpu.pipeline_mode<synchronous>, transform_indices = @transform_7, window_bounds = array<i64: 9, 12>}, {pipeline_mode = #tpu.pipeline_mode<synchronous>, transform_indices = @transform_8, window_bounds = array<i64: 1, 12>}, {pipeline_mode = #tpu.pipeline_mode<synchronous>, transform_indices = @transform_9, window_bounds = array<i64: 4, 128, 128>}, {pipeline_mode = #tpu.pipeline_mode<synchronous>, transform_indices = @transform_10, window_bounds = array<i64: 128, 1>}, {pipeline_mode = #tpu.pipeline_mode<synchronous>, transform_indices = @transform_11, window_bounds = array<i64: 128, 128>}, {pipeline_mode = #tpu.pipeline_mode<synchronous>, transform_indices = @transform_12, window_bounds = array<i64: 128, 1>}, {pipeline_mode = #tpu.pipeline_mode<synchronous>, transform_indices = @transform_13, window_bounds = array<i64: 48, 128>}, {pipeline_mode = #tpu.pipeline_mode<synchronous>, transform_indices = @transform_14, window_bounds = array<i64: 48, 1>}, {transform_indices = @transform_15, window_bounds = array<i64: 1, 48, 1>}]} {
    %c0 = arith.constant 0 : index
    %c0_0 = arith.constant 0 : index
    %c0_1 = arith.constant 0 : index
    %0 = vector.load %arg1[%c0, %c0_0, %c0_1] : memref<1x349x1227xf32, #tpu.memory_space<vmem>>, vector<1x349x1227xf32>
    %1 = vector.shape_cast %0 : vector<1x349x1227xf32> to vector<349x1227xf32>
    %c0_2 = arith.constant 0 : index
    %c0_3 = arith.constant 0 : index
    %2 = vector.load %arg2[%c0_2, %c0_3] : memref<3x1227xf32, #tpu.memory_space<vmem>>, vector<3x1227xf32>
    %cst = arith.constant dense<0.000000e+00> : vector<349x3xf32>
    %3 = tpu.matmul %1, %2, %cst {dimension_numbers = #tpu.dot_dimension_numbers<[1], [1], [0], [0], [0, 0, 1, 0], [], []>} : vector<349x1227xf32>, vector<3x1227xf32>, vector<349x3xf32> -> vector<349x3xf32>
    %c0_4 = arith.constant 0 : index
    %c0_5 = arith.constant 0 : index
    %4 = vector.load %arg3[%c0_4, %c0_5] : memref<1x3xf32, #tpu.memory_space<vmem>>, vector<1x3xf32>
    %5 = vector.broadcast %4 : vector<1x3xf32> to vector<349x3xf32>
    %6 = arith.addf %3, %5 : vector<349x3xf32>
    %c0_6 = arith.constant 0 : index
    %c0_7 = arith.constant 0 : index
    %7 = vector.load %arg5[%c0_6, %c0_7] : memref<20x3xf32, #tpu.memory_space<vmem>>, vector<20x3xf32>
    %8 = vector.extract_strided_slice %7 {offsets = [0, 0], sizes = [20, 1], strides = [1, 1]} : vector<20x3xf32> to vector<20x1xf32>
    %c0_8 = arith.constant 0 : index
    %c0_9 = arith.constant 0 : index
    %c0_10 = arith.constant 0 : index
    %9 = vector.load %arg4[%c0_8, %c0_9, %c0_10] : memref<9x20x349xf32, #tpu.memory_space<vmem>>, vector<1x20x349xf32>
    %10 = vector.shape_cast %9 : vector<1x20x349xf32> to vector<20x349xf32>
    %11 = vector.extract_strided_slice %6 {offsets = [0, 0], sizes = [349, 1], strides = [1, 1]} : vector<349x3xf32> to vector<349x1xf32>
    %cst_11 = arith.constant dense<0.000000e+00> : vector<20x1xf32>
    %12 = tpu.matmul %10, %11, %cst_11 {dimension_numbers = #tpu.dot_dimension_numbers<[1], [0], [0], [1], [0, 0, 1, 1], [], []>} : vector<20x349xf32>, vector<349x1xf32>, vector<20x1xf32> -> vector<20x1xf32>
    %13 = arith.addf %8, %12 : vector<20x1xf32>
    %c1 = arith.constant 1 : index
    %c0_12 = arith.constant 0 : index
    %c0_13 = arith.constant 0 : index
    %14 = vector.load %arg4[%c1, %c0_12, %c0_13] : memref<9x20x349xf32, #tpu.memory_space<vmem>>, vector<1x20x349xf32>
    %15 = vector.shape_cast %14 : vector<1x20x349xf32> to vector<20x349xf32>
    %16 = vector.extract_strided_slice %6 {offsets = [0, 1], sizes = [349, 1], strides = [1, 1]} : vector<349x3xf32> to vector<349x1xf32>
    %cst_14 = arith.constant dense<0.000000e+00> : vector<20x1xf32>
    %17 = tpu.matmul %15, %16, %cst_14 {dimension_numbers = #tpu.dot_dimension_numbers<[1], [0], [0], [1], [0, 0, 1, 1], [], []>} : vector<20x349xf32>, vector<349x1xf32>, vector<20x1xf32> -> vector<20x1xf32>
    %18 = arith.addf %13, %17 : vector<20x1xf32>
    %c2 = arith.constant 2 : index
    %c0_15 = arith.constant 0 : index
    %c0_16 = arith.constant 0 : index
    %19 = vector.load %arg4[%c2, %c0_15, %c0_16] : memref<9x20x349xf32, #tpu.memory_space<vmem>>, vector<1x20x349xf32>
    %20 = vector.shape_cast %19 : vector<1x20x349xf32> to vector<20x349xf32>
    %21 = vector.extract_strided_slice %6 {offsets = [0, 2], sizes = [349, 1], strides = [1, 1]} : vector<349x3xf32> to vector<349x1xf32>
    %cst_17 = arith.constant dense<0.000000e+00> : vector<20x1xf32>
    %22 = tpu.matmul %20, %21, %cst_17 {dimension_numbers = #tpu.dot_dimension_numbers<[1], [0], [0], [1], [0, 0, 1, 1], [], []>} : vector<20x349xf32>, vector<349x1xf32>, vector<20x1xf32> -> vector<20x1xf32>
    %23 = arith.addf %18, %22 : vector<20x1xf32>
    %24 = vector.extract_strided_slice %7 {offsets = [0, 1], sizes = [20, 1], strides = [1, 1]} : vector<20x3xf32> to vector<20x1xf32>
    %c3 = arith.constant 3 : index
    %c0_18 = arith.constant 0 : index
    %c0_19 = arith.constant 0 : index
    %25 = vector.load %arg4[%c3, %c0_18, %c0_19] : memref<9x20x349xf32, #tpu.memory_space<vmem>>, vector<1x20x349xf32>
    %26 = vector.shape_cast %25 : vector<1x20x349xf32> to vector<20x349xf32>
    %27 = vector.extract_strided_slice %6 {offsets = [0, 0], sizes = [349, 1], strides = [1, 1]} : vector<349x3xf32> to vector<349x1xf32>
    %cst_20 = arith.constant dense<0.000000e+00> : vector<20x1xf32>
    %28 = tpu.matmul %26, %27, %cst_20 {dimension_numbers = #tpu.dot_dimension_numbers<[1], [0], [0], [1], [0, 0, 1, 1], [], []>} : vector<20x349xf32>, vector<349x1xf32>, vector<20x1xf32> -> vector<20x1xf32>
    %29 = arith.addf %24, %28 : vector<20x1xf32>
    %c4 = arith.constant 4 : index
    %c0_21 = arith.constant 0 : index
    %c0_22 = arith.constant 0 : index
    %30 = vector.load %arg4[%c4, %c0_21, %c0_22] : memref<9x20x349xf32, #tpu.memory_space<vmem>>, vector<1x20x349xf32>
    %31 = vector.shape_cast %30 : vector<1x20x349xf32> to vector<20x349xf32>
    %32 = vector.extract_strided_slice %6 {offsets = [0, 1], sizes = [349, 1], strides = [1, 1]} : vector<349x3xf32> to vector<349x1xf32>
    %cst_23 = arith.constant dense<0.000000e+00> : vector<20x1xf32>
    %33 = tpu.matmul %31, %32, %cst_23 {dimension_numbers = #tpu.dot_dimension_numbers<[1], [0], [0], [1], [0, 0, 1, 1], [], []>} : vector<20x349xf32>, vector<349x1xf32>, vector<20x1xf32> -> vector<20x1xf32>
    %34 = arith.addf %29, %33 : vector<20x1xf32>
    %c5 = arith.constant 5 : index
    %c0_24 = arith.constant 0 : index
    %c0_25 = arith.constant 0 : index
    %35 = vector.load %arg4[%c5, %c0_24, %c0_25] : memref<9x20x349xf32, #tpu.memory_space<vmem>>, vector<1x20x349xf32>
    %36 = vector.shape_cast %35 : vector<1x20x349xf32> to vector<20x349xf32>
    %37 = vector.extract_strided_slice %6 {offsets = [0, 2], sizes = [349, 1], strides = [1, 1]} : vector<349x3xf32> to vector<349x1xf32>
    %cst_26 = arith.constant dense<0.000000e+00> : vector<20x1xf32>
    %38 = tpu.matmul %36, %37, %cst_26 {dimension_numbers = #tpu.dot_dimension_numbers<[1], [0], [0], [1], [0, 0, 1, 1], [], []>} : vector<20x349xf32>, vector<349x1xf32>, vector<20x1xf32> -> vector<20x1xf32>
    %39 = arith.addf %34, %38 : vector<20x1xf32>
    %40 = vector.extract_strided_slice %7 {offsets = [0, 2], sizes = [20, 1], strides = [1, 1]} : vector<20x3xf32> to vector<20x1xf32>
    %c6 = arith.constant 6 : index
    %c0_27 = arith.constant 0 : index
    %c0_28 = arith.constant 0 : index
    %41 = vector.load %arg4[%c6, %c0_27, %c0_28] : memref<9x20x349xf32, #tpu.memory_space<vmem>>, vector<1x20x349xf32>
    %42 = vector.shape_cast %41 : vector<1x20x349xf32> to vector<20x349xf32>
    %43 = vector.extract_strided_slice %6 {offsets = [0, 0], sizes = [349, 1], strides = [1, 1]} : vector<349x3xf32> to vector<349x1xf32>
    %cst_29 = arith.constant dense<0.000000e+00> : vector<20x1xf32>
    %44 = tpu.matmul %42, %43, %cst_29 {dimension_numbers = #tpu.dot_dimension_numbers<[1], [0], [0], [1], [0, 0, 1, 1], [], []>} : vector<20x349xf32>, vector<349x1xf32>, vector<20x1xf32> -> vector<20x1xf32>
    %45 = arith.addf %40, %44 : vector<20x1xf32>
    %c7 = arith.constant 7 : index
    %c0_30 = arith.constant 0 : index
    %c0_31 = arith.constant 0 : index
    %46 = vector.load %arg4[%c7, %c0_30, %c0_31] : memref<9x20x349xf32, #tpu.memory_space<vmem>>, vector<1x20x349xf32>
    %47 = vector.shape_cast %46 : vector<1x20x349xf32> to vector<20x349xf32>
    %48 = vector.extract_strided_slice %6 {offsets = [0, 1], sizes = [349, 1], strides = [1, 1]} : vector<349x3xf32> to vector<349x1xf32>
    %cst_32 = arith.constant dense<0.000000e+00> : vector<20x1xf32>
    %49 = tpu.matmul %47, %48, %cst_32 {dimension_numbers = #tpu.dot_dimension_numbers<[1], [0], [0], [1], [0, 0, 1, 1], [], []>} : vector<20x349xf32>, vector<349x1xf32>, vector<20x1xf32> -> vector<20x1xf32>
    %50 = arith.addf %45, %49 : vector<20x1xf32>
    %c8 = arith.constant 8 : index
    %c0_33 = arith.constant 0 : index
    %c0_34 = arith.constant 0 : index
    %51 = vector.load %arg4[%c8, %c0_33, %c0_34] : memref<9x20x349xf32, #tpu.memory_space<vmem>>, vector<1x20x349xf32>
    %52 = vector.shape_cast %51 : vector<1x20x349xf32> to vector<20x349xf32>
    %53 = vector.extract_strided_slice %6 {offsets = [0, 2], sizes = [349, 1], strides = [1, 1]} : vector<349x3xf32> to vector<349x1xf32>
    %cst_35 = arith.constant dense<0.000000e+00> : vector<20x1xf32>
    %54 = tpu.matmul %52, %53, %cst_35 {dimension_numbers = #tpu.dot_dimension_numbers<[1], [0], [0], [1], [0, 0, 1, 1], [], []>} : vector<20x349xf32>, vector<349x1xf32>, vector<20x1xf32> -> vector<20x1xf32>
    %55 = arith.addf %50, %54 : vector<20x1xf32>
    %c0_36 = arith.constant 0 : index
    %c0_37 = arith.constant 0 : index
    %56 = vector.load %arg7[%c0_36, %c0_37] : memref<1x1xf32, #tpu.memory_space<vmem>>, vector<1x1xf32>
    %57 = vector.extract %56[0, 0] : f32 from vector<1x1xf32>
    %c0_38 = arith.constant 0 : index
    %c0_39 = arith.constant 0 : index
    %c0_40 = arith.constant 0 : index
    %58 = vector.load %arg6[%c0_38, %c0_39, %c0_40] : memref<3x128x20xf32, #tpu.memory_space<vmem>>, vector<1x128x20xf32>
    %59 = vector.shape_cast %58 : vector<1x128x20xf32> to vector<128x20xf32>
    %cst_41 = arith.constant dense<0.000000e+00> : vector<128x1xf32>
    %60 = tpu.matmul %59, %23, %cst_41 {dimension_numbers = #tpu.dot_dimension_numbers<[1], [0], [0], [1], [0, 0, 1, 1], [], []>} : vector<128x20xf32>, vector<20x1xf32>, vector<128x1xf32> -> vector<128x1xf32>
    %cst_42 = arith.constant 0.000000e+00 : f32
    %61 = vector.broadcast %cst_42 : f32 to vector<128x1xf32>
    %62 = arith.cmpf ogt, %60, %61 : vector<128x1xf32>
    %63 = vector.broadcast %57 : f32 to vector<128x1xf32>
    %64 = arith.mulf %63, %60 : vector<128x1xf32>
    %65 = arith.select %62, %60, %64 : vector<128x1xi1>, vector<128x1xf32>
    %c0_43 = arith.constant 0 : index
    %c0_44 = arith.constant 0 : index
    %c0_45 = arith.constant 0 : index
    %66 = vector.load %arg6[%c0_43, %c0_44, %c0_45] : memref<3x128x20xf32, #tpu.memory_space<vmem>>, vector<1x128x20xf32>
    %67 = vector.shape_cast %66 : vector<1x128x20xf32> to vector<128x20xf32>
    %cst_46 = arith.constant dense<0.000000e+00> : vector<128x1xf32>
    %68 = tpu.matmul %67, %39, %cst_46 {dimension_numbers = #tpu.dot_dimension_numbers<[1], [0], [0], [1], [0, 0, 1, 1], [], []>} : vector<128x20xf32>, vector<20x1xf32>, vector<128x1xf32> -> vector<128x1xf32>
    %cst_47 = arith.constant 0.000000e+00 : f32
    %69 = vector.broadcast %cst_47 : f32 to vector<128x1xf32>
    %70 = arith.cmpf ogt, %68, %69 : vector<128x1xf32>
    %71 = vector.broadcast %57 : f32 to vector<128x1xf32>
    %72 = arith.mulf %71, %68 : vector<128x1xf32>
    %73 = arith.select %70, %68, %72 : vector<128x1xi1>, vector<128x1xf32>
    %c0_48 = arith.constant 0 : index
    %c0_49 = arith.constant 0 : index
    %c0_50 = arith.constant 0 : index
    %74 = vector.load %arg6[%c0_48, %c0_49, %c0_50] : memref<3x128x20xf32, #tpu.memory_space<vmem>>, vector<1x128x20xf32>
    %75 = vector.shape_cast %74 : vector<1x128x20xf32> to vector<128x20xf32>
    %cst_51 = arith.constant dense<0.000000e+00> : vector<128x1xf32>
    %76 = tpu.matmul %75, %55, %cst_51 {dimension_numbers = #tpu.dot_dimension_numbers<[1], [0], [0], [1], [0, 0, 1, 1], [], []>} : vector<128x20xf32>, vector<20x1xf32>, vector<128x1xf32> -> vector<128x1xf32>
    %cst_52 = arith.constant 0.000000e+00 : f32
    %77 = vector.broadcast %cst_52 : f32 to vector<128x1xf32>
    %78 = arith.cmpf ogt, %76, %77 : vector<128x1xf32>
    %79 = vector.broadcast %57 : f32 to vector<128x1xf32>
    %80 = arith.mulf %79, %76 : vector<128x1xf32>
    %81 = arith.select %78, %76, %80 : vector<128x1xi1>, vector<128x1xf32>
    %c1_53 = arith.constant 1 : index
    %c0_54 = arith.constant 0 : index
    %c0_55 = arith.constant 0 : index
    %82 = vector.load %arg6[%c1_53, %c0_54, %c0_55] : memref<3x128x20xf32, #tpu.memory_space<vmem>>, vector<1x128x20xf32>
    %83 = vector.shape_cast %82 : vector<1x128x20xf32> to vector<128x20xf32>
    %cst_56 = arith.constant dense<0.000000e+00> : vector<128x1xf32>
    %84 = tpu.matmul %83, %23, %cst_56 {dimension_numbers = #tpu.dot_dimension_numbers<[1], [0], [0], [1], [0, 0, 1, 1], [], []>} : vector<128x20xf32>, vector<20x1xf32>, vector<128x1xf32> -> vector<128x1xf32>
    %cst_57 = arith.constant 0.000000e+00 : f32
    %85 = vector.broadcast %cst_57 : f32 to vector<128x1xf32>
    %86 = arith.cmpf ogt, %84, %85 : vector<128x1xf32>
    %87 = vector.broadcast %57 : f32 to vector<128x1xf32>
    %88 = arith.mulf %87, %84 : vector<128x1xf32>
    %89 = arith.select %86, %84, %88 : vector<128x1xi1>, vector<128x1xf32>
    %c1_58 = arith.constant 1 : index
    %c0_59 = arith.constant 0 : index
    %c0_60 = arith.constant 0 : index
    %90 = vector.load %arg6[%c1_58, %c0_59, %c0_60] : memref<3x128x20xf32, #tpu.memory_space<vmem>>, vector<1x128x20xf32>
    %91 = vector.shape_cast %90 : vector<1x128x20xf32> to vector<128x20xf32>
    %cst_61 = arith.constant dense<0.000000e+00> : vector<128x1xf32>
    %92 = tpu.matmul %91, %39, %cst_61 {dimension_numbers = #tpu.dot_dimension_numbers<[1], [0], [0], [1], [0, 0, 1, 1], [], []>} : vector<128x20xf32>, vector<20x1xf32>, vector<128x1xf32> -> vector<128x1xf32>
    %cst_62 = arith.constant 0.000000e+00 : f32
    %93 = vector.broadcast %cst_62 : f32 to vector<128x1xf32>
    %94 = arith.cmpf ogt, %92, %93 : vector<128x1xf32>
    %95 = vector.broadcast %57 : f32 to vector<128x1xf32>
    %96 = arith.mulf %95, %92 : vector<128x1xf32>
    %97 = arith.select %94, %92, %96 : vector<128x1xi1>, vector<128x1xf32>
    %c1_63 = arith.constant 1 : index
    %c0_64 = arith.constant 0 : index
    %c0_65 = arith.constant 0 : index
    %98 = vector.load %arg6[%c1_63, %c0_64, %c0_65] : memref<3x128x20xf32, #tpu.memory_space<vmem>>, vector<1x128x20xf32>
    %99 = vector.shape_cast %98 : vector<1x128x20xf32> to vector<128x20xf32>
    %cst_66 = arith.constant dense<0.000000e+00> : vector<128x1xf32>
    %100 = tpu.matmul %99, %55, %cst_66 {dimension_numbers = #tpu.dot_dimension_numbers<[1], [0], [0], [1], [0, 0, 1, 1], [], []>} : vector<128x20xf32>, vector<20x1xf32>, vector<128x1xf32> -> vector<128x1xf32>
    %cst_67 = arith.constant 0.000000e+00 : f32
    %101 = vector.broadcast %cst_67 : f32 to vector<128x1xf32>
    %102 = arith.cmpf ogt, %100, %101 : vector<128x1xf32>
    %103 = vector.broadcast %57 : f32 to vector<128x1xf32>
    %104 = arith.mulf %103, %100 : vector<128x1xf32>
    %105 = arith.select %102, %100, %104 : vector<128x1xi1>, vector<128x1xf32>
    %c2_68 = arith.constant 2 : index
    %c0_69 = arith.constant 0 : index
    %c0_70 = arith.constant 0 : index
    %106 = vector.load %arg6[%c2_68, %c0_69, %c0_70] : memref<3x128x20xf32, #tpu.memory_space<vmem>>, vector<1x128x20xf32>
    %107 = vector.shape_cast %106 : vector<1x128x20xf32> to vector<128x20xf32>
    %cst_71 = arith.constant dense<0.000000e+00> : vector<128x1xf32>
    %108 = tpu.matmul %107, %23, %cst_71 {dimension_numbers = #tpu.dot_dimension_numbers<[1], [0], [0], [1], [0, 0, 1, 1], [], []>} : vector<128x20xf32>, vector<20x1xf32>, vector<128x1xf32> -> vector<128x1xf32>
    %cst_72 = arith.constant 0.000000e+00 : f32
    %109 = vector.broadcast %cst_72 : f32 to vector<128x1xf32>
    %110 = arith.cmpf ogt, %108, %109 : vector<128x1xf32>
    %111 = vector.broadcast %57 : f32 to vector<128x1xf32>
    %112 = arith.mulf %111, %108 : vector<128x1xf32>
    %113 = arith.select %110, %108, %112 : vector<128x1xi1>, vector<128x1xf32>
    %c2_73 = arith.constant 2 : index
    %c0_74 = arith.constant 0 : index
    %c0_75 = arith.constant 0 : index
    %114 = vector.load %arg6[%c2_73, %c0_74, %c0_75] : memref<3x128x20xf32, #tpu.memory_space<vmem>>, vector<1x128x20xf32>
    %115 = vector.shape_cast %114 : vector<1x128x20xf32> to vector<128x20xf32>
    %cst_76 = arith.constant dense<0.000000e+00> : vector<128x1xf32>
    %116 = tpu.matmul %115, %39, %cst_76 {dimension_numbers = #tpu.dot_dimension_numbers<[1], [0], [0], [1], [0, 0, 1, 1], [], []>} : vector<128x20xf32>, vector<20x1xf32>, vector<128x1xf32> -> vector<128x1xf32>
    %cst_77 = arith.constant 0.000000e+00 : f32
    %117 = vector.broadcast %cst_77 : f32 to vector<128x1xf32>
    %118 = arith.cmpf ogt, %116, %117 : vector<128x1xf32>
    %119 = vector.broadcast %57 : f32 to vector<128x1xf32>
    %120 = arith.mulf %119, %116 : vector<128x1xf32>
    %121 = arith.select %118, %116, %120 : vector<128x1xi1>, vector<128x1xf32>
    %c2_78 = arith.constant 2 : index
    %c0_79 = arith.constant 0 : index
    %c0_80 = arith.constant 0 : index
    %122 = vector.load %arg6[%c2_78, %c0_79, %c0_80] : memref<3x128x20xf32, #tpu.memory_space<vmem>>, vector<1x128x20xf32>
    %123 = vector.shape_cast %122 : vector<1x128x20xf32> to vector<128x20xf32>
    %cst_81 = arith.constant dense<0.000000e+00> : vector<128x1xf32>
    %124 = tpu.matmul %123, %55, %cst_81 {dimension_numbers = #tpu.dot_dimension_numbers<[1], [0], [0], [1], [0, 0, 1, 1], [], []>} : vector<128x20xf32>, vector<20x1xf32>, vector<128x1xf32> -> vector<128x1xf32>
    %cst_82 = arith.constant 0.000000e+00 : f32
    %125 = vector.broadcast %cst_82 : f32 to vector<128x1xf32>
    %126 = arith.cmpf ogt, %124, %125 : vector<128x1xf32>
    %127 = vector.broadcast %57 : f32 to vector<128x1xf32>
    %128 = arith.mulf %127, %124 : vector<128x1xf32>
    %129 = arith.select %126, %124, %128 : vector<128x1xi1>, vector<128x1xf32>
    %c0_83 = arith.constant 0 : index
    %c0_84 = arith.constant 0 : index
    %130 = vector.load %arg8[%c0_83, %c0_84] : memref<9x12xf32, #tpu.memory_space<vmem>>, vector<9x12xf32>
    %c0_85 = arith.constant 0 : index
    %c0_86 = arith.constant 0 : index
    %131 = vector.load %arg9[%c0_85, %c0_86] : memref<1x12xf32, #tpu.memory_space<vmem>>, vector<1x12xf32>
    %132 = vector.extract_strided_slice %130 {offsets = [0, 0], sizes = [1, 12], strides = [1, 1]} : vector<9x12xf32> to vector<1x12xf32>
    %133 = vector.broadcast %65 : vector<128x1xf32> to vector<128x12xf32>
    %134 = vector.broadcast %132 : vector<1x12xf32> to vector<128x12xf32>
    %135 = arith.mulf %133, %134 : vector<128x12xf32>
    %136 = vector.broadcast %131 : vector<1x12xf32> to vector<128x12xf32>
    %137 = arith.addf %136, %135 : vector<128x12xf32>
    %138 = vector.extract_strided_slice %130 {offsets = [1, 0], sizes = [1, 12], strides = [1, 1]} : vector<9x12xf32> to vector<1x12xf32>
    %139 = vector.broadcast %73 : vector<128x1xf32> to vector<128x12xf32>
    %140 = vector.broadcast %138 : vector<1x12xf32> to vector<128x12xf32>
    %141 = arith.mulf %139, %140 : vector<128x12xf32>
    %142 = arith.addf %137, %141 : vector<128x12xf32>
    %143 = vector.extract_strided_slice %130 {offsets = [2, 0], sizes = [1, 12], strides = [1, 1]} : vector<9x12xf32> to vector<1x12xf32>
    %144 = vector.broadcast %81 : vector<128x1xf32> to vector<128x12xf32>
    %145 = vector.broadcast %143 : vector<1x12xf32> to vector<128x12xf32>
    %146 = arith.mulf %144, %145 : vector<128x12xf32>
    %147 = arith.addf %142, %146 : vector<128x12xf32>
    %148 = vector.extract_strided_slice %130 {offsets = [3, 0], sizes = [1, 12], strides = [1, 1]} : vector<9x12xf32> to vector<1x12xf32>
    %149 = vector.broadcast %89 : vector<128x1xf32> to vector<128x12xf32>
    %150 = vector.broadcast %148 : vector<1x12xf32> to vector<128x12xf32>
    %151 = arith.mulf %149, %150 : vector<128x12xf32>
    %152 = arith.addf %147, %151 : vector<128x12xf32>
    %153 = vector.extract_strided_slice %130 {offsets = [4, 0], sizes = [1, 12], strides = [1, 1]} : vector<9x12xf32> to vector<1x12xf32>
    %154 = vector.broadcast %97 : vector<128x1xf32> to vector<128x12xf32>
    %155 = vector.broadcast %153 : vector<1x12xf32> to vector<128x12xf32>
    %156 = arith.mulf %154, %155 : vector<128x12xf32>
    %157 = arith.addf %152, %156 : vector<128x12xf32>
    %158 = vector.extract_strided_slice %130 {offsets = [5, 0], sizes = [1, 12], strides = [1, 1]} : vector<9x12xf32> to vector<1x12xf32>
    %159 = vector.broadcast %105 : vector<128x1xf32> to vector<128x12xf32>
    %160 = vector.broadcast %158 : vector<1x12xf32> to vector<128x12xf32>
    %161 = arith.mulf %159, %160 : vector<128x12xf32>
    %162 = arith.addf %157, %161 : vector<128x12xf32>
    %163 = vector.extract_strided_slice %130 {offsets = [6, 0], sizes = [1, 12], strides = [1, 1]} : vector<9x12xf32> to vector<1x12xf32>
    %164 = vector.broadcast %113 : vector<128x1xf32> to vector<128x12xf32>
    %165 = vector.broadcast %163 : vector<1x12xf32> to vector<128x12xf32>
    %166 = arith.mulf %164, %165 : vector<128x12xf32>
    %167 = arith.addf %162, %166 : vector<128x12xf32>
    %168 = vector.extract_strided_slice %130 {offsets = [7, 0], sizes = [1, 12], strides = [1, 1]} : vector<9x12xf32> to vector<1x12xf32>
    %169 = vector.broadcast %121 : vector<128x1xf32> to vector<128x12xf32>
    %170 = vector.broadcast %168 : vector<1x12xf32> to vector<128x12xf32>
    %171 = arith.mulf %169, %170 : vector<128x12xf32>
    %172 = arith.addf %167, %171 : vector<128x12xf32>
    %173 = vector.extract_strided_slice %130 {offsets = [8, 0], sizes = [1, 12], strides = [1, 1]} : vector<9x12xf32> to vector<1x12xf32>
    %174 = vector.broadcast %129 : vector<128x1xf32> to vector<128x12xf32>
    %175 = vector.broadcast %173 : vector<1x12xf32> to vector<128x12xf32>
    %176 = arith.mulf %174, %175 : vector<128x12xf32>
    %177 = arith.addf %172, %176 : vector<128x12xf32>
    %c0_87 = arith.constant 0 : index
    %c0_88 = arith.constant 0 : index
    %178 = vector.load %arg11[%c0_87, %c0_88] : memref<128x1xf32, #tpu.memory_space<vmem>>, vector<128x1xf32>
    %179 = vector.extract_strided_slice %177 {offsets = [0, 0], sizes = [128, 2], strides = [1, 1]} : vector<128x12xf32> to vector<128x2xf32>
    %180 = vector.extract_strided_slice %177 {offsets = [0, 4], sizes = [128, 2], strides = [1, 1]} : vector<128x12xf32> to vector<128x2xf32>
    %181 = vector.extract_strided_slice %177 {offsets = [0, 8], sizes = [128, 2], strides = [1, 1]} : vector<128x12xf32> to vector<128x2xf32>
    %cst_89 = arith.constant dense<0.000000e+00> : vector<128x128xf32>
    %182 = tpu.matmul %179, %180, %cst_89 {dimension_numbers = #tpu.dot_dimension_numbers<[1], [1], [0], [0], [0, 0, 1, 0], [], []>} : vector<128x2xf32>, vector<128x2xf32>, vector<128x128xf32> -> vector<128x128xf32>
    %cst_90 = arith.constant 0.707106769 : f32
    %183 = vector.broadcast %cst_90 : f32 to vector<128x128xf32>
    %184 = arith.mulf %182, %183 : vector<128x128xf32>
    %cst_91 = arith.constant dense<0xFF800000> : vector<128xf32>
    %185 = vector.multi_reduction <maximumf>, %184, %cst_91 [1] : vector<128x128xf32> to vector<128xf32>
    %186 = vector.shape_cast %185 : vector<128xf32> to vector<128x1xf32>
    %187 = vector.broadcast %186 : vector<128x1xf32> to vector<128x128xf32>
    %188 = arith.subf %184, %187 : vector<128x128xf32>
    %189 = math.exp %188 : vector<128x128xf32>
    %cst_92 = arith.constant dense<0.000000e+00> : vector<128xf32>
    %190 = vector.multi_reduction <add>, %189, %cst_92 [1] : vector<128x128xf32> to vector<128xf32>
    %191 = vector.shape_cast %190 : vector<128xf32> to vector<128x1xf32>
    %192 = tpu.reciprocal %191 {approx = true} : vector<128x1xf32> -> vector<128x1xf32>
    %193 = vector.broadcast %192 : vector<128x1xf32> to vector<128x128xf32>
    %194 = arith.mulf %189, %193 : vector<128x128xf32>
    %cst_93 = arith.constant dense<0.000000e+00> : vector<128x2xf32>
    %195 = tpu.matmul %194, %181, %cst_93 {dimension_numbers = #tpu.dot_dimension_numbers<[1], [0], [0], [1], [0, 0, 1, 1], [], []>} : vector<128x128xf32>, vector<128x2xf32>, vector<128x2xf32> -> vector<128x2xf32>
    %c0_94 = arith.constant 0 : index
    %c0_95 = arith.constant 0 : index
    %c0_96 = arith.constant 0 : index
    %196 = vector.load %arg10[%c0_94, %c0_95, %c0_96] : memref<4x128x128xf32, #tpu.memory_space<vmem>>, vector<1x128x128xf32>
    %197 = vector.shape_cast %196 : vector<1x128x128xf32> to vector<128x128xf32>
    %198 = vector.extract_strided_slice %195 {offsets = [0, 0], sizes = [128, 1], strides = [1, 1]} : vector<128x2xf32> to vector<128x1xf32>
    %cst_97 = arith.constant dense<0.000000e+00> : vector<128x1xf32>
    %199 = tpu.matmul %197, %198, %cst_97 {dimension_numbers = #tpu.dot_dimension_numbers<[1], [0], [0], [1], [0, 0, 1, 1], [], []>} : vector<128x128xf32>, vector<128x1xf32>, vector<128x1xf32> -> vector<128x1xf32>
    %200 = arith.addf %178, %199 : vector<128x1xf32>
    %c1_98 = arith.constant 1 : index
    %c0_99 = arith.constant 0 : index
    %c0_100 = arith.constant 0 : index
    %201 = vector.load %arg10[%c1_98, %c0_99, %c0_100] : memref<4x128x128xf32, #tpu.memory_space<vmem>>, vector<1x128x128xf32>
    %202 = vector.shape_cast %201 : vector<1x128x128xf32> to vector<128x128xf32>
    %203 = vector.extract_strided_slice %195 {offsets = [0, 1], sizes = [128, 1], strides = [1, 1]} : vector<128x2xf32> to vector<128x1xf32>
    %cst_101 = arith.constant dense<0.000000e+00> : vector<128x1xf32>
    %204 = tpu.matmul %202, %203, %cst_101 {dimension_numbers = #tpu.dot_dimension_numbers<[1], [0], [0], [1], [0, 0, 1, 1], [], []>} : vector<128x128xf32>, vector<128x1xf32>, vector<128x1xf32> -> vector<128x1xf32>
    %205 = arith.addf %200, %204 : vector<128x1xf32>
    %206 = vector.extract_strided_slice %177 {offsets = [0, 2], sizes = [128, 2], strides = [1, 1]} : vector<128x12xf32> to vector<128x2xf32>
    %207 = vector.extract_strided_slice %177 {offsets = [0, 6], sizes = [128, 2], strides = [1, 1]} : vector<128x12xf32> to vector<128x2xf32>
    %208 = vector.extract_strided_slice %177 {offsets = [0, 10], sizes = [128, 2], strides = [1, 1]} : vector<128x12xf32> to vector<128x2xf32>
    %cst_102 = arith.constant dense<0.000000e+00> : vector<128x128xf32>
    %209 = tpu.matmul %206, %207, %cst_102 {dimension_numbers = #tpu.dot_dimension_numbers<[1], [1], [0], [0], [0, 0, 1, 0], [], []>} : vector<128x2xf32>, vector<128x2xf32>, vector<128x128xf32> -> vector<128x128xf32>
    %cst_103 = arith.constant 0.707106769 : f32
    %210 = vector.broadcast %cst_103 : f32 to vector<128x128xf32>
    %211 = arith.mulf %209, %210 : vector<128x128xf32>
    %cst_104 = arith.constant dense<0xFF800000> : vector<128xf32>
    %212 = vector.multi_reduction <maximumf>, %211, %cst_104 [1] : vector<128x128xf32> to vector<128xf32>
    %213 = vector.shape_cast %212 : vector<128xf32> to vector<128x1xf32>
    %214 = vector.broadcast %213 : vector<128x1xf32> to vector<128x128xf32>
    %215 = arith.subf %211, %214 : vector<128x128xf32>
    %216 = math.exp %215 : vector<128x128xf32>
    %cst_105 = arith.constant dense<0.000000e+00> : vector<128xf32>
    %217 = vector.multi_reduction <add>, %216, %cst_105 [1] : vector<128x128xf32> to vector<128xf32>
    %218 = vector.shape_cast %217 : vector<128xf32> to vector<128x1xf32>
    %219 = tpu.reciprocal %218 {approx = true} : vector<128x1xf32> -> vector<128x1xf32>
    %220 = vector.broadcast %219 : vector<128x1xf32> to vector<128x128xf32>
    %221 = arith.mulf %216, %220 : vector<128x128xf32>
    %cst_106 = arith.constant dense<0.000000e+00> : vector<128x2xf32>
    %222 = tpu.matmul %221, %208, %cst_106 {dimension_numbers = #tpu.dot_dimension_numbers<[1], [0], [0], [1], [0, 0, 1, 1], [], []>} : vector<128x128xf32>, vector<128x2xf32>, vector<128x2xf32> -> vector<128x2xf32>
    %c2_107 = arith.constant 2 : index
    %c0_108 = arith.constant 0 : index
    %c0_109 = arith.constant 0 : index
    %223 = vector.load %arg10[%c2_107, %c0_108, %c0_109] : memref<4x128x128xf32, #tpu.memory_space<vmem>>, vector<1x128x128xf32>
    %224 = vector.shape_cast %223 : vector<1x128x128xf32> to vector<128x128xf32>
    %225 = vector.extract_strided_slice %222 {offsets = [0, 0], sizes = [128, 1], strides = [1, 1]} : vector<128x2xf32> to vector<128x1xf32>
    %cst_110 = arith.constant dense<0.000000e+00> : vector<128x1xf32>
    %226 = tpu.matmul %224, %225, %cst_110 {dimension_numbers = #tpu.dot_dimension_numbers<[1], [0], [0], [1], [0, 0, 1, 1], [], []>} : vector<128x128xf32>, vector<128x1xf32>, vector<128x1xf32> -> vector<128x1xf32>
    %227 = arith.addf %205, %226 : vector<128x1xf32>
    %c3_111 = arith.constant 3 : index
    %c0_112 = arith.constant 0 : index
    %c0_113 = arith.constant 0 : index
    %228 = vector.load %arg10[%c3_111, %c0_112, %c0_113] : memref<4x128x128xf32, #tpu.memory_space<vmem>>, vector<1x128x128xf32>
    %229 = vector.shape_cast %228 : vector<1x128x128xf32> to vector<128x128xf32>
    %230 = vector.extract_strided_slice %222 {offsets = [0, 1], sizes = [128, 1], strides = [1, 1]} : vector<128x2xf32> to vector<128x1xf32>
    %cst_114 = arith.constant dense<0.000000e+00> : vector<128x1xf32>
    %231 = tpu.matmul %229, %230, %cst_114 {dimension_numbers = #tpu.dot_dimension_numbers<[1], [0], [0], [1], [0, 0, 1, 1], [], []>} : vector<128x128xf32>, vector<128x1xf32>, vector<128x1xf32> -> vector<128x1xf32>
    %232 = arith.addf %227, %231 : vector<128x1xf32>
    %c0_115 = arith.constant 0 : index
    %c0_116 = arith.constant 0 : index
    %233 = vector.load %arg12[%c0_115, %c0_116] : memref<128x128xf32, #tpu.memory_space<vmem>>, vector<128x128xf32>
    %cst_117 = arith.constant dense<0.000000e+00> : vector<128x1xf32>
    %234 = tpu.matmul %233, %232, %cst_117 {dimension_numbers = #tpu.dot_dimension_numbers<[1], [0], [0], [1], [0, 0, 1, 1], [], []>} : vector<128x128xf32>, vector<128x1xf32>, vector<128x1xf32> -> vector<128x1xf32>
    %c0_118 = arith.constant 0 : index
    %c0_119 = arith.constant 0 : index
    %235 = vector.load %arg13[%c0_118, %c0_119] : memref<128x1xf32, #tpu.memory_space<vmem>>, vector<128x1xf32>
    %236 = arith.addf %234, %235 : vector<128x1xf32>
    %cst_120 = arith.constant 0.000000e+00 : f32
    %237 = vector.broadcast %cst_120 : f32 to vector<128x1xf32>
    %238 = arith.cmpf ogt, %236, %237 : vector<128x1xf32>
    %cst_121 = arith.constant 0.000000e+00 : f32
    %239 = vector.broadcast %cst_121 : f32 to vector<128x1xf32>
    %240 = arith.minimumf %236, %239 : vector<128x1xf32>
    %241 = math.exp %240 : vector<128x1xf32>
    %cst_122 = arith.constant 1.000000e+00 : f32
    %242 = vector.broadcast %cst_122 : f32 to vector<128x1xf32>
    %243 = arith.subf %241, %242 : vector<128x1xf32>
    %244 = arith.select %238, %236, %243 : vector<128x1xi1>, vector<128x1xf32>
    %245 = arith.addf %232, %244 : vector<128x1xf32>
    %c0_123 = arith.constant 0 : index
    %c0_124 = arith.constant 0 : index
    %246 = vector.load %arg14[%c0_123, %c0_124] : memref<48x128xf32, #tpu.memory_space<vmem>>, vector<48x128xf32>
    %cst_125 = arith.constant dense<0.000000e+00> : vector<48x1xf32>
    %247 = tpu.matmul %246, %245, %cst_125 {dimension_numbers = #tpu.dot_dimension_numbers<[1], [0], [0], [1], [0, 0, 1, 1], [], []>} : vector<48x128xf32>, vector<128x1xf32>, vector<48x1xf32> -> vector<48x1xf32>
    %c0_126 = arith.constant 0 : index
    %c0_127 = arith.constant 0 : index
    %248 = vector.load %arg15[%c0_126, %c0_127] : memref<48x1xf32, #tpu.memory_space<vmem>>, vector<48x1xf32>
    %249 = arith.addf %247, %248 : vector<48x1xf32>
    %c0_128 = arith.constant 0 : index
    %c0_129 = arith.constant 0 : index
    %c0_130 = arith.constant 0 : index
    %250 = vector.load %arg16[%c0_128, %c0_129, %c0_130] : memref<1x48x1xf32, #tpu.memory_space<vmem>>, vector<1x48x1xf32>
    %251 = vector.shape_cast %250 : vector<1x48x1xf32> to vector<48x1xf32>
    %252 = vector.shape_cast %249 : vector<48x1xf32> to vector<1x48x1xf32>
    tpu.vector_store %arg16[%c0_128, %c0_129, %c0_130], %252 {strides = array<i32>} : memref<1x48x1xf32, #tpu.memory_space<vmem>>, vector<1x48x1xf32>,
    return
  }
  func.func @transform_0(%arg0: i32) -> (i32, i32, i32) {
    %c0_i32 = arith.constant 0 : i32
    %c0_i32_0 = arith.constant 0 : i32
    %c0_i32_1 = arith.constant 0 : i32
    return %arg0, %c0_i32, %c0_i32_0 : i32, i32, i32
  }
  func.func @transform_1(%arg0: i32) -> (i32, i32) {
    %c0_i32 = arith.constant 0 : i32
    %c0_i32_0 = arith.constant 0 : i32
    %c0_i32_1 = arith.constant 0 : i32
    return %c0_i32, %c0_i32_0 : i32, i32
  }
  func.func @transform_2(%arg0: i32) -> (i32, i32) {
    %c0_i32 = arith.constant 0 : i32
    %c0_i32_0 = arith.constant 0 : i32
    %c0_i32_1 = arith.constant 0 : i32
    return %c0_i32, %c0_i32_0 : i32, i32
  }
  func.func @transform_3(%arg0: i32) -> (i32, i32, i32) {
    %c0_i32 = arith.constant 0 : i32
    %c0_i32_0 = arith.constant 0 : i32
    %c0_i32_1 = arith.constant 0 : i32
    %c0_i32_2 = arith.constant 0 : i32
    return %c0_i32, %c0_i32_0, %c0_i32_1 : i32, i32, i32
  }
  func.func @transform_4(%arg0: i32) -> (i32, i32) {
    %c0_i32 = arith.constant 0 : i32
    %c0_i32_0 = arith.constant 0 : i32
    %c0_i32_1 = arith.constant 0 : i32
    return %c0_i32, %c0_i32_0 : i32, i32
  }
  func.func @transform_5(%arg0: i32) -> (i32, i32, i32) {
    %c0_i32 = arith.constant 0 : i32
    %c0_i32_0 = arith.constant 0 : i32
    %c0_i32_1 = arith.constant 0 : i32
    %c0_i32_2 = arith.constant 0 : i32
    return %c0_i32, %c0_i32_0, %c0_i32_1 : i32, i32, i32
  }
  func.func @transform_6(%arg0: i32) -> (i32, i32) {
    %c0_i32 = arith.constant 0 : i32
    %c0_i32_0 = arith.constant 0 : i32
    %c0_i32_1 = arith.constant 0 : i32
    return %c0_i32, %c0_i32_0 : i32, i32
  }
  func.func @transform_7(%arg0: i32) -> (i32, i32) {
    %c0_i32 = arith.constant 0 : i32
    %c0_i32_0 = arith.constant 0 : i32
    %c0_i32_1 = arith.constant 0 : i32
    return %c0_i32, %c0_i32_0 : i32, i32
  }
  func.func @transform_8(%arg0: i32) -> (i32, i32) {
    %c0_i32 = arith.constant 0 : i32
    %c0_i32_0 = arith.constant 0 : i32
    %c0_i32_1 = arith.constant 0 : i32
    return %c0_i32, %c0_i32_0 : i32, i32
  }
  func.func @transform_9(%arg0: i32) -> (i32, i32, i32) {
    %c0_i32 = arith.constant 0 : i32
    %c0_i32_0 = arith.constant 0 : i32
    %c0_i32_1 = arith.constant 0 : i32
    %c0_i32_2 = arith.constant 0 : i32
    return %c0_i32, %c0_i32_0, %c0_i32_1 : i32, i32, i32
  }
  func.func @transform_10(%arg0: i32) -> (i32, i32) {
    %c0_i32 = arith.constant 0 : i32
    %c0_i32_0 = arith.constant 0 : i32
    %c0_i32_1 = arith.constant 0 : i32
    return %c0_i32, %c0_i32_0 : i32, i32
  }
  func.func @transform_11(%arg0: i32) -> (i32, i32) {
    %c0_i32 = arith.constant 0 : i32
    %c0_i32_0 = arith.constant 0 : i32
    %c0_i32_1 = arith.constant 0 : i32
    return %c0_i32, %c0_i32_0 : i32, i32
  }
  func.func @transform_12(%arg0: i32) -> (i32, i32) {
    %c0_i32 = arith.constant 0 : i32
    %c0_i32_0 = arith.constant 0 : i32
    %c0_i32_1 = arith.constant 0 : i32
    return %c0_i32, %c0_i32_0 : i32, i32
  }
  func.func @transform_13(%arg0: i32) -> (i32, i32) {
    %c0_i32 = arith.constant 0 : i32
    %c0_i32_0 = arith.constant 0 : i32
    %c0_i32_1 = arith.constant 0 : i32
    return %c0_i32, %c0_i32_0 : i32, i32
  }
  func.func @transform_14(%arg0: i32) -> (i32, i32) {
    %c0_i32 = arith.constant 0 : i32
    %c0_i32_0 = arith.constant 0 : i32
    %c0_i32_1 = arith.constant 0 : i32
    return %c0_i32, %c0_i32_0 : i32, i32
  }
  func.func @transform_15(%arg0: i32) -> (i32, i32, i32) {
    %c0_i32 = arith.constant 0 : i32
    %c0_i32_0 = arith.constant 0 : i32
    %c0_i32_1 = arith.constant 0 : i32
    return %arg0, %c0_i32, %c0_i32_0 : i32, i32, i32
  }
}

</mosaic_0001>

<llo_original>
// kernel: gmw_forward.1
$region0: #{gmw_forward.1}
  #allocation0 [shape = 'u32[]', space=smem, size = 0x4, offset = 0x4, fixed_abs, tag = 'smem constant byte address 0x4 - core index']
  #allocation1 [shape = 'u32[144,128]{1,0:T(1,128)}', space=vmem, size = 0x12000, scoped, tag = 'internal scratch']
  #allocation2 [shape = 'f32[1,1]{1,0:T(1,128)S(1)}', space=vmem, size = 0x200, scoped, tag = 'scoped memory for gmw_forward.1']
  %s0 = inlined_call_operand.vmem [shape: f32[2,349,1227], index: 0, kind: input, shape index: {}]
  %s1 = inlined_call_operand.vmem [shape: f32[3,1227], index: 1, kind: input, shape index: {}]
  %s2 = inlined_call_operand.vmem [shape: f32[1,3], index: 2, kind: input, shape index: {}]
  %s3 = inlined_call_operand.vmem [shape: f32[9,20,349], index: 3, kind: input, shape index: {}]
  %s4 = inlined_call_operand.vmem [shape: f32[20,3], index: 4, kind: input, shape index: {}]
  %s5 = inlined_call_operand.vmem [shape: f32[3,128,20], index: 5, kind: input, shape index: {}]
  %s6 = inlined_call_operand.<no memory space> [shape: f32[1,1], index: 6, kind: input, shape index: {}]
  %s7 = inlined_call_operand.vmem [shape: f32[9,12], index: 7, kind: input, shape index: {}]
  %s8 = inlined_call_operand.vmem [shape: f32[1,12], index: 8, kind: input, shape index: {}]
  %s9 = inlined_call_operand.vmem [shape: f32[4,128,128], index: 9, kind: input, shape index: {}]
  %s10 = inlined_call_operand.vmem [shape: f32[128,1], index: 10, kind: input, shape index: {}]
  %s11 = inlined_call_operand.vmem [shape: f32[128,128], index: 11, kind: input, shape index: {}]
  %s12 = inlined_call_operand.vmem [shape: f32[128,1], index: 12, kind: input, shape index: {}]
  %s13 = inlined_call_operand.vmem [shape: f32[48,128], index: 13, kind: input, shape index: {}]
  %s14 = inlined_call_operand.vmem [shape: f32[48,1], index: 14, kind: input, shape index: {}]
  %s15 = inlined_call_operand.vmem [shape: f32[2,48,1], index: 15, kind: output, shape index: {}]
  %s16 = sld [smem:[#allocation0]]
  $region93: #{gmw_forward.1} parent=0
    _
  %s18 = ssub.s32 1, %s16
  %s19 = scalar_select 0, %s18, %s16
  %v20 = vstv %s6
  %21 = vst [vmem:[#allocation2] sm:$0x1] %v20
  loop: start=0, step=1, limit=4
  $region2: #{gmw_forward.1} parent=0 // loop_pre_header
    _
  $region3: #{gmw_forward.1} parent=0 // loop_header
    %s23 = sphi 0, %s27
    %p24 = scmp.ge.s32.totalorder %s23, 4
    %s33 = sphi 0, %s35
    %s36 = sphi 0, %s33
    %s37 = sphi 0, %s36
    %s53 = sphi 0, %s37
    %s57 = sphi 0, %s57
    %s59 = sphi 0, %s57
    %s60 = sphi 0, %s59
    %s74 = sphi 0, %s60
    %s78 = sphi 0, %s78
    %s80 = sphi 0, %s78
    %s81 = sphi 0, %s80
    %s95 = sphi 0, %s81
    %s99 = sphi 0, %s99
    %s101 = sphi 0, %s99
    %s102 = sphi 0, %s101
    %s116 = sphi 0, %s102
    %s120 = sphi 0, %s120
    %s122 = sphi 0, %s120
    %s123 = sphi 0, %s122
    %s137 = sphi 0, %s123
    %s141 = sphi 0, %s141
    %s143 = sphi 0, %s141
    %s144 = sphi 0, %s143
    %s158 = sphi 0, %s144
    %s162 = sphi 0, %s162
    %s164 = sphi 0, %s162
    %s165 = sphi 0, %s164
    %s179 = sphi 0, %s165
    %s183 = sphi 0, %s183
    %s185 = sphi 0, %s183
    %s186 = sphi 0, %s185
    %s200 = sphi 0, %s186
    %s204 = sphi 0, %s204
    %s206 = sphi 0, %s204
    %s207 = sphi 0, %s206
    %s221 = sphi 0, %s207
    %s225 = sphi 0, %s225
    %s227 = sphi 0, %s225
    %s228 = sphi 0, %s227
    %s242 = sphi 0, %s228
    %s246 = sphi 0, %s246
    %s248 = sphi 0, %s246
    %s249 = sphi 0, %s248
    %s263 = sphi 0, %s249
    %s267 = sphi 0, %s267
    %s269 = sphi 0, %s267
    %s270 = sphi 0, %s269
    %s284 = sphi 0, %s270
    %s288 = sphi 0, %s288
    %s290 = sphi 0, %s288
    %s291 = sphi 0, %s290
    %s305 = sphi 0, %s291
    %s309 = sphi 0, %s309
    %s311 = sphi 0, %s309
    %s312 = sphi 0, %s311
    %s326 = sphi 0, %s312
    %s330 = sphi 0, %s330
    %s332 = sphi 0, %s330
    %s333 = sphi 0, %s332
    %s347 = sphi 0, %s333
    %s353 = sphi 0, %s355
    %s356 = sphi 0, %s353
    %s357 = sphi 0, %s356
    %s373 = sphi 0, %s357
  $region4: #{gmw_forward.1} parent=0 // loop_header_branch
    %26 = sbr.rel (%p24) target = $region8
  $region5: #{gmw_forward.1} parent=0 // loop_body
    %s28 = ssub.s32 %s23, 1
    %s29 = ssub.s32 %s23, 2
    %s30 = sadd.s32 %s23, 1
    %s31 = ssub.s32 %s23, %s30
    %p32 = scmp.eq.s32.totalorder %s31, 0
    %s34 = sadd.s32 %s33, 1
    %s35 = scalar_select %p32, %s33, %s34
    %p38 = pneg %p32
    %p39 = scmp.eq.s32.totalorder %s23, 1
    %p40 = por %p38, %p39
    %p41 = scmp.ne.s32.totalorder %s33, %s36
    %p42 = scmp.eq.s32.totalorder %s23, 0
    %p43 = por %p41, %p42
    %p44 = scmp.ne.s32.totalorder %s33, %s36
    %p45 = scmp.eq.s32.totalorder %s28, 1
    %p46 = por %p44, %p45
    %p47 = scmp.ne.s32.totalorder %s36, %s37
    %p48 = scmp.eq.s32.totalorder %s28, 0
    %p49 = por %p47, %p48
    %p50 = scmp.ne.s32.totalorder %s36, %s37
    %p51 = scmp.eq.s32.totalorder %s29, 1
    %p52 = por %p50, %p51
    %p54 = scmp.ne.s32.totalorder %s37, %s53
    %p55 = scmp.eq.s32.totalorder %s29, 0
    %p56 = por %p54, %p55
    %s58 = sadd.s32 %s57, 1
    %p61 = scmp.eq.s32.totalorder %s23, 1
    %p62 = scmp.ne.s32.totalorder %s57, %s59
    %p63 = scmp.eq.s32.totalorder %s23, 0
    %p64 = por %p62, %p63
    %p65 = scmp.ne.s32.totalorder %s57, %s59
    %p66 = scmp.eq.s32.totalorder %s28, 1
    %p67 = por %p65, %p66
    %p68 = scmp.ne.s32.totalorder %s59, %s60
    %p69 = scmp.eq.s32.totalorder %s28, 0
    %p70 = por %p68, %p69
    %p71 = scmp.ne.s32.totalorder %s59, %s60
    %p72 = scmp.eq.s32.totalorder %s29, 1
    %p73 = por %p71, %p72
    %p75 = scmp.ne.s32.totalorder %s60, %s74
    %p76 = scmp.eq.s32.totalorder %s29, 0
    %p77 = por %p75, %p76
    %s79 = sadd.s32 %s78, 1
    %p82 = scmp.eq.s32.totalorder %s23, 1
    %p83 = scmp.ne.s32.totalorder %s78, %s80
    %p84 = scmp.eq.s32.totalorder %s23, 0
    %p85 = por %p83, %p84
    %p86 = scmp.ne.s32.totalorder %s78, %s80
    %p87 = scmp.eq.s32.totalorder %s28, 1
    %p88 = por %p86, %p87
    %p89 = scmp.ne.s32.totalorder %s80, %s81
    %p90 = scmp.eq.s32.totalorder %s28, 0
    %p91 = por %p89, %p90
    %p92 = scmp.ne.s32.totalorder %s80, %s81
    %p93 = scmp.eq.s32.totalorder %s29, 1
    %p94 = por %p92, %p93
    %p96 = scmp.ne.s32.totalorder %s81, %s95
    %p97 = scmp.eq.s32.totalorder %s29, 0
    %p98 = por %p96, %p97
    %s100 = sadd.s32 %s99, 1
    %p103 = scmp.eq.s32.totalorder %s23, 1
    %p104 = scmp.ne.s32.totalorder %s99, %s101
    %p105 = scmp.eq.s32.totalorder %s23, 0
    %p106 = por %p104, %p105
    %p107 = scmp.ne.s32.totalorder %s99, %s101
    %p108 = scmp.eq.s32.totalorder %s28, 1
    %p109 = por %p107, %p108
    %p110 = scmp.ne.s32.totalorder %s101, %s102
    %p111 = scmp.eq.s32.totalorder %s28, 0
    %p112 = por %p110, %p111
    %p113 = scmp.ne.s32.totalorder %s101, %s102
    %p114 = scmp.eq.s32.totalorder %s29, 1
    %p115 = por %p113, %p114
    %p117 = scmp.ne.s32.totalorder %s102, %s116
    %p118 = scmp.eq.s32.totalorder %s29, 0
    %p119 = por %p117, %p118
    %s121 = sadd.s32 %s120, 1
    %p124 = scmp.eq.s32.totalorder %s23, 1
    %p125 = scmp.ne.s32.totalorder %s120, %s122
    %p126 = scmp.eq.s32.totalorder %s23, 0
    %p127 = por %p125, %p126
    %p128 = scmp.ne.s32.totalorder %s120, %s122
    %p129 = scmp.eq.s32.totalorder %s28, 1
    %p130 = por %p128, %p129
    %p131 = scmp.ne.s32.totalorder %s122, %s123
    %p132 = scmp.eq.s32.totalorder %s28, 0
    %p133 = por %p131, %p132
    %p134 = scmp.ne.s32.totalorder %s122, %s123
    %p135 = scmp.eq.s32.totalorder %s29, 1
    %p136 = por %p134, %p135
    %p138 = scmp.ne.s32.totalorder %s123, %s137
    %p139 = scmp.eq.s32.totalorder %s29, 0
    %p140 = por %p138, %p139
    %s142 = sadd.s32 %s141, 1
    %p145 = scmp.eq.s32.totalorder %s23, 1
    %p146 = scmp.ne.s32.totalorder %s141, %s143
    %p147 = scmp.eq.s32.totalorder %s23, 0
    %p148 = por %p146, %p147
    %p149 = scmp.ne.s32.totalorder %s141, %s143
    %p150 = scmp.eq.s32.totalorder %s28, 1
    %p151 = por %p149, %p150
    %p152 = scmp.ne.s32.totalorder %s143, %s144
    %p153 = scmp.eq.s32.totalorder %s28, 0
    %p154 = por %p152, %p153
    %p155 = scmp.ne.s32.totalorder %s143, %s144
    %p156 = scmp.eq.s32.totalorder %s29, 1
    %p157 = por %p155, %p156
    %p159 = scmp.ne.s32.totalorder %s144, %s158
    %p160 = scmp.eq.s32.totalorder %s29, 0
    %p161 = por %p159, %p160
    %s163 = sadd.s32 %s162, 1
    %p166 = scmp.eq.s32.totalorder %s23, 1
    %p167 = scmp.ne.s32.totalorder %s162, %s164
    %p168 = scmp.eq.s32.totalorder %s23, 0
    %p169 = por %p167, %p168
    %p170 = scmp.ne.s32.totalorder %s162, %s164
    %p171 = scmp.eq.s32.totalorder %s28, 1
    %p172 = por %p170, %p171
    %p173 = scmp.ne.s32.totalorder %s164, %s165
    %p174 = scmp.eq.s32.totalorder %s28, 0
    %p175 = por %p173, %p174
    %p176 = scmp.ne.s32.totalorder %s164, %s165
    %p177 = scmp.eq.s32.totalorder %s29, 1
    %p178 = por %p176, %p177
    %p180 = scmp.ne.s32.totalorder %s165, %s179
    %p181 = scmp.eq.s32.totalorder %s29, 0
    %p182 = por %p180, %p181
    %s184 = sadd.s32 %s183, 1
    %p187 = scmp.eq.s32.totalorder %s23, 1
    %p188 = scmp.ne.s32.totalorder %s183, %s185
    %p189 = scmp.eq.s32.totalorder %s23, 0
    %p190 = por %p188, %p189
    %p191 = scmp.ne.s32.totalorder %s183, %s185
    %p192 = scmp.eq.s32.totalorder %s28, 1
    %p193 = por %p191, %p192
    %p194 = scmp.ne.s32.totalorder %s185, %s186
    %p195 = scmp.eq.s32.totalorder %s28, 0
    %p196 = por %p194, %p195
    %p197 = scmp.ne.s32.totalorder %s185, %s186
    %p198 = scmp.eq.s32.totalorder %s29, 1
    %p199 = por %p197, %p198
    %p201 = scmp.ne.s32.totalorder %s186, %s200
    %p202 = scmp.eq.s32.totalorder %s29, 0
    %p203 = por %p201, %p202
    %s205 = sadd.s32 %s204, 1
    %p208 = scmp.eq.s32.totalorder %s23, 1
    %p209 = scmp.ne.s32.totalorder %s204, %s206
    %p210 = scmp.eq.s32.totalorder %s23, 0
    %p211 = por %p209, %p210
    %p212 = scmp.ne.s32.totalorder %s204, %s206
    %p213 = scmp.eq.s32.totalorder %s28, 1
    %p214 = por %p212, %p213
    %p215 = scmp.ne.s32.totalorder %s206, %s207
    %p216 = scmp.eq.s32.totalorder %s28, 0
    %p217 = por %p215, %p216
    %p218 = scmp.ne.s32.totalorder %s206, %s207
    %p219 = scmp.eq.s32.totalorder %s29, 1
    %p220 = por %p218, %p219
    %p222 = scmp.ne.s32.totalorder %s207, %s221
    %p223 = scmp.eq.s32.totalorder %s29, 0
    %p224 = por %p222, %p223
    %s226 = sadd.s32 %s225, 1
    %p229 = scmp.eq.s32.totalorder %s23, 1
    %p230 = scmp.ne.s32.totalorder %s225, %s227
    %p231 = scmp.eq.s32.totalorder %s23, 0
    %p232 = por %p230, %p231
    %p233 = scmp.ne.s32.totalorder %s225, %s227
    %p234 = scmp.eq.s32.totalorder %s28, 1
    %p235 = por %p233, %p234
    %p236 = scmp.ne.s32.totalorder %s227, %s228
    %p237 = scmp.eq.s32.totalorder %s28, 0
    %p238 = por %p236, %p237
    %p239 = scmp.ne.s32.totalorder %s227, %s228
    %p240 = scmp.eq.s32.totalorder %s29, 1
    %p241 = por %p239, %p240
    %p243 = scmp.ne.s32.totalorder %s228, %s242
    %p244 = scmp.eq.s32.totalorder %s29, 0
    %p245 = por %p243, %p244
    %s247 = sadd.s32 %s246, 1
    %p250 = scmp.eq.s32.totalorder %s23, 1
    %p251 = scmp.ne.s32.totalorder %s246, %s248
    %p252 = scmp.eq.s32.totalorder %s23, 0
    %p253 = por %p251, %p252
    %p254 = scmp.ne.s32.totalorder %s246, %s248
    %p255 = scmp.eq.s32.totalorder %s28, 1
    %p256 = por %p254, %p255
    %p257 = scmp.ne.s32.totalorder %s248, %s249
    %p258 = scmp.eq.s32.totalorder %s28, 0
    %p259 = por %p257, %p258
    %p260 = scmp.ne.s32.totalorder %s248, %s249
    %p261 = scmp.eq.s32.totalorder %s29, 1
    %p262 = por %p260, %p261
    %p264 = scmp.ne.s32.totalorder %s249, %s263
    %p265 = scmp.eq.s32.totalorder %s29, 0
    %p266 = por %p264, %p265
    %s268 = sadd.s32 %s267, 1
    %p271 = scmp.eq.s32.totalorder %s23, 1
    %p272 = scmp.ne.s32.totalorder %s267, %s269
    %p273 = scmp.eq.s32.totalorder %s23, 0
    %p274 = por %p272, %p273
    %p275 = scmp.ne.s32.totalorder %s267, %s269
    %p276 = scmp.eq.s32.totalorder %s28, 1
    %p277 = por %p275, %p276
    %p278 = scmp.ne.s32.totalorder %s269, %s270
    %p279 = scmp.eq.s32.totalorder %s28, 0
    %p280 = por %p278, %p279
    %p281 = scmp.ne.s32.totalorder %s269, %s270
    %p282 = scmp.eq.s32.totalorder %s29, 1
    %p283 = por %p281, %p282
    %p285 = scmp.ne.s32.totalorder %s270, %s284
    %p286 = scmp.eq.s32.totalorder %s29, 0
    %p287 = por %p285, %p286
    %s289 = sadd.s32 %s288, 1
    %p292 = scmp.eq.s32.totalorder %s23, 1
    %p293 = scmp.ne.s32.totalorder %s288, %s290
    %p294 = scmp.eq.s32.totalorder %s23, 0
    %p295 = por %p293, %p294
    %p296 = scmp.ne.s32.totalorder %s288, %s290
    %p297 = scmp.eq.s32.totalorder %s28, 1
    %p298 = por %p296, %p297
    %p299 = scmp.ne.s32.totalorder %s290, %s291
    %p300 = scmp.eq.s32.totalorder %s28, 0
    %p301 = por %p299, %p300
    %p302 = scmp.ne.s32.totalorder %s290, %s291
    %p303 = scmp.eq.s32.totalorder %s29, 1
    %p304 = por %p302, %p303
    %p306 = scmp.ne.s32.totalorder %s291, %s305
    %p307 = scmp.eq.s32.totalorder %s29, 0
    %p308 = por %p306, %p307
    %s310 = sadd.s32 %s309, 1
    %p313 = scmp.eq.s32.totalorder %s23, 1
    %p314 = scmp.ne.s32.totalorder %s309, %s311
    %p315 = scmp.eq.s32.totalorder %s23, 0
    %p316 = por %p314, %p315
    %p317 = scmp.ne.s32.totalorder %s309, %s311
    %p318 = scmp.eq.s32.totalorder %s28, 1
    %p319 = por %p317, %p318
    %p320 = scmp.ne.s32.totalorder %s311, %s312
    %p321 = scmp.eq.s32.totalorder %s28, 0
    %p322 = por %p320, %p321
    %p323 = scmp.ne.s32.totalorder %s311, %s312
    %p324 = scmp.eq.s32.totalorder %s29, 1
    %p325 = por %p323, %p324
    %p327 = scmp.ne.s32.totalorder %s312, %s326
    %p328 = scmp.eq.s32.totalorder %s29, 0
    %p329 = por %p327, %p328
    %s331 = sadd.s32 %s330, 1
    %p334 = scmp.eq.s32.totalorder %s23, 1
    %p335 = scmp.ne.s32.totalorder %s330, %s332
    %p336 = scmp.eq.s32.totalorder %s23, 0
    %p337 = por %p335, %p336
    %p338 = scmp.ne.s32.totalorder %s330, %s332
    %p339 = scmp.eq.s32.totalorder %s28, 1
    %p340 = por %p338, %p339
    %p341 = scmp.ne.s32.totalorder %s332, %s333
    %p342 = scmp.eq.s32.totalorder %s28, 0
    %p343 = por %p341, %p342
    %p344 = scmp.ne.s32.totalorder %s332, %s333
    %p345 = scmp.eq.s32.totalorder %s29, 1
    %p346 = por %p344, %p345
    %p348 = scmp.ne.s32.totalorder %s333, %s347
    %p349 = scmp.eq.s32.totalorder %s29, 0
    %p350 = por %p348, %p349
    %s351 = ssub.s32 %s23, %s30
    %p352 = scmp.eq.s32.totalorder %s351, 0
    %s354 = sadd.s32 %s353, 1
    %s355 = scalar_select %p352, %s353, %s354
    %p358 = pneg %p352
    %p359 = scmp.eq.s32.totalorder %s23, 1
    %p360 = por %p358, %p359
    %p361 = scmp.ne.s32.totalorder %s353, %s356
    %p362 = scmp.eq.s32.totalorder %s23, 0
    %p363 = por %p361, %p362
    %p364 = scmp.ne.s32.totalorder %s353, %s356
    %p365 = scmp.eq.s32.totalorder %s28, 1
    %p366 = por %p364, %p365
    %p367 = scmp.ne.s32.totalorder %s356, %s357
    %p368 = scmp.eq.s32.totalorder %s28, 0
    %p369 = por %p367, %p368
    %p370 = scmp.ne.s32.totalorder %s356, %s357
    %p371 = scmp.eq.s32.totalorder %s29, 1
    %p372 = por %p370, %p371
    %p374 = scmp.ne.s32.totalorder %s357, %s373
    %p375 = scmp.eq.s32.totalorder %s29, 0
    %p376 = por %p374, %p375
    %p377 = scmp.le.s32.totalorder 1, %s23
    %p378 = scmp.lt.s32.totalorder %s23, 3
    %p379 = pnand %p377, %p378
    %p380 = pneg %p379
    // Predicated region
    $region9: #{gmw_forward.1} parent=5 // pred_check
      _
    $region10: #{gmw_forward.1} parent=5 // pred_check_branch
      %382 = sbr.rel (%p379) target = $region12
    $region11: #{gmw_forward.1} parent=5 // pred_region
      %s383 = ssub.s32 %s23, 1
      // Predicated region
      $region13: #{gmw_forward.1} parent=11 // pred_check
        %p384 = pneg %p70
      $region14: #{gmw_forward.1} parent=11 // pred_check_branch
        %386 = sbr.rel (%p384) target = $region16
      $region15: #{gmw_forward.1} parent=11 // pred_region
        _
      $region16: #{gmw_forward.1} parent=11 // pred_fallthru
        _
      // Predicated region
      $region17: #{gmw_forward.1} parent=11 // pred_check
        %p387 = pneg %p91
      $region18: #{gmw_forward.1} parent=11 // pred_check_branch
        %389 = sbr.rel (%p387) target = $region20
      $region19: #{gmw_forward.1} parent=11 // pred_region
        _
      $region20: #{gmw_forward.1} parent=11 // pred_fallthru
        _
      // Predicated region
      $region21: #{gmw_forward.1} parent=11 // pred_check
        %p390 = pneg %p112
      $region22: #{gmw_forward.1} parent=11 // pred_check_branch
        %392 = sbr.rel (%p390) target = $region24
      $region23: #{gmw_forward.1} parent=11 // pred_region
        _
      $region24: #{gmw_forward.1} parent=11 // pred_fallthru
        _
      // Predicated region
      $region25: #{gmw_forward.1} parent=11 // pred_check
        %p393 = pneg %p133
      $region26: #{gmw_forward.1} parent=11 // pred_check_branch
        %395 = sbr.rel (%p393) target = $region28
      $region27: #{gmw_forward.1} parent=11 // pred_region
        _
      $region28: #{gmw_forward.1} parent=11 // pred_fallthru
        _
      // Predicated region
      $region29: #{gmw_forward.1} parent=11 // pred_check
        %p396 = pneg %p154
      $region30: #{gmw_forward.1} parent=11 // pred_check_branch
        %398 = sbr.rel (%p396) target = $region32
      $region31: #{gmw_forward.1} parent=11 // pred_region
        _
      $region32: #{gmw_forward.1} parent=11 // pred_fallthru
        _
      // Predicated region
      $region33: #{gmw_forward.1} parent=11 // pred_check
        %p399 = pneg %p175
      $region34: #{gmw_forward.1} parent=11 // pred_check_branch
        %401 = sbr.rel (%p399) target = $region36
      $region35: #{gmw_forward.1} parent=11 // pred_region
        _
      $region36: #{gmw_forward.1} parent=11 // pred_fallthru
        _
      // Predicated region
      $region37: #{gmw_forward.1} parent=11 // pred_check
        %p402 = pneg %p196
      $region38: #{gmw_forward.1} parent=11 // pred_check_branch
        %404 = sbr.rel (%p402) target = $region40
      $region39: #{gmw_forward.1} parent=11 // pred_region
        _
      $region40: #{gmw_forward.1} parent=11 // pred_fallthru
        _
      // Predicated region
      $region41: #{gmw_forward.1} parent=11 // pred_check
        %p405 = pneg %p217
      $region42: #{gmw_forward.1} parent=11 // pred_check_branch
        %407 = sbr.rel (%p405) target = $region44
      $region43: #{gmw_forward.1} parent=11 // pred_region
        _
      $region44: #{gmw_forward.1} parent=11 // pred_fallthru
        _
      // Predicated region
      $region45: #{gmw_forward.1} parent=11 // pred_check
        %p408 = pneg %p238
      $region46: #{gmw_forward.1} parent=11 // pred_check_branch
        %410 = sbr.rel (%p408) target = $region48
      $region47: #{gmw_forward.1} parent=11 // pred_region
        _
      $region48: #{gmw_forward.1} parent=11 // pred_fallthru
        _
      // Predicated region
      $region49: #{gmw_forward.1} parent=11 // pred_check
        %p411 = pneg %p259
      $region50: #{gmw_forward.1} parent=11 // pred_check_branch
        %413 = sbr.rel (%p411) target = $region52
      $region51: #{gmw_forward.1} parent=11 // pred_region
        _
      $region52: #{gmw_forward.1} parent=11 // pred_fallthru
        _
      // Predicated region
      $region53: #{gmw_forward.1} parent=11 // pred_check
        %p414 = pneg %p280
      $region54: #{gmw_forward.1} parent=11 // pred_check_branch
        %416 = sbr.rel (%p414) target = $region56
      $region55: #{gmw_forward.1} parent=11 // pred_region
        _
      $region56: #{gmw_forward.1} parent=11 // pred_fallthru
        _
      // Predicated region
      $region57: #{gmw_forward.1} parent=11 // pred_check
        %p417 = pneg %p301
      $region58: #{gmw_forward.1} parent=11 // pred_check_branch
        %419 = sbr.rel (%p417) target = $region60
      $region59: #{gmw_forward.1} parent=11 // pred_region
        _
      $region60: #{gmw_forward.1} parent=11 // pred_fallthru
        _
      // Predicated region
      $region61: #{gmw_forward.1} parent=11 // pred_check
        %p420 = pneg %p322
      $region62: #{gmw_forward.1} parent=11 // pred_check_branch
        %422 = sbr.rel (%p420) target = $region64
      $region63: #{gmw_forward.1} parent=11 // pred_region
        _
      $region64: #{gmw_forward.1} parent=11 // pred_fallthru
        _
      // Predicated region
      $region65: #{gmw_forward.1} parent=11 // pred_check
        %p423 = pneg %p343
      $region66: #{gmw_forward.1} parent=11 // pred_check_branch
        %425 = sbr.rel (%p423) target = $region68
      $region67: #{gmw_forward.1} parent=11 // pred_region
        _
      $region68: #{gmw_forward.1} parent=11 // pred_fallthru
        _
    $region12: #{gmw_forward.1} parent=5 // pred_fallthru
      _
    %p426 = scmp.lt.s32.totalorder %s23, 2
    // Predicated region
    $region69: #{gmw_forward.1} parent=5 // pred_check
      %p427 = pneg %p426
    $region70: #{gmw_forward.1} parent=5 // pred_check_branch
      %429 = sbr.rel (%p427) target = $region72
    $region71: #{gmw_forward.1} parent=5 // pred_region
      // Predicated region
      $region73: #{gmw_forward.1} parent=71 // pred_check
        %p430 = pneg %p43
      $region74: #{gmw_forward.1} parent=71 // pred_check_branch
        %432 = sbr.rel (%p430) target = $region76
      $region75: #{gmw_forward.1} parent=71 // pred_region
        %p433 = scmp.lt.s32.totalorder %s23, 1
        %s434 = scalar_select %p433, %s23, 1
        %s435 = smul.addr %s434, 440
        %s436 = smul.addr %s435, 8
        %s437 = scalar_lea.vmem %s0, %s436
      $region76: #{gmw_forward.1} parent=71 // pred_fallthru
        _
    $region72: #{gmw_forward.1} parent=5 // pred_fallthru
      _
    %p438 = scmp.le.s32.totalorder 1, %s23
    %p439 = scmp.lt.s32.totalorder %s23, 3
    %p440 = pnand %p438, %p439
    %p441 = pneg %p440
    // Predicated region
    $region77: #{gmw_forward.1} parent=5 // pred_check
      _
    $region78: #{gmw_forward.1} parent=5 // pred_check_branch
      %443 = sbr.rel (%p440) target = $region80
    $region79: #{gmw_forward.1} parent=5 // pred_region
      %s444 = ssub.s32 %s23, 1
      %p445 = scmp.lt.s32.totalorder %s28, 1
      %s446 = scalar_select %p445, %s28, 1
      %s447 = smul.addr %s446, 440
      %s448 = smul.addr %s447, 8
      %s449 = scalar_lea.vmem %s0, %s448
      %p450 = pneg %p49
      %p451 = pneg %p46
      %p452 = pneg %p70
      %p453 = pneg %p67
      %p454 = pneg %p91
      %p455 = pneg %p88
      %p456 = pneg %p112
      %p457 = pneg %p109
      %p458 = pneg %p133
      %p459 = pneg %p130
      %p460 = pneg %p154
      %p461 = pneg %p151
      %p462 = pneg %p175
      %p463 = pneg %p172
      %p464 = pneg %p196
      %p465 = pneg %p193
      %p466 = pneg %p217
      %p467 = pneg %p214
      %p468 = pneg %p238
      %p469 = pneg %p235
      %p470 = pneg %p259
      %p471 = pneg %p256
      %p472 = pneg %p280
      %p473 = pneg %p277
      %p474 = pneg %p301
      %p475 = pneg %p298
      %p476 = pneg %p322
      %p477 = pneg %p319
      %p478 = pneg %p343
      %p479 = pneg %p340
      %p480 = pneg %p369
      %p481 = pneg %p366
      %p482 = scmp.lt.s32.totalorder %s28, 1
      %s483 = scalar_select %p482, %s28, 1
      %s484 = smul.addr %s483, 6
      %s485 = smul.addr %s484, 8
      %s486 = scalar_lea.vmem %s15, %s485
      %p487 = scmp.lt.s32.totalorder %s28, 1
      %s488 = scalar_select %p487, %s28, 1
      %s489 = smul.addr %s488, 440
      %s490 = smul.addr %s489, 8
      %s491 = scalar_lea.vmem %s0, %s490
      %p492 = scmp.lt.s32.totalorder %s28, 1
      %s493 = scalar_select %p492, %s28, 1
      %s494 = smul.addr %s493, 6
      %s495 = smul.addr %s494, 8
      %s496 = scalar_lea.vmem %s15, %s495
      %v497 = vld [vmem:[%s491] sm:$0xff]
      %v498 = vld [vmem:[%s491 + $0x8] sm:$0xff]
      %v499 = vld [vmem:[%s491 + $0x10] sm:$0xff]
      %v500 = vld [vmem:[%s491 + $0x18] sm:$0xff]
      %v501 = vld [vmem:[%s491 + $0x20] sm:$0xff]
      %v502 = vld [vmem:[%s491 + $0x28] sm:$0xff]
      %v503 = vld [vmem:[%s491 + $0x30] sm:$0xff]
      %v504 = vld [vmem:[%s491 + $0x38] sm:$0xff]
      %v505 = vld [vmem:[%s491 + $0x40] sm:$0xff]
      %v506 = vld [vmem:[%s491 + $0x48] sm:$0xff]
      %v507 = vld [vmem:[%s491 + $0x50] sm:$0xff]
      %v508 = vld [vmem:[%s491 + $0x58] sm:$0xff]
      %v509 = vld [vmem:[%s491 + $0x60] sm:$0xff]
      %v510 = vld [vmem:[%s491 + $0x68] sm:$0xff]
      %v511 = vld [vmem:[%s491 + $0x70] sm:$0xff]
      %v512 = vld [vmem:[%s491 + $0x78] sm:$0xff]
      %v513 = vld [vmem:[%s491 + $0x80] sm:$0xff]
      %v514 = vld [vmem:[%s491 + $0x88] sm:$0xff]
      %v515 = vld [vmem:[%s491 + $0x90] sm:$0xff]
      %v516 = vld [vmem:[%s491 + $0x98] sm:$0xff]
      %v517 = vld [vmem:[%s491 + $0xa0] sm:$0xff]
      %v518 = vld [vmem:[%s491 + $0xa8] sm:$0xff]
      %v519 = vld [vmem:[%s491 + $0xb0] sm:$0xff]
      %v520 = vld [vmem:[%s491 + $0xb8] sm:$0xff]
      %v521 = vld [vmem:[%s491 + $0xc0] sm:$0xff]
      %v522 = vld [vmem:[%s491 + $0xc8] sm:$0xff]
      %v523 = vld [vmem:[%s491 + $0xd0] sm:$0xff]
      %v524 = vld [vmem:[%s491 + $0xd8] sm:$0xff]
      %v525 = vld [vmem:[%s491 + $0xe0] sm:$0xff]
      %v526 = vld [vmem:[%s491 + $0xe8] sm:$0xff]
      %v527 = vld [vmem:[%s491 + $0xf0] sm:$0xff]
      %v528 = vld [vmem:[%s491 + $0xf8] sm:$0xff]
      %v529 = vld [vmem:[%s491 + $0x100] sm:$0xff]
      %v530 = vld [vmem:[%s491 + $0x108] sm:$0xff]
      %v531 = vld [vmem:[%s491 + $0x110] sm:$0xff]
      %v532 = vld [vmem:[%s491 + $0x118] sm:$0xff]
      %v533 = vld [vmem:[%s491 + $0x120] sm:$0xff]
      %v534 = vld [vmem:[%s491 + $0x128] sm:$0xff]
      %v535 = vld [vmem:[%s491 + $0x130] sm:$0xff]
      %v536 = vld [vmem:[%s491 + $0x138] sm:$0xff]
      %v537 = vld [vmem:[%s491 + $0x140] sm:$0xff]
      %v538 = vld [vmem:[%s491 + $0x148] sm:$0xff]
      %v539 = vld [vmem:[%s491 + $0x150] sm:$0xff]
      %v540 = vld [vmem:[%s491 + $0x158] sm:$0xff]
      %v541 = vld [vmem:[%s491 + $0x160] sm:$0xff]
      %v542 = vld [vmem:[%s491 + $0x168] sm:$0xff]
      %v543 = vld [vmem:[%s491 + $0x170] sm:$0xff]
      %v544 = vld [vmem:[%s491 + $0x178] sm:$0xff]
      %v545 = vld [vmem:[%s491 + $0x180] sm:$0xff]
      %v546 = vld [vmem:[%s491 + $0x188] sm:$0xff]
      %v547 = vld [vmem:[%s491 + $0x190] sm:$0xff]
      %v548 = vld [vmem:[%s491 + $0x198] sm:$0xff]
      %v549 = vld [vmem:[%s491 + $0x1a0] sm:$0xff]
      %v550 = vld [vmem:[%s491 + $0x1a8] sm:$0xff]
      %v551 = vld [vmem:[%s491 + $0x1b0] sm:$0xff]
      %v552 = vld [vmem:[%s491 + $0x1b8] sm:$0xff]
      %v553 = vld [vmem:[%s491 + $0x1c0] sm:$0xff]
      %v554 = vld [vmem:[%s491 + $0x1c8] sm:$0xff]
      %v555 = vld [vmem:[%s491 + $0x1d0] sm:$0xff]
      %v556 = vld [vmem:[%s491 + $0x1d8] sm:$0xff]
      %v557 = vld [vmem:[%s491 + $0x1e0] sm:$0xff]
      %v558 = vld [vmem:[%s491 + $0x1e8] sm:$0xff]
      %v559 = vld [vmem:[%s491 + $0x1f0] sm:$0xff]
      %v560 = vld [vmem:[%s491 + $0x1f8] sm:$0xff]
      %v561 = vld [vmem:[%s491 + $0x200] sm:$0xff]
      %v562 = vld [vmem:[%s491 + $0x208] sm:$0xff]
      %v563 = vld [vmem:[%s491 + $0x210] sm:$0xff]
      %v564 = vld [vmem:[%s491 + $0x218] sm:$0xff]
      %v565 = vld [vmem:[%s491 + $0x220] sm:$0xff]
      %v566 = vld [vmem:[%s491 + $0x228] sm:$0xff]
      %v567 = vld [vmem:[%s491 + $0x230] sm:$0xff]
      %v568 = vld [vmem:[%s491 + $0x238] sm:$0xff]
      %v569 = vld [vmem:[%s491 + $0x240] sm:$0xff]
      %v570 = vld [vmem:[%s491 + $0x248] sm:$0xff]
      %v571 = vld [vmem:[%s491 + $0x250] sm:$0xff]
      %v572 = vld [vmem:[%s491 + $0x258] sm:$0xff]
      %v573 = vld [vmem:[%s491 + $0x260] sm:$0xff]
      %v574 = vld [vmem:[%s491 + $0x268] sm:$0xff]
      %v575 = vld [vmem:[%s491 + $0x270] sm:$0xff]
      %v576 = vld [vmem:[%s491 + $0x278] sm:$0xff]
      %v577 = vld [vmem:[%s491 + $0x280] sm:$0xff]
      %v578 = vld [vmem:[%s491 + $0x288] sm:$0xff]
      %v579 = vld [vmem:[%s491 + $0x290] sm:$0xff]
      %v580 = vld [vmem:[%s491 + $0x298] sm:$0xff]
      %v581 = vld [vmem:[%s491 + $0x2a0] sm:$0xff]
      %v582 = vld [vmem:[%s491 + $0x2a8] sm:$0xff]
      %v583 = vld [vmem:[%s491 + $0x2b0] sm:$0xff]
      %v584 = vld [vmem:[%s491 + $0x2b8] sm:$0xff]
      %v585 = vld [vmem:[%s491 + $0x2c0] sm:$0xff]
      %v586 = vld [vmem:[%s491 + $0x2c8] sm:$0xff]
      %v587 = vld [vmem:[%s491 + $0x2d0] sm:$0xff]
      %v588 = vld [vmem:[%s491 + $0x2d8] sm:$0xff]
      %v589 = vld [vmem:[%s491 + $0x2e0] sm:$0xff]
      %v590 = vld [vmem:[%s491 + $0x2e8] sm:$0xff]
      %v591 = vld [vmem:[%s491 + $0x2f0] sm:$0xff]
      %v592 = vld [vmem:[%s491 + $0x2f8] sm:$0xff]
      %v593 = vld [vmem:[%s491 + $0x300] sm:$0xff]
      %v594 = vld [vmem:[%s491 + $0x308] sm:$0xff]
      %v595 = vld [vmem:[%s491 + $0x310] sm:$0xff]
      %v596 = vld [vmem:[%s491 + $0x318] sm:$0xff]
      %v597 = vld [vmem:[%s491 + $0x320] sm:$0xff]
      %v598 = vld [vmem:[%s491 + $0x328] sm:$0xff]
      %v599 = vld [vmem:[%s491 + $0x330] sm:$0xff]
      %v600 = vld [vmem:[%s491 + $0x338] sm:$0xff]
      %v601 = vld [vmem:[%s491 + $0x340] sm:$0xff]
      %v602 = vld [vmem:[%s491 + $0x348] sm:$0xff]
      %v603 = vld [vmem:[%s491 + $0x350] sm:$0xff]
      %v604 = vld [vmem:[%s491 + $0x358] sm:$0xff]
      %v605 = vld [vmem:[%s491 + $0x360] sm:$0xff]
      %v606 = vld [vmem:[%s491 + $0x368] sm:$0xff]
      %v607 = vld [vmem:[%s491 + $0x370] sm:$0xff]
      %v608 = vld [vmem:[%s491 + $0x378] sm:$0xff]
      %v609 = vld [vmem:[%s491 + $0x380] sm:$0xff]
      %v610 = vld [vmem:[%s491 + $0x388] sm:$0xff]
      %v611 = vld [vmem:[%s491 + $0x390] sm:$0xff]
      %v612 = vld [vmem:[%s491 + $0x398] sm:$0xff]
      %v613 = vld [vmem:[%s491 + $0x3a0] sm:$0xff]
      %v614 = vld [vmem:[%s491 + $0x3a8] sm:$0xff]
      %v615 = vld [vmem:[%s491 + $0x3b0] sm:$0xff]
      %v616 = vld [vmem:[%s491 + $0x3b8] sm:$0xff]
      %v617 = vld [vmem:[%s491 + $0x3c0] sm:$0xff]
      %v618 = vld [vmem:[%s491 + $0x3c8] sm:$0xff]
      %v619 = vld [vmem:[%s491 + $0x3d0] sm:$0xff]
      %v620 = vld [vmem:[%s491 + $0x3d8] sm:$0xff]
      %v621 = vld [vmem:[%s491 + $0x3e0] sm:$0xff]
      %v622 = vld [vmem:[%s491 + $0x3e8] sm:$0xff]
      %v623 = vld [vmem:[%s491 + $0x3f0] sm:$0xff]
      %v624 = vld [vmem:[%s491 + $0x3f8] sm:$0xff]
      %v625 = vld [vmem:[%s491 + $0x400] sm:$0xff]
      %v626 = vld [vmem:[%s491 + $0x408] sm:$0xff]
      %v627 = vld [vmem:[%s491 + $0x410] sm:$0xff]
      %v628 = vld [vmem:[%s491 + $0x418] sm:$0xff]
      %v629 = vld [vmem:[%s491 + $0x420] sm:$0xff]
      %v630 = vld [vmem:[%s491 + $0x428] sm:$0xff]
      %v631 = vld [vmem:[%s491 + $0x430] sm:$0xff]
      %v632 = vld [vmem:[%s491 + $0x438] sm:$0xff]
      %v633 = vld [vmem:[%s491 + $0x440] sm:$0xff]
      %v634 = vld [vmem:[%s491 + $0x448] sm:$0xff]
      %v635 = vld [vmem:[%s491 + $0x450] sm:$0xff]
      %v636 = vld [vmem:[%s491 + $0x458] sm:$0xff]
      %v637 = vld [vmem:[%s491 + $0x460] sm:$0xff]
      %v638 = vld [vmem:[%s491 + $0x468] sm:$0xff]
      %v639 = vld [vmem:[%s491 + $0x470] sm:$0xff]
      %v640 = vld [vmem:[%s491 + $0x478] sm:$0xff]
      %v641 = vld [vmem:[%s491 + $0x480] sm:$0xff]
      %v642 = vld [vmem:[%s491 + $0x488] sm:$0xff]
      %v643 = vld [vmem:[%s491 + $0x490] sm:$0xff]
      %v644 = vld [vmem:[%s491 + $0x498] sm:$0xff]
      %v645 = vld [vmem:[%s491 + $0x4a0] sm:$0xff]
      %v646 = vld [vmem:[%s491 + $0x4a8] sm:$0xff]
      %v647 = vld [vmem:[%s491 + $0x4b0] sm:$0xff]
      %v648 = vld [vmem:[%s491 + $0x4b8] sm:$0xff]
      %v649 = vld [vmem:[%s491 + $0x4c0] sm:$0xff]
      %v650 = vld [vmem:[%s491 + $0x4c8] sm:$0xff]
      %v651 = vld [vmem:[%s491 + $0x4d0] sm:$0xff]
      %v652 = vld [vmem:[%s491 + $0x4d8] sm:$0xff]
      %v653 = vld [vmem:[%s491 + $0x4e0] sm:$0xff]
      %v654 = vld [vmem:[%s491 + $0x4e8] sm:$0xff]
      %v655 = vld [vmem:[%s491 + $0x4f0] sm:$0xff]
      %v656 = vld [vmem:[%s491 + $0x4f8] sm:$0xff]
      %v657 = vld [vmem:[%s491 + $0x500] sm:$0xff]
      %v658 = vld [vmem:[%s491 + $0x508] sm:$0xff]
      %v659 = vld [vmem:[%s491 + $0x510] sm:$0xff]
      %v660 = vld [vmem:[%s491 + $0x518] sm:$0xff]
      %v661 = vld [vmem:[%s491 + $0x520] sm:$0xff]
      %v662 = vld [vmem:[%s491 + $0x528] sm:$0xff]
      %v663 = vld [vmem:[%s491 + $0x530] sm:$0xff]
      %v664 = vld [vmem:[%s491 + $0x538] sm:$0xff]
      %v665 = vld [vmem:[%s491 + $0x540] sm:$0xff]
      %v666 = vld [vmem:[%s491 + $0x548] sm:$0xff]
      %v667 = vld [vmem:[%s491 + $0x550] sm:$0xff]
      %v668 = vld [vmem:[%s491 + $0x558] sm:$0xff]
      %v669 = vld [vmem:[%s491 + $0x560] sm:$0xff]
      %v670 = vld [vmem:[%s491 + $0x568] sm:$0xff]
      %v671 = vld [vmem:[%s491 + $0x570] sm:$0xff]
      %v672 = vld [vmem:[%s491 + $0x578] sm:$0xff]
      %v673 = vld [vmem:[%s491 + $0x580] sm:$0xff]
      %v674 = vld [vmem:[%s491 + $0x588] sm:$0xff]
      %v675 = vld [vmem:[%s491 + $0x590] sm:$0xff]
      %v676 = vld [vmem:[%s491 + $0x598] sm:$0xff]
      %v677 = vld [vmem:[%s491 + $0x5a0] sm:$0xff]
      %v678 = vld [vmem:[%s491 + $0x5a8] sm:$0xff]
      %v679 = vld [vmem:[%s491 + $0x5b0] sm:$0xff]
      %v680 = vld [vmem:[%s491 + $0x5b8] sm:$0xff]
      %v681 = vld [vmem:[%s491 + $0x5c0] sm:$0xff]
      %v682 = vld [vmem:[%s491 + $0x5c8] sm:$0xff]
      %v683 = vld [vmem:[%s491 + $0x5d0] sm:$0xff]
      %v684 = vld [vmem:[%s491 + $0x5d8] sm:$0xff]
      %v685 = vld [vmem:[%s491 + $0x5e0] sm:$0xff]
      %v686 = vld [vmem:[%s491 + $0x5e8] sm:$0xff]
      %v687 = vld [vmem:[%s491 + $0x5f0] sm:$0xff]
      %v688 = vld [vmem:[%s491 + $0x5f8] sm:$0xff]
      %v689 = vld [vmem:[%s491 + $0x600] sm:$0xff]
      %v690 = vld [vmem:[%s491 + $0x608] sm:$0xff]
      %v691 = vld [vmem:[%s491 + $0x610] sm:$0xff]
      %v692 = vld [vmem:[%s491 + $0x618] sm:$0xff]
      %v693 = vld [vmem:[%s491 + $0x620] sm:$0xff]
      %v694 = vld [vmem:[%s491 + $0x628] sm:$0xff]
      %v695 = vld [vmem:[%s491 + $0x630] sm:$0xff]
      %v696 = vld [vmem:[%s491 + $0x638] sm:$0xff]
      %v697 = vld [vmem:[%s491 + $0x640] sm:$0xff]
      %v698 = vld [vmem:[%s491 + $0x648] sm:$0xff]
      %v699 = vld [vmem:[%s491 + $0x650] sm:$0xff]
      %v700 = vld [vmem:[%s491 + $0x658] sm:$0xff]
      %v701 = vld [vmem:[%s491 + $0x660] sm:$0xff]
      %v702 = vld [vmem:[%s491 + $0x668] sm:$0xff]
      %v703 = vld [vmem:[%s491 + $0x670] sm:$0xff]
      %v704 = vld [vmem:[%s491 + $0x678] sm:$0xff]
      %v705 = vld [vmem:[%s491 + $0x680] sm:$0xff]
      %v706 = vld [vmem:[%s491 + $0x688] sm:$0xff]
      %v707 = vld [vmem:[%s491 + $0x690] sm:$0xff]
      %v708 = vld [vmem:[%s491 + $0x698] sm:$0xff]
      %v709 = vld [vmem:[%s491 + $0x6a0] sm:$0xff]
      %v710 = vld [vmem:[%s491 + $0x6a8] sm:$0xff]
      %v711 = vld [vmem:[%s491 + $0x6b0] sm:$0xff]
      %v712 = vld [vmem:[%s491 + $0x6b8] sm:$0xff]
      %v713 = vld [vmem:[%s491 + $0x6c0] sm:$0xff]
      %v714 = vld [vmem:[%s491 + $0x6c8] sm:$0xff]
      %v715 = vld [vmem:[%s491 + $0x6d0] sm:$0xff]
      %v716 = vld [vmem:[%s491 + $0x6d8] sm:$0xff]
      %v717 = vld [vmem:[%s491 + $0x6e0] sm:$0xff]
      %v718 = vld [vmem:[%s491 + $0x6e8] sm:$0xff]
      %v719 = vld [vmem:[%s491 + $0x6f0] sm:$0xff]
      %v720 = vld [vmem:[%s491 + $0x6f8] sm:$0xff]
      %v721 = vld [vmem:[%s491 + $0x700] sm:$0xff]
      %v722 = vld [vmem:[%s491 + $0x708] sm:$0xff]
      %v723 = vld [vmem:[%s491 + $0x710] sm:$0xff]
      %v724 = vld [vmem:[%s491 + $0x718] sm:$0xff]
      %v725 = vld [vmem:[%s491 + $0x720] sm:$0xff]
      %v726 = vld [vmem:[%s491 + $0x728] sm:$0xff]
      %v727 = vld [vmem:[%s491 + $0x730] sm:$0xff]
      %v728 = vld [vmem:[%s491 + $0x738] sm:$0xff]
      %v729 = vld [vmem:[%s491 + $0x740] sm:$0xff]
      %v730 = vld [vmem:[%s491 + $0x748] sm:$0xff]
      %v731 = vld [vmem:[%s491 + $0x750] sm:$0xff]
      %v732 = vld [vmem:[%s491 + $0x758] sm:$0xff]
      %v733 = vld [vmem:[%s491 + $0x760] sm:$0xff]
      %v734 = vld [vmem:[%s491 + $0x768] sm:$0xff]
      %v735 = vld [vmem:[%s491 + $0x770] sm:$0xff]
      %v736 = vld [vmem:[%s491 + $0x778] sm:$0xff]
      %v737 = vld [vmem:[%s491 + $0x780] sm:$0xff]
      %v738 = vld [vmem:[%s491 + $0x788] sm:$0xff]
      %v739 = vld [vmem:[%s491 + $0x790] sm:$0xff]
      %v740 = vld [vmem:[%s491 + $0x798] sm:$0xff]
      %v741 = vld [vmem:[%s491 + $0x7a0] sm:$0xff]
      %v742 = vld [vmem:[%s491 + $0x7a8] sm:$0xff]
      %v743 = vld [vmem:[%s491 + $0x7b0] sm:$0xff]
      %v744 = vld [vmem:[%s491 + $0x7b8] sm:$0xff]
      %v745 = vld [vmem:[%s491 + $0x7c0] sm:$0xff]
      %v746 = vld [vmem:[%s491 + $0x7c8] sm:$0xff]
      %v747 = vld [vmem:[%s491 + $0x7d0] sm:$0xff]
      %v748 = vld [vmem:[%s491 + $0x7d8] sm:$0xff]
      %v749 = vld [vmem:[%s491 + $0x7e0] sm:$0xff]
      %v750 = vld [vmem:[%s491 + $0x7e8] sm:$0xff]
      %v751 = vld [vmem:[%s491 + $0x7f0] sm:$0xff]
      %v752 = vld [vmem:[%s491 + $0x7f8] sm:$0xff]
      %v753 = vld [vmem:[%s491 + $0x800] sm:$0xff]
      %v754 = vld [vmem:[%s491 + $0x808] sm:$0xff]
      %v755 = vld [vmem:[%s491 + $0x810] sm:$0xff]
      %v756 = vld [vmem:[%s491 + $0x818] sm:$0xff]
      %v757 = vld [vmem:[%s491 + $0x820] sm:$0xff]
      %v758 = vld [vmem:[%s491 + $0x828] sm:$0xff]
      %v759 = vld [vmem:[%s491 + $0x830] sm:$0xff]
      %v760 = vld [vmem:[%s491 + $0x838] sm:$0xff]
      %v761 = vld [vmem:[%s491 + $0x840] sm:$0xff]
      %v762 = vld [vmem:[%s491 + $0x848] sm:$0xff]
      %v763 = vld [vmem:[%s491 + $0x850] sm:$0xff]
      %v764 = vld [vmem:[%s491 + $0x858] sm:$0xff]
      %v765 = vld [vmem:[%s491 + $0x860] sm:$0xff]
      %v766 = vld [vmem:[%s491 + $0x868] sm:$0xff]
      %v767 = vld [vmem:[%s491 + $0x870] sm:$0xff]
      %v768 = vld [vmem:[%s491 + $0x878] sm:$0xff]
      %v769 = vld [vmem:[%s491 + $0x880] sm:$0xff]
      %v770 = vld [vmem:[%s491 + $0x888] sm:$0xff]
      %v771 = vld [vmem:[%s491 + $0x890] sm:$0xff]
      %v772 = vld [vmem:[%s491 + $0x898] sm:$0xff]
      %v773 = vld [vmem:[%s491 + $0x8a0] sm:$0xff]
      %v774 = vld [vmem:[%s491 + $0x8a8] sm:$0xff]
      %v775 = vld [vmem:[%s491 + $0x8b0] sm:$0xff]
      %v776 = vld [vmem:[%s491 + $0x8b8] sm:$0xff]
      %v777 = vld [vmem:[%s491 + $0x8c0] sm:$0xff]
      %v778 = vld [vmem:[%s491 + $0x8c8] sm:$0xff]
      %v779 = vld [vmem:[%s491 + $0x8d0] sm:$0xff]
      %v780 = vld [vmem:[%s491 + $0x8d8] sm:$0xff]
      %v781 = vld [vmem:[%s491 + $0x8e0] sm:$0xff]
      %v782 = vld [vmem:[%s491 + $0x8e8] sm:$0xff]
      %v783 = vld [vmem:[%s491 + $0x8f0] sm:$0xff]
      %v784 = vld [vmem:[%s491 + $0x8f8] sm:$0xff]
      %v785 = vld [vmem:[%s491 + $0x900] sm:$0xff]
      %v786 = vld [vmem:[%s491 + $0x908] sm:$0xff]
      %v787 = vld [vmem:[%s491 + $0x910] sm:$0xff]
      %v788 = vld [vmem:[%s491 + $0x918] sm:$0xff]
      %v789 = vld [vmem:[%s491 + $0x920] sm:$0xff]
      %v790 = vld [vmem:[%s491 + $0x928] sm:$0xff]
      %v791 = vld [vmem:[%s491 + $0x930] sm:$0xff]
      %v792 = vld [vmem:[%s491 + $0x938] sm:$0xff]
      %v793 = vld [vmem:[%s491 + $0x940] sm:$0xff]
      %v794 = vld [vmem:[%s491 + $0x948] sm:$0xff]
      %v795 = vld [vmem:[%s491 + $0x950] sm:$0xff]
      %v796 = vld [vmem:[%s491 + $0x958] sm:$0xff]
      %v797 = vld [vmem:[%s491 + $0x960] sm:$0xff]
      %v798 = vld [vmem:[%s491 + $0x968] sm:$0xff]
      %v799 = vld [vmem:[%s491 + $0x970] sm:$0xff]
      %v800 = vld [vmem:[%s491 + $0x978] sm:$0xff]
      %v801 = vld [vmem:[%s491 + $0x980] sm:$0xff]
      %v802 = vld [vmem:[%s491 + $0x988] sm:$0xff]
      %v803 = vld [vmem:[%s491 + $0x990] sm:$0xff]
      %v804 = vld [vmem:[%s491 + $0x998] sm:$0xff]
      %v805 = vld [vmem:[%s491 + $0x9a0] sm:$0xff]
      %v806 = vld [vmem:[%s491 + $0x9a8] sm:$0xff]
      %v807 = vld [vmem:[%s491 + $0x9b0] sm:$0xff]
      %v808 = vld [vmem:[%s491 + $0x9b8] sm:$0xff]
      %v809 = vld [vmem:[%s491 + $0x9c0] sm:$0xff]
      %v810 = vld [vmem:[%s491 + $0x9c8] sm:$0xff]
      %v811 = vld [vmem:[%s491 + $0x9d0] sm:$0xff]
      %v812 = vld [vmem:[%s491 + $0x9d8] sm:$0xff]
      %v813 = vld [vmem:[%s491 + $0x9e0] sm:$0xff]
      %v814 = vld [vmem:[%s491 + $0x9e8] sm:$0xff]
      %v815 = vld [vmem:[%s491 + $0x9f0] sm:$0xff]
      %v816 = vld [vmem:[%s491 + $0x9f8] sm:$0xff]
      %v817 = vld [vmem:[%s491 + $0xa00] sm:$0xff]
      %v818 = vld [vmem:[%s491 + $0xa08] sm:$0xff]
      %v819 = vld [vmem:[%s491 + $0xa10] sm:$0xff]
      %v820 = vld [vmem:[%s491 + $0xa18] sm:$0xff]
      %v821 = vld [vmem:[%s491 + $0xa20] sm:$0xff]
      %v822 = vld [vmem:[%s491 + $0xa28] sm:$0xff]
      %v823 = vld [vmem:[%s491 + $0xa30] sm:$0xff]
      %v824 = vld [vmem:[%s491 + $0xa38] sm:$0xff]
      %v825 = vld [vmem:[%s491 + $0xa40] sm:$0xff]
      %v826 = vld [vmem:[%s491 + $0xa48] sm:$0xff]
      %v827 = vld [vmem:[%s491 + $0xa50] sm:$0xff]
      %v828 = vld [vmem:[%s491 + $0xa58] sm:$0xff]
      %v829 = vld [vmem:[%s491 + $0xa60] sm:$0xff]
      %v830 = vld [vmem:[%s491 + $0xa68] sm:$0xff]
      %v831 = vld [vmem:[%s491 + $0xa70] sm:$0xff]
      %v832 = vld [vmem:[%s491 + $0xa78] sm:$0xff]
      %v833 = vld [vmem:[%s491 + $0xa80] sm:$0xff]
      %v834 = vld [vmem:[%s491 + $0xa88] sm:$0xff]
      %v835 = vld [vmem:[%s491 + $0xa90] sm:$0xff]
      %v836 = vld [vmem:[%s491 + $0xa98] sm:$0xff]
      %v837 = vld [vmem:[%s491 + $0xaa0] sm:$0xff]
      %v838 = vld [vmem:[%s491 + $0xaa8] sm:$0xff]
      %v839 = vld [vmem:[%s491 + $0xab0] sm:$0xff]
      %v840 = vld [vmem:[%s491 + $0xab8] sm:$0xff]
      %v841 = vld [vmem:[%s491 + $0xac0] sm:$0xff]
      %v842 = vld [vmem:[%s491 + $0xac8] sm:$0xff]
      %v843 = vld [vmem:[%s491 + $0xad0] sm:$0xff]
      %v844 = vld [vmem:[%s491 + $0xad8] sm:$0xff]
      %v845 = vld [vmem:[%s491 + $0xae0] sm:$0xff]
      %v846 = vld [vmem:[%s491 + $0xae8] sm:$0xff]
      %v847 = vld [vmem:[%s491 + $0xaf0] sm:$0xff]
      %v848 = vld [vmem:[%s491 + $0xaf8] sm:$0xff]
      %v849 = vld [vmem:[%s491 + $0xb00] sm:$0xff]
      %v850 = vld [vmem:[%s491 + $0xb08] sm:$0xff]
      %v851 = vld [vmem:[%s491 + $0xb10] sm:$0xff]
      %v852 = vld [vmem:[%s491 + $0xb18] sm:$0xff]
      %v853 = vld [vmem:[%s491 + $0xb20] sm:$0xff]
      %v854 = vld [vmem:[%s491 + $0xb28] sm:$0xff]
      %v855 = vld [vmem:[%s491 + $0xb30] sm:$0xff]
      %v856 = vld [vmem:[%s491 + $0xb38] sm:$0xff]
      %v857 = vld [vmem:[%s491 + $0xb40] sm:$0xff]
      %v858 = vld [vmem:[%s491 + $0xb48] sm:$0xff]
      %v859 = vld [vmem:[%s491 + $0xb50] sm:$0xff]
      %v860 = vld [vmem:[%s491 + $0xb58] sm:$0xff]
      %v861 = vld [vmem:[%s491 + $0xb60] sm:$0xff]
      %v862 = vld [vmem:[%s491 + $0xb68] sm:$0xff]
      %v863 = vld [vmem:[%s491 + $0xb70] sm:$0xff]
      %v864 = vld [vmem:[%s491 + $0xb78] sm:$0xff]
      %v865 = vld [vmem:[%s491 + $0xb80] sm:$0xff]
      %v866 = vld [vmem:[%s491 + $0xb88] sm:$0xff]
      %v867 = vld [vmem:[%s491 + $0xb90] sm:$0xff]
      %v868 = vld [vmem:[%s491 + $0xb98] sm:$0xff]
      %v869 = vld [vmem:[%s491 + $0xba0] sm:$0xff]
      %v870 = vld [vmem:[%s491 + $0xba8] sm:$0xff]
      %v871 = vld [vmem:[%s491 + $0xbb0] sm:$0xff]
      %v872 = vld [vmem:[%s491 + $0xbb8] sm:$0xff]
      %v873 = vld [vmem:[%s491 + $0xbc0] sm:$0xff]
      %v874 = vld [vmem:[%s491 + $0xbc8] sm:$0xff]
      %v875 = vld [vmem:[%s491 + $0xbd0] sm:$0xff]
      %v876 = vld [vmem:[%s491 + $0xbd8] sm:$0xff]
      %v877 = vld [vmem:[%s491 + $0xbe0] sm:$0xff]
      %v878 = vld [vmem:[%s491 + $0xbe8] sm:$0xff]
      %v879 = vld [vmem:[%s491 + $0xbf0] sm:$0xff]
      %v880 = vld [vmem:[%s491 + $0xbf8] sm:$0xff]
      %v881 = vld [vmem:[%s491 + $0xc00] sm:$0xff]
      %v882 = vld [vmem:[%s491 + $0xc08] sm:$0xff]
      %v883 = vld [vmem:[%s491 + $0xc10] sm:$0xff]
      %v884 = vld [vmem:[%s491 + $0xc18] sm:$0xff]
      %v885 = vld [vmem:[%s491 + $0xc20] sm:$0xff]
      %v886 = vld [vmem:[%s491 + $0xc28] sm:$0xff]
      %v887 = vld [vmem:[%s491 + $0xc30] sm:$0xff]
      %v888 = vld [vmem:[%s491 + $0xc38] sm:$0xff]
      %v889 = vld [vmem:[%s491 + $0xc40] sm:$0xff]
      %v890 = vld [vmem:[%s491 + $0xc48] sm:$0xff]
      %v891 = vld [vmem:[%s491 + $0xc50] sm:$0xff]
      %v892 = vld [vmem:[%s491 + $0xc58] sm:$0xff]
      %v893 = vld [vmem:[%s491 + $0xc60] sm:$0xff]
      %v894 = vld [vmem:[%s491 + $0xc68] sm:$0xff]
      %v895 = vld [vmem:[%s491 + $0xc70] sm:$0xff]
      %v896 = vld [vmem:[%s491 + $0xc78] sm:$0xff]
      %v897 = vld [vmem:[%s491 + $0xc80] sm:$0xff]
      %v898 = vld [vmem:[%s491 + $0xc88] sm:$0xff]
      %v899 = vld [vmem:[%s491 + $0xc90] sm:$0xff]
      %v900 = vld [vmem:[%s491 + $0xc98] sm:$0xff]
      %v901 = vld [vmem:[%s491 + $0xca0] sm:$0xff]
      %v902 = vld [vmem:[%s491 + $0xca8] sm:$0xff]
      %v903 = vld [vmem:[%s491 + $0xcb0] sm:$0xff]
      %v904 = vld [vmem:[%s491 + $0xcb8] sm:$0xff]
      %v905 = vld [vmem:[%s491 + $0xcc0] sm:$0xff]
      %v906 = vld [vmem:[%s491 + $0xcc8] sm:$0xff]
      %v907 = vld [vmem:[%s491 + $0xcd0] sm:$0xff]
      %v908 = vld [vmem:[%s491 + $0xcd8] sm:$0xff]
      %v909 = vld [vmem:[%s491 + $0xce0] sm:$0xff]
      %v910 = vld [vmem:[%s491 + $0xce8] sm:$0xff]
      %v911 = vld [vmem:[%s491 + $0xcf0] sm:$0xff]
      %v912 = vld [vmem:[%s491 + $0xcf8] sm:$0xff]
      %v913 = vld [vmem:[%s491 + $0xd00] sm:$0xff]
      %v914 = vld [vmem:[%s491 + $0xd08] sm:$0xff]
      %v915 = vld [vmem:[%s491 + $0xd10] sm:$0xff]
      %v916 = vld [vmem:[%s491 + $0xd18] sm:$0xff]
      %v917 = vld [vmem:[%s491 + $0xd20] sm:$0xff]
      %v918 = vld [vmem:[%s491 + $0xd28] sm:$0xff]
      %v919 = vld [vmem:[%s491 + $0xd30] sm:$0xff]
      %v920 = vld [vmem:[%s491 + $0xd38] sm:$0xff]
      %v921 = vld [vmem:[%s491 + $0xd40] sm:$0xff]
      %v922 = vld [vmem:[%s491 + $0xd48] sm:$0xff]
      %v923 = vld [vmem:[%s491 + $0xd50] sm:$0xff]
      %v924 = vld [vmem:[%s491 + $0xd58] sm:$0xff]
      %v925 = vld [vmem:[%s491 + $0xd60] sm:$0xff]
      %v926 = vld [vmem:[%s491 + $0xd68] sm:$0xff]
      %v927 = vld [vmem:[%s491 + $0xd70] sm:$0x1f]
      %v928 = vld [vmem:[%s491 + $0xd78] sm:$0x1f]
      %v929 = vld [vmem:[%s491 + $0xd80] sm:$0x1f]
      %v930 = vld [vmem:[%s491 + $0xd88] sm:$0x1f]
      %v931 = vld [vmem:[%s491 + $0xd90] sm:$0x1f]
      %v932 = vld [vmem:[%s491 + $0xd98] sm:$0x1f]
      %v933 = vld [vmem:[%s491 + $0xda0] sm:$0x1f]
      %v934 = vld [vmem:[%s491 + $0xda8] sm:$0x1f]
      %v935 = vld [vmem:[%s491 + $0xdb0] sm:$0x1f]
      %v936 = vld [vmem:[%s491 + $0xdb8] sm:$0x1f]
      %v937 = vld [vmem:[%s1] sm:$0x77]
      %v938 = vld [vmem:[%s1 + $0x8] sm:$0x77]
      %v939 = vld [vmem:[%s1 + $0x10] sm:$0x77]
      %v940 = vld [vmem:[%s1 + $0x18] sm:$0x77]
      %v941 = vld [vmem:[%s1 + $0x20] sm:$0x77]
      %v942 = vld [vmem:[%s2] sm:$0x1]
      %v944 = vlaneseq
      %v945 = vshrl.u32 %v944, 7
      %v946 = vsub.s32 0, %v945
      %v947 = vrot.slane %v942, %v946
      %v954 = vcombine.high %v937, %v937
      %v955 = vcombine.high %v938, %v938
      %v956 = vcombine.high %v939, %v939
      %v957 = vcombine.high %v940, %v940
      %v958 = vcombine.high %v941, %v941
      %vm963 = vcmask 613376
      %v965 = vsel %vm963, %v506, 0
      %v968 = vsel %vm963, %v516, 0
      %v971 = vsel %vm963, %v526, 0
      %v974 = vsel %vm963, %v536, 0
      %v977 = vsel %vm963, %v546, 0
      %v980 = vsel %vm963, %v556, 0
      %v983 = vsel %vm963, %v566, 0
      %v986 = vsel %vm963, %v576, 0
      %v989 = vsel %vm963, %v586, 0
      %v992 = vsel %vm963, %v596, 0
      %v995 = vsel %vm963, %v606, 0
      %v998 = vsel %vm963, %v616, 0
      %v1001 = vsel %vm963, %v626, 0
      %v1004 = vsel %vm963, %v636, 0
      %v1007 = vsel %vm963, %v646, 0
      %v1010 = vsel %vm963, %v656, 0
      %v1013 = vsel %vm963, %v666, 0
      %v1016 = vsel %vm963, %v676, 0
      %v1019 = vsel %vm963, %v686, 0
      %v1022 = vsel %vm963, %v696, 0
      %v1025 = vsel %vm963, %v706, 0
      %v1028 = vsel %vm963, %v716, 0
      %v1031 = vsel %vm963, %v726, 0
      %v1034 = vsel %vm963, %v736, 0
      %v1037 = vsel %vm963, %v746, 0
      %v1040 = vsel %vm963, %v756, 0
      %v1043 = vsel %vm963, %v766, 0
      %v1046 = vsel %vm963, %v776, 0
      %v1049 = vsel %vm963, %v786, 0
      %v1052 = vsel %vm963, %v796, 0
      %v1055 = vsel %vm963, %v806, 0
      %v1058 = vsel %vm963, %v816, 0
      %v1061 = vsel %vm963, %v826, 0
      %v1064 = vsel %vm963, %v836, 0
      %v1067 = vsel %vm963, %v846, 0
      %v1070 = vsel %vm963, %v856, 0
      %v1073 = vsel %vm963, %v866, 0
      %v1076 = vsel %vm963, %v876, 0
      %v1079 = vsel %vm963, %v886, 0
      %v1082 = vsel %vm963, %v896, 0
      %v1085 = vsel %vm963, %v906, 0
      %v1088 = vsel %vm963, %v916, 0
      %v1091 = vsel %vm963, %v926, 0
      %v1094 = vsel %vm963, %v936, 0
      %v1096 = vsel %vm963, %v958, 0
      %1098 = vmatprep.subr.mxu0 %v954
      %1099 = vmatpush1.xpose.msra.mxu0 %v937
      %1100 = vmatprep.subr.mxu0 0.0
      %1101 = vmatpush1.xpose.msra.mxu0 0.0
      %1102 = vmatprep.subr.mxu0 0.0
      %1103 = vmatpush1.xpose.msra.mxu0 0.0
      %1104 = vmatprep.subr.mxu0 0.0
      %1105 = vmatpush1.xpose.msra.mxu0 0.0
      %1106 = vmatprep.subr.mxu0 0.0
      %1107 = vmatpush1.xpose.msra.mxu0 0.0
      %1108 = vmatprep.subr.mxu0 0.0
      %1109 = vmatpush1.xpose.msra.mxu0 0.0
      %1110 = vmatprep.subr.mxu0 0.0
      %1111 = vmatpush1.xpose.msra.mxu0 0.0
      %1112 = vmatprep.subr.mxu0 0.0
      %1113 = vmatpush1.xpose.msra.mxu0 0.0
      %1114 = vmatprep.subr.mxu0 0.0
      %1115 = vmatpush1.xpose.msra.mxu0 0.0
      %1116 = vmatprep.subr.mxu0 0.0
      %1117 = vmatpush1.xpose.msra.mxu0 0.0
      %1118 = vmatprep.subr.mxu0 0.0
      %1119 = vmatpush1.xpose.msra.mxu0 0.0
      %1120 = vmatprep.subr.mxu0 0.0
      %1121 = vmatpush1.xpose.msra.mxu0 0.0
      %1122 = vmatprep.subr.mxu0 0.0
      %1123 = vmatpush1.xpose.msra.mxu0 0.0
      %1124 = vmatprep.subr.mxu0 0.0
      %1125 = vmatpush1.xpose.msra.mxu0 0.0
      %1126 = vmatprep.subr.mxu0 0.0
      %1127 = vmatpush1.xpose.msra.mxu0 0.0
      %1128 = vmatprep.subr.mxu0 0.0
      %1129 = vmatpush1.xpose.msra.mxu0 0.0
      %1130 = vmatprep.subr.mxu0 0.0
      %1131 = vmatpush1.xpose.msra.mxu0 0.0
      %1132 = vmatprep.subr.mxu0 0.0
      %1133 = vmatpush1.xpose.msra.mxu0 0.0
      %1134 = vmatprep.subr.mxu0 0.0
      %1135 = vmatpush1.xpose.msra.mxu0 0.0
      %1136 = vmatprep.subr.mxu0 0.0
      %1137 = vmatpush1.xpose.msra.mxu0 0.0
      %1138 = vmatprep.subr.mxu0 0.0
      %1139 = vmatpush1.xpose.msra.mxu0 0.0
      %1140 = vmatprep.subr.mxu0 0.0
      %1141 = vmatpush1.xpose.msra.mxu0 0.0
      %1142 = vmatprep.subr.mxu0 0.0
      %1143 = vmatpush1.xpose.msra.mxu0 0.0
      %1144 = vmatprep.subr.mxu0 0.0
      %1145 = vmatpush1.xpose.msra.mxu0 0.0
      %1146 = vmatprep.subr.mxu0 0.0
      %1147 = vmatpush1.xpose.msra.mxu0 0.0
      %1148 = vmatprep.subr.mxu0 0.0
      %1149 = vmatpush1.xpose.msra.mxu0 0.0
      %1150 = vmatprep.subr.mxu0 0.0
      %1151 = vmatpush1.xpose.msra.mxu0 0.0
      %1152 = vmatprep.subr.mxu0 0.0
      %1153 = vmatpush1.xpose.msra.mxu0 0.0
      %1154 = vmatprep.subr.mxu0 0.0
      %1155 = vmatpush1.xpose.msra.mxu0 0.0
      %1156 = vmatprep.subr.mxu0 0.0
      %1157 = vmatpush1.xpose.msra.mxu0 0.0
      %1158 = vmatprep.subr.mxu0 0.0
      %1159 = vmatpush1.xpose.msra.mxu0 0.0
      %1160 = vmatprep.subr.mxu0 0.0
      %1161 = vmatpush1.xpose.msra.mxu0 0.0
      %1162 = vmatprep.mubr.f32.mxu0 %v498
      %1163 = vmatmul.mubr.f32.gmra.mrb[0].mxu0 %v497
      %v1164 = vpop.f32.mrb[0].mxu0
      %v1165 = vadd.f32 %v947, %v1164
      %v1166 = vpop.f32.mrb[0].mxu0
      %1167 = vmatprep.mubr.f32.mxu0 %v508
      %1168 = vmatmul.mubr.f32.gmra.mrb[0].mxu0 %v507
      %v1169 = vpop.f32.mrb[0].mxu0
      %v1170 = vadd.f32 %v947, %v1169
      %v1171 = vpop.f32.mrb[0].mxu0
      %1172 = vmatprep.mubr.f32.mxu0 %v518
      %1173 = vmatmul.mubr.f32.gmra.mrb[0].mxu0 %v517
      %v1174 = vpop.f32.mrb[0].mxu0
      %v1175 = vadd.f32 %v947, %v1174
      %v1176 = vpop.f32.mrb[0].mxu0
      %1177 = vmatprep.mubr.f32.mxu0 %v528
      %1178 = vmatmul.mubr.f32.gmra.mrb[0].mxu0 %v527
      %v1179 = vpop.f32.mrb[0].mxu0
      %v1180 = vadd.f32 %v947, %v1179
      %v1181 = vpop.f32.mrb[0].mxu0
      %1182 = vmatprep.mubr.f32.mxu0 %v538
      %1183 = vmatmul.mubr.f32.gmra.mrb[0].mxu0 %v537
      %v1184 = vpop.f32.mrb[0].mxu0
      %v1185 = vadd.f32 %v947, %v1184
      %v1186 = vpop.f32.mrb[0].mxu0
      %1187 = vmatprep.mubr.f32.mxu0 %v548
      %1188 = vmatmul.mubr.f32.gmra.mrb[0].mxu0 %v547
      %v1189 = vpop.f32.mrb[0].mxu0
      %v1190 = vadd.f32 %v947, %v1189
      %v1191 = vpop.f32.mrb[0].mxu0
      %1192 = vmatprep.mubr.f32.mxu0 %v558
      %1193 = vmatmul.mubr.f32.gmra.mrb[0].mxu0 %v557
      %v1194 = vpop.f32.mrb[0].mxu0
      %v1195 = vadd.f32 %v947, %v1194
      %v1196 = vpop.f32.mrb[0].mxu0
      %1197 = vmatprep.mubr.f32.mxu0 %v568
      %1198 = vmatmul.mubr.f32.gmra.mrb[0].mxu0 %v567
      %v1199 = vpop.f32.mrb[0].mxu0
      %v1200 = vadd.f32 %v947, %v1199
      %v1201 = vpop.f32.mrb[0].mxu0
      %1202 = vmatprep.mubr.f32.mxu0 %v578
      %1203 = vmatmul.mubr.f32.gmra.mrb[0].mxu0 %v577
      %v1204 = vpop.f32.mrb[0].mxu0
      %v1205 = vadd.f32 %v947, %v1204
      %v1206 = vpop.f32.mrb[0].mxu0
      %1207 = vmatprep.mubr.f32.mxu0 %v588
      %1208 = vmatmul.mubr.f32.gmra.mrb[0].mxu0 %v587
      %v1209 = vpop.f32.mrb[0].mxu0
      %v1210 = vadd.f32 %v947, %v1209
      %v1211 = vpop.f32.mrb[0].mxu0
      %1212 = vmatprep.mubr.f32.mxu0 %v598
      %1213 = vmatmul.mubr.f32.gmra.mrb[0].mxu0 %v597
      %v1214 = vpop.f32.mrb[0].mxu0
      %v1215 = vadd.f32 %v947, %v1214
      %v1216 = vpop.f32.mrb[0].mxu0
      %1217 = vmatprep.mubr.f32.mxu0 %v608
      %1218 = vmatmul.mubr.f32.gmra.mrb[0].mxu0 %v607
      %v1219 = vpop.f32.mrb[0].mxu0
      %v1220 = vadd.f32 %v947, %v1219
      %v1221 = vpop.f32.mrb[0].mxu0
      %1222 = vmatprep.mubr.f32.mxu0 %v618
      %1223 = vmatmul.mubr.f32.gmra.mrb[0].mxu0 %v617
      %v1224 = vpop.f32.mrb[0].mxu0
      %v1225 = vadd.f32 %v947, %v1224
      %v1226 = vpop.f32.mrb[0].mxu0
      %1227 = vmatprep.mubr.f32.mxu0 %v628
      %1228 = vmatmul.mubr.f32.gmra.mrb[0].mxu0 %v627
      %v1229 = vpop.f32.mrb[0].mxu0
      %v1230 = vadd.f32 %v947, %v1229
      %v1231 = vpop.f32.mrb[0].mxu0
      %1232 = vmatprep.mubr.f32.mxu0 %v638
      %1233 = vmatmul.mubr.f32.gmra.mrb[0].mxu0 %v637
      %v1234 = vpop.f32.mrb[0].mxu0
      %v1235 = vadd.f32 %v947, %v1234
      %v1236 = vpop.f32.mrb[0].mxu0
      %1237 = vmatprep.mubr.f32.mxu0 %v648
      %1238 = vmatmul.mubr.f32.gmra.mrb[0].mxu0 %v647
      %v1239 = vpop.f32.mrb[0].mxu0
      %v1240 = vadd.f32 %v947, %v1239
      %v1241 = vpop.f32.mrb[0].mxu0
      %1242 = vmatprep.mubr.f32.mxu0 %v658
      %1243 = vmatmul.mubr.f32.gmra.mrb[0].mxu0 %v657
      %v1244 = vpop.f32.mrb[0].mxu0
      %v1245 = vadd.f32 %v947, %v1244
      %v1246 = vpop.f32.mrb[0].mxu0
      %1247 = vmatprep.mubr.f32.mxu0 %v668
      %1248 = vmatmul.mubr.f32.gmra.mrb[0].mxu0 %v667
      %v1249 = vpop.f32.mrb[0].mxu0
      %v1250 = vadd.f32 %v947, %v1249
      %v1251 = vpop.f32.mrb[0].mxu0
      %1252 = vmatprep.mubr.f32.mxu0 %v678
      %1253 = vmatmul.mubr.f32.gmra.mrb[0].mxu0 %v677
      %v1254 = vpop.f32.mrb[0].mxu0
      %v1255 = vadd.f32 %v947, %v1254
      %v1256 = vpop.f32.mrb[0].mxu0
      %1257 = vmatprep.mubr.f32.mxu0 %v688
      %1258 = vmatmul.mubr.f32.gmra.mrb[0].mxu0 %v687
      %v1259 = vpop.f32.mrb[0].mxu0
      %v1260 = vadd.f32 %v947, %v1259
      %v1261 = vpop.f32.mrb[0].mxu0
      %1262 = vmatprep.mubr.f32.mxu0 %v698
      %1263 = vmatmul.mubr.f32.gmra.mrb[0].mxu0 %v697
      %v1264 = vpop.f32.mrb[0].mxu0
      %v1265 = vadd.f32 %v947, %v1264
      %v1266 = vpop.f32.mrb[0].mxu0
      %1267 = vmatprep.mubr.f32.mxu0 %v708
      %1268 = vmatmul.mubr.f32.gmra.mrb[0].mxu0 %v707
      %v1269 = vpop.f32.mrb[0].mxu0
      %v1270 = vadd.f32 %v947, %v1269
      %v1271 = vpop.f32.mrb[0].mxu0
      %1272 = vmatprep.mubr.f32.mxu0 %v718
      %1273 = vmatmul.mubr.f32.gmra.mrb[0].mxu0 %v717
      %v1274 = vpop.f32.mrb[0].mxu0
      %v1275 = vadd.f32 %v947, %v1274
      %v1276 = vpop.f32.mrb[0].mxu0
      %1277 = vmatprep.mubr.f32.mxu0 %v728
      %1278 = vmatmul.mubr.f32.gmra.mrb[0].mxu0 %v727
      %v1279 = vpop.f32.mrb[0].mxu0
      %v1280 = vadd.f32 %v947, %v1279
      %v1281 = vpop.f32.mrb[0].mxu0
      %1282 = vmatprep.mubr.f32.mxu0 %v738
      %1283 = vmatmul.mubr.f32.gmra.mrb[0].mxu0 %v737
      %v1284 = vpop.f32.mrb[0].mxu0
      %v1285 = vadd.f32 %v947, %v1284
      %v1286 = vpop.f32.mrb[0].mxu0
      %1287 = vmatprep.mubr.f32.mxu0 %v748
      %1288 = vmatmul.mubr.f32.gmra.mrb[0].mxu0 %v747
      %v1289 = vpop.f32.mrb[0].mxu0
      %v1290 = vadd.f32 %v947, %v1289
      %v1291 = vpop.f32.mrb[0].mxu0
      %1292 = vmatprep.mubr.f32.mxu0 %v758
      %1293 = vmatmul.mubr.f32.gmra.mrb[0].mxu0 %v757
      %v1294 = vpop.f32.mrb[0].mxu0
      %v1295 = vadd.f32 %v947, %v1294
      %v1296 = vpop.f32.mrb[0].mxu0
      %1297 = vmatprep.mubr.f32.mxu0 %v768
      %1298 = vmatmul.mubr.f32.gmra.mrb[0].mxu0 %v767
      %v1299 = vpop.f32.mrb[0].mxu0
      %v1300 = vadd.f32 %v947, %v1299
      %v1301 = vpop.f32.mrb[0].mxu0
      %1302 = vmatprep.mubr.f32.mxu0 %v778
      %1303 = vmatmul.mubr.f32.gmra.mrb[0].mxu0 %v777
      %v1304 = vpop.f32.mrb[0].mxu0
      %v1305 = vadd.f32 %v947, %v1304
      %v1306 = vpop.f32.mrb[0].mxu0
      %1307 = vmatprep.mubr.f32.mxu0 %v788
      %1308 = vmatmul.mubr.f32.gmra.mrb[0].mxu0 %v787
      %v1309 = vpop.f32.mrb[0].mxu0
      %v1310 = vadd.f32 %v947, %v1309
      %v1311 = vpop.f32.mrb[0].mxu0
      %1312 = vmatprep.mubr.f32.mxu0 %v798
      %1313 = vmatmul.mubr.f32.gmra.mrb[0].mxu0 %v797
      %v1314 = vpop.f32.mrb[0].mxu0
      %v1315 = vadd.f32 %v947, %v1314
      %v1316 = vpop.f32.mrb[0].mxu0
      %1317 = vmatprep.mubr.f32.mxu0 %v808
      %1318 = vmatmul.mubr.f32.gmra.mrb[0].mxu0 %v807
      %v1319 = vpop.f32.mrb[0].mxu0
      %v1320 = vadd.f32 %v947, %v1319
      %v1321 = vpop.f32.mrb[0].mxu0
      %1322 = vmatprep.mubr.f32.mxu0 %v818
      %1323 = vmatmul.mubr.f32.gmra.mrb[0].mxu0 %v817
      %v1324 = vpop.f32.mrb[0].mxu0
      %v1325 = vadd.f32 %v947, %v1324
      %v1326 = vpop.f32.mrb[0].mxu0
      %1327 = vmatprep.mubr.f32.mxu0 %v828
      %1328 = vmatmul.mubr.f32.gmra.mrb[0].mxu0 %v827
      %v1329 = vpop.f32.mrb[0].mxu0
      %v1330 = vadd.f32 %v947, %v1329
      %v1331 = vpop.f32.mrb[0].mxu0
      %1332 = vmatprep.mubr.f32.mxu0 %v838
      %1333 = vmatmul.mubr.f32.gmra.mrb[0].mxu0 %v837
      %v1334 = vpop.f32.mrb[0].mxu0
      %v1335 = vadd.f32 %v947, %v1334
      %v1336 = vpop.f32.mrb[0].mxu0
      %1337 = vmatprep.mubr.f32.mxu0 %v848
      %1338 = vmatmul.mubr.f32.gmra.mrb[0].mxu0 %v847
      %v1339 = vpop.f32.mrb[0].mxu0
      %v1340 = vadd.f32 %v947, %v1339
      %v1341 = vpop.f32.mrb[0].mxu0
      %1342 = vmatprep.mubr.f32.mxu0 %v858
      %1343 = vmatmul.mubr.f32.gmra.mrb[0].mxu0 %v857
      %v1344 = vpop.f32.mrb[0].mxu0
      %v1345 = vadd.f32 %v947, %v1344
      %v1346 = vpop.f32.mrb[0].mxu0
      %1347 = vmatprep.mubr.f32.mxu0 %v868
      %1348 = vmatmul.mubr.f32.gmra.mrb[0].mxu0 %v867
      %v1349 = vpop.f32.mrb[0].mxu0
      %v1350 = vadd.f32 %v947, %v1349
      %v1351 = vpop.f32.mrb[0].mxu0
      %1352 = vmatprep.mubr.f32.mxu0 %v878
      %1353 = vmatmul.mubr.f32.gmra.mrb[0].mxu0 %v877
      %v1354 = vpop.f32.mrb[0].mxu0
      %v1355 = vadd.f32 %v947, %v1354
      %v1356 = vpop.f32.mrb[0].mxu0
      %1357 = vmatprep.mubr.f32.mxu0 %v888
      %1358 = vmatmul.mubr.f32.gmra.mrb[0].mxu0 %v887
      %v1359 = vpop.f32.mrb[0].mxu0
      %v1360 = vadd.f32 %v947, %v1359
      %v1361 = vpop.f32.mrb[0].mxu0
      %1362 = vmatprep.mubr.f32.mxu0 %v898
      %1363 = vmatmul.mubr.f32.gmra.mrb[0].mxu0 %v897
      %v1364 = vpop.f32.mrb[0].mxu0
      %v1365 = vadd.f32 %v947, %v1364
      %v1366 = vpop.f32.mrb[0].mxu0
      %1367 = vmatprep.mubr.f32.mxu0 %v908
      %1368 = vmatmul.mubr.f32.gmra.mrb[0].mxu0 %v907
      %v1369 = vpop.f32.mrb[0].mxu0
      %v1370 = vadd.f32 %v947, %v1369
      %v1371 = vpop.f32.mrb[0].mxu0
      %1372 = vmatprep.mubr.f32.mxu0 %v918
      %1373 = vmatmul.mubr.f32.gmra.mrb[0].mxu0 %v917
      %v1374 = vpop.f32.mrb[0].mxu0
      %v1375 = vadd.f32 %v947, %v1374
      %v1376 = vpop.f32.mrb[0].mxu0
      %1377 = vmatprep.mubr.f32.mxu0 %v928
      %1378 = vmatmul.mubr.f32.gmra.mrb[0].mxu0 %v927
      %v1379 = vpop.f32.mrb[0].mxu0
      %v1380 = vadd.f32 %v947, %v1379
      %v1381 = vpop.f32.mrb[0].mxu0
      %1382 = vdwg.mxu0
      %1383 = vmatprep.subr.mxu0 %v955
      %1384 = vmatpush1.xpose.msra.mxu0 %v938
      %1385 = vmatprep.subr.mxu0 0.0
      %1386 = vmatpush1.xpose.msra.mxu0 0.0
      %1387 = vmatprep.subr.mxu0 0.0
      %1388 = vmatpush1.xpose.msra.mxu0 0.0
      %1389 = vmatprep.subr.mxu0 0.0
      %1390 = vmatpush1.xpose.msra.mxu0 0.0
      %1391 = vmatprep.subr.mxu0 0.0
      %1392 = vmatpush1.xpose.msra.mxu0 0.0
      %1393 = vmatprep.subr.mxu0 0.0
      %1394 = vmatpush1.xpose.msra.mxu0 0.0
      %1395 = vmatprep.subr.mxu0 0.0
      %1396 = vmatpush1.xpose.msra.mxu0 0.0
      %1397 = vmatprep.subr.mxu0 0.0
      %1398 = vmatpush1.xpose.msra.mxu0 0.0
      %1399 = vmatprep.subr.mxu0 0.0
      %1400 = vmatpush1.xpose.msra.mxu0 0.0
      %1401 = vmatprep.subr.mxu0 0.0
      %1402 = vmatpush1.xpose.msra.mxu0 0.0
      %1403 = vmatprep.subr.mxu0 0.0
      %1404 = vmatpush1.xpose.msra.mxu0 0.0
      %1405 = vmatprep.subr.mxu0 0.0
      %1406 = vmatpush1.xpose.msra.mxu0 0.0
      %1407 = vmatprep.subr.mxu0 0.0
      %1408 = vmatpush1.xpose.msra.mxu0 0.0
      %1409 = vmatprep.subr.mxu0 0.0
      %1410 = vmatpush1.xpose.msra.mxu0 0.0
      %1411 = vmatprep.subr.mxu0 0.0
      %1412 = vmatpush1.xpose.msra.mxu0 0.0
      %1413 = vmatprep.subr.mxu0 0.0
      %1414 = vmatpush1.xpose.msra.mxu0 0.0
      %1415 = vmatprep.subr.mxu0 0.0
      %1416 = vmatpush1.xpose.msra.mxu0 0.0
      %1417 = vmatprep.subr.mxu0 0.0
      %1418 = vmatpush1.xpose.msra.mxu0 0.0
      %1419 = vmatprep.subr.mxu0 0.0
      %1420 = vmatpush1.xpose.msra.mxu0 0.0
      %1421 = vmatprep.subr.mxu0 0.0
      %1422 = vmatpush1.xpose.msra.mxu0 0.0
      %1423 = vmatprep.subr.mxu0 0.0
      %1424 = vmatpush1.xpose.msra.mxu0 0.0
      %1425 = vmatprep.subr.mxu0 0.0
      %1426 = vmatpush1.xpose.msra.mxu0 0.0
      %1427 = vmatprep.subr.mxu0 0.0
      %1428 = vmatpush1.xpose.msra.mxu0 0.0
      %1429 = vmatprep.subr.mxu0 0.0
      %1430 = vmatpush1.xpose.msra.mxu0 0.0
      %1431 = vmatprep.subr.mxu0 0.0
      %1432 = vmatpush1.xpose.msra.mxu0 0.0
      %1433 = vmatprep.subr.mxu0 0.0
      %1434 = vmatpush1.xpose.msra.mxu0 0.0
      %1435 = vmatprep.subr.mxu0 0.0
      %1436 = vmatpush1.xpose.msra.mxu0 0.0
      %1437 = vmatprep.subr.mxu0 0.0
      %1438 = vmatpush1.xpose.msra.mxu0 0.0
      %1439 = vmatprep.subr.mxu0 0.0
      %1440 = vmatpush1.xpose.msra.mxu0 0.0
      %1441 = vmatprep.subr.mxu0 0.0
      %1442 = vmatpush1.xpose.msra.mxu0 0.0
      %1443 = vmatprep.subr.mxu0 0.0
      %1444 = vmatpush1.xpose.msra.mxu0 0.0
      %1445 = vmatprep.subr.mxu0 0.0
      %1446 = vmatpush1.xpose.msra.mxu0 0.0
      %1447 = vmatprep.mubr.f32.mxu0 %v500
      %1448 = vmatmul.mubr.f32.gmra.mrb[0].mxu0 %v499
      %v1449 = vpop.f32.mrb[0].mxu0
      %v1450 = vadd.f32 %v1165, %v1449
      %v1451 = vpop.f32.mrb[0].mxu0
      %1452 = vmatprep.mubr.f32.mxu0 %v510
      %1453 = vmatmul.mubr.f32.gmra.mrb[0].mxu0 %v509
      %v1454 = vpop.f32.mrb[0].mxu0
      %v1455 = vadd.f32 %v1170, %v1454
      %v1456 = vpop.f32.mrb[0].mxu0
      %1457 = vmatprep.mubr.f32.mxu0 %v520
      %1458 = vmatmul.mubr.f32.gmra.mrb[0].mxu0 %v519
      %v1459 = vpop.f32.mrb[0].mxu0
      %v1460 = vadd.f32 %v1175, %v1459
      %v1461 = vpop.f32.mrb[0].mxu0
      %1462 = vmatprep.mubr.f32.mxu0 %v530
      %1463 = vmatmul.mubr.f32.gmra.mrb[0].mxu0 %v529
      %v1464 = vpop.f32.mrb[0].mxu0
      %v1465 = vadd.f32 %v1180, %v1464
      %v1466 = vpop.f32.mrb[0].mxu0
      %1467 = vmatprep.mubr.f32.mxu0 %v540
      %1468 = vmatmul.mubr.f32.gmra.mrb[0].mxu0 %v539
      %v1469 = vpop.f32.mrb[0].mxu0
      %v1470 = vadd.f32 %v1185, %v1469
      %v1471 = vpop.f32.mrb[0].mxu0
      %1472 = vmatprep.mubr.f32.mxu0 %v550
      %1473 = vmatmul.mubr.f32.gmra.mrb[0].mxu0 %v549
      %v1474 = vpop.f32.mrb[0].mxu0
      %v1475 = vadd.f32 %v1190, %v1474
      %v1476 = vpop.f32.mrb[0].mxu0
      %1477 = vmatprep.mubr.f32.mxu0 %v560
      %1478 = vmatmul.mubr.f32.gmra.mrb[0].mxu0 %v559
      %v1479 = vpop.f32.mrb[0].mxu0
      %v1480 = vadd.f32 %v1195, %v1479
      %v1481 = vpop.f32.mrb[0].mxu0
      %1482 = vmatprep.mubr.f32.mxu0 %v570
      %1483 = vmatmul.mubr.f32.gmra.mrb[0].mxu0 %v569
      %v1484 = vpop.f32.mrb[0].mxu0
      %v1485 = vadd.f32 %v1200, %v1484
      %v1486 = vpop.f32.mrb[0].mxu0
      %1487 = vmatprep.mubr.f32.mxu0 %v580
      %1488 = vmatmul.mubr.f32.gmra.mrb[0].mxu0 %v579
      %v1489 = vpop.f32.mrb[0].mxu0
      %v1490 = vadd.f32 %v1205, %v1489
      %v1491 = vpop.f32.mrb[0].mxu0
      %1492 = vmatprep.mubr.f32.mxu0 %v590
      %1493 = vmatmul.mubr.f32.gmra.mrb[0].mxu0 %v589
      %v1494 = vpop.f32.mrb[0].mxu0
      %v1495 = vadd.f32 %v1210, %v1494
      %v1496 = vpop.f32.mrb[0].mxu0
      %1497 = vmatprep.mubr.f32.mxu0 %v600
      %1498 = vmatmul.mubr.f32.gmra.mrb[0].mxu0 %v599
      %v1499 = vpop.f32.mrb[0].mxu0
      %v1500 = vadd.f32 %v1215, %v1499
      %v1501 = vpop.f32.mrb[0].mxu0
      %1502 = vmatprep.mubr.f32.mxu0 %v610
      %1503 = vmatmul.mubr.f32.gmra.mrb[0].mxu0 %v609
      %v1504 = vpop.f32.mrb[0].mxu0
      %v1505 = vadd.f32 %v1220, %v1504
      %v1506 = vpop.f32.mrb[0].mxu0
      %1507 = vmatprep.mubr.f32.mxu0 %v620
      %1508 = vmatmul.mubr.f32.gmra.mrb[0].mxu0 %v619
      %v1509 = vpop.f32.mrb[0].mxu0
      %v1510 = vadd.f32 %v1225, %v1509
      %v1511 = vpop.f32.mrb[0].mxu0
      %1512 = vmatprep.mubr.f32.mxu0 %v630
      %1513 = vmatmul.mubr.f32.gmra.mrb[0].mxu0 %v629
      %v1514 = vpop.f32.mrb[0].mxu0
      %v1515 = vadd.f32 %v1230, %v1514
      %v1516 = vpop.f32.mrb[0].mxu0
      %1517 = vmatprep.mubr.f32.mxu0 %v640
      %1518 = vmatmul.mubr.f32.gmra.mrb[0].mxu0 %v639
      %v1519 = vpop.f32.mrb[0].mxu0
      %v1520 = vadd.f32 %v1235, %v1519
      %v1521 = vpop.f32.mrb[0].mxu0
      %1522 = vmatprep.mubr.f32.mxu0 %v650
      %1523 = vmatmul.mubr.f32.gmra.mrb[0].mxu0 %v649
      %v1524 = vpop.f32.mrb[0].mxu0
      %v1525 = vadd.f32 %v1240, %v1524
      %v1526 = vpop.f32.mrb[0].mxu0
      %1527 = vmatprep.mubr.f32.mxu0 %v660
      %1528 = vmatmul.mubr.f32.gmra.mrb[0].mxu0 %v659
      %v1529 = vpop.f32.mrb[0].mxu0
      %v1530 = vadd.f32 %v1245, %v1529
      %v1531 = vpop.f32.mrb[0].mxu0
      %1532 = vmatprep.mubr.f32.mxu0 %v670
      %1533 = vmatmul.mubr.f32.gmra.mrb[0].mxu0 %v669
      %v1534 = vpop.f32.mrb[0].mxu0
      %v1535 = vadd.f32 %v1250, %v1534
      %v1536 = vpop.f32.mrb[0].mxu0
      %1537 = vmatprep.mubr.f32.mxu0 %v680
      %1538 = vmatmul.mubr.f32.gmra.mrb[0].mxu0 %v679
      %v1539 = vpop.f32.mrb[0].mxu0
      %v1540 = vadd.f32 %v1255, %v1539
      %v1541 = vpop.f32.mrb[0].mxu0
      %1542 = vmatprep.mubr.f32.mxu0 %v690
      %1543 = vmatmul.mubr.f32.gmra.mrb[0].mxu0 %v689
      %v1544 = vpop.f32.mrb[0].mxu0
      %v1545 = vadd.f32 %v1260, %v1544
      %v1546 = vpop.f32.mrb[0].mxu0
      %1547 = vmatprep.mubr.f32.mxu0 %v700
      %1548 = vmatmul.mubr.f32.gmra.mrb[0].mxu0 %v699
      %v1549 = vpop.f32.mrb[0].mxu0
      %v1550 = vadd.f32 %v1265, %v1549
      %v1551 = vpop.f32.mrb[0].mxu0
      %1552 = vmatprep.mubr.f32.mxu0 %v710
      %1553 = vmatmul.mubr.f32.gmra.mrb[0].mxu0 %v709
      %v1554 = vpop.f32.mrb[0].mxu0
      %v1555 = vadd.f32 %v1270, %v1554
      %v1556 = vpop.f32.mrb[0].mxu0
      %1557 = vmatprep.mubr.f32.mxu0 %v720
      %1558 = vmatmul.mubr.f32.gmra.mrb[0].mxu0 %v719
      %v1559 = vpop.f32.mrb[0].mxu0
      %v1560 = vadd.f32 %v1275, %v1559
      %v1561 = vpop.f32.mrb[0].mxu0
      %1562 = vmatprep.mubr.f32.mxu0 %v730
      %1563 = vmatmul.mubr.f32.gmra.mrb[0].mxu0 %v729
      %v1564 = vpop.f32.mrb[0].mxu0
      %v1565 = vadd.f32 %v1280, %v1564
      %v1566 = vpop.f32.mrb[0].mxu0
      %1567 = vmatprep.mubr.f32.mxu0 %v740
      %1568 = vmatmul.mubr.f32.gmra.mrb[0].mxu0 %v739
      %v1569 = vpop.f32.mrb[0].mxu0
      %v1570 = vadd.f32 %v1285, %v1569
      %v1571 = vpop.f32.mrb[0].mxu0
      %1572 = vmatprep.mubr.f32.mxu0 %v750
      %1573 = vmatmul.mubr.f32.gmra.mrb[0].mxu0 %v749
      %v1574 = vpop.f32.mrb[0].mxu0
      %v1575 = vadd.f32 %v1290, %v1574
      %v1576 = vpop.f32.mrb[0].mxu0
      %1577 = vmatprep.mubr.f32.mxu0 %v760
      %1578 = vmatmul.mubr.f32.gmra.mrb[0].mxu0 %v759
      %v1579 = vpop.f32.mrb[0].mxu0
      %v1580 = vadd.f32 %v1295, %v1579
      %v1581 = vpop.f32.mrb[0].mxu0
      %1582 = vmatprep.mubr.f32.mxu0 %v770
      %1583 = vmatmul.mubr.f32.gmra.mrb[0].mxu0 %v769
      %v1584 = vpop.f32.mrb[0].mxu0
      %v1585 = vadd.f32 %v1300, %v1584
      %v1586 = vpop.f32.mrb[0].mxu0
      %1587 = vmatprep.mubr.f32.mxu0 %v780
      %1588 = vmatmul.mubr.f32.gmra.mrb[0].mxu0 %v779
      %v1589 = vpop.f32.mrb[0].mxu0
      %v1590 = vadd.f32 %v1305, %v1589
      %v1591 = vpop.f32.mrb[0].mxu0
      %1592 = vmatprep.mubr.f32.mxu0 %v790
      %1593 = vmatmul.mubr.f32.gmra.mrb[0].mxu0 %v789
      %v1594 = vpop.f32.mrb[0].mxu0
      %v1595 = vadd.f32 %v1310, %v1594
      %v1596 = vpop.f32.mrb[0].mxu0
      %1597 = vmatprep.mubr.f32.mxu0 %v800
      %1598 = vmatmul.mubr.f32.gmra.mrb[0].mxu0 %v799
      %v1599 = vpop.f32.mrb[0].mxu0
      %v1600 = vadd.f32 %v1315, %v1599
      %v1601 = vpop.f32.mrb[0].mxu0
      %1602 = vmatprep.mubr.f32.mxu0 %v810
      %1603 = vmatmul.mubr.f32.gmra.mrb[0].mxu0 %v809
      %v1604 = vpop.f32.mrb[0].mxu0
      %v1605 = vadd.f32 %v1320, %v1604
      %v1606 = vpop.f32.mrb[0].mxu0
      %1607 = vmatprep.mubr.f32.mxu0 %v820
      %1608 = vmatmul.mubr.f32.gmra.mrb[0].mxu0 %v819
      %v1609 = vpop.f32.mrb[0].mxu0
      %v1610 = vadd.f32 %v1325, %v1609
      %v1611 = vpop.f32.mrb[0].mxu0
      %1612 = vmatprep.mubr.f32.mxu0 %v830
      %1613 = vmatmul.mubr.f32.gmra.mrb[0].mxu0 %v829
      %v1614 = vpop.f32.mrb[0].mxu0
      %v1615 = vadd.f32 %v1330, %v1614
      %v1616 = vpop.f32.mrb[0].mxu0
      %1617 = vmatprep.mubr.f32.mxu0 %v840
      %1618 = vmatmul.mubr.f32.gmra.mrb[0].mxu0 %v839
      %v1619 = vpop.f32.mrb[0].mxu0
      %v1620 = vadd.f32 %v1335, %v1619
      %v1621 = vpop.f32.mrb[0].mxu0
      %1622 = vmatprep.mubr.f32.mxu0 %v850
      %1623 = vmatmul.mubr.f32.gmra.mrb[0].mxu0 %v849
      %v1624 = vpop.f32.mrb[0].mxu0
      %v1625 = vadd.f32 %v1340, %v1624
      %v1626 = vpop.f32.mrb[0].mxu0
      %1627 = vmatprep.mubr.f32.mxu0 %v860
      %1628 = vmatmul.mubr.f32.gmra.mrb[0].mxu0 %v859
      %v1629 = vpop.f32.mrb[0].mxu0
      %v1630 = vadd.f32 %v1345, %v1629
      %v1631 = vpop.f32.mrb[0].mxu0
      %1632 = vmatprep.mubr.f32.mxu0 %v870
      %1633 = vmatmul.mubr.f32.gmra.mrb[0].mxu0 %v869
      %v1634 = vpop.f32.mrb[0].mxu0
      %v1635 = vadd.f32 %v1350, %v1634
      %v1636 = vpop.f32.mrb[0].mxu0
      %1637 = vmatprep.mubr.f32.mxu0 %v880
      %1638 = vmatmul.mubr.f32.gmra.mrb[0].mxu0 %v879
      %v1639 = vpop.f32.mrb[0].mxu0
      %v1640 = vadd.f32 %v1355, %v1639
      %v1641 = vpop.f32.mrb[0].mxu0
      %1642 = vmatprep.mubr.f32.mxu0 %v890
      %1643 = vmatmul.mubr.f32.gmra.mrb[0].mxu0 %v889
      %v1644 = vpop.f32.mrb[0].mxu0
      %v1645 = vadd.f32 %v1360, %v1644
      %v1646 = vpop.f32.mrb[0].mxu0
      %1647 = vmatprep.mubr.f32.mxu0 %v900
      %1648 = vmatmul.mubr.f32.gmra.mrb[0].mxu0 %v899
      %v1649 = vpop.f32.mrb[0].mxu0
      %v1650 = vadd.f32 %v1365, %v1649
      %v1651 = vpop.f32.mrb[0].mxu0
      %1652 = vmatprep.mubr.f32.mxu0 %v910
      %1653 = vmatmul.mubr.f32.gmra.mrb[0].mxu0 %v909
      %v1654 = vpop.f32.mrb[0].mxu0
      %v1655 = vadd.f32 %v1370, %v1654
      %v1656 = vpop.f32.mrb[0].mxu0
      %1657 = vmatprep.mubr.f32.mxu0 %v920
      %1658 = vmatmul.mubr.f32.gmra.mrb[0].mxu0 %v919
      %v1659 = vpop.f32.mrb[0].mxu0
      %v1660 = vadd.f32 %v1375, %v1659
      %v1661 = vpop.f32.mrb[0].mxu0
      %1662 = vmatprep.mubr.f32.mxu0 %v930
      %1663 = vmatmul.mubr.f32.gmra.mrb[0].mxu0 %v929
      %v1664 = vpop.f32.mrb[0].mxu0
      %v1665 = vadd.f32 %v1380, %v1664
      %v1666 = vpop.f32.mrb[0].mxu0
      %1667 = vdwg.mxu0
      %1668 = vmatprep.subr.mxu0 %v956
      %1669 = vmatpush1.xpose.msra.mxu0 %v939
      %1670 = vmatprep.subr.mxu0 0.0
      %1671 = vmatpush1.xpose.msra.mxu0 0.0
      %1672 = vmatprep.subr.mxu0 0.0
      %1673 = vmatpush1.xpose.msra.mxu0 0.0
      %1674 = vmatprep.subr.mxu0 0.0
      %1675 = vmatpush1.xpose.msra.mxu0 0.0
      %1676 = vmatprep.subr.mxu0 0.0
      %1677 = vmatpush1.xpose.msra.mxu0 0.0
      %1678 = vmatprep.subr.mxu0 0.0
      %1679 = vmatpush1.xpose.msra.mxu0 0.0
      %1680 = vmatprep.subr.mxu0 0.0
      %1681 = vmatpush1.xpose.msra.mxu0 0.0
      %1682 = vmatprep.subr.mxu0 0.0
      %1683 = vmatpush1.xpose.msra.mxu0 0.0
      %1684 = vmatprep.subr.mxu0 0.0
      %1685 = vmatpush1.xpose.msra.mxu0 0.0
      %1686 = vmatprep.subr.mxu0 0.0
      %1687 = vmatpush1.xpose.msra.mxu0 0.0
      %1688 = vmatprep.subr.mxu0 0.0
      %1689 = vmatpush1.xpose.msra.mxu0 0.0
      %1690 = vmatprep.subr.mxu0 0.0
      %1691 = vmatpush1.xpose.msra.mxu0 0.0
      %1692 = vmatprep.subr.mxu0 0.0
      %1693 = vmatpush1.xpose.msra.mxu0 0.0
      %1694 = vmatprep.subr.mxu0 0.0
      %1695 = vmatpush1.xpose.msra.mxu0 0.0
      %1696 = vmatprep.subr.mxu0 0.0
      %1697 = vmatpush1.xpose.msra.mxu0 0.0
      %1698 = vmatprep.subr.mxu0 0.0
      %1699 = vmatpush1.xpose.msra.mxu0 0.0
      %1700 = vmatprep.subr.mxu0 0.0
      %1701 = vmatpush1.xpose.msra.mxu0 0.0
      %1702 = vmatprep.subr.mxu0 0.0
      %1703 = vmatpush1.xpose.msra.mxu0 0.0
      %1704 = vmatprep.subr.mxu0 0.0
      %1705 = vmatpush1.xpose.msra.mxu0 0.0
      %1706 = vmatprep.subr.mxu0 0.0
      %1707 = vmatpush1.xpose.msra.mxu0 0.0
      %1708 = vmatprep.subr.mxu0 0.0
      %1709 = vmatpush1.xpose.msra.mxu0 0.0
      %1710 = vmatprep.subr.mxu0 0.0
      %1711 = vmatpush1.xpose.msra.mxu0 0.0
      %1712 = vmatprep.subr.mxu0 0.0
      %1713 = vmatpush1.xpose.msra.mxu0 0.0
      %1714 = vmatprep.subr.mxu0 0.0
      %1715 = vmatpush1.xpose.msra.mxu0 0.0
      %1716 = vmatprep.subr.mxu0 0.0
      %1717 = vmatpush1.xpose.msra.mxu0 0.0
      %1718 = vmatprep.subr.mxu0 0.0
      %1719 = vmatpush1.xpose.msra.mxu0 0.0
      %1720 = vmatprep.subr.mxu0 0.0
      %1721 = vmatpush1.xpose.msra.mxu0 0.0
      %1722 = vmatprep.subr.mxu0 0.0
      %1723 = vmatpush1.xpose.msra.mxu0 0.0
      %1724 = vmatprep.subr.mxu0 0.0
      %1725 = vmatpush1.xpose.msra.mxu0 0.0
      %1726 = vmatprep.subr.mxu0 0.0
      %1727 = vmatpush1.xpose.msra.mxu0 0.0
      %1728 = vmatprep.subr.mxu0 0.0
      %1729 = vmatpush1.xpose.msra.mxu0 0.0
      %1730 = vmatprep.subr.mxu0 0.0
      %1731 = vmatpush1.xpose.msra.mxu0 0.0
      %1732 = vmatprep.mubr.f32.mxu0 %v502
      %1733 = vmatmul.mubr.f32.gmra.mrb[0].mxu0 %v501
      %v1734 = vpop.f32.mrb[0].mxu0
      %v1735 = vadd.f32 %v1450, %v1734
      %v1736 = vpop.f32.mrb[0].mxu0
      %1737 = vmatprep.mubr.f32.mxu0 %v512
      %1738 = vmatmul.mubr.f32.gmra.mrb[0].mxu0 %v511
      %v1739 = vpop.f32.mrb[0].mxu0
      %v1740 = vadd.f32 %v1455, %v1739
      %v1741 = vpop.f32.mrb[0].mxu0
      %1742 = vmatprep.mubr.f32.mxu0 %v522
      %1743 = vmatmul.mubr.f32.gmra.mrb[0].mxu0 %v521
      %v1744 = vpop.f32.mrb[0].mxu0
      %v1745 = vadd.f32 %v1460, %v1744
      %v1746 = vpop.f32.mrb[0].mxu0
      %1747 = vmatprep.mubr.f32.mxu0 %v532
      %1748 = vmatmul.mubr.f32.gmra.mrb[0].mxu0 %v531
      %v1749 = vpop.f32.mrb[0].mxu0
      %v1750 = vadd.f32 %v1465, %v1749
      %v1751 = vpop.f32.mrb[0].mxu0
      %1752 = vmatprep.mubr.f32.mxu0 %v542
      %1753 = vmatmul.mubr.f32.gmra.mrb[0].mxu0 %v541
      %v1754 = vpop.f32.mrb[0].mxu0
      %v1755 = vadd.f32 %v1470, %v1754
      %v1756 = vpop.f32.mrb[0].mxu0
      %1757 = vmatprep.mubr.f32.mxu0 %v552
      %1758 = vmatmul.mubr.f32.gmra.mrb[0].mxu0 %v551
      %v1759 = vpop.f32.mrb[0].mxu0
      %v1760 = vadd.f32 %v1475, %v1759
      %v1761 = vpop.f32.mrb[0].mxu0
      %1762 = vmatprep.mubr.f32.mxu0 %v562
      %1763 = vmatmul.mubr.f32.gmra.mrb[0].mxu0 %v561
      %v1764 = vpop.f32.mrb[0].mxu0
      %v1765 = vadd.f32 %v1480, %v1764
      %v1766 = vpop.f32.mrb[0].mxu0
      %1767 = vmatprep.mubr.f32.mxu0 %v572
      %1768 = vmatmul.mubr.f32.gmra.mrb[0].mxu0 %v571
      %v1769 = vpop.f32.mrb[0].mxu0
      %v1770 = vadd.f32 %v1485, %v1769
      %v1771 = vpop.f32.mrb[0].mxu0
      %1772 = vmatprep.mubr.f32.mxu0 %v582
      %1773 = vmatmul.mubr.f32.gmra.mrb[0].mxu0 %v581
      %v1774 = vpop.f32.mrb[0].mxu0
      %v1775 = vadd.f32 %v1490, %v1774
      %v1776 = vpop.f32.mrb[0].mxu0
      %1777 = vmatprep.mubr.f32.mxu0 %v592
      %1778 = vmatmul.mubr.f32.gmra.mrb[0].mxu0 %v591
      %v1779 = vpop.f32.mrb[0].mxu0
      %v1780 = vadd.f32 %v1495, %v1779
      %v1781 = vpop.f32.mrb[0].mxu0
      %1782 = vmatprep.mubr.f32.mxu0 %v602
      %1783 = vmatmul.mubr.f32.gmra.mrb[0].mxu0 %v601
      %v1784 = vpop.f32.mrb[0].mxu0
      %v1785 = vadd.f32 %v1500, %v1784
      %v1786 = vpop.f32.mrb[0].mxu0
      %1787 = vmatprep.mubr.f32.mxu0 %v612
      %1788 = vmatmul.mubr.f32.gmra.mrb[0].mxu0 %v611
      %v1789 = vpop.f32.mrb[0].mxu0
      %v1790 = vadd.f32 %v1505, %v1789
      %v1791 = vpop.f32.mrb[0].mxu0
      %1792 = vmatprep.mubr.f32.mxu0 %v622
      %1793 = vmatmul.mubr.f32.gmra.mrb[0].mxu0 %v621
      %v1794 = vpop.f32.mrb[0].mxu0
      %v1795 = vadd.f32 %v1510, %v1794
      %v1796 = vpop.f32.mrb[0].mxu0
      %1797 = vmatprep.mubr.f32.mxu0 %v632
      %1798 = vmatmul.mubr.f32.gmra.mrb[0].mxu0 %v631
      %v1799 = vpop.f32.mrb[0].mxu0
      %v1800 = vadd.f32 %v1515, %v1799
      %v1801 = vpop.f32.mrb[0].mxu0
      %1802 = vmatprep.mubr.f32.mxu0 %v642
      %1803 = vmatmul.mubr.f32.gmra.mrb[0].mxu0 %v641
      %v1804 = vpop.f32.mrb[0].mxu0
      %v1805 = vadd.f32 %v1520, %v1804
      %v1806 = vpop.f32.mrb[0].mxu0
      %1807 = vmatprep.mubr.f32.mxu0 %v652
      %1808 = vmatmul.mubr.f32.gmra.mrb[0].mxu0 %v651
      %v1809 = vpop.f32.mrb[0].mxu0
      %v1810 = vadd.f32 %v1525, %v1809
      %v1811 = vpop.f32.mrb[0].mxu0
      %1812 = vmatprep.mubr.f32.mxu0 %v662
      %1813 = vmatmul.mubr.f32.gmra.mrb[0].mxu0 %v661
      %v1814 = vpop.f32.mrb[0].mxu0
      %v1815 = vadd.f32 %v1530, %v1814
      %v1816 = vpop.f32.mrb[0].mxu0
      %1817 = vmatprep.mubr.f32.mxu0 %v672
      %1818 = vmatmul.mubr.f32.gmra.mrb[0].mxu0 %v671
      %v1819 = vpop.f32.mrb[0].mxu0
      %v1820 = vadd.f32 %v1535, %v1819
      %v1821 = vpop.f32.mrb[0].mxu0
      %1822 = vmatprep.mubr.f32.mxu0 %v682
      %1823 = vmatmul.mubr.f32.gmra.mrb[0].mxu0 %v681
      %v1824 = vpop.f32.mrb[0].mxu0
      %v1825 = vadd.f32 %v1540, %v1824
      %v1826 = vpop.f32.mrb[0].mxu0
      %1827 = vmatprep.mubr.f32.mxu0 %v692
      %1828 = vmatmul.mubr.f32.gmra.mrb[0].mxu0 %v691
      %v1829 = vpop.f32.mrb[0].mxu0
      %v1830 = vadd.f32 %v1545, %v1829
      %v1831 = vpop.f32.mrb[0].mxu0
      %1832 = vmatprep.mubr.f32.mxu0 %v702
      %1833 = vmatmul.mubr.f32.gmra.mrb[0].mxu0 %v701
      %v1834 = vpop.f32.mrb[0].mxu0
      %v1835 = vadd.f32 %v1550, %v1834
      %v1836 = vpop.f32.mrb[0].mxu0
      %1837 = vmatprep.mubr.f32.mxu0 %v712
      %1838 = vmatmul.mubr.f32.gmra.mrb[0].mxu0 %v711
      %v1839 = vpop.f32.mrb[0].mxu0
      %v1840 = vadd.f32 %v1555, %v1839
      %v1841 = vpop.f32.mrb[0].mxu0
      %1842 = vmatprep.mubr.f32.mxu0 %v722
      %1843 = vmatmul.mubr.f32.gmra.mrb[0].mxu0 %v721
      %v1844 = vpop.f32.mrb[0].mxu0
      %v1845 = vadd.f32 %v1560, %v1844
      %v1846 = vpop.f32.mrb[0].mxu0
      %1847 = vmatprep.mubr.f32.mxu0 %v732
      %1848 = vmatmul.mubr.f32.gmra.mrb[0].mxu0 %v731
      %v1849 = vpop.f32.mrb[0].mxu0
      %v1850 = vadd.f32 %v1565, %v1849
      %v1851 = vpop.f32.mrb[0].mxu0
      %1852 = vmatprep.mubr.f32.mxu0 %v742
      %1853 = vmatmul.mubr.f32.gmra.mrb[0].mxu0 %v741
      %v1854 = vpop.f32.mrb[0].mxu0
      %v1855 = vadd.f32 %v1570, %v1854
      %v1856 = vpop.f32.mrb[0].mxu0
      %1857 = vmatprep.mubr.f32.mxu0 %v752
      %1858 = vmatmul.mubr.f32.gmra.mrb[0].mxu0 %v751
      %v1859 = vpop.f32.mrb[0].mxu0
      %v1860 = vadd.f32 %v1575, %v1859
      %v1861 = vpop.f32.mrb[0].mxu0
      %1862 = vmatprep.mubr.f32.mxu0 %v762
      %1863 = vmatmul.mubr.f32.gmra.mrb[0].mxu0 %v761
      %v1864 = vpop.f32.mrb[0].mxu0
      %v1865 = vadd.f32 %v1580, %v1864
      %v1866 = vpop.f32.mrb[0].mxu0
      %1867 = vmatprep.mubr.f32.mxu0 %v772
      %1868 = vmatmul.mubr.f32.gmra.mrb[0].mxu0 %v771
      %v1869 = vpop.f32.mrb[0].mxu0
      %v1870 = vadd.f32 %v1585, %v1869
      %v1871 = vpop.f32.mrb[0].mxu0
      %1872 = vmatprep.mubr.f32.mxu0 %v782
      %1873 = vmatmul.mubr.f32.gmra.mrb[0].mxu0 %v781
      %v1874 = vpop.f32.mrb[0].mxu0
      %v1875 = vadd.f32 %v1590, %v1874
      %v1876 = vpop.f32.mrb[0].mxu0
      %1877 = vmatprep.mubr.f32.mxu0 %v792
      %1878 = vmatmul.mubr.f32.gmra.mrb[0].mxu0 %v791
      %v1879 = vpop.f32.mrb[0].mxu0
      %v1880 = vadd.f32 %v1595, %v1879
      %v1881 = vpop.f32.mrb[0].mxu0
      %1882 = vmatprep.mubr.f32.mxu0 %v802
      %1883 = vmatmul.mubr.f32.gmra.mrb[0].mxu0 %v801
      %v1884 = vpop.f32.mrb[0].mxu0
      %v1885 = vadd.f32 %v1600, %v1884
      %v1886 = vpop.f32.mrb[0].mxu0
      %1887 = vmatprep.mubr.f32.mxu0 %v812
      %1888 = vmatmul.mubr.f32.gmra.mrb[0].mxu0 %v811
      %v1889 = vpop.f32.mrb[0].mxu0
      %v1890 = vadd.f32 %v1605, %v1889
      %v1891 = vpop.f32.mrb[0].mxu0
      %1892 = vmatprep.mubr.f32.mxu0 %v822
      %1893 = vmatmul.mubr.f32.gmra.mrb[0].mxu0 %v821
      %v1894 = vpop.f32.mrb[0].mxu0
      %v1895 = vadd.f32 %v1610, %v1894
      %v1896 = vpop.f32.mrb[0].mxu0
      %1897 = vmatprep.mubr.f32.mxu0 %v832
      %1898 = vmatmul.mubr.f32.gmra.mrb[0].mxu0 %v831
      %v1899 = vpop.f32.mrb[0].mxu0
      %v1900 = vadd.f32 %v1615, %v1899
      %v1901 = vpop.f32.mrb[0].mxu0
      %1902 = vmatprep.mubr.f32.mxu0 %v842
      %1903 = vmatmul.mubr.f32.gmra.mrb[0].mxu0 %v841
      %v1904 = vpop.f32.mrb[0].mxu0
      %v1905 = vadd.f32 %v1620, %v1904
      %v1906 = vpop.f32.mrb[0].mxu0
      %1907 = vmatprep.mubr.f32.mxu0 %v852
      %1908 = vmatmul.mubr.f32.gmra.mrb[0].mxu0 %v851
      %v1909 = vpop.f32.mrb[0].mxu0
      %v1910 = vadd.f32 %v1625, %v1909
      %v1911 = vpop.f32.mrb[0].mxu0
      %1912 = vmatprep.mubr.f32.mxu0 %v862
      %1913 = vmatmul.mubr.f32.gmra.mrb[0].mxu0 %v861
      %v1914 = vpop.f32.mrb[0].mxu0
      %v1915 = vadd.f32 %v1630, %v1914
      %v1916 = vpop.f32.mrb[0].mxu0
      %1917 = vmatprep.mubr.f32.mxu0 %v872
      %1918 = vmatmul.mubr.f32.gmra.mrb[0].mxu0 %v871
      %v1919 = vpop.f32.mrb[0].mxu0
      %v1920 = vadd.f32 %v1635, %v1919
      %v1921 = vpop.f32.mrb[0].mxu0
      %1922 = vmatprep.mubr.f32.mxu0 %v882
      %1923 = vmatmul.mubr.f32.gmra.mrb[0].mxu0 %v881
      %v1924 = vpop.f32.mrb[0].mxu0
      %v1925 = vadd.f32 %v1640, %v1924
      %v1926 = vpop.f32.mrb[0].mxu0
      %1927 = vmatprep.mubr.f32.mxu0 %v892
      %1928 = vmatmul.mubr.f32.gmra.mrb[0].mxu0 %v891
      %v1929 = vpop.f32.mrb[0].mxu0
      %v1930 = vadd.f32 %v1645, %v1929
      %v1931 = vpop.f32.mrb[0].mxu0
      %1932 = vmatprep.mubr.f32.mxu0 %v902
      %1933 = vmatmul.mubr.f32.gmra.mrb[0].mxu0 %v901
      %v1934 = vpop.f32.mrb[0].mxu0
      %v1935 = vadd.f32 %v1650, %v1934
      %v1936 = vpop.f32.mrb[0].mxu0
      %1937 = vmatprep.mubr.f32.mxu0 %v912
      %1938 = vmatmul.mubr.f32.gmra.mrb[0].mxu0 %v911
      %v1939 = vpop.f32.mrb[0].mxu0
      %v1940 = vadd.f32 %v1655, %v1939
      %v1941 = vpop.f32.mrb[0].mxu0
      %1942 = vmatprep.mubr.f32.mxu0 %v922
      %1943 = vmatmul.mubr.f32.gmra.mrb[0].mxu0 %v921
      %v1944 = vpop.f32.mrb[0].mxu0
      %v1945 = vadd.f32 %v1660, %v1944
      %v1946 = vpop.f32.mrb[0].mxu0
      %1947 = vmatprep.mubr.f32.mxu0 %v932
      %1948 = vmatmul.mubr.f32.gmra.mrb[0].mxu0 %v931
      %v1949 = vpop.f32.mrb[0].mxu0
      %v1950 = vadd.f32 %v1665, %v1949
      %v1951 = vpop.f32.mrb[0].mxu0
      %1952 = vdwg.mxu0
      %1953 = vmatprep.subr.mxu0 %v957
      %1954 = vmatpush1.xpose.msra.mxu0 %v940
      %1955 = vmatprep.subr.mxu0 0.0
      %1956 = vmatpush1.xpose.msra.mxu0 0.0
      %1957 = vmatprep.subr.mxu0 0.0
      %1958 = vmatpush1.xpose.msra.mxu0 0.0
      %1959 = vmatprep.subr.mxu0 0.0
      %1960 = vmatpush1.xpose.msra.mxu0 0.0
      %1961 = vmatprep.subr.mxu0 0.0
      %1962 = vmatpush1.xpose.msra.mxu0 0.0
      %1963 = vmatprep.subr.mxu0 0.0
      %1964 = vmatpush1.xpose.msra.mxu0 0.0
      %1965 = vmatprep.subr.mxu0 0.0
      %1966 = vmatpush1.xpose.msra.mxu0 0.0
      %1967 = vmatprep.subr.mxu0 0.0
      %1968 = vmatpush1.xpose.msra.mxu0 0.0
      %1969 = vmatprep.subr.mxu0 0.0
      %1970 = vmatpush1.xpose.msra.mxu0 0.0
      %1971 = vmatprep.subr.mxu0 0.0
      %1972 = vmatpush1.xpose.msra.mxu0 0.0
      %1973 = vmatprep.subr.mxu0 0.0
      %1974 = vmatpush1.xpose.msra.mxu0 0.0
      %1975 = vmatprep.subr.mxu0 0.0
      %1976 = vmatpush1.xpose.msra.mxu0 0.0
      %1977 = vmatprep.subr.mxu0 0.0
      %1978 = vmatpush1.xpose.msra.mxu0 0.0
      %1979 = vmatprep.subr.mxu0 0.0
      %1980 = vmatpush1.xpose.msra.mxu0 0.0
      %1981 = vmatprep.subr.mxu0 0.0
      %1982 = vmatpush1.xpose.msra.mxu0 0.0
      %1983 = vmatprep.subr.mxu0 0.0
      %1984 = vmatpush1.xpose.msra.mxu0 0.0
      %1985 = vmatprep.subr.mxu0 0.0
      %1986 = vmatpush1.xpose.msra.mxu0 0.0
      %1987 = vmatprep.subr.mxu0 0.0
      %1988 = vmatpush1.xpose.msra.mxu0 0.0
      %1989 = vmatprep.subr.mxu0 0.0
      %1990 = vmatpush1.xpose.msra.mxu0 0.0
      %1991 = vmatprep.subr.mxu0 0.0
      %1992 = vmatpush1.xpose.msra.mxu0 0.0
      %1993 = vmatprep.subr.mxu0 0.0
      %1994 = vmatpush1.xpose.msra.mxu0 0.0
      %1995 = vmatprep.subr.mxu0 0.0
      %1996 = vmatpush1.xpose.msra.mxu0 0.0
      %1997 = vmatprep.subr.mxu0 0.0
      %1998 = vmatpush1.xpose.msra.mxu0 0.0
      %1999 = vmatprep.subr.mxu0 0.0
      %2000 = vmatpush1.xpose.msra.mxu0 0.0
      %2001 = vmatprep.subr.mxu0 0.0
      %2002 = vmatpush1.xpose.msra.mxu0 0.0
      %2003 = vmatprep.subr.mxu0 0.0
      %2004 = vmatpush1.xpose.msra.mxu0 0.0
      %2005 = vmatprep.subr.mxu0 0.0
      %2006 = vmatpush1.xpose.msra.mxu0 0.0
      %2007 = vmatprep.subr.mxu0 0.0
      %2008 = vmatpush1.xpose.msra.mxu0 0.0
      %2009 = vmatprep.subr.mxu0 0.0
      %2010 = vmatpush1.xpose.msra.mxu0 0.0
      %2011 = vmatprep.subr.mxu0 0.0
      %2012 = vmatpush1.xpose.msra.mxu0 0.0
      %2013 = vmatprep.subr.mxu0 0.0
      %2014 = vmatpush1.xpose.msra.mxu0 0.0
      %2015 = vmatprep.subr.mxu0 0.0
      %2016 = vmatpush1.xpose.msra.mxu0 0.0
      %2017 = vmatprep.mubr.f32.mxu0 %v504
      %2018 = vmatmul.mubr.f32.gmra.mrb[0].mxu0 %v503
      %v2019 = vpop.f32.mrb[0].mxu0
      %v2020 = vadd.f32 %v1735, %v2019
      %v2021 = vpop.f32.mrb[0].mxu0
      %2022 = vmatprep.mubr.f32.mxu0 %v514
      %2023 = vmatmul.mubr.f32.gmra.mrb[0].mxu0 %v513
      %v2024 = vpop.f32.mrb[0].mxu0
      %v2025 = vadd.f32 %v1740, %v2024
      %v2026 = vpop.f32.mrb[0].mxu0
      %2027 = vmatprep.mubr.f32.mxu0 %v524
      %2028 = vmatmul.mubr.f32.gmra.mrb[0].mxu0 %v523
      %v2029 = vpop.f32.mrb[0].mxu0
      %v2030 = vadd.f32 %v1745, %v2029
      %v2031 = vpop.f32.mrb[0].mxu0
      %2032 = vmatprep.mubr.f32.mxu0 %v534
      %2033 = vmatmul.mubr.f32.gmra.mrb[0].mxu0 %v533
      %v2034 = vpop.f32.mrb[0].mxu0
      %v2035 = vadd.f32 %v1750, %v2034
      %v2036 = vpop.f32.mrb[0].mxu0
      %2037 = vmatprep.mubr.f32.mxu0 %v544
      %2038 = vmatmul.mubr.f32.gmra.mrb[0].mxu0 %v543
      %v2039 = vpop.f32.mrb[0].mxu0
      %v2040 = vadd.f32 %v1755, %v2039
      %v2041 = vpop.f32.mrb[0].mxu0
      %2042 = vmatprep.mubr.f32.mxu0 %v554
      %2043 = vmatmul.mubr.f32.gmra.mrb[0].mxu0 %v553
      %v2044 = vpop.f32.mrb[0].mxu0
      %v2045 = vadd.f32 %v1760, %v2044
      %v2046 = vpop.f32.mrb[0].mxu0
      %2047 = vmatprep.mubr.f32.mxu0 %v564
      %2048 = vmatmul.mubr.f32.gmra.mrb[0].mxu0 %v563
      %v2049 = vpop.f32.mrb[0].mxu0
      %v2050 = vadd.f32 %v1765, %v2049
      %v2051 = vpop.f32.mrb[0].mxu0
      %2052 = vmatprep.mubr.f32.mxu0 %v574
      %2053 = vmatmul.mubr.f32.gmra.mrb[0].mxu0 %v573
      %v2054 = vpop.f32.mrb[0].mxu0
      %v2055 = vadd.f32 %v1770, %v2054
      %v2056 = vpop.f32.mrb[0].mxu0
      %2057 = vmatprep.mubr.f32.mxu0 %v584
      %2058 = vmatmul.mubr.f32.gmra.mrb[0].mxu0 %v583
      %v2059 = vpop.f32.mrb[0].mxu0
      %v2060 = vadd.f32 %v1775, %v2059
      %v2061 = vpop.f32.mrb[0].mxu0
      %2062 = vmatprep.mubr.f32.mxu0 %v594
      %2063 = vmatmul.mubr.f32.gmra.mrb[0].mxu0 %v593
      %v2064 = vpop.f32.mrb[0].mxu0
      %v2065 = vadd.f32 %v1780, %v2064
      %v2066 = vpop.f32.mrb[0].mxu0
      %2067 = vmatprep.mubr.f32.mxu0 %v604
      %2068 = vmatmul.mubr.f32.gmra.mrb[0].mxu0 %v603
      %v2069 = vpop.f32.mrb[0].mxu0
      %v2070 = vadd.f32 %v1785, %v2069
      %v2071 = vpop.f32.mrb[0].mxu0
      %2072 = vmatprep.mubr.f32.mxu0 %v614
      %2073 = vmatmul.mubr.f32.gmra.mrb[0].mxu0 %v613
      %v2074 = vpop.f32.mrb[0].mxu0
      %v2075 = vadd.f32 %v1790, %v2074
      %v2076 = vpop.f32.mrb[0].mxu0
      %2077 = vmatprep.mubr.f32.mxu0 %v624
      %2078 = vmatmul.mubr.f32.gmra.mrb[0].mxu0 %v623
      %v2079 = vpop.f32.mrb[0].mxu0
      %v2080 = vadd.f32 %v1795, %v2079
      %v2081 = vpop.f32.mrb[0].mxu0
      %2082 = vmatprep.mubr.f32.mxu0 %v634
      %2083 = vmatmul.mubr.f32.gmra.mrb[0].mxu0 %v633
      %v2084 = vpop.f32.mrb[0].mxu0
      %v2085 = vadd.f32 %v1800, %v2084
      %v2086 = vpop.f32.mrb[0].mxu0
      %2087 = vmatprep.mubr.f32.mxu0 %v644
      %2088 = vmatmul.mubr.f32.gmra.mrb[0].mxu0 %v643
      %v2089 = vpop.f32.mrb[0].mxu0
      %v2090 = vadd.f32 %v1805, %v2089
      %v2091 = vpop.f32.mrb[0].mxu0
      %2092 = vmatprep.mubr.f32.mxu0 %v654
      %2093 = vmatmul.mubr.f32.gmra.mrb[0].mxu0 %v653
      %v2094 = vpop.f32.mrb[0].mxu0
      %v2095 = vadd.f32 %v1810, %v2094
      %v2096 = vpop.f32.mrb[0].mxu0
      %2097 = vmatprep.mubr.f32.mxu0 %v664
      %2098 = vmatmul.mubr.f32.gmra.mrb[0].mxu0 %v663
      %v2099 = vpop.f32.mrb[0].mxu0
      %v2100 = vadd.f32 %v1815, %v2099
      %v2101 = vpop.f32.mrb[0].mxu0
      %2102 = vmatprep.mubr.f32.mxu0 %v674
      %2103 = vmatmul.mubr.f32.gmra.mrb[0].mxu0 %v673
      %v2104 = vpop.f32.mrb[0].mxu0
      %v2105 = vadd.f32 %v1820, %v2104
      %v2106 = vpop.f32.mrb[0].mxu0
      %2107 = vmatprep.mubr.f32.mxu0 %v684
      %2108 = vmatmul.mubr.f32.gmra.mrb[0].mxu0 %v683
      %v2109 = vpop.f32.mrb[0].mxu0
      %v2110 = vadd.f32 %v1825, %v2109
      %v2111 = vpop.f32.mrb[0].mxu0
      %2112 = vmatprep.mubr.f32.mxu0 %v694
      %2113 = vmatmul.mubr.f32.gmra.mrb[0].mxu0 %v693
      %v2114 = vpop.f32.mrb[0].mxu0
      %v2115 = vadd.f32 %v1830, %v2114
      %v2116 = vpop.f32.mrb[0].mxu0
      %2117 = vmatprep.mubr.f32.mxu0 %v704
      %2118 = vmatmul.mubr.f32.gmra.mrb[0].mxu0 %v703
      %v2119 = vpop.f32.mrb[0].mxu0
      %v2120 = vadd.f32 %v1835, %v2119
      %v2121 = vpop.f32.mrb[0].mxu0
      %2122 = vmatprep.mubr.f32.mxu0 %v714
      %2123 = vmatmul.mubr.f32.gmra.mrb[0].mxu0 %v713
      %v2124 = vpop.f32.mrb[0].mxu0
      %v2125 = vadd.f32 %v1840, %v2124
      %v2126 = vpop.f32.mrb[0].mxu0
      %2127 = vmatprep.mubr.f32.mxu0 %v724
      %2128 = vmatmul.mubr.f32.gmra.mrb[0].mxu0 %v723
      %v2129 = vpop.f32.mrb[0].mxu0
      %v2130 = vadd.f32 %v1845, %v2129
      %v2131 = vpop.f32.mrb[0].mxu0
      %2132 = vmatprep.mubr.f32.mxu0 %v734
      %2133 = vmatmul.mubr.f32.gmra.mrb[0].mxu0 %v733
      %v2134 = vpop.f32.mrb[0].mxu0
      %v2135 = vadd.f32 %v1850, %v2134
      %v2136 = vpop.f32.mrb[0].mxu0
      %2137 = vmatprep.mubr.f32.mxu0 %v744
      %2138 = vmatmul.mubr.f32.gmra.mrb[0].mxu0 %v743
      %v2139 = vpop.f32.mrb[0].mxu0
      %v2140 = vadd.f32 %v1855, %v2139
      %v2141 = vpop.f32.mrb[0].mxu0
      %2142 = vmatprep.mubr.f32.mxu0 %v754
      %2143 = vmatmul.mubr.f32.gmra.mrb[0].mxu0 %v753
      %v2144 = vpop.f32.mrb[0].mxu0
      %v2145 = vadd.f32 %v1860, %v2144
      %v2146 = vpop.f32.mrb[0].mxu0
      %2147 = vmatprep.mubr.f32.mxu0 %v764
      %2148 = vmatmul.mubr.f32.gmra.mrb[0].mxu0 %v763
      %v2149 = vpop.f32.mrb[0].mxu0
      %v2150 = vadd.f32 %v1865, %v2149
      %v2151 = vpop.f32.mrb[0].mxu0
      %2152 = vmatprep.mubr.f32.mxu0 %v774
      %2153 = vmatmul.mubr.f32.gmra.mrb[0].mxu0 %v773
      %v2154 = vpop.f32.mrb[0].mxu0
      %v2155 = vadd.f32 %v1870, %v2154
      %v2156 = vpop.f32.mrb[0].mxu0
      %2157 = vmatprep.mubr.f32.mxu0 %v784
      %2158 = vmatmul.mubr.f32.gmra.mrb[0].mxu0 %v783
      %v2159 = vpop.f32.mrb[0].mxu0
      %v2160 = vadd.f32 %v1875, %v2159
      %v2161 = vpop.f32.mrb[0].mxu0
      %2162 = vmatprep.mubr.f32.mxu0 %v794
      %2163 = vmatmul.mubr.f32.gmra.mrb[0].mxu0 %v793
      %v2164 = vpop.f32.mrb[0].mxu0
      %v2165 = vadd.f32 %v1880, %v2164
      %v2166 = vpop.f32.mrb[0].mxu0
      %2167 = vmatprep.mubr.f32.mxu0 %v804
      %2168 = vmatmul.mubr.f32.gmra.mrb[0].mxu0 %v803
      %v2169 = vpop.f32.mrb[0].mxu0
      %v2170 = vadd.f32 %v1885, %v2169
      %v2171 = vpop.f32.mrb[0].mxu0
      %2172 = vmatprep.mubr.f32.mxu0 %v814
      %2173 = vmatmul.mubr.f32.gmra.mrb[0].mxu0 %v813
      %v2174 = vpop.f32.mrb[0].mxu0
      %v2175 = vadd.f32 %v1890, %v2174
      %v2176 = vpop.f32.mrb[0].mxu0
      %2177 = vmatprep.mubr.f32.mxu0 %v824
      %2178 = vmatmul.mubr.f32.gmra.mrb[0].mxu0 %v823
      %v2179 = vpop.f32.mrb[0].mxu0
      %v2180 = vadd.f32 %v1895, %v2179
      %v2181 = vpop.f32.mrb[0].mxu0
      %2182 = vmatprep.mubr.f32.mxu0 %v834
      %2183 = vmatmul.mubr.f32.gmra.mrb[0].mxu0 %v833
      %v2184 = vpop.f32.mrb[0].mxu0
      %v2185 = vadd.f32 %v1900, %v2184
      %v2186 = vpop.f32.mrb[0].mxu0
      %2187 = vmatprep.mubr.f32.mxu0 %v844
      %2188 = vmatmul.mubr.f32.gmra.mrb[0].mxu0 %v843
      %v2189 = vpop.f32.mrb[0].mxu0
      %v2190 = vadd.f32 %v1905, %v2189
      %v2191 = vpop.f32.mrb[0].mxu0
      %2192 = vmatprep.mubr.f32.mxu0 %v854
      %2193 = vmatmul.mubr.f32.gmra.mrb[0].mxu0 %v853
      %v2194 = vpop.f32.mrb[0].mxu0
      %v2195 = vadd.f32 %v1910, %v2194
      %v2196 = vpop.f32.mrb[0].mxu0
      %2197 = vmatprep.mubr.f32.mxu0 %v864
      %2198 = vmatmul.mubr.f32.gmra.mrb[0].mxu0 %v863
      %v2199 = vpop.f32.mrb[0].mxu0
      %v2200 = vadd.f32 %v1915, %v2199
      %v2201 = vpop.f32.mrb[0].mxu0
      %2202 = vmatprep.mubr.f32.mxu0 %v874
      %2203 = vmatmul.mubr.f32.gmra.mrb[0].mxu0 %v873
      %v2204 = vpop.f32.mrb[0].mxu0
      %v2205 = vadd.f32 %v1920, %v2204
      %v2206 = vpop.f32.mrb[0].mxu0
      %2207 = vmatprep.mubr.f32.mxu0 %v884
      %2208 = vmatmul.mubr.f32.gmra.mrb[0].mxu0 %v883
      %v2209 = vpop.f32.mrb[0].mxu0
      %v2210 = vadd.f32 %v1925, %v2209
      %v2211 = vpop.f32.mrb[0].mxu0
      %2212 = vmatprep.mubr.f32.mxu0 %v894
      %2213 = vmatmul.mubr.f32.gmra.mrb[0].mxu0 %v893
      %v2214 = vpop.f32.mrb[0].mxu0
      %v2215 = vadd.f32 %v1930, %v2214
      %v2216 = vpop.f32.mrb[0].mxu0
      %2217 = vmatprep.mubr.f32.mxu0 %v904
      %2218 = vmatmul.mubr.f32.gmra.mrb[0].mxu0 %v903
      %v2219 = vpop.f32.mrb[0].mxu0
      %v2220 = vadd.f32 %v1935, %v2219
      %v2221 = vpop.f32.mrb[0].mxu0
      %2222 = vmatprep.mubr.f32.mxu0 %v914
      %2223 = vmatmul.mubr.f32.gmra.mrb[0].mxu0 %v913
      %v2224 = vpop.f32.mrb[0].mxu0
      %v2225 = vadd.f32 %v1940, %v2224
      %v2226 = vpop.f32.mrb[0].mxu0
      %2227 = vmatprep.mubr.f32.mxu0 %v924
      %2228 = vmatmul.mubr.f32.gmra.mrb[0].mxu0 %v923
      %v2229 = vpop.f32.mrb[0].mxu0
      %v2230 = vadd.f32 %v1945, %v2229
      %v2231 = vpop.f32.mrb[0].mxu0
      %2232 = vmatprep.mubr.f32.mxu0 %v934
      %2233 = vmatmul.mubr.f32.gmra.mrb[0].mxu0 %v933
      %v2234 = vpop.f32.mrb[0].mxu0
      %v2235 = vadd.f32 %v1950, %v2234
      %v2236 = vpop.f32.mrb[0].mxu0
      %2237 = vdwg.mxu0
      %2238 = vmatprep.subr.mxu0 %v1096
      %2239 = vmatpush1.xpose.msra.mxu0 %v941
      %2240 = vmatprep.subr.mxu0 0.0
      %2241 = vmatpush1.xpose.msra.mxu0 0.0
      %2242 = vmatprep.subr.mxu0 0.0
      %2243 = vmatpush1.xpose.msra.mxu0 0.0
      %2244 = vmatprep.subr.mxu0 0.0
      %2245 = vmatpush1.xpose.msra.mxu0 0.0
      %2246 = vmatprep.subr.mxu0 0.0
      %2247 = vmatpush1.xpose.msra.mxu0 0.0
      %2248 = vmatprep.subr.mxu0 0.0
      %2249 = vmatpush1.xpose.msra.mxu0 0.0
      %2250 = vmatprep.subr.mxu0 0.0
      %2251 = vmatpush1.xpose.msra.mxu0 0.0
      %2252 = vmatprep.subr.mxu0 0.0
      %2253 = vmatpush1.xpose.msra.mxu0 0.0
      %2254 = vmatprep.subr.mxu0 0.0
      %2255 = vmatpush1.xpose.msra.mxu0 0.0
      %2256 = vmatprep.subr.mxu0 0.0
      %2257 = vmatpush1.xpose.msra.mxu0 0.0
      %2258 = vmatprep.subr.mxu0 0.0
      %2259 = vmatpush1.xpose.msra.mxu0 0.0
      %2260 = vmatprep.subr.mxu0 0.0
      %2261 = vmatpush1.xpose.msra.mxu0 0.0
      %2262 = vmatprep.subr.mxu0 0.0
      %2263 = vmatpush1.xpose.msra.mxu0 0.0
      %2264 = vmatprep.subr.mxu0 0.0
      %2265 = vmatpush1.xpose.msra.mxu0 0.0
      %2266 = vmatprep.subr.mxu0 0.0
      %2267 = vmatpush1.xpose.msra.mxu0 0.0
      %2268 = vmatprep.subr.mxu0 0.0
      %2269 = vmatpush1.xpose.msra.mxu0 0.0
      %2270 = vmatprep.subr.mxu0 0.0
      %2271 = vmatpush1.xpose.msra.mxu0 0.0
      %2272 = vmatprep.subr.mxu0 0.0
      %2273 = vmatpush1.xpose.msra.mxu0 0.0
      %2274 = vmatprep.subr.mxu0 0.0
      %2275 = vmatpush1.xpose.msra.mxu0 0.0
      %2276 = vmatprep.subr.mxu0 0.0
      %2277 = vmatpush1.xpose.msra.mxu0 0.0
      %2278 = vmatprep.subr.mxu0 0.0
      %2279 = vmatpush1.xpose.msra.mxu0 0.0
      %2280 = vmatprep.subr.mxu0 0.0
      %2281 = vmatpush1.xpose.msra.mxu0 0.0
      %2282 = vmatprep.subr.mxu0 0.0
      %2283 = vmatpush1.xpose.msra.mxu0 0.0
      %2284 = vmatprep.subr.mxu0 0.0
      %2285 = vmatpush1.xpose.msra.mxu0 0.0
      %2286 = vmatprep.subr.mxu0 0.0
      %2287 = vmatpush1.xpose.msra.mxu0 0.0
      %2288 = vmatprep.subr.mxu0 0.0
      %2289 = vmatpush1.xpose.msra.mxu0 0.0
      %2290 = vmatprep.subr.mxu0 0.0
      %2291 = vmatpush1.xpose.msra.mxu0 0.0
      %2292 = vmatprep.subr.mxu0 0.0
      %2293 = vmatpush1.xpose.msra.mxu0 0.0
      %2294 = vmatprep.subr.mxu0 0.0
      %2295 = vmatpush1.xpose.msra.mxu0 0.0
      %2296 = vmatprep.subr.mxu0 0.0
      %2297 = vmatpush1.xpose.msra.mxu0 0.0
      %2298 = vmatprep.subr.mxu0 0.0
      %2299 = vmatpush1.xpose.msra.mxu0 0.0
      %2300 = vmatprep.subr.mxu0 0.0
      %2301 = vmatpush1.xpose.msra.mxu0 0.0
      %2302 = vmatprep.mubr.f32.mxu0 %v965
      %2303 = vmatmul.mubr.f32.gmra.mrb[0].mxu0 %v505
      %v2304 = vpop.f32.mrb[0].mxu0
      %v2305 = vadd.f32 %v2020, %v2304
      %v2306 = vpop.f32.mrb[0].mxu0
      %2307 = vmatprep.mubr.f32.mxu0 %v968
      %2308 = vmatmul.mubr.f32.gmra.mrb[0].mxu0 %v515
      %v2309 = vpop.f32.mrb[0].mxu0
      %v2310 = vadd.f32 %v2025, %v2309
      %v2311 = vpop.f32.mrb[0].mxu0
      %2312 = vmatprep.mubr.f32.mxu0 %v971
      %2313 = vmatmul.mubr.f32.gmra.mrb[0].mxu0 %v525
      %v2314 = vpop.f32.mrb[0].mxu0
      %v2315 = vadd.f32 %v2030, %v2314
      %v2316 = vpop.f32.mrb[0].mxu0
      %2317 = vmatprep.mubr.f32.mxu0 %v974
      %2318 = vmatmul.mubr.f32.gmra.mrb[0].mxu0 %v535
      %v2319 = vpop.f32.mrb[0].mxu0
      %v2320 = vadd.f32 %v2035, %v2319
      %v2321 = vpop.f32.mrb[0].mxu0
      %2322 = vmatprep.mubr.f32.mxu0 %v977
      %2323 = vmatmul.mubr.f32.gmra.mrb[0].mxu0 %v545
      %v2324 = vpop.f32.mrb[0].mxu0
      %v2325 = vadd.f32 %v2040, %v2324
      %v2326 = vpop.f32.mrb[0].mxu0
      %2327 = vmatprep.mubr.f32.mxu0 %v980
      %2328 = vmatmul.mubr.f32.gmra.mrb[0].mxu0 %v555
      %v2329 = vpop.f32.mrb[0].mxu0
      %v2330 = vadd.f32 %v2045, %v2329
      %v2331 = vpop.f32.mrb[0].mxu0
      %2332 = vmatprep.mubr.f32.mxu0 %v983
      %2333 = vmatmul.mubr.f32.gmra.mrb[0].mxu0 %v565
      %v2334 = vpop.f32.mrb[0].mxu0
      %v2335 = vadd.f32 %v2050, %v2334
      %v2336 = vpop.f32.mrb[0].mxu0
      %2337 = vmatprep.mubr.f32.mxu0 %v986
      %2338 = vmatmul.mubr.f32.gmra.mrb[0].mxu0 %v575
      %v2339 = vpop.f32.mrb[0].mxu0
      %v2340 = vadd.f32 %v2055, %v2339
      %v2341 = vpop.f32.mrb[0].mxu0
      %2342 = vmatprep.mubr.f32.mxu0 %v989
      %2343 = vmatmul.mubr.f32.gmra.mrb[0].mxu0 %v585
      %v2344 = vpop.f32.mrb[0].mxu0
      %v2345 = vadd.f32 %v2060, %v2344
      %v2346 = vpop.f32.mrb[0].mxu0
      %2347 = vmatprep.mubr.f32.mxu0 %v992
      %2348 = vmatmul.mubr.f32.gmra.mrb[0].mxu0 %v595
      %v2349 = vpop.f32.mrb[0].mxu0
      %v2350 = vadd.f32 %v2065, %v2349
      %v2351 = vpop.f32.mrb[0].mxu0
      %2352 = vmatprep.mubr.f32.mxu0 %v995
      %2353 = vmatmul.mubr.f32.gmra.mrb[0].mxu0 %v605
      %v2354 = vpop.f32.mrb[0].mxu0
      %v2355 = vadd.f32 %v2070, %v2354
      %v2356 = vpop.f32.mrb[0].mxu0
      %2357 = vmatprep.mubr.f32.mxu0 %v998
      %2358 = vmatmul.mubr.f32.gmra.mrb[0].mxu0 %v615
      %v2359 = vpop.f32.mrb[0].mxu0
      %v2360 = vadd.f32 %v2075, %v2359
      %v2361 = vpop.f32.mrb[0].mxu0
      %2362 = vmatprep.mubr.f32.mxu0 %v1001
      %2363 = vmatmul.mubr.f32.gmra.mrb[0].mxu0 %v625
      %v2364 = vpop.f32.mrb[0].mxu0
      %v2365 = vadd.f32 %v2080, %v2364
      %v2366 = vpop.f32.mrb[0].mxu0
      %2367 = vmatprep.mubr.f32.mxu0 %v1004
      %2368 = vmatmul.mubr.f32.gmra.mrb[0].mxu0 %v635
      %v2369 = vpop.f32.mrb[0].mxu0
      %v2370 = vadd.f32 %v2085, %v2369
      %v2371 = vpop.f32.mrb[0].mxu0
      %2372 = vmatprep.mubr.f32.mxu0 %v1007
      %2373 = vmatmul.mubr.f32.gmra.mrb[0].mxu0 %v645
      %v2374 = vpop.f32.mrb[0].mxu0
      %v2375 = vadd.f32 %v2090, %v2374
      %v2376 = vpop.f32.mrb[0].mxu0
      %2377 = vmatprep.mubr.f32.mxu0 %v1010
      %2378 = vmatmul.mubr.f32.gmra.mrb[0].mxu0 %v655
      %v2379 = vpop.f32.mrb[0].mxu0
      %v2380 = vadd.f32 %v2095, %v2379
      %v2381 = vpop.f32.mrb[0].mxu0
      %2382 = vmatprep.mubr.f32.mxu0 %v1013
      %2383 = vmatmul.mubr.f32.gmra.mrb[0].mxu0 %v665
      %v2384 = vpop.f32.mrb[0].mxu0
      %v2385 = vadd.f32 %v2100, %v2384
      %v2386 = vpop.f32.mrb[0].mxu0
      %2387 = vmatprep.mubr.f32.mxu0 %v1016
      %2388 = vmatmul.mubr.f32.gmra.mrb[0].mxu0 %v675
      %v2389 = vpop.f32.mrb[0].mxu0
      %v2390 = vadd.f32 %v2105, %v2389
      %v2391 = vpop.f32.mrb[0].mxu0
      %2392 = vmatprep.mubr.f32.mxu0 %v1019
      %2393 = vmatmul.mubr.f32.gmra.mrb[0].mxu0 %v685
      %v2394 = vpop.f32.mrb[0].mxu0
      %v2395 = vadd.f32 %v2110, %v2394
      %v2396 = vpop.f32.mrb[0].mxu0
      %2397 = vmatprep.mubr.f32.mxu0 %v1022
      %2398 = vmatmul.mubr.f32.gmra.mrb[0].mxu0 %v695
      %v2399 = vpop.f32.mrb[0].mxu0
      %v2400 = vadd.f32 %v2115, %v2399
      %v2401 = vpop.f32.mrb[0].mxu0
      %2402 = vmatprep.mubr.f32.mxu0 %v1025
      %2403 = vmatmul.mubr.f32.gmra.mrb[0].mxu0 %v705
      %v2404 = vpop.f32.mrb[0].mxu0
      %v2405 = vadd.f32 %v2120, %v2404
      %v2406 = vpop.f32.mrb[0].mxu0
      %2407 = vmatprep.mubr.f32.mxu0 %v1028
      %2408 = vmatmul.mubr.f32.gmra.mrb[0].mxu0 %v715
      %v2409 = vpop.f32.mrb[0].mxu0
      %v2410 = vadd.f32 %v2125, %v2409
      %v2411 = vpop.f32.mrb[0].mxu0
      %2412 = vmatprep.mubr.f32.mxu0 %v1031
      %2413 = vmatmul.mubr.f32.gmra.mrb[0].mxu0 %v725
      %v2414 = vpop.f32.mrb[0].mxu0
      %v2415 = vadd.f32 %v2130, %v2414
      %v2416 = vpop.f32.mrb[0].mxu0
      %2417 = vmatprep.mubr.f32.mxu0 %v1034
      %2418 = vmatmul.mubr.f32.gmra.mrb[0].mxu0 %v735
      %v2419 = vpop.f32.mrb[0].mxu0
      %v2420 = vadd.f32 %v2135, %v2419
      %v2421 = vpop.f32.mrb[0].mxu0
      %2422 = vmatprep.mubr.f32.mxu0 %v1037
      %2423 = vmatmul.mubr.f32.gmra.mrb[0].mxu0 %v745
      %v2424 = vpop.f32.mrb[0].mxu0
      %v2425 = vadd.f32 %v2140, %v2424
      %v2426 = vpop.f32.mrb[0].mxu0
      %2427 = vmatprep.mubr.f32.mxu0 %v1040
      %2428 = vmatmul.mubr.f32.gmra.mrb[0].mxu0 %v755
      %v2429 = vpop.f32.mrb[0].mxu0
      %v2430 = vadd.f32 %v2145, %v2429
      %v2431 = vpop.f32.mrb[0].mxu0
      %2432 = vmatprep.mubr.f32.mxu0 %v1043
      %2433 = vmatmul.mubr.f32.gmra.mrb[0].mxu0 %v765
      %v2434 = vpop.f32.mrb[0].mxu0
      %v2435 = vadd.f32 %v2150, %v2434
      %v2436 = vpop.f32.mrb[0].mxu0
      %2437 = vmatprep.mubr.f32.mxu0 %v1046
      %2438 = vmatmul.mubr.f32.gmra.mrb[0].mxu0 %v775
      %v2439 = vpop.f32.mrb[0].mxu0
      %v2440 = vadd.f32 %v2155, %v2439
      %v2441 = vpop.f32.mrb[0].mxu0
      %2442 = vmatprep.mubr.f32.mxu0 %v1049
      %2443 = vmatmul.mubr.f32.gmra.mrb[0].mxu0 %v785
      %v2444 = vpop.f32.mrb[0].mxu0
      %v2445 = vadd.f32 %v2160, %v2444
      %v2446 = vpop.f32.mrb[0].mxu0
      %2447 = vmatprep.mubr.f32.mxu0 %v1052
      %2448 = vmatmul.mubr.f32.gmra.mrb[0].mxu0 %v795
      %v2449 = vpop.f32.mrb[0].mxu0
      %v2450 = vadd.f32 %v2165, %v2449
      %v2451 = vpop.f32.mrb[0].mxu0
      %2452 = vmatprep.mubr.f32.mxu0 %v1055
      %2453 = vmatmul.mubr.f32.gmra.mrb[0].mxu0 %v805
      %v2454 = vpop.f32.mrb[0].mxu0
      %v2455 = vadd.f32 %v2170, %v2454
      %v2456 = vpop.f32.mrb[0].mxu0
      %2457 = vmatprep.mubr.f32.mxu0 %v1058
      %2458 = vmatmul.mubr.f32.gmra.mrb[0].mxu0 %v815
      %v2459 = vpop.f32.mrb[0].mxu0
      %v2460 = vadd.f32 %v2175, %v2459
      %v2461 = vpop.f32.mrb[0].mxu0
      %2462 = vmatprep.mubr.f32.mxu0 %v1061
      %2463 = vmatmul.mubr.f32.gmra.mrb[0].mxu0 %v825
      %v2464 = vpop.f32.mrb[0].mxu0
      %v2465 = vadd.f32 %v2180, %v2464
      %v2466 = vpop.f32.mrb[0].mxu0
      %2467 = vmatprep.mubr.f32.mxu0 %v1064
      %2468 = vmatmul.mubr.f32.gmra.mrb[0].mxu0 %v835
      %v2469 = vpop.f32.mrb[0].mxu0
      %v2470 = vadd.f32 %v2185, %v2469
      %v2471 = vpop.f32.mrb[0].mxu0
      %2472 = vmatprep.mubr.f32.mxu0 %v1067
      %2473 = vmatmul.mubr.f32.gmra.mrb[0].mxu0 %v845
      %v2474 = vpop.f32.mrb[0].mxu0
      %v2475 = vadd.f32 %v2190, %v2474
      %v2476 = vpop.f32.mrb[0].mxu0
      %2477 = vmatprep.mubr.f32.mxu0 %v1070
      %2478 = vmatmul.mubr.f32.gmra.mrb[0].mxu0 %v855
      %v2479 = vpop.f32.mrb[0].mxu0
      %v2480 = vadd.f32 %v2195, %v2479
      %v2481 = vpop.f32.mrb[0].mxu0
      %2482 = vmatprep.mubr.f32.mxu0 %v1073
      %2483 = vmatmul.mubr.f32.gmra.mrb[0].mxu0 %v865
      %v2484 = vpop.f32.mrb[0].mxu0
      %v2485 = vadd.f32 %v2200, %v2484
      %v2486 = vpop.f32.mrb[0].mxu0
      %2487 = vmatprep.mubr.f32.mxu0 %v1076
      %2488 = vmatmul.mubr.f32.gmra.mrb[0].mxu0 %v875
      %v2489 = vpop.f32.mrb[0].mxu0
      %v2490 = vadd.f32 %v2205, %v2489
      %v2491 = vpop.f32.mrb[0].mxu0
      %2492 = vmatprep.mubr.f32.mxu0 %v1079
      %2493 = vmatmul.mubr.f32.gmra.mrb[0].mxu0 %v885
      %v2494 = vpop.f32.mrb[0].mxu0
      %v2495 = vadd.f32 %v2210, %v2494
      %v2496 = vpop.f32.mrb[0].mxu0
      %2497 = vmatprep.mubr.f32.mxu0 %v1082
      %2498 = vmatmul.mubr.f32.gmra.mrb[0].mxu0 %v895
      %v2499 = vpop.f32.mrb[0].mxu0
      %v2500 = vadd.f32 %v2215, %v2499
      %v2501 = vpop.f32.mrb[0].mxu0
      %2502 = vmatprep.mubr.f32.mxu0 %v1085
      %2503 = vmatmul.mubr.f32.gmra.mrb[0].mxu0 %v905
      %v2504 = vpop.f32.mrb[0].mxu0
      %v2505 = vadd.f32 %v2220, %v2504
      %v2506 = vpop.f32.mrb[0].mxu0
      %2507 = vmatprep.mubr.f32.mxu0 %v1088
      %2508 = vmatmul.mubr.f32.gmra.mrb[0].mxu0 %v915
      %v2509 = vpop.f32.mrb[0].mxu0
      %v2510 = vadd.f32 %v2225, %v2509
      %v2511 = vpop.f32.mrb[0].mxu0
      %2512 = vmatprep.mubr.f32.mxu0 %v1091
      %2513 = vmatmul.mubr.f32.gmra.mrb[0].mxu0 %v925
      %v2514 = vpop.f32.mrb[0].mxu0
      %v2515 = vadd.f32 %v2230, %v2514
      %v2516 = vpop.f32.mrb[0].mxu0
      %2517 = vmatprep.mubr.f32.mxu0 %v1094
      %2518 = vmatmul.mubr.f32.gmra.mrb[0].mxu0 %v935
      %v2519 = vpop.f32.mrb[0].mxu0
      %v2520 = vadd.f32 %v2235, %v2519
      %v2521 = vpop.f32.mrb[0].mxu0
      %2522 = vdwg.mxu0
      %v2523 = vld [vmem:[%s4] sm:$0xff]
      %v2524 = vld [vmem:[%s4 + $0x8] sm:$0xff]
      %v2525 = vld [vmem:[%s4 + $0x10] sm:$0xf]
      %v2526 = vld [vmem:[%s3] sm:$0xff]
      %v2527 = vld [vmem:[%s3 + $0x8] sm:$0xff]
      %v2528 = vld [vmem:[%s3 + $0x10] sm:$0xff]
      %v2529 = vld [vmem:[%s3 + $0x18] sm:$0xff]
      %v2530 = vld [vmem:[%s3 + $0x20] sm:$0xff]
      %v2531 = vld [vmem:[%s3 + $0x28] sm:$0xff]
      %v2532 = vld [vmem:[%s3 + $0x30] sm:$0xf]
      %v2533 = vld [vmem:[%s3 + $0x38] sm:$0xf]
      %v2534 = vld [vmem:[%s3 + $0x40] sm:$0xf]
      %vm2535 = vcmask 760832
      %v2537 = vsel %vm2535, %v2528, 0
      %v2540 = vsel %vm2535, %v2531, 0
      %v2543 = vsel %vm2535, %v2534, 0
      %vm2545 = vcmask 1044480
      %v2547 = vsel %vm2545, %v2520, 0
      %2549 = vmatprep.subr.mxu0 0.0
      %2550 = vmatpush1.msra.mxu0 %v2305
      %2551 = vmatprep.subr.mxu0 0.0
      %2552 = vmatpush1.msra.mxu0 %v2310
      %2553 = vmatprep.subr.mxu0 0.0
      %2554 = vmatpush1.msra.mxu0 %v2315
      %2555 = vmatprep.subr.mxu0 0.0
      %2556 = vmatpush1.msra.mxu0 %v2320
      %2557 = vmatprep.subr.mxu0 0.0
      %2558 = vmatpush1.msra.mxu0 %v2325
      %2559 = vmatprep.subr.mxu0 0.0
      %2560 = vmatpush1.msra.mxu0 %v2330
      %2561 = vmatprep.subr.mxu0 0.0
      %2562 = vmatpush1.msra.mxu0 %v2335
      %2563 = vmatprep.subr.mxu0 0.0
      %2564 = vmatpush1.msra.mxu0 %v2340
      %2565 = vmatprep.subr.mxu0 0.0
      %2566 = vmatpush1.msra.mxu0 %v2345
      %2567 = vmatprep.subr.mxu0 0.0
      %2568 = vmatpush1.msra.mxu0 %v2350
      %2569 = vmatprep.subr.mxu0 0.0
      %2570 = vmatpush1.msra.mxu0 %v2355
      %2571 = vmatprep.subr.mxu0 0.0
      %2572 = vmatpush1.msra.mxu0 %v2360
      %2573 = vmatprep.subr.mxu0 0.0
      %2574 = vmatpush1.msra.mxu0 %v2365
      %2575 = vmatprep.subr.mxu0 0.0
      %2576 = vmatpush1.msra.mxu0 %v2370
      %2577 = vmatprep.subr.mxu0 0.0
      %2578 = vmatpush1.msra.mxu0 %v2375
      %2579 = vmatprep.subr.mxu0 0.0
      %2580 = vmatpush1.msra.mxu0 %v2380
      %2581 = vmatprep.subr.mxu0 0.0
      %2582 = vmatpush1.msra.mxu0 %v2385
      %2583 = vmatprep.subr.mxu0 0.0
      %2584 = vmatpush1.msra.mxu0 %v2390
      %2585 = vmatprep.subr.mxu0 0.0
      %2586 = vmatpush1.msra.mxu0 %v2395
      %2587 = vmatprep.subr.mxu0 0.0
      %2588 = vmatpush1.msra.mxu0 %v2400
      %2589 = vmatprep.subr.mxu0 0.0
      %2590 = vmatpush1.msra.mxu0 %v2405
      %2591 = vmatprep.subr.mxu0 0.0
      %2592 = vmatpush1.msra.mxu0 %v2410
      %2593 = vmatprep.subr.mxu0 0.0
      %2594 = vmatpush1.msra.mxu0 %v2415
      %2595 = vmatprep.subr.mxu0 0.0
      %2596 = vmatpush1.msra.mxu0 %v2420
      %2597 = vmatprep.subr.mxu0 0.0
      %2598 = vmatpush1.msra.mxu0 %v2425
      %2599 = vmatprep.subr.mxu0 0.0
      %2600 = vmatpush1.msra.mxu0 %v2430
      %2601 = vmatprep.subr.mxu0 0.0
      %2602 = vmatpush1.msra.mxu0 %v2435
      %2603 = vmatprep.subr.mxu0 0.0
      %2604 = vmatpush1.msra.mxu0 %v2440
      %2605 = vmatprep.subr.mxu0 0.0
      %2606 = vmatpush1.msra.mxu0 %v2445
      %2607 = vmatprep.subr.mxu0 0.0
      %2608 = vmatpush1.msra.mxu0 %v2450
      %2609 = vmatprep.subr.mxu0 0.0
      %2610 = vmatpush1.msra.mxu0 %v2455
      %2611 = vmatprep.subr.mxu0 0.0
      %2612 = vmatpush1.msra.mxu0 %v2460
      %2613 = vmatprep.mubr.f32.mxu0 %v2527
      %2614 = vmatmul.mubr.f32.gmra.mrb[0].mxu0 %v2526
      %v2615 = vpop.f32.mrb[0].mxu0
      %v2616 = vadd.f32 0.0, %v2615
      %v2617 = vpop.f32.mrb[0].mxu0
      %2618 = vmatprep.mubr.f32.mxu0 %v2530
      %2619 = vmatmul.mubr.f32.gmra.mrb[0].mxu0 %v2529
      %v2620 = vpop.f32.mrb[0].mxu0
      %v2621 = vadd.f32 0.0, %v2620
      %v2622 = vpop.f32.mrb[0].mxu0
      %2623 = vmatprep.mubr.f32.mxu0 %v2533
      %2624 = vmatmul.mubr.f32.gmra.mrb[0].mxu0 %v2532
      %v2625 = vpop.f32.mrb[0].mxu0
      %v2626 = vadd.f32 0.0, %v2625
      %v2627 = vpop.f32.mrb[0].mxu0
      %2628 = vdwg.mxu0
      %2629 = vmatprep.subr.mxu0 0.0
      %2630 = vmatpush1.msra.mxu0 %v2465
      %2631 = vmatprep.subr.mxu0 0.0
      %2632 = vmatpush1.msra.mxu0 %v2470
      %2633 = vmatprep.subr.mxu0 0.0
      %2634 = vmatpush1.msra.mxu0 %v2475
      %2635 = vmatprep.subr.mxu0 0.0
      %2636 = vmatpush1.msra.mxu0 %v2480
      %2637 = vmatprep.subr.mxu0 0.0
      %2638 = vmatpush1.msra.mxu0 %v2485
      %2639 = vmatprep.subr.mxu0 0.0
      %2640 = vmatpush1.msra.mxu0 %v2490
      %2641 = vmatprep.subr.mxu0 0.0
      %2642 = vmatpush1.msra.mxu0 %v2495
      %2643 = vmatprep.subr.mxu0 0.0
      %2644 = vmatpush1.msra.mxu0 %v2500
      %2645 = vmatprep.subr.mxu0 0.0
      %2646 = vmatpush1.msra.mxu0 %v2505
      %2647 = vmatprep.subr.mxu0 0.0
      %2648 = vmatpush1.msra.mxu0 %v2510
      %2649 = vmatprep.subr.mxu0 0.0
      %2650 = vmatpush1.msra.mxu0 %v2515
      %2651 = vmatprep.subr.mxu0 0.0
      %2652 = vmatpush1.msra.mxu0 %v2547
      %2653 = vmatprep.subr.mxu0 0.0
      %2654 = vmatpush1.msra.mxu0 0.0
      %2655 = vmatprep.subr.mxu0 0.0
      %2656 = vmatpush1.msra.mxu0 0.0
      %2657 = vmatprep.subr.mxu0 0.0
      %2658 = vmatpush1.msra.mxu0 0.0
      %2659 = vmatprep.subr.mxu0 0.0
      %2660 = vmatpush1.msra.mxu0 0.0
      %2661 = vmatprep.subr.mxu0 0.0
      %2662 = vmatpush1.msra.mxu0 0.0
      %2663 = vmatprep.subr.mxu0 0.0
      %2664 = vmatpush1.msra.mxu0 0.0
      %2665 = vmatprep.subr.mxu0 0.0
      %2666 = vmatpush1.msra.mxu0 0.0
      %2667 = vmatprep.subr.mxu0 0.0
      %2668 = vmatpush1.msra.mxu0 0.0
      %2669 = vmatprep.subr.mxu0 0.0
      %2670 = vmatpush1.msra.mxu0 0.0
      %2671 = vmatprep.subr.mxu0 0.0
      %2672 = vmatpush1.msra.mxu0 0.0
      %2673 = vmatprep.subr.mxu0 0.0
      %2674 = vmatpush1.msra.mxu0 0.0
      %2675 = vmatprep.subr.mxu0 0.0
      %2676 = vmatpush1.msra.mxu0 0.0
      %2677 = vmatprep.subr.mxu0 0.0
      %2678 = vmatpush1.msra.mxu0 0.0
      %2679 = vmatprep.subr.mxu0 0.0
      %2680 = vmatpush1.msra.mxu0 0.0
      %2681 = vmatprep.subr.mxu0 0.0
      %2682 = vmatpush1.msra.mxu0 0.0
      %2683 = vmatprep.subr.mxu0 0.0
      %2684 = vmatpush1.msra.mxu0 0.0
      %2685 = vmatprep.subr.mxu0 0.0
      %2686 = vmatpush1.msra.mxu0 0.0
      %2687 = vmatprep.subr.mxu0 0.0
      %2688 = vmatpush1.msra.mxu0 0.0
      %2689 = vmatprep.subr.mxu0 0.0
      %2690 = vmatpush1.msra.mxu0 0.0
      %2691 = vmatprep.subr.mxu0 0.0
      %2692 = vmatpush1.msra.mxu0 0.0
      %2693 = vmatprep.mubr.f32.mxu0 0.0
      %2694 = vmatmul.mubr.f32.gmra.mrb[0].mxu0 %v2537
      %v2695 = vpop.f32.mrb[0].mxu0
      %v2696 = vadd.f32 %v2616, %v2695
      %v2697 = vpop.f32.mrb[0].mxu0
      %2698 = vmatprep.mubr.f32.mxu0 0.0
      %2699 = vmatmul.mubr.f32.gmra.mrb[0].mxu0 %v2540
      %v2700 = vpop.f32.mrb[0].mxu0
      %v2701 = vadd.f32 %v2621, %v2700
      %v2702 = vpop.f32.mrb[0].mxu0
      %2703 = vmatprep.mubr.f32.mxu0 0.0
      %2704 = vmatmul.mubr.f32.gmra.mrb[0].mxu0 %v2543
      %v2705 = vpop.f32.mrb[0].mxu0
      %v2706 = vadd.f32 %v2626, %v2705
      %v2707 = vpop.f32.mrb[0].mxu0
      %2708 = vdwg.mxu0
      %v2709 = vadd.f32 %v2523, %v2696
      %v2710 = vadd.f32 %v2524, %v2701
      %v2711 = vadd.f32 %v2525, %v2706
      %s2712 = scalar_lea.vmem %s3, 72
      %v2713 = vld [vmem:[%s2712] sm:$0xff]
      %v2714 = vld [vmem:[%s2712 + $0x8] sm:$0xff]
      %v2715 = vld [vmem:[%s2712 + $0x10] sm:$0xff]
      %v2716 = vld [vmem:[%s2712 + $0x18] sm:$0xff]
      %v2717 = vld [vmem:[%s2712 + $0x20] sm:$0xff]
      %v2718 = vld [vmem:[%s2712 + $0x28] sm:$0xff]
      %v2719 = vld [vmem:[%s2712 + $0x30] sm:$0xf]
      %v2720 = vld [vmem:[%s2712 + $0x38] sm:$0xf]
      %v2721 = vld [vmem:[%s2712 + $0x40] sm:$0xf]
      %2765 = vrot.lane.b32.xlu0 %v2305, 127
      %v2766 = vpop.permute.xlu0 %2765
      %2767 = vrot.lane.b32.xlu0 %v2310, 127
      %v2768 = vpop.permute.xlu0 %2767
      %2769 = vrot.lane.b32.xlu0 %v2315, 127
      %v2770 = vpop.permute.xlu0 %2769
      %2771 = vrot.lane.b32.xlu0 %v2320, 127
      %v2772 = vpop.permute.xlu0 %2771
      %2773 = vrot.lane.b32.xlu0 %v2325, 127
      %v2774 = vpop.permute.xlu0 %2773
      %2775 = vrot.lane.b32.xlu0 %v2330, 127
      %v2776 = vpop.permute.xlu0 %2775
      %2777 = vrot.lane.b32.xlu0 %v2335, 127
      %v2778 = vpop.permute.xlu0 %2777
      %2779 = vrot.lane.b32.xlu0 %v2340, 127
      %v2780 = vpop.permute.xlu0 %2779
      %2781 = vrot.lane.b32.xlu0 %v2345, 127
      %v2782 = vpop.permute.xlu0 %2781
      %2783 = vrot.lane.b32.xlu0 %v2350, 127
      %v2784 = vpop.permute.xlu0 %2783
      %2785 = vrot.lane.b32.xlu0 %v2355, 127
      %v2786 = vpop.permute.xlu0 %2785
      %2787 = vrot.lane.b32.xlu0 %v2360, 127
      %v2788 = vpop.permute.xlu0 %2787
      %2789 = vrot.lane.b32.xlu0 %v2365, 127
      %v2790 = vpop.permute.xlu0 %2789
      %2791 = vrot.lane.b32.xlu0 %v2370, 127
      %v2792 = vpop.permute.xlu0 %2791
      %2793 = vrot.lane.b32.xlu0 %v2375, 127
      %v2794 = vpop.permute.xlu0 %2793
      %2795 = vrot.lane.b32.xlu0 %v2380, 127
      %v2796 = vpop.permute.xlu0 %2795
      %2797 = vrot.lane.b32.xlu0 %v2385, 127
      %v2798 = vpop.permute.xlu0 %2797
      %2799 = vrot.lane.b32.xlu0 %v2390, 127
      %v2800 = vpop.permute.xlu0 %2799
      %2801 = vrot.lane.b32.xlu0 %v2395, 127
      %v2802 = vpop.permute.xlu0 %2801
      %2803 = vrot.lane.b32.xlu0 %v2400, 127
      %v2804 = vpop.permute.xlu0 %2803
      %2805 = vrot.lane.b32.xlu0 %v2405, 127
      %v2806 = vpop.permute.xlu0 %2805
      %2807 = vrot.lane.b32.xlu0 %v2410, 127
      %v2808 = vpop.permute.xlu0 %2807
      %2809 = vrot.lane.b32.xlu0 %v2415, 127
      %v2810 = vpop.permute.xlu0 %2809
      %2811 = vrot.lane.b32.xlu0 %v2420, 127
      %v2812 = vpop.permute.xlu0 %2811
      %2813 = vrot.lane.b32.xlu0 %v2425, 127
      %v2814 = vpop.permute.xlu0 %2813
      %2815 = vrot.lane.b32.xlu0 %v2430, 127
      %v2816 = vpop.permute.xlu0 %2815
      %2817 = vrot.lane.b32.xlu0 %v2435, 127
      %v2818 = vpop.permute.xlu0 %2817
      %2819 = vrot.lane.b32.xlu0 %v2440, 127
      %v2820 = vpop.permute.xlu0 %2819
      %2821 = vrot.lane.b32.xlu0 %v2445, 127
      %v2822 = vpop.permute.xlu0 %2821
      %2823 = vrot.lane.b32.xlu0 %v2450, 127
      %v2824 = vpop.permute.xlu0 %2823
      %2825 = vrot.lane.b32.xlu0 %v2455, 127
      %v2826 = vpop.permute.xlu0 %2825
      %2827 = vrot.lane.b32.xlu0 %v2460, 127
      %v2828 = vpop.permute.xlu0 %2827
      %2829 = vrot.lane.b32.xlu0 %v2465, 127
      %v2830 = vpop.permute.xlu0 %2829
      %2831 = vrot.lane.b32.xlu0 %v2470, 127
      %v2832 = vpop.permute.xlu0 %2831
      %2833 = vrot.lane.b32.xlu0 %v2475, 127
      %v2834 = vpop.permute.xlu0 %2833
      %2835 = vrot.lane.b32.xlu0 %v2480, 127
      %v2836 = vpop.permute.xlu0 %2835
      %2837 = vrot.lane.b32.xlu0 %v2485, 127
      %v2838 = vpop.permute.xlu0 %2837
      %2839 = vrot.lane.b32.xlu0 %v2490, 127
      %v2840 = vpop.permute.xlu0 %2839
      %2841 = vrot.lane.b32.xlu0 %v2495, 127
      %v2842 = vpop.permute.xlu0 %2841
      %2843 = vrot.lane.b32.xlu0 %v2500, 127
      %v2844 = vpop.permute.xlu0 %2843
      %2845 = vrot.lane.b32.xlu0 %v2505, 127
      %v2846 = vpop.permute.xlu0 %2845
      %2847 = vrot.lane.b32.xlu0 %v2510, 127
      %v2848 = vpop.permute.xlu0 %2847
      %2849 = vrot.lane.b32.xlu0 %v2515, 127
      %v2850 = vpop.permute.xlu0 %2849
      %2851 = vrot.lane.b32.xlu0 %v2520, 127
      %v2852 = vpop.permute.xlu0 %2851
      %v2897 = vsel %vm2535, %v2715, 0
      %v2900 = vsel %vm2535, %v2718, 0
      %v2903 = vsel %vm2535, %v2721, 0
      %v2905 = vsel %vm2545, %v2852, 0
      %2907 = vmatprep.subr.mxu0 0.0
      %2908 = vmatpush1.msra.mxu0 %v2766
      %2909 = vmatprep.subr.mxu0 0.0
      %2910 = vmatpush1.msra.mxu0 %v2768
      %2911 = vmatprep.subr.mxu0 0.0
      %2912 = vmatpush1.msra.mxu0 %v2770
      %2913 = vmatprep.subr.mxu0 0.0
      %2914 = vmatpush1.msra.mxu0 %v2772
      %2915 = vmatprep.subr.mxu0 0.0
      %2916 = vmatpush1.msra.mxu0 %v2774
      %2917 = vmatprep.subr.mxu0 0.0
      %2918 = vmatpush1.msra.mxu0 %v2776
      %2919 = vmatprep.subr.mxu0 0.0
      %2920 = vmatpush1.msra.mxu0 %v2778
      %2921 = vmatprep.subr.mxu0 0.0
      %2922 = vmatpush1.msra.mxu0 %v2780
      %2923 = vmatprep.subr.mxu0 0.0
      %2924 = vmatpush1.msra.mxu0 %v2782
      %2925 = vmatprep.subr.mxu0 0.0
      %2926 = vmatpush1.msra.mxu0 %v2784
      %2927 = vmatprep.subr.mxu0 0.0
      %2928 = vmatpush1.msra.mxu0 %v2786
      %2929 = vmatprep.subr.mxu0 0.0
      %2930 = vmatpush1.msra.mxu0 %v2788
      %2931 = vmatprep.subr.mxu0 0.0
      %2932 = vmatpush1.msra.mxu0 %v2790
      %2933 = vmatprep.subr.mxu0 0.0
      %2934 = vmatpush1.msra.mxu0 %v2792
      %2935 = vmatprep.subr.mxu0 0.0
      %2936 = vmatpush1.msra.mxu0 %v2794
      %2937 = vmatprep.subr.mxu0 0.0
      %2938 = vmatpush1.msra.mxu0 %v2796
      %2939 = vmatprep.subr.mxu0 0.0
      %2940 = vmatpush1.msra.mxu0 %v2798
      %2941 = vmatprep.subr.mxu0 0.0
      %2942 = vmatpush1.msra.mxu0 %v2800
      %2943 = vmatprep.subr.mxu0 0.0
      %2944 = vmatpush1.msra.mxu0 %v2802
      %2945 = vmatprep.subr.mxu0 0.0
      %2946 = vmatpush1.msra.mxu0 %v2804
      %2947 = vmatprep.subr.mxu0 0.0
      %2948 = vmatpush1.msra.mxu0 %v2806
      %2949 = vmatprep.subr.mxu0 0.0
      %2950 = vmatpush1.msra.mxu0 %v2808
      %2951 = vmatprep.subr.mxu0 0.0
      %2952 = vmatpush1.msra.mxu0 %v2810
      %2953 = vmatprep.subr.mxu0 0.0
      %2954 = vmatpush1.msra.mxu0 %v2812
      %2955 = vmatprep.subr.mxu0 0.0
      %2956 = vmatpush1.msra.mxu0 %v2814
      %2957 = vmatprep.subr.mxu0 0.0
      %2958 = vmatpush1.msra.mxu0 %v2816
      %2959 = vmatprep.subr.mxu0 0.0
      %2960 = vmatpush1.msra.mxu0 %v2818
      %2961 = vmatprep.subr.mxu0 0.0
      %2962 = vmatpush1.msra.mxu0 %v2820
      %2963 = vmatprep.subr.mxu0 0.0
      %2964 = vmatpush1.msra.mxu0 %v2822
      %2965 = vmatprep.subr.mxu0 0.0
      %2966 = vmatpush1.msra.mxu0 %v2824
      %2967 = vmatprep.subr.mxu0 0.0
      %2968 = vmatpush1.msra.mxu0 %v2826
      %2969 = vmatprep.subr.mxu0 0.0
      %2970 = vmatpush1.msra.mxu0 %v2828
      %2971 = vmatprep.mubr.f32.mxu0 %v2714
      %2972 = vmatmul.mubr.f32.gmra.mrb[0].mxu0 %v2713
      %v2973 = vpop.f32.mrb[0].mxu0
      %v2974 = vadd.f32 0.0, %v2973
      %v2975 = vpop.f32.mrb[0].mxu0
      %2976 = vmatprep.mubr.f32.mxu0 %v2717
      %2977 = vmatmul.mubr.f32.gmra.mrb[0].mxu0 %v2716
      %v2978 = vpop.f32.mrb[0].mxu0
      %v2979 = vadd.f32 0.0, %v2978
      %v2980 = vpop.f32.mrb[0].mxu0
      %2981 = vmatprep.mubr.f32.mxu0 %v2720
      %2982 = vmatmul.mubr.f32.gmra.mrb[0].mxu0 %v2719
      %v2983 = vpop.f32.mrb[0].mxu0
      %v2984 = vadd.f32 0.0, %v2983
      %v2985 = vpop.f32.mrb[0].mxu0
      %2986 = vdwg.mxu0
      %2987 = vmatprep.subr.mxu0 0.0
      %2988 = vmatpush1.msra.mxu0 %v2830
      %2989 = vmatprep.subr.mxu0 0.0
      %2990 = vmatpush1.msra.mxu0 %v2832
      %2991 = vmatprep.subr.mxu0 0.0
      %2992 = vmatpush1.msra.mxu0 %v2834
      %2993 = vmatprep.subr.mxu0 0.0
      %2994 = vmatpush1.msra.mxu0 %v2836
      %2995 = vmatprep.subr.mxu0 0.0
      %2996 = vmatpush1.msra.mxu0 %v2838
      %2997 = vmatprep.subr.mxu0 0.0
      %2998 = vmatpush1.msra.mxu0 %v2840
      %2999 = vmatprep.subr.mxu0 0.0
      %3000 = vmatpush1.msra.mxu0 %v2842
      %3001 = vmatprep.subr.mxu0 0.0
      %3002 = vmatpush1.msra.mxu0 %v2844
      %3003 = vmatprep.subr.mxu0 0.0
      %3004 = vmatpush1.msra.mxu0 %v2846
      %3005 = vmatprep.subr.mxu0 0.0
      %3006 = vmatpush1.msra.mxu0 %v2848
      %3007 = vmatprep.subr.mxu0 0.0
      %3008 = vmatpush1.msra.mxu0 %v2850
      %3009 = vmatprep.subr.mxu0 0.0
      %3010 = vmatpush1.msra.mxu0 %v2905
      %3011 = vmatprep.subr.mxu0 0.0
      %3012 = vmatpush1.msra.mxu0 0.0
      %3013 = vmatprep.subr.mxu0 0.0
      %3014 = vmatpush1.msra.mxu0 0.0
      %3015 = vmatprep.subr.mxu0 0.0
      %3016 = vmatpush1.msra.mxu0 0.0
      %3017 = vmatprep.subr.mxu0 0.0
      %3018 = vmatpush1.msra.mxu0 0.0
      %3019 = vmatprep.subr.mxu0 0.0
      %3020 = vmatpush1.msra.mxu0 0.0
      %3021 = vmatprep.subr.mxu0 0.0
      %3022 = vmatpush1.msra.mxu0 0.0
      %3023 = vmatprep.subr.mxu0 0.0
      %3024 = vmatpush1.msra.mxu0 0.0
      %3025 = vmatprep.subr.mxu0 0.0
      %3026 = vmatpush1.msra.mxu0 0.0
      %3027 = vmatprep.subr.mxu0 0.0
      %3028 = vmatpush1.msra.mxu0 0.0
      %3029 = vmatprep.subr.mxu0 0.0
      %3030 = vmatpush1.msra.mxu0 0.0
      %3031 = vmatprep.subr.mxu0 0.0
      %3032 = vmatpush1.msra.mxu0 0.0
      %3033 = vmatprep.subr.mxu0 0.0
      %3034 = vmatpush1.msra.mxu0 0.0
      %3035 = vmatprep.subr.mxu0 0.0
      %3036 = vmatpush1.msra.mxu0 0.0
      %3037 = vmatprep.subr.mxu0 0.0
      %3038 = vmatpush1.msra.mxu0 0.0
      %3039 = vmatprep.subr.mxu0 0.0
      %3040 = vmatpush1.msra.mxu0 0.0
      %3041 = vmatprep.subr.mxu0 0.0
      %3042 = vmatpush1.msra.mxu0 0.0
      %3043 = vmatprep.subr.mxu0 0.0
      %3044 = vmatpush1.msra.mxu0 0.0
      %3045 = vmatprep.subr.mxu0 0.0
      %3046 = vmatpush1.msra.mxu0 0.0
      %3047 = vmatprep.subr.mxu0 0.0
      %3048 = vmatpush1.msra.mxu0 0.0
      %3049 = vmatprep.subr.mxu0 0.0
      %3050 = vmatpush1.msra.mxu0 0.0
      %3051 = vmatprep.mubr.f32.mxu0 0.0
      %3052 = vmatmul.mubr.f32.gmra.mrb[0].mxu0 %v2897
      %v3053 = vpop.f32.mrb[0].mxu0
      %v3054 = vadd.f32 %v2974, %v3053
      %v3055 = vpop.f32.mrb[0].mxu0
      %3056 = vmatprep.mubr.f32.mxu0 0.0
      %3057 = vmatmul.mubr.f32.gmra.mrb[0].mxu0 %v2900
      %v3058 = vpop.f32.mrb[0].mxu0
      %v3059 = vadd.f32 %v2979, %v3058
      %v3060 = vpop.f32.mrb[0].mxu0
      %3061 = vmatprep.mubr.f32.mxu0 0.0
      %3062 = vmatmul.mubr.f32.gmra.mrb[0].mxu0 %v2903
      %v3063 = vpop.f32.mrb[0].mxu0
      %v3064 = vadd.f32 %v2984, %v3063
      %v3065 = vpop.f32.mrb[0].mxu0
      %3066 = vdwg.mxu0
      %v3067 = vadd.f32 %v2709, %v3054
      %v3068 = vadd.f32 %v2710, %v3059
      %v3069 = vadd.f32 %v2711, %v3064
      %s3070 = scalar_lea.vmem %s3, 144
      %v3071 = vld [vmem:[%s3070] sm:$0xff]
      %v3072 = vld [vmem:[%s3070 + $0x8] sm:$0xff]
      %v3073 = vld [vmem:[%s3070 + $0x10] sm:$0xff]
      %v3074 = vld [vmem:[%s3070 + $0x18] sm:$0xff]
      %v3075 = vld [vmem:[%s3070 + $0x20] sm:$0xff]
      %v3076 = vld [vmem:[%s3070 + $0x28] sm:$0xff]
      %v3077 = vld [vmem:[%s3070 + $0x30] sm:$0xf]
      %v3078 = vld [vmem:[%s3070 + $0x38] sm:$0xf]
      %v3079 = vld [vmem:[%s3070 + $0x40] sm:$0xf]
      %3080 = vrot.lane.b32.xlu0 %v2305, 126
      %v3081 = vpop.permute.xlu0 %3080
      %3082 = vrot.lane.b32.xlu0 %v2310, 126
      %v3083 = vpop.permute.xlu0 %3082
      %3084 = vrot.lane.b32.xlu0 %v2315, 126
      %v3085 = vpop.permute.xlu0 %3084
      %3086 = vrot.lane.b32.xlu0 %v2320, 126
      %v3087 = vpop.permute.xlu0 %3086
      %3088 = vrot.lane.b32.xlu0 %v2325, 126
      %v3089 = vpop.permute.xlu0 %3088
      %3090 = vrot.lane.b32.xlu0 %v2330, 126
      %v3091 = vpop.permute.xlu0 %3090
      %3092 = vrot.lane.b32.xlu0 %v2335, 126
      %v3093 = vpop.permute.xlu0 %3092
      %3094 = vrot.lane.b32.xlu0 %v2340, 126
      %v3095 = vpop.permute.xlu0 %3094
      %3096 = vrot.lane.b32.xlu0 %v2345, 126
      %v3097 = vpop.permute.xlu0 %3096
      %3098 = vrot.lane.b32.xlu0 %v2350, 126
      %v3099 = vpop.permute.xlu0 %3098
      %3100 = vrot.lane.b32.xlu0 %v2355, 126
      %v3101 = vpop.permute.xlu0 %3100
      %3102 = vrot.lane.b32.xlu0 %v2360, 126
      %v3103 = vpop.permute.xlu0 %3102
      %3104 = vrot.lane.b32.xlu0 %v2365, 126
      %v3105 = vpop.permute.xlu0 %3104
      %3106 = vrot.lane.b32.xlu0 %v2370, 126
      %v3107 = vpop.permute.xlu0 %3106
      %3108 = vrot.lane.b32.xlu0 %v2375, 126
      %v3109 = vpop.permute.xlu0 %3108
      %3110 = vrot.lane.b32.xlu0 %v2380, 126
      %v3111 = vpop.permute.xlu0 %3110
      %3112 = vrot.lane.b32.xlu0 %v2385, 126
      %v3113 = vpop.permute.xlu0 %3112
      %3114 = vrot.lane.b32.xlu0 %v2390, 126
      %v3115 = vpop.permute.xlu0 %3114
      %3116 = vrot.lane.b32.xlu0 %v2395, 126
      %v3117 = vpop.permute.xlu0 %3116
      %3118 = vrot.lane.b32.xlu0 %v2400, 126
      %v3119 = vpop.permute.xlu0 %3118
      %3120 = vrot.lane.b32.xlu0 %v2405, 126
      %v3121 = vpop.permute.xlu0 %3120
      %3122 = vrot.lane.b32.xlu0 %v2410, 126
      %v3123 = vpop.permute.xlu0 %3122
      %3124 = vrot.lane.b32.xlu0 %v2415, 126
      %v3125 = vpop.permute.xlu0 %3124
      %3126 = vrot.lane.b32.xlu0 %v2420, 126
      %v3127 = vpop.permute.xlu0 %3126
      %3128 = vrot.lane.b32.xlu0 %v2425, 126
      %v3129 = vpop.permute.xlu0 %3128
      %3130 = vrot.lane.b32.xlu0 %v2430, 126
      %v3131 = vpop.permute.xlu0 %3130
      %3132 = vrot.lane.b32.xlu0 %v2435, 126
      %v3133 = vpop.permute.xlu0 %3132
      %3134 = vrot.lane.b32.xlu0 %v2440, 126
      %v3135 = vpop.permute.xlu0 %3134
      %3136 = vrot.lane.b32.xlu0 %v2445, 126
      %v3137 = vpop.permute.xlu0 %3136
      %3138 = vrot.lane.b32.xlu0 %v2450, 126
      %v3139 = vpop.permute.xlu0 %3138
      %3140 = vrot.lane.b32.xlu0 %v2455, 126
      %v3141 = vpop.permute.xlu0 %3140
      %3142 = vrot.lane.b32.xlu0 %v2460, 126
      %v3143 = vpop.permute.xlu0 %3142
      %3144 = vrot.lane.b32.xlu0 %v2465, 126
      %v3145 = vpop.permute.xlu0 %3144
      %3146 = vrot.lane.b32.xlu0 %v2470, 126
      %v3147 = vpop.permute.xlu0 %3146
      %3148 = vrot.lane.b32.xlu0 %v2475, 126
      %v3149 = vpop.permute.xlu0 %3148
      %3150 = vrot.lane.b32.xlu0 %v2480, 126
      %v3151 = vpop.permute.xlu0 %3150
      %3152 = vrot.lane.b32.xlu0 %v2485, 126
      %v3153 = vpop.permute.xlu0 %3152
      %3154 = vrot.lane.b32.xlu0 %v2490, 126
      %v3155 = vpop.permute.xlu0 %3154
      %3156 = vrot.lane.b32.xlu0 %v2495, 126
      %v3157 = vpop.permute.xlu0 %3156
      %3158 = vrot.lane.b32.xlu0 %v2500, 126
      %v3159 = vpop.permute.xlu0 %3158
      %3160 = vrot.lane.b32.xlu0 %v2505, 126
      %v3161 = vpop.permute.xlu0 %3160
      %3162 = vrot.lane.b32.xlu0 %v2510, 126
      %v3163 = vpop.permute.xlu0 %3162
      %3164 = vrot.lane.b32.xlu0 %v2515, 126
      %v3165 = vpop.permute.xlu0 %3164
      %3166 = vrot.lane.b32.xlu0 %v2520, 126
      %v3167 = vpop.permute.xlu0 %3166
      %v3212 = vsel %vm2535, %v3073, 0
      %v3215 = vsel %vm2535, %v3076, 0
      %v3218 = vsel %vm2535, %v3079, 0
      %v3220 = vsel %vm2545, %v3167, 0
      %3222 = vmatprep.subr.mxu0 0.0
      %3223 = vmatpush1.msra.mxu0 %v3081
      %3224 = vmatprep.subr.mxu0 0.0
      %3225 = vmatpush1.msra.mxu0 %v3083
      %3226 = vmatprep.subr.mxu0 0.0
      %3227 = vmatpush1.msra.mxu0 %v3085
      %3228 = vmatprep.subr.mxu0 0.0
      %3229 = vmatpush1.msra.mxu0 %v3087
      %3230 = vmatprep.subr.mxu0 0.0
      %3231 = vmatpush1.msra.mxu0 %v3089
      %3232 = vmatprep.subr.mxu0 0.0
      %3233 = vmatpush1.msra.mxu0 %v3091
      %3234 = vmatprep.subr.mxu0 0.0
      %3235 = vmatpush1.msra.mxu0 %v3093
      %3236 = vmatprep.subr.mxu0 0.0
      %3237 = vmatpush1.msra.mxu0 %v3095
      %3238 = vmatprep.subr.mxu0 0.0
      %3239 = vmatpush1.msra.mxu0 %v3097
      %3240 = vmatprep.subr.mxu0 0.0
      %3241 = vmatpush1.msra.mxu0 %v3099
      %3242 = vmatprep.subr.mxu0 0.0
      %3243 = vmatpush1.msra.mxu0 %v3101
      %3244 = vmatprep.subr.mxu0 0.0
      %3245 = vmatpush1.msra.mxu0 %v3103
      %3246 = vmatprep.subr.mxu0 0.0
      %3247 = vmatpush1.msra.mxu0 %v3105
      %3248 = vmatprep.subr.mxu0 0.0
      %3249 = vmatpush1.msra.mxu0 %v3107
      %3250 = vmatprep.subr.mxu0 0.0
      %3251 = vmatpush1.msra.mxu0 %v3109
      %3252 = vmatprep.subr.mxu0 0.0
      %3253 = vmatpush1.msra.mxu0 %v3111
      %3254 = vmatprep.subr.mxu0 0.0
      %3255 = vmatpush1.msra.mxu0 %v3113
      %3256 = vmatprep.subr.mxu0 0.0
      %3257 = vmatpush1.msra.mxu0 %v3115
      %3258 = vmatprep.subr.mxu0 0.0
      %3259 = vmatpush1.msra.mxu0 %v3117
      %3260 = vmatprep.subr.mxu0 0.0
      %3261 = vmatpush1.msra.mxu0 %v3119
      %3262 = vmatprep.subr.mxu0 0.0
      %3263 = vmatpush1.msra.mxu0 %v3121
      %3264 = vmatprep.subr.mxu0 0.0
      %3265 = vmatpush1.msra.mxu0 %v3123
      %3266 = vmatprep.subr.mxu0 0.0
      %3267 = vmatpush1.msra.mxu0 %v3125
      %3268 = vmatprep.subr.mxu0 0.0
      %3269 = vmatpush1.msra.mxu0 %v3127
      %3270 = vmatprep.subr.mxu0 0.0
      %3271 = vmatpush1.msra.mxu0 %v3129
      %3272 = vmatprep.subr.mxu0 0.0
      %3273 = vmatpush1.msra.mxu0 %v3131
      %3274 = vmatprep.subr.mxu0 0.0
      %3275 = vmatpush1.msra.mxu0 %v3133
      %3276 = vmatprep.subr.mxu0 0.0
      %3277 = vmatpush1.msra.mxu0 %v3135
      %3278 = vmatprep.subr.mxu0 0.0
      %3279 = vmatpush1.msra.mxu0 %v3137
      %3280 = vmatprep.subr.mxu0 0.0
      %3281 = vmatpush1.msra.mxu0 %v3139
      %3282 = vmatprep.subr.mxu0 0.0
      %3283 = vmatpush1.msra.mxu0 %v3141
      %3284 = vmatprep.subr.mxu0 0.0
      %3285 = vmatpush1.msra.mxu0 %v3143
      %3286 = vmatprep.mubr.f32.mxu0 %v3072
      %3287 = vmatmul.mubr.f32.gmra.mrb[0].mxu0 %v3071
      %v3288 = vpop.f32.mrb[0].mxu0
      %v3289 = vadd.f32 0.0, %v3288
      %v3290 = vpop.f32.mrb[0].mxu0
      %3291 = vmatprep.mubr.f32.mxu0 %v3075
      %3292 = vmatmul.mubr.f32.gmra.mrb[0].mxu0 %v3074
      %v3293 = vpop.f32.mrb[0].mxu0
      %v3294 = vadd.f32 0.0, %v3293
      %v3295 = vpop.f32.mrb[0].mxu0
      %3296 = vmatprep.mubr.f32.mxu0 %v3078
      %3297 = vmatmul.mubr.f32.gmra.mrb[0].mxu0 %v3077
      %v3298 = vpop.f32.mrb[0].mxu0
      %v3299 = vadd.f32 0.0, %v3298
      %v3300 = vpop.f32.mrb[0].mxu0
      %3301 = vdwg.mxu0
      %3302 = vmatprep.subr.mxu0 0.0
      %3303 = vmatpush1.msra.mxu0 %v3145
      %3304 = vmatprep.subr.mxu0 0.0
      %3305 = vmatpush1.msra.mxu0 %v3147
      %3306 = vmatprep.subr.mxu0 0.0
      %3307 = vmatpush1.msra.mxu0 %v3149
      %3308 = vmatprep.subr.mxu0 0.0
      %3309 = vmatpush1.msra.mxu0 %v3151
      %3310 = vmatprep.subr.mxu0 0.0
      %3311 = vmatpush1.msra.mxu0 %v3153
      %3312 = vmatprep.subr.mxu0 0.0
      %3313 = vmatpush1.msra.mxu0 %v3155
      %3314 = vmatprep.subr.mxu0 0.0
      %3315 = vmatpush1.msra.mxu0 %v3157
      %3316 = vmatprep.subr.mxu0 0.0
      %3317 = vmatpush1.msra.mxu0 %v3159
      %3318 = vmatprep.subr.mxu0 0.0
      %3319 = vmatpush1.msra.mxu0 %v3161
      %3320 = vmatprep.subr.mxu0 0.0
      %3321 = vmatpush1.msra.mxu0 %v3163
      %3322 = vmatprep.subr.mxu0 0.0
      %3323 = vmatpush1.msra.mxu0 %v3165
      %3324 = vmatprep.subr.mxu0 0.0
      %3325 = vmatpush1.msra.mxu0 %v3220
      %3326 = vmatprep.subr.mxu0 0.0
      %3327 = vmatpush1.msra.mxu0 0.0
      %3328 = vmatprep.subr.mxu0 0.0
      %3329 = vmatpush1.msra.mxu0 0.0
      %3330 = vmatprep.subr.mxu0 0.0
      %3331 = vmatpush1.msra.mxu0 0.0
      %3332 = vmatprep.subr.mxu0 0.0
      %3333 = vmatpush1.msra.mxu0 0.0
      %3334 = vmatprep.subr.mxu0 0.0
      %3335 = vmatpush1.msra.mxu0 0.0
      %3336 = vmatprep.subr.mxu0 0.0
      %3337 = vmatpush1.msra.mxu0 0.0
      %3338 = vmatprep.subr.mxu0 0.0
      %3339 = vmatpush1.msra.mxu0 0.0
      %3340 = vmatprep.subr.mxu0 0.0
      %3341 = vmatpush1.msra.mxu0 0.0
      %3342 = vmatprep.subr.mxu0 0.0
      %3343 = vmatpush1.msra.mxu0 0.0
      %3344 = vmatprep.subr.mxu0 0.0
      %3345 = vmatpush1.msra.mxu0 0.0
      %3346 = vmatprep.subr.mxu0 0.0
      %3347 = vmatpush1.msra.mxu0 0.0
      %3348 = vmatprep.subr.mxu0 0.0
      %3349 = vmatpush1.msra.mxu0 0.0
      %3350 = vmatprep.subr.mxu0 0.0
      %3351 = vmatpush1.msra.mxu0 0.0
      %3352 = vmatprep.subr.mxu0 0.0
      %3353 = vmatpush1.msra.mxu0 0.0
      %3354 = vmatprep.subr.mxu0 0.0
      %3355 = vmatpush1.msra.mxu0 0.0
      %3356 = vmatprep.subr.mxu0 0.0
      %3357 = vmatpush1.msra.mxu0 0.0
      %3358 = vmatprep.subr.mxu0 0.0
      %3359 = vmatpush1.msra.mxu0 0.0
      %3360 = vmatprep.subr.mxu0 0.0
      %3361 = vmatpush1.msra.mxu0 0.0
      %3362 = vmatprep.subr.mxu0 0.0
      %3363 = vmatpush1.msra.mxu0 0.0
      %3364 = vmatprep.subr.mxu0 0.0
      %3365 = vmatpush1.msra.mxu0 0.0
      %3366 = vmatprep.mubr.f32.mxu0 0.0
      %3367 = vmatmul.mubr.f32.gmra.mrb[0].mxu0 %v3212
      %v3368 = vpop.f32.mrb[0].mxu0
      %v3369 = vadd.f32 %v3289, %v3368
      %v3370 = vpop.f32.mrb[0].mxu0
      %3371 = vmatprep.mubr.f32.mxu0 0.0
      %3372 = vmatmul.mubr.f32.gmra.mrb[0].mxu0 %v3215
      %v3373 = vpop.f32.mrb[0].mxu0
      %v3374 = vadd.f32 %v3294, %v3373
      %v3375 = vpop.f32.mrb[0].mxu0
      %3376 = vmatprep.mubr.f32.mxu0 0.0
      %3377 = vmatmul.mubr.f32.gmra.mrb[0].mxu0 %v3218
      %v3378 = vpop.f32.mrb[0].mxu0
      %v3379 = vadd.f32 %v3299, %v3378
      %v3380 = vpop.f32.mrb[0].mxu0
      %3381 = vdwg.mxu0
      %v3382 = vadd.f32 %v3067, %v3369
      %v3383 = vadd.f32 %v3068, %v3374
      %v3384 = vadd.f32 %v3069, %v3379
      %s3385 = scalar_lea.vmem %s3, 216
      %v3386 = vld [vmem:[%s3385] sm:$0xff]
      %v3387 = vld [vmem:[%s3385 + $0x8] sm:$0xff]
      %v3388 = vld [vmem:[%s3385 + $0x10] sm:$0xff]
      %v3389 = vld [vmem:[%s3385 + $0x18] sm:$0xff]
      %v3390 = vld [vmem:[%s3385 + $0x20] sm:$0xff]
      %v3391 = vld [vmem:[%s3385 + $0x28] sm:$0xff]
      %v3392 = vld [vmem:[%s3385 + $0x30] sm:$0xf]
      %v3393 = vld [vmem:[%s3385 + $0x38] sm:$0xf]
      %v3394 = vld [vmem:[%s3385 + $0x40] sm:$0xf]
      %v3396 = vsel %vm2535, %v3388, 0
      %v3399 = vsel %vm2535, %v3391, 0
      %v3402 = vsel %vm2535, %v3394, 0
      %3404 = vmatprep.subr.mxu0 0.0
      %3405 = vmatpush1.msra.mxu0 %v2305
      %3406 = vmatprep.subr.mxu0 0.0
      %3407 = vmatpush1.msra.mxu0 %v2310
      %3408 = vmatprep.subr.mxu0 0.0
      %3409 = vmatpush1.msra.mxu0 %v2315
      %3410 = vmatprep.subr.mxu0 0.0
      %3411 = vmatpush1.msra.mxu0 %v2320
      %3412 = vmatprep.subr.mxu0 0.0
      %3413 = vmatpush1.msra.mxu0 %v2325
      %3414 = vmatprep.subr.mxu0 0.0
      %3415 = vmatpush1.msra.mxu0 %v2330
      %3416 = vmatprep.subr.mxu0 0.0
      %3417 = vmatpush1.msra.mxu0 %v2335
      %3418 = vmatprep.subr.mxu0 0.0
      %3419 = vmatpush1.msra.mxu0 %v2340
      %3420 = vmatprep.subr.mxu0 0.0
      %3421 = vmatpush1.msra.mxu0 %v2345
      %3422 = vmatprep.subr.mxu0 0.0
      %3423 = vmatpush1.msra.mxu0 %v2350
      %3424 = vmatprep.subr.mxu0 0.0
      %3425 = vmatpush1.msra.mxu0 %v2355
      %3426 = vmatprep.subr.mxu0 0.0
      %3427 = vmatpush1.msra.mxu0 %v2360
      %3428 = vmatprep.subr.mxu0 0.0
      %3429 = vmatpush1.msra.mxu0 %v2365
      %3430 = vmatprep.subr.mxu0 0.0
      %3431 = vmatpush1.msra.mxu0 %v2370
      %3432 = vmatprep.subr.mxu0 0.0
      %3433 = vmatpush1.msra.mxu0 %v2375
      %3434 = vmatprep.subr.mxu0 0.0
      %3435 = vmatpush1.msra.mxu0 %v2380
      %3436 = vmatprep.subr.mxu0 0.0
      %3437 = vmatpush1.msra.mxu0 %v2385
      %3438 = vmatprep.subr.mxu0 0.0
      %3439 = vmatpush1.msra.mxu0 %v2390
      %3440 = vmatprep.subr.mxu0 0.0
      %3441 = vmatpush1.msra.mxu0 %v2395
      %3442 = vmatprep.subr.mxu0 0.0
      %3443 = vmatpush1.msra.mxu0 %v2400
      %3444 = vmatprep.subr.mxu0 0.0
      %3445 = vmatpush1.msra.mxu0 %v2405
      %3446 = vmatprep.subr.mxu0 0.0
      %3447 = vmatpush1.msra.mxu0 %v2410
      %3448 = vmatprep.subr.mxu0 0.0
      %3449 = vmatpush1.msra.mxu0 %v2415
      %3450 = vmatprep.subr.mxu0 0.0
      %3451 = vmatpush1.msra.mxu0 %v2420
      %3452 = vmatprep.subr.mxu0 0.0
      %3453 = vmatpush1.msra.mxu0 %v2425
      %3454 = vmatprep.subr.mxu0 0.0
      %3455 = vmatpush1.msra.mxu0 %v2430
      %3456 = vmatprep.subr.mxu0 0.0
      %3457 = vmatpush1.msra.mxu0 %v2435
      %3458 = vmatprep.subr.mxu0 0.0
      %3459 = vmatpush1.msra.mxu0 %v2440
      %3460 = vmatprep.subr.mxu0 0.0
      %3461 = vmatpush1.msra.mxu0 %v2445
      %3462 = vmatprep.subr.mxu0 0.0
      %3463 = vmatpush1.msra.mxu0 %v2450
      %3464 = vmatprep.subr.mxu0 0.0
      %3465 = vmatpush1.msra.mxu0 %v2455
      %3466 = vmatprep.subr.mxu0 0.0
      %3467 = vmatpush1.msra.mxu0 %v2460
      %3468 = vmatprep.mubr.f32.mxu0 %v3387
      %3469 = vmatmul.mubr.f32.gmra.mrb[0].mxu0 %v3386
      %v3470 = vpop.f32.mrb[0].mxu0
      %v3471 = vadd.f32 0.0, %v3470
      %v3472 = vpop.f32.mrb[0].mxu0
      %3473 = vmatprep.mubr.f32.mxu0 %v3390
      %3474 = vmatmul.mubr.f32.gmra.mrb[0].mxu0 %v3389
      %v3475 = vpop.f32.mrb[0].mxu0
      %v3476 = vadd.f32 0.0, %v3475
      %v3477 = vpop.f32.mrb[0].mxu0
      %3478 = vmatprep.mubr.f32.mxu0 %v3393
      %3479 = vmatmul.mubr.f32.gmra.mrb[0].mxu0 %v3392
      %v3480 = vpop.f32.mrb[0].mxu0
      %v3481 = vadd.f32 0.0, %v3480
      %v3482 = vpop.f32.mrb[0].mxu0
      %3483 = vdwg.mxu0
      %3484 = vmatprep.subr.mxu0 0.0
      %3485 = vmatpush1.msra.mxu0 %v2465
      %3486 = vmatprep.subr.mxu0 0.0
      %3487 = vmatpush1.msra.mxu0 %v2470
      %3488 = vmatprep.subr.mxu0 0.0
      %3489 = vmatpush1.msra.mxu0 %v2475
      %3490 = vmatprep.subr.mxu0 0.0
      %3491 = vmatpush1.msra.mxu0 %v2480
      %3492 = vmatprep.subr.mxu0 0.0
      %3493 = vmatpush1.msra.mxu0 %v2485
      %3494 = vmatprep.subr.mxu0 0.0
      %3495 = vmatpush1.msra.mxu0 %v2490
      %3496 = vmatprep.subr.mxu0 0.0
      %3497 = vmatpush1.msra.mxu0 %v2495
      %3498 = vmatprep.subr.mxu0 0.0
      %3499 = vmatpush1.msra.mxu0 %v2500
      %3500 = vmatprep.subr.mxu0 0.0
      %3501 = vmatpush1.msra.mxu0 %v2505
      %3502 = vmatprep.subr.mxu0 0.0
      %3503 = vmatpush1.msra.mxu0 %v2510
      %3504 = vmatprep.subr.mxu0 0.0
      %3505 = vmatpush1.msra.mxu0 %v2515
      %3506 = vmatprep.subr.mxu0 0.0
      %3507 = vmatpush1.msra.mxu0 %v2547
      %3508 = vmatprep.subr.mxu0 0.0
      %3509 = vmatpush1.msra.mxu0 0.0
      %3510 = vmatprep.subr.mxu0 0.0
      %3511 = vmatpush1.msra.mxu0 0.0
      %3512 = vmatprep.subr.mxu0 0.0
      %3513 = vmatpush1.msra.mxu0 0.0
      %3514 = vmatprep.subr.mxu0 0.0
      %3515 = vmatpush1.msra.mxu0 0.0
      %3516 = vmatprep.subr.mxu0 0.0
      %3517 = vmatpush1.msra.mxu0 0.0
      %3518 = vmatprep.subr.mxu0 0.0
      %3519 = vmatpush1.msra.mxu0 0.0
      %3520 = vmatprep.subr.mxu0 0.0
      %3521 = vmatpush1.msra.mxu0 0.0
      %3522 = vmatprep.subr.mxu0 0.0
      %3523 = vmatpush1.msra.mxu0 0.0
      %3524 = vmatprep.subr.mxu0 0.0
      %3525 = vmatpush1.msra.mxu0 0.0
      %3526 = vmatprep.subr.mxu0 0.0
      %3527 = vmatpush1.msra.mxu0 0.0
      %3528 = vmatprep.subr.mxu0 0.0
      %3529 = vmatpush1.msra.mxu0 0.0
      %3530 = vmatprep.subr.mxu0 0.0
      %3531 = vmatpush1.msra.mxu0 0.0
      %3532 = vmatprep.subr.mxu0 0.0
      %3533 = vmatpush1.msra.mxu0 0.0
      %3534 = vmatprep.subr.mxu0 0.0
      %3535 = vmatpush1.msra.mxu0 0.0
      %3536 = vmatprep.subr.mxu0 0.0
      %3537 = vmatpush1.msra.mxu0 0.0
      %3538 = vmatprep.subr.mxu0 0.0
      %3539 = vmatpush1.msra.mxu0 0.0
      %3540 = vmatprep.subr.mxu0 0.0
      %3541 = vmatpush1.msra.mxu0 0.0
      %3542 = vmatprep.subr.mxu0 0.0
      %3543 = vmatpush1.msra.mxu0 0.0
      %3544 = vmatprep.subr.mxu0 0.0
      %3545 = vmatpush1.msra.mxu0 0.0
      %3546 = vmatprep.subr.mxu0 0.0
      %3547 = vmatpush1.msra.mxu0 0.0
      %3548 = vmatprep.mubr.f32.mxu0 0.0
      %3549 = vmatmul.mubr.f32.gmra.mrb[0].mxu0 %v3396
      %v3550 = vpop.f32.mrb[0].mxu0
      %v3551 = vadd.f32 %v3471, %v3550
      %v3552 = vpop.f32.mrb[0].mxu0
      %3553 = vmatprep.mubr.f32.mxu0 0.0
      %3554 = vmatmul.mubr.f32.gmra.mrb[0].mxu0 %v3399
      %v3555 = vpop.f32.mrb[0].mxu0
      %v3556 = vadd.f32 %v3476, %v3555
      %v3557 = vpop.f32.mrb[0].mxu0
      %3558 = vmatprep.mubr.f32.mxu0 0.0
      %3559 = vmatmul.mubr.f32.gmra.mrb[0].mxu0 %v3402
      %v3560 = vpop.f32.mrb[0].mxu0
      %v3561 = vadd.f32 %v3481, %v3560
      %v3562 = vpop.f32.mrb[0].mxu0
      %3563 = vdwg.mxu0
      %3567 = vrot.lane.b32.xlu0 %v3551, 1
      %v3568 = vpop.permute.xlu0 %3567
      %3569 = vrot.lane.b32.xlu0 %v3556, 1
      %v3570 = vpop.permute.xlu0 %3569
      %3571 = vrot.lane.b32.xlu0 %v3561, 1
      %v3572 = vpop.permute.xlu0 %3571
      %v3576 = vadd.f32 %v2523, %v3568
      %v3577 = vadd.f32 %v2524, %v3570
      %v3578 = vadd.f32 %v2525, %v3572
      %s3579 = scalar_lea.vmem %s3, 288
      %v3580 = vld [vmem:[%s3579] sm:$0xff]
      %v3581 = vld [vmem:[%s3579 + $0x8] sm:$0xff]
      %v3582 = vld [vmem:[%s3579 + $0x10] sm:$0xff]
      %v3583 = vld [vmem:[%s3579 + $0x18] sm:$0xff]
      %v3584 = vld [vmem:[%s3579 + $0x20] sm:$0xff]
      %v3585 = vld [vmem:[%s3579 + $0x28] sm:$0xff]
      %v3586 = vld [vmem:[%s3579 + $0x30] sm:$0xf]
      %v3587 = vld [vmem:[%s3579 + $0x38] sm:$0xf]
      %v3588 = vld [vmem:[%s3579 + $0x40] sm:$0xf]
      %v3590 = vsel %vm2535, %v3582, 0
      %v3593 = vsel %vm2535, %v3585, 0
      %v3596 = vsel %vm2535, %v3588, 0
      %3598 = vmatprep.subr.mxu0 0.0
      %3599 = vmatpush1.msra.mxu0 %v2766
      %3600 = vmatprep.subr.mxu0 0.0
      %3601 = vmatpush1.msra.mxu0 %v2768
      %3602 = vmatprep.subr.mxu0 0.0
      %3603 = vmatpush1.msra.mxu0 %v2770
      %3604 = vmatprep.subr.mxu0 0.0
      %3605 = vmatpush1.msra.mxu0 %v2772
      %3606 = vmatprep.subr.mxu0 0.0
      %3607 = vmatpush1.msra.mxu0 %v2774
      %3608 = vmatprep.subr.mxu0 0.0
      %3609 = vmatpush1.msra.mxu0 %v2776
      %3610 = vmatprep.subr.mxu0 0.0
      %3611 = vmatpush1.msra.mxu0 %v2778
      %3612 = vmatprep.subr.mxu0 0.0
      %3613 = vmatpush1.msra.mxu0 %v2780
      %3614 = vmatprep.subr.mxu0 0.0
      %3615 = vmatpush1.msra.mxu0 %v2782
      %3616 = vmatprep.subr.mxu0 0.0
      %3617 = vmatpush1.msra.mxu0 %v2784
      %3618 = vmatprep.subr.mxu0 0.0
      %3619 = vmatpush1.msra.mxu0 %v2786
      %3620 = vmatprep.subr.mxu0 0.0
      %3621 = vmatpush1.msra.mxu0 %v2788
      %3622 = vmatprep.subr.mxu0 0.0
      %3623 = vmatpush1.msra.mxu0 %v2790
      %3624 = vmatprep.subr.mxu0 0.0
      %3625 = vmatpush1.msra.mxu0 %v2792
      %3626 = vmatprep.subr.mxu0 0.0
      %3627 = vmatpush1.msra.mxu0 %v2794
      %3628 = vmatprep.subr.mxu0 0.0
      %3629 = vmatpush1.msra.mxu0 %v2796
      %3630 = vmatprep.subr.mxu0 0.0
      %3631 = vmatpush1.msra.mxu0 %v2798
      %3632 = vmatprep.subr.mxu0 0.0
      %3633 = vmatpush1.msra.mxu0 %v2800
      %3634 = vmatprep.subr.mxu0 0.0
      %3635 = vmatpush1.msra.mxu0 %v2802
      %3636 = vmatprep.subr.mxu0 0.0
      %3637 = vmatpush1.msra.mxu0 %v2804
      %3638 = vmatprep.subr.mxu0 0.0
      %3639 = vmatpush1.msra.mxu0 %v2806
      %3640 = vmatprep.subr.mxu0 0.0
      %3641 = vmatpush1.msra.mxu0 %v2808
      %3642 = vmatprep.subr.mxu0 0.0
      %3643 = vmatpush1.msra.mxu0 %v2810
      %3644 = vmatprep.subr.mxu0 0.0
      %3645 = vmatpush1.msra.mxu0 %v2812
      %3646 = vmatprep.subr.mxu0 0.0
      %3647 = vmatpush1.msra.mxu0 %v2814
      %3648 = vmatprep.subr.mxu0 0.0
      %3649 = vmatpush1.msra.mxu0 %v2816
      %3650 = vmatprep.subr.mxu0 0.0
      %3651 = vmatpush1.msra.mxu0 %v2818
      %3652 = vmatprep.subr.mxu0 0.0
      %3653 = vmatpush1.msra.mxu0 %v2820
      %3654 = vmatprep.subr.mxu0 0.0
      %3655 = vmatpush1.msra.mxu0 %v2822
      %3656 = vmatprep.subr.mxu0 0.0
      %3657 = vmatpush1.msra.mxu0 %v2824
      %3658 = vmatprep.subr.mxu0 0.0
      %3659 = vmatpush1.msra.mxu0 %v2826
      %3660 = vmatprep.subr.mxu0 0.0
      %3661 = vmatpush1.msra.mxu0 %v2828
      %3662 = vmatprep.mubr.f32.mxu0 %v3581
      %3663 = vmatmul.mubr.f32.gmra.mrb[0].mxu0 %v3580
      %v3664 = vpop.f32.mrb[0].mxu0
      %v3665 = vadd.f32 0.0, %v3664
      %v3666 = vpop.f32.mrb[0].mxu0
      %3667 = vmatprep.mubr.f32.mxu0 %v3584
      %3668 = vmatmul.mubr.f32.gmra.mrb[0].mxu0 %v3583
      %v3669 = vpop.f32.mrb[0].mxu0
      %v3670 = vadd.f32 0.0, %v3669
      %v3671 = vpop.f32.mrb[0].mxu0
      %3672 = vmatprep.mubr.f32.mxu0 %v3587
      %3673 = vmatmul.mubr.f32.gmra.mrb[0].mxu0 %v3586
      %v3674 = vpop.f32.mrb[0].mxu0
      %v3675 = vadd.f32 0.0, %v3674
      %v3676 = vpop.f32.mrb[0].mxu0
      %3677 = vdwg.mxu0
      %3678 = vmatprep.subr.mxu0 0.0
      %3679 = vmatpush1.msra.mxu0 %v2830
      %3680 = vmatprep.subr.mxu0 0.0
      %3681 = vmatpush1.msra.mxu0 %v2832
      %3682 = vmatprep.subr.mxu0 0.0
      %3683 = vmatpush1.msra.mxu0 %v2834
      %3684 = vmatprep.subr.mxu0 0.0
      %3685 = vmatpush1.msra.mxu0 %v2836
      %3686 = vmatprep.subr.mxu0 0.0
      %3687 = vmatpush1.msra.mxu0 %v2838
      %3688 = vmatprep.subr.mxu0 0.0
      %3689 = vmatpush1.msra.mxu0 %v2840
      %3690 = vmatprep.subr.mxu0 0.0
      %3691 = vmatpush1.msra.mxu0 %v2842
      %3692 = vmatprep.subr.mxu0 0.0
      %3693 = vmatpush1.msra.mxu0 %v2844
      %3694 = vmatprep.subr.mxu0 0.0
      %3695 = vmatpush1.msra.mxu0 %v2846
      %3696 = vmatprep.subr.mxu0 0.0
      %3697 = vmatpush1.msra.mxu0 %v2848
      %3698 = vmatprep.subr.mxu0 0.0
      %3699 = vmatpush1.msra.mxu0 %v2850
      %3700 = vmatprep.subr.mxu0 0.0
      %3701 = vmatpush1.msra.mxu0 %v2905
      %3702 = vmatprep.subr.mxu0 0.0
      %3703 = vmatpush1.msra.mxu0 0.0
      %3704 = vmatprep.subr.mxu0 0.0
      %3705 = vmatpush1.msra.mxu0 0.0
      %3706 = vmatprep.subr.mxu0 0.0
      %3707 = vmatpush1.msra.mxu0 0.0
      %3708 = vmatprep.subr.mxu0 0.0
      %3709 = vmatpush1.msra.mxu0 0.0
      %3710 = vmatprep.subr.mxu0 0.0
      %3711 = vmatpush1.msra.mxu0 0.0
      %3712 = vmatprep.subr.mxu0 0.0
      %3713 = vmatpush1.msra.mxu0 0.0
      %3714 = vmatprep.subr.mxu0 0.0
      %3715 = vmatpush1.msra.mxu0 0.0
      %3716 = vmatprep.subr.mxu0 0.0
      %3717 = vmatpush1.msra.mxu0 0.0
      %3718 = vmatprep.subr.mxu0 0.0
      %3719 = vmatpush1.msra.mxu0 0.0
      %3720 = vmatprep.subr.mxu0 0.0
      %3721 = vmatpush1.msra.mxu0 0.0
      %3722 = vmatprep.subr.mxu0 0.0
      %3723 = vmatpush1.msra.mxu0 0.0
      %3724 = vmatprep.subr.mxu0 0.0
      %3725 = vmatpush1.msra.mxu0 0.0
      %3726 = vmatprep.subr.mxu0 0.0
      %3727 = vmatpush1.msra.mxu0 0.0
      %3728 = vmatprep.subr.mxu0 0.0
      %3729 = vmatpush1.msra.mxu0 0.0
      %3730 = vmatprep.subr.mxu0 0.0
      %3731 = vmatpush1.msra.mxu0 0.0
      %3732 = vmatprep.subr.mxu0 0.0
      %3733 = vmatpush1.msra.mxu0 0.0
      %3734 = vmatprep.subr.mxu0 0.0
      %3735 = vmatpush1.msra.mxu0 0.0
      %3736 = vmatprep.subr.mxu0 0.0
      %3737 = vmatpush1.msra.mxu0 0.0
      %3738 = vmatprep.subr.mxu0 0.0
      %3739 = vmatpush1.msra.mxu0 0.0
      %3740 = vmatprep.subr.mxu0 0.0
      %3741 = vmatpush1.msra.mxu0 0.0
      %3742 = vmatprep.mubr.f32.mxu0 0.0
      %3743 = vmatmul.mubr.f32.gmra.mrb[0].mxu0 %v3590
      %v3744 = vpop.f32.mrb[0].mxu0
      %v3745 = vadd.f32 %v3665, %v3744
      %v3746 = vpop.f32.mrb[0].mxu0
      %3747 = vmatprep.mubr.f32.mxu0 0.0
      %3748 = vmatmul.mubr.f32.gmra.mrb[0].mxu0 %v3593
      %v3749 = vpop.f32.mrb[0].mxu0
      %v3750 = vadd.f32 %v3670, %v3749
      %v3751 = vpop.f32.mrb[0].mxu0
      %3752 = vmatprep.mubr.f32.mxu0 0.0
      %3753 = vmatmul.mubr.f32.gmra.mrb[0].mxu0 %v3596
      %v3754 = vpop.f32.mrb[0].mxu0
      %v3755 = vadd.f32 %v3675, %v3754
      %v3756 = vpop.f32.mrb[0].mxu0
      %3757 = vdwg.mxu0
      %3761 = vrot.lane.b32.xlu0 %v3745, 1
      %v3762 = vpop.permute.xlu0 %3761
      %3763 = vrot.lane.b32.xlu0 %v3750, 1
      %v3764 = vpop.permute.xlu0 %3763
      %3765 = vrot.lane.b32.xlu0 %v3755, 1
      %v3766 = vpop.permute.xlu0 %3765
      %v3770 = vadd.f32 %v3576, %v3762
      %v3771 = vadd.f32 %v3577, %v3764
      %v3772 = vadd.f32 %v3578, %v3766
      %s3773 = scalar_lea.vmem %s3, 360
      %v3774 = vld [vmem:[%s3773] sm:$0xff]
      %v3775 = vld [vmem:[%s3773 + $0x8] sm:$0xff]
      %v3776 = vld [vmem:[%s3773 + $0x10] sm:$0xff]
      %v3777 = vld [vmem:[%s3773 + $0x18] sm:$0xff]
      %v3778 = vld [vmem:[%s3773 + $0x20] sm:$0xff]
      %v3779 = vld [vmem:[%s3773 + $0x28] sm:$0xff]
      %v3780 = vld [vmem:[%s3773 + $0x30] sm:$0xf]
      %v3781 = vld [vmem:[%s3773 + $0x38] sm:$0xf]
      %v3782 = vld [vmem:[%s3773 + $0x40] sm:$0xf]
      %v3784 = vsel %vm2535, %v3776, 0
      %v3787 = vsel %vm2535, %v3779, 0
      %v3790 = vsel %vm2535, %v3782, 0
      %3792 = vmatprep.subr.mxu0 0.0
      %3793 = vmatpush1.msra.mxu0 %v3081
      %3794 = vmatprep.subr.mxu0 0.0
      %3795 = vmatpush1.msra.mxu0 %v3083
      %3796 = vmatprep.subr.mxu0 0.0
      %3797 = vmatpush1.msra.mxu0 %v3085
      %3798 = vmatprep.subr.mxu0 0.0
      %3799 = vmatpush1.msra.mxu0 %v3087
      %3800 = vmatprep.subr.mxu0 0.0
      %3801 = vmatpush1.msra.mxu0 %v3089
      %3802 = vmatprep.subr.mxu0 0.0
      %3803 = vmatpush1.msra.mxu0 %v3091
      %3804 = vmatprep.subr.mxu0 0.0
      %3805 = vmatpush1.msra.mxu0 %v3093
      %3806 = vmatprep.subr.mxu0 0.0
      %3807 = vmatpush1.msra.mxu0 %v3095
      %3808 = vmatprep.subr.mxu0 0.0
      %3809 = vmatpush1.msra.mxu0 %v3097
      %3810 = vmatprep.subr.mxu0 0.0
      %3811 = vmatpush1.msra.mxu0 %v3099
      %3812 = vmatprep.subr.mxu0 0.0
      %3813 = vmatpush1.msra.mxu0 %v3101
      %3814 = vmatprep.subr.mxu0 0.0
      %3815 = vmatpush1.msra.mxu0 %v3103
      %3816 = vmatprep.subr.mxu0 0.0
      %3817 = vmatpush1.msra.mxu0 %v3105
      %3818 = vmatprep.subr.mxu0 0.0
      %3819 = vmatpush1.msra.mxu0 %v3107
      %3820 = vmatprep.subr.mxu0 0.0
      %3821 = vmatpush1.msra.mxu0 %v3109
      %3822 = vmatprep.subr.mxu0 0.0
      %3823 = vmatpush1.msra.mxu0 %v3111
      %3824 = vmatprep.subr.mxu0 0.0
      %3825 = vmatpush1.msra.mxu0 %v3113
      %3826 = vmatprep.subr.mxu0 0.0
      %3827 = vmatpush1.msra.mxu0 %v3115
      %3828 = vmatprep.subr.mxu0 0.0
      %3829 = vmatpush1.msra.mxu0 %v3117
      %3830 = vmatprep.subr.mxu0 0.0
      %3831 = vmatpush1.msra.mxu0 %v3119
      %3832 = vmatprep.subr.mxu0 0.0
      %3833 = vmatpush1.msra.mxu0 %v3121
      %3834 = vmatprep.subr.mxu0 0.0
      %3835 = vmatpush1.msra.mxu0 %v3123
      %3836 = vmatprep.subr.mxu0 0.0
      %3837 = vmatpush1.msra.mxu0 %v3125
      %3838 = vmatprep.subr.mxu0 0.0
      %3839 = vmatpush1.msra.mxu0 %v3127
      %3840 = vmatprep.subr.mxu0 0.0
      %3841 = vmatpush1.msra.mxu0 %v3129
      %3842 = vmatprep.subr.mxu0 0.0
      %3843 = vmatpush1.msra.mxu0 %v3131
      %3844 = vmatprep.subr.mxu0 0.0
      %3845 = vmatpush1.msra.mxu0 %v3133
      %3846 = vmatprep.subr.mxu0 0.0
      %3847 = vmatpush1.msra.mxu0 %v3135
      %3848 = vmatprep.subr.mxu0 0.0
      %3849 = vmatpush1.msra.mxu0 %v3137
      %3850 = vmatprep.subr.mxu0 0.0
      %3851 = vmatpush1.msra.mxu0 %v3139
      %3852 = vmatprep.subr.mxu0 0.0
      %3853 = vmatpush1.msra.mxu0 %v3141
      %3854 = vmatprep.subr.mxu0 0.0
      %3855 = vmatpush1.msra.mxu0 %v3143
      %3856 = vmatprep.mubr.f32.mxu0 %v3775
      %3857 = vmatmul.mubr.f32.gmra.mrb[0].mxu0 %v3774
      %v3858 = vpop.f32.mrb[0].mxu0
      %v3859 = vadd.f32 0.0, %v3858
      %v3860 = vpop.f32.mrb[0].mxu0
      %3861 = vmatprep.mubr.f32.mxu0 %v3778
      %3862 = vmatmul.mubr.f32.gmra.mrb[0].mxu0 %v3777
      %v3863 = vpop.f32.mrb[0].mxu0
      %v3864 = vadd.f32 0.0, %v3863
      %v3865 = vpop.f32.mrb[0].mxu0
      %3866 = vmatprep.mubr.f32.mxu0 %v3781
      %3867 = vmatmul.mubr.f32.gmra.mrb[0].mxu0 %v3780
      %v3868 = vpop.f32.mrb[0].mxu0
      %v3869 = vadd.f32 0.0, %v3868
      %v3870 = vpop.f32.mrb[0].mxu0
      %3871 = vdwg.mxu0
      %3872 = vmatprep.subr.mxu0 0.0
      %3873 = vmatpush1.msra.mxu0 %v3145
      %3874 = vmatprep.subr.mxu0 0.0
      %3875 = vmatpush1.msra.mxu0 %v3147
      %3876 = vmatprep.subr.mxu0 0.0
      %3877 = vmatpush1.msra.mxu0 %v3149
      %3878 = vmatprep.subr.mxu0 0.0
      %3879 = vmatpush1.msra.mxu0 %v3151
      %3880 = vmatprep.subr.mxu0 0.0
      %3881 = vmatpush1.msra.mxu0 %v3153
      %3882 = vmatprep.subr.mxu0 0.0
      %3883 = vmatpush1.msra.mxu0 %v3155
      %3884 = vmatprep.subr.mxu0 0.0
      %3885 = vmatpush1.msra.mxu0 %v3157
      %3886 = vmatprep.subr.mxu0 0.0
      %3887 = vmatpush1.msra.mxu0 %v3159
      %3888 = vmatprep.subr.mxu0 0.0
      %3889 = vmatpush1.msra.mxu0 %v3161
      %3890 = vmatprep.subr.mxu0 0.0
      %3891 = vmatpush1.msra.mxu0 %v3163
      %3892 = vmatprep.subr.mxu0 0.0
      %3893 = vmatpush1.msra.mxu0 %v3165
      %3894 = vmatprep.subr.mxu0 0.0
      %3895 = vmatpush1.msra.mxu0 %v3220
      %3896 = vmatprep.subr.mxu0 0.0
      %3897 = vmatpush1.msra.mxu0 0.0
      %3898 = vmatprep.subr.mxu0 0.0
      %3899 = vmatpush1.msra.mxu0 0.0
      %3900 = vmatprep.subr.mxu0 0.0
      %3901 = vmatpush1.msra.mxu0 0.0
      %3902 = vmatprep.subr.mxu0 0.0
      %3903 = vmatpush1.msra.mxu0 0.0
      %3904 = vmatprep.subr.mxu0 0.0
      %3905 = vmatpush1.msra.mxu0 0.0
      %3906 = vmatprep.subr.mxu0 0.0
      %3907 = vmatpush1.msra.mxu0 0.0
      %3908 = vmatprep.subr.mxu0 0.0
      %3909 = vmatpush1.msra.mxu0 0.0
      %3910 = vmatprep.subr.mxu0 0.0
      %3911 = vmatpush1.msra.mxu0 0.0
      %3912 = vmatprep.subr.mxu0 0.0
      %3913 = vmatpush1.msra.mxu0 0.0
      %3914 = vmatprep.subr.mxu0 0.0
      %3915 = vmatpush1.msra.mxu0 0.0
      %3916 = vmatprep.subr.mxu0 0.0
      %3917 = vmatpush1.msra.mxu0 0.0
      %3918 = vmatprep.subr.mxu0 0.0
      %3919 = vmatpush1.msra.mxu0 0.0
      %3920 = vmatprep.subr.mxu0 0.0
      %3921 = vmatpush1.msra.mxu0 0.0
      %3922 = vmatprep.subr.mxu0 0.0
      %3923 = vmatpush1.msra.mxu0 0.0
      %3924 = vmatprep.subr.mxu0 0.0
      %3925 = vmatpush1.msra.mxu0 0.0
      %3926 = vmatprep.subr.mxu0 0.0
      %3927 = vmatpush1.msra.mxu0 0.0
      %3928 = vmatprep.subr.mxu0 0.0
      %3929 = vmatpush1.msra.mxu0 0.0
      %3930 = vmatprep.subr.mxu0 0.0
      %3931 = vmatpush1.msra.mxu0 0.0
      %3932 = vmatprep.subr.mxu0 0.0
      %3933 = vmatpush1.msra.mxu0 0.0
      %3934 = vmatprep.subr.mxu0 0.0
      %3935 = vmatpush1.msra.mxu0 0.0
      %3936 = vmatprep.mubr.f32.mxu0 0.0
      %3937 = vmatmul.mubr.f32.gmra.mrb[0].mxu0 %v3784
      %v3938 = vpop.f32.mrb[0].mxu0
      %v3939 = vadd.f32 %v3859, %v3938
      %v3940 = vpop.f32.mrb[0].mxu0
      %3941 = vmatprep.mubr.f32.mxu0 0.0
      %3942 = vmatmul.mubr.f32.gmra.mrb[0].mxu0 %v3787
      %v3943 = vpop.f32.mrb[0].mxu0
      %v3944 = vadd.f32 %v3864, %v3943
      %v3945 = vpop.f32.mrb[0].mxu0
      %3946 = vmatprep.mubr.f32.mxu0 0.0
      %3947 = vmatmul.mubr.f32.gmra.mrb[0].mxu0 %v3790
      %v3948 = vpop.f32.mrb[0].mxu0
      %v3949 = vadd.f32 %v3869, %v3948
      %v3950 = vpop.f32.mrb[0].mxu0
      %3951 = vdwg.mxu0
      %3955 = vrot.lane.b32.xlu0 %v3939, 1
      %v3956 = vpop.permute.xlu0 %3955
      %3957 = vrot.lane.b32.xlu0 %v3944, 1
      %v3958 = vpop.permute.xlu0 %3957
      %3959 = vrot.lane.b32.xlu0 %v3949, 1
      %v3960 = vpop.permute.xlu0 %3959
      %v3964 = vadd.f32 %v3770, %v3956
      %v3965 = vadd.f32 %v3771, %v3958
      %v3966 = vadd.f32 %v3772, %v3960
      %s3967 = scalar_lea.vmem %s3, 432
      %v3968 = vld [vmem:[%s3967] sm:$0xff]
      %v3969 = vld [vmem:[%s3967 + $0x8] sm:$0xff]
      %v3970 = vld [vmem:[%s3967 + $0x10] sm:$0xff]
      %v3971 = vld [vmem:[%s3967 + $0x18] sm:$0xff]
      %v3972 = vld [vmem:[%s3967 + $0x20] sm:$0xff]
      %v3973 = vld [vmem:[%s3967 + $0x28] sm:$0xff]
      %v3974 = vld [vmem:[%s3967 + $0x30] sm:$0xf]
      %v3975 = vld [vmem:[%s3967 + $0x38] sm:$0xf]
      %v3976 = vld [vmem:[%s3967 + $0x40] sm:$0xf]
      %v3978 = vsel %vm2535, %v3970, 0
      %v3981 = vsel %vm2535, %v3973, 0
      %v3984 = vsel %vm2535, %v3976, 0
      %3986 = vmatprep.subr.mxu0 0.0
      %3987 = vmatpush1.msra.mxu0 %v2305
      %3988 = vmatprep.subr.mxu0 0.0
      %3989 = vmatpush1.msra.mxu0 %v2310
      %3990 = vmatprep.subr.mxu0 0.0
      %3991 = vmatpush1.msra.mxu0 %v2315
      %3992 = vmatprep.subr.mxu0 0.0
      %3993 = vmatpush1.msra.mxu0 %v2320
      %3994 = vmatprep.subr.mxu0 0.0
      %3995 = vmatpush1.msra.mxu0 %v2325
      %3996 = vmatprep.subr.mxu0 0.0
      %3997 = vmatpush1.msra.mxu0 %v2330
      %3998 = vmatprep.subr.mxu0 0.0
      %3999 = vmatpush1.msra.mxu0 %v2335
      %4000 = vmatprep.subr.mxu0 0.0
      %4001 = vmatpush1.msra.mxu0 %v2340
      %4002 = vmatprep.subr.mxu0 0.0
      %4003 = vmatpush1.msra.mxu0 %v2345
      %4004 = vmatprep.subr.mxu0 0.0
      %4005 = vmatpush1.msra.mxu0 %v2350
      %4006 = vmatprep.subr.mxu0 0.0
      %4007 = vmatpush1.msra.mxu0 %v2355
      %4008 = vmatprep.subr.mxu0 0.0
      %4009 = vmatpush1.msra.mxu0 %v2360
      %4010 = vmatprep.subr.mxu0 0.0
      %4011 = vmatpush1.msra.mxu0 %v2365
      %4012 = vmatprep.subr.mxu0 0.0
      %4013 = vmatpush1.msra.mxu0 %v2370
      %4014 = vmatprep.subr.mxu0 0.0
      %4015 = vmatpush1.msra.mxu0 %v2375
      %4016 = vmatprep.subr.mxu0 0.0
      %4017 = vmatpush1.msra.mxu0 %v2380
      %4018 = vmatprep.subr.mxu0 0.0
      %4019 = vmatpush1.msra.mxu0 %v2385
      %4020 = vmatprep.subr.mxu0 0.0
      %4021 = vmatpush1.msra.mxu0 %v2390
      %4022 = vmatprep.subr.mxu0 0.0
      %4023 = vmatpush1.msra.mxu0 %v2395
      %4024 = vmatprep.subr.mxu0 0.0
      %4025 = vmatpush1.msra.mxu0 %v2400
      %4026 = vmatprep.subr.mxu0 0.0
      %4027 = vmatpush1.msra.mxu0 %v2405
      %4028 = vmatprep.subr.mxu0 0.0
      %4029 = vmatpush1.msra.mxu0 %v2410
      %4030 = vmatprep.subr.mxu0 0.0
      %4031 = vmatpush1.msra.mxu0 %v2415
      %4032 = vmatprep.subr.mxu0 0.0
      %4033 = vmatpush1.msra.mxu0 %v2420
      %4034 = vmatprep.subr.mxu0 0.0
      %4035 = vmatpush1.msra.mxu0 %v2425
      %4036 = vmatprep.subr.mxu0 0.0
      %4037 = vmatpush1.msra.mxu0 %v2430
      %4038 = vmatprep.subr.mxu0 0.0
      %4039 = vmatpush1.msra.mxu0 %v2435
      %4040 = vmatprep.subr.mxu0 0.0
      %4041 = vmatpush1.msra.mxu0 %v2440
      %4042 = vmatprep.subr.mxu0 0.0
      %4043 = vmatpush1.msra.mxu0 %v2445
      %4044 = vmatprep.subr.mxu0 0.0
      %4045 = vmatpush1.msra.mxu0 %v2450
      %4046 = vmatprep.subr.mxu0 0.0
      %4047 = vmatpush1.msra.mxu0 %v2455
      %4048 = vmatprep.subr.mxu0 0.0
      %4049 = vmatpush1.msra.mxu0 %v2460
      %4050 = vmatprep.mubr.f32.mxu0 %v3969
      %4051 = vmatmul.mubr.f32.gmra.mrb[0].mxu0 %v3968
      %v4052 = vpop.f32.mrb[0].mxu0
      %v4053 = vadd.f32 0.0, %v4052
      %v4054 = vpop.f32.mrb[0].mxu0
      %4055 = vmatprep.mubr.f32.mxu0 %v3972
      %4056 = vmatmul.mubr.f32.gmra.mrb[0].mxu0 %v3971
      %v4057 = vpop.f32.mrb[0].mxu0
      %v4058 = vadd.f32 0.0, %v4057
      %v4059 = vpop.f32.mrb[0].mxu0
      %4060 = vmatprep.mubr.f32.mxu0 %v3975
      %4061 = vmatmul.mubr.f32.gmra.mrb[0].mxu0 %v3974
      %v4062 = vpop.f32.mrb[0].mxu0
      %v4063 = vadd.f32 0.0, %v4062
      %v4064 = vpop.f32.mrb[0].mxu0
      %4065 = vdwg.mxu0
      %4066 = vmatprep.subr.mxu0 0.0
      %4067 = vmatpush1.msra.mxu0 %v2465
      %4068 = vmatprep.subr.mxu0 0.0
      %4069 = vmatpush1.msra.mxu0 %v2470
      %4070 = vmatprep.subr.mxu0 0.0
      %4071 = vmatpush1.msra.mxu0 %v2475
      %4072 = vmatprep.subr.mxu0 0.0
      %4073 = vmatpush1.msra.mxu0 %v2480
      %4074 = vmatprep.subr.mxu0 0.0
      %4075 = vmatpush1.msra.mxu0 %v2485
      %4076 = vmatprep.subr.mxu0 0.0
      %4077 = vmatpush1.msra.mxu0 %v2490
      %4078 = vmatprep.subr.mxu0 0.0
      %4079 = vmatpush1.msra.mxu0 %v2495
      %4080 = vmatprep.subr.mxu0 0.0
      %4081 = vmatpush1.msra.mxu0 %v2500
      %4082 = vmatprep.subr.mxu0 0.0
      %4083 = vmatpush1.msra.mxu0 %v2505
      %4084 = vmatprep.subr.mxu0 0.0
      %4085 = vmatpush1.msra.mxu0 %v2510
      %4086 = vmatprep.subr.mxu0 0.0
      %4087 = vmatpush1.msra.mxu0 %v2515
      %4088 = vmatprep.subr.mxu0 0.0
      %4089 = vmatpush1.msra.mxu0 %v2547
      %4090 = vmatprep.subr.mxu0 0.0
      %4091 = vmatpush1.msra.mxu0 0.0
      %4092 = vmatprep.subr.mxu0 0.0
      %4093 = vmatpush1.msra.mxu0 0.0
      %4094 = vmatprep.subr.mxu0 0.0
      %4095 = vmatpush1.msra.mxu0 0.0
      %4096 = vmatprep.subr.mxu0 0.0
      %4097 = vmatpush1.msra.mxu0 0.0
      %4098 = vmatprep.subr.mxu0 0.0
      %4099 = vmatpush1.msra.mxu0 0.0
      %4100 = vmatprep.subr.mxu0 0.0
      %4101 = vmatpush1.msra.mxu0 0.0
      %4102 = vmatprep.subr.mxu0 0.0
      %4103 = vmatpush1.msra.mxu0 0.0
      %4104 = vmatprep.subr.mxu0 0.0
      %4105 = vmatpush1.msra.mxu0 0.0
      %4106 = vmatprep.subr.mxu0 0.0
      %4107 = vmatpush1.msra.mxu0 0.0
      %4108 = vmatprep.subr.mxu0 0.0
      %4109 = vmatpush1.msra.mxu0 0.0
      %4110 = vmatprep.subr.mxu0 0.0
      %4111 = vmatpush1.msra.mxu0 0.0
      %4112 = vmatprep.subr.mxu0 0.0
      %4113 = vmatpush1.msra.mxu0 0.0
      %4114 = vmatprep.subr.mxu0 0.0
      %4115 = vmatpush1.msra.mxu0 0.0
      %4116 = vmatprep.subr.mxu0 0.0
      %4117 = vmatpush1.msra.mxu0 0.0
      %4118 = vmatprep.subr.mxu0 0.0
      %4119 = vmatpush1.msra.mxu0 0.0
      %4120 = vmatprep.subr.mxu0 0.0
      %4121 = vmatpush1.msra.mxu0 0.0
      %4122 = vmatprep.subr.mxu0 0.0
      %4123 = vmatpush1.msra.mxu0 0.0
      %4124 = vmatprep.subr.mxu0 0.0
      %4125 = vmatpush1.msra.mxu0 0.0
      %4126 = vmatprep.subr.mxu0 0.0
      %4127 = vmatpush1.msra.mxu0 0.0
      %4128 = vmatprep.subr.mxu0 0.0
      %4129 = vmatpush1.msra.mxu0 0.0
      %4130 = vmatprep.mubr.f32.mxu0 0.0
      %4131 = vmatmul.mubr.f32.gmra.mrb[0].mxu0 %v3978
      %v4132 = vpop.f32.mrb[0].mxu0
      %v4133 = vadd.f32 %v4053, %v4132
      %v4134 = vpop.f32.mrb[0].mxu0
      %4135 = vmatprep.mubr.f32.mxu0 0.0
      %4136 = vmatmul.mubr.f32.gmra.mrb[0].mxu0 %v3981
      %v4137 = vpop.f32.mrb[0].mxu0
      %v4138 = vadd.f32 %v4058, %v4137
      %v4139 = vpop.f32.mrb[0].mxu0
      %4140 = vmatprep.mubr.f32.mxu0 0.0
      %4141 = vmatmul.mubr.f32.gmra.mrb[0].mxu0 %v3984
      %v4142 = vpop.f32.mrb[0].mxu0
      %v4143 = vadd.f32 %v4063, %v4142
      %v4144 = vpop.f32.mrb[0].mxu0
      %4145 = vdwg.mxu0
      %4149 = vrot.lane.b32.xlu0 %v4133, 2
      %v4150 = vpop.permute.xlu0 %4149
      %4151 = vrot.lane.b32.xlu0 %v4138, 2
      %v4152 = vpop.permute.xlu0 %4151
      %4153 = vrot.lane.b32.xlu0 %v4143, 2
      %v4154 = vpop.permute.xlu0 %4153
      %v4158 = vadd.f32 %v2523, %v4150
      %v4159 = vadd.f32 %v2524, %v4152
      %v4160 = vadd.f32 %v2525, %v4154
      %s4161 = scalar_lea.vmem %s3, 504
      %v4162 = vld [vmem:[%s4161] sm:$0xff]
      %v4163 = vld [vmem:[%s4161 + $0x8] sm:$0xff]
      %v4164 = vld [vmem:[%s4161 + $0x10] sm:$0xff]
      %v4165 = vld [vmem:[%s4161 + $0x18] sm:$0xff]
      %v4166 = vld [vmem:[%s4161 + $0x20] sm:$0xff]
      %v4167 = vld [vmem:[%s4161 + $0x28] sm:$0xff]
      %v4168 = vld [vmem:[%s4161 + $0x30] sm:$0xf]
      %v4169 = vld [vmem:[%s4161 + $0x38] sm:$0xf]
      %v4170 = vld [vmem:[%s4161 + $0x40] sm:$0xf]
      %v4172 = vsel %vm2535, %v4164, 0
      %v4175 = vsel %vm2535, %v4167, 0
      %v4178 = vsel %vm2535, %v4170, 0
      %4180 = vmatprep.subr.mxu0 0.0
      %4181 = vmatpush1.msra.mxu0 %v2766
      %4182 = vmatprep.subr.mxu0 0.0
      %4183 = vmatpush1.msra.mxu0 %v2768
      %4184 = vmatprep.subr.mxu0 0.0
      %4185 = vmatpush1.msra.mxu0 %v2770
      %4186 = vmatprep.subr.mxu0 0.0
      %4187 = vmatpush1.msra.mxu0 %v2772
      %4188 = vmatprep.subr.mxu0 0.0
      %4189 = vmatpush1.msra.mxu0 %v2774
      %4190 = vmatprep.subr.mxu0 0.0
      %4191 = vmatpush1.msra.mxu0 %v2776
      %4192 = vmatprep.subr.mxu0 0.0
      %4193 = vmatpush1.msra.mxu0 %v2778
      %4194 = vmatprep.subr.mxu0 0.0
      %4195 = vmatpush1.msra.mxu0 %v2780
      %4196 = vmatprep.subr.mxu0 0.0
      %4197 = vmatpush1.msra.mxu0 %v2782
      %4198 = vmatprep.subr.mxu0 0.0
      %4199 = vmatpush1.msra.mxu0 %v2784
      %4200 = vmatprep.subr.mxu0 0.0
      %4201 = vmatpush1.msra.mxu0 %v2786
      %4202 = vmatprep.subr.mxu0 0.0
      %4203 = vmatpush1.msra.mxu0 %v2788
      %4204 = vmatprep.subr.mxu0 0.0
      %4205 = vmatpush1.msra.mxu0 %v2790
      %4206 = vmatprep.subr.mxu0 0.0
      %4207 = vmatpush1.msra.mxu0 %v2792
      %4208 = vmatprep.subr.mxu0 0.0
      %4209 = vmatpush1.msra.mxu0 %v2794
      %4210 = vmatprep.subr.mxu0 0.0
      %4211 = vmatpush1.msra.mxu0 %v2796
      %4212 = vmatprep.subr.mxu0 0.0
      %4213 = vmatpush1.msra.mxu0 %v2798
      %4214 = vmatprep.subr.mxu0 0.0
      %4215 = vmatpush1.msra.mxu0 %v2800
      %4216 = vmatprep.subr.mxu0 0.0
      %4217 = vmatpush1.msra.mxu0 %v2802
      %4218 = vmatprep.subr.mxu0 0.0
      %4219 = vmatpush1.msra.mxu0 %v2804
      %4220 = vmatprep.subr.mxu0 0.0
      %4221 = vmatpush1.msra.mxu0 %v2806
      %4222 = vmatprep.subr.mxu0 0.0
      %4223 = vmatpush1.msra.mxu0 %v2808
      %4224 = vmatprep.subr.mxu0 0.0
      %4225 = vmatpush1.msra.mxu0 %v2810
      %4226 = vmatprep.subr.mxu0 0.0
      %4227 = vmatpush1.msra.mxu0 %v2812
      %4228 = vmatprep.subr.mxu0 0.0
      %4229 = vmatpush1.msra.mxu0 %v2814
      %4230 = vmatprep.subr.mxu0 0.0
      %4231 = vmatpush1.msra.mxu0 %v2816
      %4232 = vmatprep.subr.mxu0 0.0
      %4233 = vmatpush1.msra.mxu0 %v2818
      %4234 = vmatprep.subr.mxu0 0.0
      %4235 = vmatpush1.msra.mxu0 %v2820
      %4236 = vmatprep.subr.mxu0 0.0
      %4237 = vmatpush1.msra.mxu0 %v2822
      %4238 = vmatprep.subr.mxu0 0.0
      %4239 = vmatpush1.msra.mxu0 %v2824
      %4240 = vmatprep.subr.mxu0 0.0
      %4241 = vmatpush1.msra.mxu0 %v2826
      %4242 = vmatprep.subr.mxu0 0.0
      %4243 = vmatpush1.msra.mxu0 %v2828
      %4244 = vmatprep.mubr.f32.mxu0 %v4163
      %4245 = vmatmul.mubr.f32.gmra.mrb[0].mxu0 %v4162
      %v4246 = vpop.f32.mrb[0].mxu0
      %v4247 = vadd.f32 0.0, %v4246
      %v4248 = vpop.f32.mrb[0].mxu0
      %4249 = vmatprep.mubr.f32.mxu0 %v4166
      %4250 = vmatmul.mubr.f32.gmra.mrb[0].mxu0 %v4165
      %v4251 = vpop.f32.mrb[0].mxu0
      %v4252 = vadd.f32 0.0, %v4251
      %v4253 = vpop.f32.mrb[0].mxu0
      %4254 = vmatprep.mubr.f32.mxu0 %v4169
      %4255 = vmatmul.mubr.f32.gmra.mrb[0].mxu0 %v4168
      %v4256 = vpop.f32.mrb[0].mxu0
      %v4257 = vadd.f32 0.0, %v4256
      %v4258 = vpop.f32.mrb[0].mxu0
      %4259 = vdwg.mxu0
      %4260 = vmatprep.subr.mxu0 0.0
      %4261 = vmatpush1.msra.mxu0 %v2830
      %4262 = vmatprep.subr.mxu0 0.0
      %4263 = vmatpush1.msra.mxu0 %v2832
      %4264 = vmatprep.subr.mxu0 0.0
      %4265 = vmatpush1.msra.mxu0 %v2834
      %4266 = vmatprep.subr.mxu0 0.0
      %4267 = vmatpush1.msra.mxu0 %v2836
      %4268 = vmatprep.subr.mxu0 0.0
      %4269 = vmatpush1.msra.mxu0 %v2838
      %4270 = vmatprep.subr.mxu0 0.0
      %4271 = vmatpush1.msra.mxu0 %v2840
      %4272 = vmatprep.subr.mxu0 0.0
      %4273 = vmatpush1.msra.mxu0 %v2842
      %4274 = vmatprep.subr.mxu0 0.0
      %4275 = vmatpush1.msra.mxu0 %v2844
      %4276 = vmatprep.subr.mxu0 0.0
      %4277 = vmatpush1.msra.mxu0 %v2846
      %4278 = vmatprep.subr.mxu0 0.0
      %4279 = vmatpush1.msra.mxu0 %v2848
      %4280 = vmatprep.subr.mxu0 0.0
      %4281 = vmatpush1.msra.mxu0 %v2850
      %4282 = vmatprep.subr.mxu0 0.0
      %4283 = vmatpush1.msra.mxu0 %v2905
      %4284 = vmatprep.subr.mxu0 0.0
      %4285 = vmatpush1.msra.mxu0 0.0
      %4286 = vmatprep.subr.mxu0 0.0
      %4287 = vmatpush1.msra.mxu0 0.0
      %4288 = vmatprep.subr.mxu0 0.0
      %4289 = vmatpush1.msra.mxu0 0.0
      %4290 = vmatprep.subr.mxu0 0.0
      %4291 = vmatpush1.msra.mxu0 0.0
      %4292 = vmatprep.subr.mxu0 0.0
      %4293 = vmatpush1.msra.mxu0 0.0
      %4294 = vmatprep.subr.mxu0 0.0
      %4295 = vmatpush1.msra.mxu0 0.0
      %4296 = vmatprep.subr.mxu0 0.0
      %4297 = vmatpush1.msra.mxu0 0.0
      %4298 = vmatprep.subr.mxu0 0.0
      %4299 = vmatpush1.msra.mxu0 0.0
      %4300 = vmatprep.subr.mxu0 0.0
      %4301 = vmatpush1.msra.mxu0 0.0
      %4302 = vmatprep.subr.mxu0 0.0
      %4303 = vmatpush1.msra.mxu0 0.0
      %4304 = vmatprep.subr.mxu0 0.0
      %4305 = vmatpush1.msra.mxu0 0.0
      %4306 = vmatprep.subr.mxu0 0.0
      %4307 = vmatpush1.msra.mxu0 0.0
      %4308 = vmatprep.subr.mxu0 0.0
      %4309 = vmatpush1.msra.mxu0 0.0
      %4310 = vmatprep.subr.mxu0 0.0
      %4311 = vmatpush1.msra.mxu0 0.0
      %4312 = vmatprep.subr.mxu0 0.0
      %4313 = vmatpush1.msra.mxu0 0.0
      %4314 = vmatprep.subr.mxu0 0.0
      %4315 = vmatpush1.msra.mxu0 0.0
      %4316 = vmatprep.subr.mxu0 0.0
      %4317 = vmatpush1.msra.mxu0 0.0
      %4318 = vmatprep.subr.mxu0 0.0
      %4319 = vmatpush1.msra.mxu0 0.0
      %4320 = vmatprep.subr.mxu0 0.0
      %4321 = vmatpush1.msra.mxu0 0.0
      %4322 = vmatprep.subr.mxu0 0.0
      %4323 = vmatpush1.msra.mxu0 0.0
      %4324 = vmatprep.mubr.f32.mxu0 0.0
      %4325 = vmatmul.mubr.f32.gmra.mrb[0].mxu0 %v4172
      %v4326 = vpop.f32.mrb[0].mxu0
      %v4327 = vadd.f32 %v4247, %v4326
      %v4328 = vpop.f32.mrb[0].mxu0
      %4329 = vmatprep.mubr.f32.mxu0 0.0
      %4330 = vmatmul.mubr.f32.gmra.mrb[0].mxu0 %v4175
      %v4331 = vpop.f32.mrb[0].mxu0
      %v4332 = vadd.f32 %v4252, %v4331
      %v4333 = vpop.f32.mrb[0].mxu0
      %4334 = vmatprep.mubr.f32.mxu0 0.0
      %4335 = vmatmul.mubr.f32.gmra.mrb[0].mxu0 %v4178
      %v4336 = vpop.f32.mrb[0].mxu0
      %v4337 = vadd.f32 %v4257, %v4336
      %v4338 = vpop.f32.mrb[0].mxu0
      %4339 = vdwg.mxu0
      %4343 = vrot.lane.b32.xlu0 %v4327, 2
      %v4344 = vpop.permute.xlu0 %4343
      %4345 = vrot.lane.b32.xlu0 %v4332, 2
      %v4346 = vpop.permute.xlu0 %4345
      %4347 = vrot.lane.b32.xlu0 %v4337, 2
      %v4348 = vpop.permute.xlu0 %4347
      %v4352 = vadd.f32 %v4158, %v4344
      %v4353 = vadd.f32 %v4159, %v4346
      %v4354 = vadd.f32 %v4160, %v4348
      %s4355 = scalar_lea.vmem %s3, 576
      %v4356 = vld [vmem:[%s4355] sm:$0xff]
      %v4357 = vld [vmem:[%s4355 + $0x8] sm:$0xff]
      %v4358 = vld [vmem:[%s4355 + $0x10] sm:$0xff]
      %v4359 = vld [vmem:[%s4355 + $0x18] sm:$0xff]
      %v4360 = vld [vmem:[%s4355 + $0x20] sm:$0xff]
      %v4361 = vld [vmem:[%s4355 + $0x28] sm:$0xff]
      %v4362 = vld [vmem:[%s4355 + $0x30] sm:$0xf]
      %v4363 = vld [vmem:[%s4355 + $0x38] sm:$0xf]
      %v4364 = vld [vmem:[%s4355 + $0x40] sm:$0xf]
      %v4366 = vsel %vm2535, %v4358, 0
      %v4369 = vsel %vm2535, %v4361, 0
      %v4372 = vsel %vm2535, %v4364, 0
      %4374 = vmatprep.subr.mxu0 0.0
      %4375 = vmatpush1.msra.mxu0 %v3081
      %4376 = vmatprep.subr.mxu0 0.0
      %4377 = vmatpush1.msra.mxu0 %v3083
      %4378 = vmatprep.subr.mxu0 0.0
      %4379 = vmatpush1.msra.mxu0 %v3085
      %4380 = vmatprep.subr.mxu0 0.0
      %4381 = vmatpush1.msra.mxu0 %v3087
      %4382 = vmatprep.subr.mxu0 0.0
      %4383 = vmatpush1.msra.mxu0 %v3089
      %4384 = vmatprep.subr.mxu0 0.0
      %4385 = vmatpush1.msra.mxu0 %v3091
      %4386 = vmatprep.subr.mxu0 0.0
      %4387 = vmatpush1.msra.mxu0 %v3093
      %4388 = vmatprep.subr.mxu0 0.0
      %4389 = vmatpush1.msra.mxu0 %v3095
      %4390 = vmatprep.subr.mxu0 0.0
      %4391 = vmatpush1.msra.mxu0 %v3097
      %4392 = vmatprep.subr.mxu0 0.0
      %4393 = vmatpush1.msra.mxu0 %v3099
      %4394 = vmatprep.subr.mxu0 0.0
      %4395 = vmatpush1.msra.mxu0 %v3101
      %4396 = vmatprep.subr.mxu0 0.0
      %4397 = vmatpush1.msra.mxu0 %v3103
      %4398 = vmatprep.subr.mxu0 0.0
      %4399 = vmatpush1.msra.mxu0 %v3105
      %4400 = vmatprep.subr.mxu0 0.0
      %4401 = vmatpush1.msra.mxu0 %v3107
      %4402 = vmatprep.subr.mxu0 0.0
      %4403 = vmatpush1.msra.mxu0 %v3109
      %4404 = vmatprep.subr.mxu0 0.0
      %4405 = vmatpush1.msra.mxu0 %v3111
      %4406 = vmatprep.subr.mxu0 0.0
      %4407 = vmatpush1.msra.mxu0 %v3113
      %4408 = vmatprep.subr.mxu0 0.0
      %4409 = vmatpush1.msra.mxu0 %v3115
      %4410 = vmatprep.subr.mxu0 0.0
      %4411 = vmatpush1.msra.mxu0 %v3117
      %4412 = vmatprep.subr.mxu0 0.0
      %4413 = vmatpush1.msra.mxu0 %v3119
      %4414 = vmatprep.subr.mxu0 0.0
      %4415 = vmatpush1.msra.mxu0 %v3121
      %4416 = vmatprep.subr.mxu0 0.0
      %4417 = vmatpush1.msra.mxu0 %v3123
      %4418 = vmatprep.subr.mxu0 0.0
      %4419 = vmatpush1.msra.mxu0 %v3125
      %4420 = vmatprep.subr.mxu0 0.0
      %4421 = vmatpush1.msra.mxu0 %v3127
      %4422 = vmatprep.subr.mxu0 0.0
      %4423 = vmatpush1.msra.mxu0 %v3129
      %4424 = vmatprep.subr.mxu0 0.0
      %4425 = vmatpush1.msra.mxu0 %v3131
      %4426 = vmatprep.subr.mxu0 0.0
      %4427 = vmatpush1.msra.mxu0 %v3133
      %4428 = vmatprep.subr.mxu0 0.0
      %4429 = vmatpush1.msra.mxu0 %v3135
      %4430 = vmatprep.subr.mxu0 0.0
      %4431 = vmatpush1.msra.mxu0 %v3137
      %4432 = vmatprep.subr.mxu0 0.0
      %4433 = vmatpush1.msra.mxu0 %v3139
      %4434 = vmatprep.subr.mxu0 0.0
      %4435 = vmatpush1.msra.mxu0 %v3141
      %4436 = vmatprep.subr.mxu0 0.0
      %4437 = vmatpush1.msra.mxu0 %v3143
      %4438 = vmatprep.mubr.f32.mxu0 %v4357
      %4439 = vmatmul.mubr.f32.gmra.mrb[0].mxu0 %v4356
      %v4440 = vpop.f32.mrb[0].mxu0
      %v4441 = vadd.f32 0.0, %v4440
      %v4442 = vpop.f32.mrb[0].mxu0
      %4443 = vmatprep.mubr.f32.mxu0 %v4360
      %4444 = vmatmul.mubr.f32.gmra.mrb[0].mxu0 %v4359
      %v4445 = vpop.f32.mrb[0].mxu0
      %v4446 = vadd.f32 0.0, %v4445
      %v4447 = vpop.f32.mrb[0].mxu0
      %4448 = vmatprep.mubr.f32.mxu0 %v4363
      %4449 = vmatmul.mubr.f32.gmra.mrb[0].mxu0 %v4362
      %v4450 = vpop.f32.mrb[0].mxu0
      %v4451 = vadd.f32 0.0, %v4450
      %v4452 = vpop.f32.mrb[0].mxu0
      %4453 = vdwg.mxu0
      %4454 = vmatprep.subr.mxu0 0.0
      %4455 = vmatpush1.msra.mxu0 %v3145
      %4456 = vmatprep.subr.mxu0 0.0
      %4457 = vmatpush1.msra.mxu0 %v3147
      %4458 = vmatprep.subr.mxu0 0.0
      %4459 = vmatpush1.msra.mxu0 %v3149
      %4460 = vmatprep.subr.mxu0 0.0
      %4461 = vmatpush1.msra.mxu0 %v3151
      %4462 = vmatprep.subr.mxu0 0.0
      %4463 = vmatpush1.msra.mxu0 %v3153
      %4464 = vmatprep.subr.mxu0 0.0
      %4465 = vmatpush1.msra.mxu0 %v3155
      %4466 = vmatprep.subr.mxu0 0.0
      %4467 = vmatpush1.msra.mxu0 %v3157
      %4468 = vmatprep.subr.mxu0 0.0
      %4469 = vmatpush1.msra.mxu0 %v3159
      %4470 = vmatprep.subr.mxu0 0.0
      %4471 = vmatpush1.msra.mxu0 %v3161
      %4472 = vmatprep.subr.mxu0 0.0
      %4473 = vmatpush1.msra.mxu0 %v3163
      %4474 = vmatprep.subr.mxu0 0.0
      %4475 = vmatpush1.msra.mxu0 %v3165
      %4476 = vmatprep.subr.mxu0 0.0
      %4477 = vmatpush1.msra.mxu0 %v3220
      %4478 = vmatprep.subr.mxu0 0.0
      %4479 = vmatpush1.msra.mxu0 0.0
      %4480 = vmatprep.subr.mxu0 0.0
      %4481 = vmatpush1.msra.mxu0 0.0
      %4482 = vmatprep.subr.mxu0 0.0
      %4483 = vmatpush1.msra.mxu0 0.0
      %4484 = vmatprep.subr.mxu0 0.0
      %4485 = vmatpush1.msra.mxu0 0.0
      %4486 = vmatprep.subr.mxu0 0.0
      %4487 = vmatpush1.msra.mxu0 0.0
      %4488 = vmatprep.subr.mxu0 0.0
      %4489 = vmatpush1.msra.mxu0 0.0
      %4490 = vmatprep.subr.mxu0 0.0
      %4491 = vmatpush1.msra.mxu0 0.0
      %4492 = vmatprep.subr.mxu0 0.0
      %4493 = vmatpush1.msra.mxu0 0.0
      %4494 = vmatprep.subr.mxu0 0.0
      %4495 = vmatpush1.msra.mxu0 0.0
      %4496 = vmatprep.subr.mxu0 0.0
      %4497 = vmatpush1.msra.mxu0 0.0
      %4498 = vmatprep.subr.mxu0 0.0
      %4499 = vmatpush1.msra.mxu0 0.0
      %4500 = vmatprep.subr.mxu0 0.0
      %4501 = vmatpush1.msra.mxu0 0.0
      %4502 = vmatprep.subr.mxu0 0.0
      %4503 = vmatpush1.msra.mxu0 0.0
      %4504 = vmatprep.subr.mxu0 0.0
      %4505 = vmatpush1.msra.mxu0 0.0
      %4506 = vmatprep.subr.mxu0 0.0
      %4507 = vmatpush1.msra.mxu0 0.0
      %4508 = vmatprep.subr.mxu0 0.0
      %4509 = vmatpush1.msra.mxu0 0.0
      %4510 = vmatprep.subr.mxu0 0.0
      %4511 = vmatpush1.msra.mxu0 0.0
      %4512 = vmatprep.subr.mxu0 0.0
      %4513 = vmatpush1.msra.mxu0 0.0
      %4514 = vmatprep.subr.mxu0 0.0
      %4515 = vmatpush1.msra.mxu0 0.0
      %4516 = vmatprep.subr.mxu0 0.0
      %4517 = vmatpush1.msra.mxu0 0.0
      %4518 = vmatprep.mubr.f32.mxu0 0.0
      %4519 = vmatmul.mubr.f32.gmra.mrb[0].mxu0 %v4366
      %v4520 = vpop.f32.mrb[0].mxu0
      %v4521 = vadd.f32 %v4441, %v4520
      %v4522 = vpop.f32.mrb[0].mxu0
      %4523 = vmatprep.mubr.f32.mxu0 0.0
      %4524 = vmatmul.mubr.f32.gmra.mrb[0].mxu0 %v4369
      %v4525 = vpop.f32.mrb[0].mxu0
      %v4526 = vadd.f32 %v4446, %v4525
      %v4527 = vpop.f32.mrb[0].mxu0
      %4528 = vmatprep.mubr.f32.mxu0 0.0
      %4529 = vmatmul.mubr.f32.gmra.mrb[0].mxu0 %v4372
      %v4530 = vpop.f32.mrb[0].mxu0
      %v4531 = vadd.f32 %v4451, %v4530
      %v4532 = vpop.f32.mrb[0].mxu0
      %4533 = vdwg.mxu0
      %4537 = vrot.lane.b32.xlu0 %v4521, 2
      %v4538 = vpop.permute.xlu0 %4537
      %4539 = vrot.lane.b32.xlu0 %v4526, 2
      %v4540 = vpop.permute.xlu0 %4539
      %4541 = vrot.lane.b32.xlu0 %v4531, 2
      %v4542 = vpop.permute.xlu0 %4541
      %v4546 = vadd.f32 %v4352, %v4538
      %v4547 = vadd.f32 %v4353, %v4540
      %v4548 = vadd.f32 %v4354, %v4542
      %v4549 = vld [vmem:[#allocation2] sm:$0x1]
      %s4550 = vtos %v4549
      %v4551 = vld [vmem:[%s5] sm:$0xff]
      %v4552 = vld [vmem:[%s5 + $0x8] sm:$0xff]
      %v4553 = vld [vmem:[%s5 + $0x10] sm:$0xff]
      %v4554 = vld [vmem:[%s5 + $0x18] sm:$0xff]
      %v4555 = vld [vmem:[%s5 + $0x20] sm:$0xff]
      %v4556 = vld [vmem:[%s5 + $0x28] sm:$0xff]
      %v4557 = vld [vmem:[%s5 + $0x30] sm:$0xff]
      %v4558 = vld [vmem:[%s5 + $0x38] sm:$0xff]
      %v4559 = vld [vmem:[%s5 + $0x40] sm:$0xff]
      %v4560 = vld [vmem:[%s5 + $0x48] sm:$0xff]
      %v4561 = vld [vmem:[%s5 + $0x50] sm:$0xff]
      %v4562 = vld [vmem:[%s5 + $0x58] sm:$0xff]
      %v4563 = vld [vmem:[%s5 + $0x60] sm:$0xff]
      %v4564 = vld [vmem:[%s5 + $0x68] sm:$0xff]
      %v4565 = vld [vmem:[%s5 + $0x70] sm:$0xff]
      %v4566 = vld [vmem:[%s5 + $0x78] sm:$0xff]
      %vm4567 = vcmask 162816
      %v4569 = vsel %vm4567, %v4551, 0
      %v4572 = vsel %vm4567, %v4552, 0
      %v4575 = vsel %vm4567, %v4553, 0
      %v4578 = vsel %vm4567, %v4554, 0
      %v4581 = vsel %vm4567, %v4555, 0
      %v4584 = vsel %vm4567, %v4556, 0
      %v4587 = vsel %vm4567, %v4557, 0
      %v4590 = vsel %vm4567, %v4558, 0
      %v4593 = vsel %vm4567, %v4559, 0
      %v4596 = vsel %vm4567, %v4560, 0
      %v4599 = vsel %vm4567, %v4561, 0
      %v4602 = vsel %vm4567, %v4562, 0
      %v4605 = vsel %vm4567, %v4563, 0
      %v4608 = vsel %vm4567, %v4564, 0
      %v4611 = vsel %vm4567, %v4565, 0
      %v4614 = vsel %vm4567, %v4566, 0
      %vm4616 = vcmask 1043456
      %v4618 = vsel %vm4616, %v3384, 0
      %4620 = vmatprep.subr.mxu0 0.0
      %4621 = vmatpush1.msra.mxu0 %v3382
      %4622 = vmatprep.subr.mxu0 0.0
      %4623 = vmatpush1.msra.mxu0 %v3383
      %4624 = vmatprep.subr.mxu0 0.0
      %4625 = vmatpush1.msra.mxu0 %v4618
      %4626 = vmatprep.subr.mxu0 0.0
      %4627 = vmatpush1.msra.mxu0 0.0
      %4628 = vmatprep.subr.mxu0 0.0
      %4629 = vmatpush1.msra.mxu0 0.0
      %4630 = vmatprep.subr.mxu0 0.0
      %4631 = vmatpush1.msra.mxu0 0.0
      %4632 = vmatprep.subr.mxu0 0.0
      %4633 = vmatpush1.msra.mxu0 0.0
      %4634 = vmatprep.subr.mxu0 0.0
      %4635 = vmatpush1.msra.mxu0 0.0
      %4636 = vmatprep.subr.mxu0 0.0
      %4637 = vmatpush1.msra.mxu0 0.0
      %4638 = vmatprep.subr.mxu0 0.0
      %4639 = vmatpush1.msra.mxu0 0.0
      %4640 = vmatprep.subr.mxu0 0.0
      %4641 = vmatpush1.msra.mxu0 0.0
      %4642 = vmatprep.subr.mxu0 0.0
      %4643 = vmatpush1.msra.mxu0 0.0
      %4644 = vmatprep.subr.mxu0 0.0
      %4645 = vmatpush1.msra.mxu0 0.0
      %4646 = vmatprep.subr.mxu0 0.0
      %4647 = vmatpush1.msra.mxu0 0.0
      %4648 = vmatprep.subr.mxu0 0.0
      %4649 = vmatpush1.msra.mxu0 0.0
      %4650 = vmatprep.subr.mxu0 0.0
      %4651 = vmatpush1.msra.mxu0 0.0
      %4652 = vmatprep.subr.mxu0 0.0
      %4653 = vmatpush1.msra.mxu0 0.0
      %4654 = vmatprep.subr.mxu0 0.0
      %4655 = vmatpush1.msra.mxu0 0.0
      %4656 = vmatprep.subr.mxu0 0.0
      %4657 = vmatpush1.msra.mxu0 0.0
      %4658 = vmatprep.subr.mxu0 0.0
      %4659 = vmatpush1.msra.mxu0 0.0
      %4660 = vmatprep.subr.mxu0 0.0
      %4661 = vmatpush1.msra.mxu0 0.0
      %4662 = vmatprep.subr.mxu0 0.0
      %4663 = vmatpush1.msra.mxu0 0.0
      %4664 = vmatprep.subr.mxu0 0.0
      %4665 = vmatpush1.msra.mxu0 0.0
      %4666 = vmatprep.subr.mxu0 0.0
      %4667 = vmatpush1.msra.mxu0 0.0
      %4668 = vmatprep.subr.mxu0 0.0
      %4669 = vmatpush1.msra.mxu0 0.0
      %4670 = vmatprep.subr.mxu0 0.0
      %4671 = vmatpush1.msra.mxu0 0.0
      %4672 = vmatprep.subr.mxu0 0.0
      %4673 = vmatpush1.msra.mxu0 0.0
      %4674 = vmatprep.subr.mxu0 0.0
      %4675 = vmatpush1.msra.mxu0 0.0
      %4676 = vmatprep.subr.mxu0 0.0
      %4677 = vmatpush1.msra.mxu0 0.0
      %4678 = vmatprep.subr.mxu0 0.0
      %4679 = vmatpush1.msra.mxu0 0.0
      %4680 = vmatprep.subr.mxu0 0.0
      %4681 = vmatpush1.msra.mxu0 0.0
      %4682 = vmatprep.subr.mxu0 0.0
      %4683 = vmatpush1.msra.mxu0 0.0
      %4684 = vmatprep.mubr.f32.mxu0 0.0
      %4685 = vmatmul.mubr.f32.gmra.mrb[0].mxu0 %v4569
      %v4686 = vpop.f32.mrb[0].mxu0
      %v4687 = vadd.f32 0.0, %v4686
      %v4688 = vpop.f32.mrb[0].mxu0
      %4689 = vmatprep.mubr.f32.mxu0 0.0
      %4690 = vmatmul.mubr.f32.gmra.mrb[0].mxu0 %v4572
      %v4691 = vpop.f32.mrb[0].mxu0
      %v4692 = vadd.f32 0.0, %v4691
      %v4693 = vpop.f32.mrb[0].mxu0
      %4694 = vmatprep.mubr.f32.mxu0 0.0
      %4695 = vmatmul.mubr.f32.gmra.mrb[0].mxu0 %v4575
      %v4696 = vpop.f32.mrb[0].mxu0
      %v4697 = vadd.f32 0.0, %v4696
      %v4698 = vpop.f32.mrb[0].mxu0
      %4699 = vmatprep.mubr.f32.mxu0 0.0
      %4700 = vmatmul.mubr.f32.gmra.mrb[0].mxu0 %v4578
      %v4701 = vpop.f32.mrb[0].mxu0
      %v4702 = vadd.f32 0.0, %v4701
      %v4703 = vpop.f32.mrb[0].mxu0
      %4704 = vmatprep.mubr.f32.mxu0 0.0
      %4705 = vmatmul.mubr.f32.gmra.mrb[0].mxu0 %v4581
      %v4706 = vpop.f32.mrb[0].mxu0
      %v4707 = vadd.f32 0.0, %v4706
      %v4708 = vpop.f32.mrb[0].mxu0
      %4709 = vmatprep.mubr.f32.mxu0 0.0
      %4710 = vmatmul.mubr.f32.gmra.mrb[0].mxu0 %v4584
      %v4711 = vpop.f32.mrb[0].mxu0
      %v4712 = vadd.f32 0.0, %v4711
      %v4713 = vpop.f32.mrb[0].mxu0
      %4714 = vmatprep.mubr.f32.mxu0 0.0
      %4715 = vmatmul.mubr.f32.gmra.mrb[0].mxu0 %v4587
      %v4716 = vpop.f32.mrb[0].mxu0
      %v4717 = vadd.f32 0.0, %v4716
      %v4718 = vpop.f32.mrb[0].mxu0
      %4719 = vmatprep.mubr.f32.mxu0 0.0
      %4720 = vmatmul.mubr.f32.gmra.mrb[0].mxu0 %v4590
      %v4721 = vpop.f32.mrb[0].mxu0
      %v4722 = vadd.f32 0.0, %v4721
      %v4723 = vpop.f32.mrb[0].mxu0
      %4724 = vmatprep.mubr.f32.mxu0 0.0
      %4725 = vmatmul.mubr.f32.gmra.mrb[0].mxu0 %v4593
      %v4726 = vpop.f32.mrb[0].mxu0
      %v4727 = vadd.f32 0.0, %v4726
      %v4728 = vpop.f32.mrb[0].mxu0
      %4729 = vmatprep.mubr.f32.mxu0 0.0
      %4730 = vmatmul.mubr.f32.gmra.mrb[0].mxu0 %v4596
      %v4731 = vpop.f32.mrb[0].mxu0
      %v4732 = vadd.f32 0.0, %v4731
      %v4733 = vpop.f32.mrb[0].mxu0
      %4734 = vmatprep.mubr.f32.mxu0 0.0
      %4735 = vmatmul.mubr.f32.gmra.mrb[0].mxu0 %v4599
      %v4736 = vpop.f32.mrb[0].mxu0
      %v4737 = vadd.f32 0.0, %v4736
      %v4738 = vpop.f32.mrb[0].mxu0
      %4739 = vmatprep.mubr.f32.mxu0 0.0
      %4740 = vmatmul.mubr.f32.gmra.mrb[0].mxu0 %v4602
      %v4741 = vpop.f32.mrb[0].mxu0
      %v4742 = vadd.f32 0.0, %v4741
      %v4743 = vpop.f32.mrb[0].mxu0
      %4744 = vmatprep.mubr.f32.mxu0 0.0
      %4745 = vmatmul.mubr.f32.gmra.mrb[0].mxu0 %v4605
      %v4746 = vpop.f32.mrb[0].mxu0
      %v4747 = vadd.f32 0.0, %v4746
      %v4748 = vpop.f32.mrb[0].mxu0
      %4749 = vmatprep.mubr.f32.mxu0 0.0
      %4750 = vmatmul.mubr.f32.gmra.mrb[0].mxu0 %v4608
      %v4751 = vpop.f32.mrb[0].mxu0
      %v4752 = vadd.f32 0.0, %v4751
      %v4753 = vpop.f32.mrb[0].mxu0
      %4754 = vmatprep.mubr.f32.mxu0 0.0
      %4755 = vmatmul.mubr.f32.gmra.mrb[0].mxu0 %v4611
      %v4756 = vpop.f32.mrb[0].mxu0
      %v4757 = vadd.f32 0.0, %v4756
      %v4758 = vpop.f32.mrb[0].mxu0
      %4759 = vmatprep.mubr.f32.mxu0 0.0
      %4760 = vmatmul.mubr.f32.gmra.mrb[0].mxu0 %v4614
      %v4761 = vpop.f32.mrb[0].mxu0
      %v4762 = vadd.f32 0.0, %v4761
      %v4763 = vpop.f32.mrb[0].mxu0
      %4764 = vdwg.mxu0
      %vm4765 = vcmp.gt.f32.partialorder %v4687, 0.0
      %vm4766 = vcmp.gt.f32.partialorder %v4692, 0.0
      %vm4767 = vcmp.gt.f32.partialorder %v4697, 0.0
      %vm4768 = vcmp.gt.f32.partialorder %v4702, 0.0
      %vm4769 = vcmp.gt.f32.partialorder %v4707, 0.0
      %vm4770 = vcmp.gt.f32.partialorder %v4712, 0.0
      %vm4771 = vcmp.gt.f32.partialorder %v4717, 0.0
      %vm4772 = vcmp.gt.f32.partialorder %v4722, 0.0
      %vm4773 = vcmp.gt.f32.partialorder %v4727, 0.0
      %vm4774 = vcmp.gt.f32.partialorder %v4732, 0.0
      %vm4775 = vcmp.gt.f32.partialorder %v4737, 0.0
      %vm4776 = vcmp.gt.f32.partialorder %v4742, 0.0
      %vm4777 = vcmp.gt.f32.partialorder %v4747, 0.0
      %vm4778 = vcmp.gt.f32.partialorder %v4752, 0.0
      %vm4779 = vcmp.gt.f32.partialorder %v4757, 0.0
      %vm4780 = vcmp.gt.f32.partialorder %v4762, 0.0
      %v4781 = vstv %s4550
      %v4782 = vmul.f32 %v4781, %v4687
      %v4783 = vmul.f32 %v4781, %v4692
      %v4784 = vmul.f32 %v4781, %v4697
      %v4785 = vmul.f32 %v4781, %v4702
      %v4786 = vmul.f32 %v4781, %v4707
      %v4787 = vmul.f32 %v4781, %v4712
      %v4788 = vmul.f32 %v4781, %v4717
      %v4789 = vmul.f32 %v4781, %v4722
      %v4790 = vmul.f32 %v4781, %v4727
      %v4791 = vmul.f32 %v4781, %v4732
      %v4792 = vmul.f32 %v4781, %v4737
      %v4793 = vmul.f32 %v4781, %v4742
      %v4794 = vmul.f32 %v4781, %v4747
      %v4795 = vmul.f32 %v4781, %v4752
      %v4796 = vmul.f32 %v4781, %v4757
      %v4797 = vmul.f32 %v4781, %v4762
      %v4798 = vsel %vm4765, %v4687, %v4782
      %v4799 = vsel %vm4766, %v4692, %v4783
      %v4800 = vsel %vm4767, %v4697, %v4784
      %v4801 = vsel %vm4768, %v4702, %v4785
      %v4802 = vsel %vm4769, %v4707, %v4786
      %v4803 = vsel %vm4770, %v4712, %v4787
      %v4804 = vsel %vm4771, %v4717, %v4788
      %v4805 = vsel %vm4772, %v4722, %v4789
      %v4806 = vsel %vm4773, %v4727, %v4790
      %v4807 = vsel %vm4774, %v4732, %v4791
      %v4808 = vsel %vm4775, %v4737, %v4792
      %v4809 = vsel %vm4776, %v4742, %v4793
      %v4810 = vsel %vm4777, %v4747, %v4794
      %v4811 = vsel %vm4778, %v4752, %v4795
      %v4812 = vsel %vm4779, %v4757, %v4796
      %v4813 = vsel %vm4780, %v4762, %v4797
      %4817 = vrot.lane.b32.xlu0 %v3964, 127
      %v4818 = vpop.permute.xlu0 %4817
      %4819 = vrot.lane.b32.xlu0 %v3965, 127
      %v4820 = vpop.permute.xlu0 %4819
      %4821 = vrot.lane.b32.xlu0 %v3966, 127
      %v4822 = vpop.permute.xlu0 %4821
      %v4825 = vsel %vm4616, %v4822, 0
      %4827 = vmatprep.subr.mxu0 0.0
      %4828 = vmatpush1.msra.mxu0 %v4818
      %4829 = vmatprep.subr.mxu0 0.0
      %4830 = vmatpush1.msra.mxu0 %v4820
      %4831 = vmatprep.subr.mxu0 0.0
      %4832 = vmatpush1.msra.mxu0 %v4825
      %4833 = vmatprep.subr.mxu0 0.0
      %4834 = vmatpush1.msra.mxu0 0.0
      %4835 = vmatprep.subr.mxu0 0.0
      %4836 = vmatpush1.msra.mxu0 0.0
      %4837 = vmatprep.subr.mxu0 0.0
      %4838 = vmatpush1.msra.mxu0 0.0
      %4839 = vmatprep.subr.mxu0 0.0
      %4840 = vmatpush1.msra.mxu0 0.0
      %4841 = vmatprep.subr.mxu0 0.0
      %4842 = vmatpush1.msra.mxu0 0.0
      %4843 = vmatprep.subr.mxu0 0.0
      %4844 = vmatpush1.msra.mxu0 0.0
      %4845 = vmatprep.subr.mxu0 0.0
      %4846 = vmatpush1.msra.mxu0 0.0
      %4847 = vmatprep.subr.mxu0 0.0
      %4848 = vmatpush1.msra.mxu0 0.0
      %4849 = vmatprep.subr.mxu0 0.0
      %4850 = vmatpush1.msra.mxu0 0.0
      %4851 = vmatprep.subr.mxu0 0.0
      %4852 = vmatpush1.msra.mxu0 0.0
      %4853 = vmatprep.subr.mxu0 0.0
      %4854 = vmatpush1.msra.mxu0 0.0
      %4855 = vmatprep.subr.mxu0 0.0
      %4856 = vmatpush1.msra.mxu0 0.0
      %4857 = vmatprep.subr.mxu0 0.0
      %4858 = vmatpush1.msra.mxu0 0.0
      %4859 = vmatprep.subr.mxu0 0.0
      %4860 = vmatpush1.msra.mxu0 0.0
      %4861 = vmatprep.subr.mxu0 0.0
      %4862 = vmatpush1.msra.mxu0 0.0
      %4863 = vmatprep.subr.mxu0 0.0
      %4864 = vmatpush1.msra.mxu0 0.0
      %4865 = vmatprep.subr.mxu0 0.0
      %4866 = vmatpush1.msra.mxu0 0.0
      %4867 = vmatprep.subr.mxu0 0.0
      %4868 = vmatpush1.msra.mxu0 0.0
      %4869 = vmatprep.subr.mxu0 0.0
      %4870 = vmatpush1.msra.mxu0 0.0
      %4871 = vmatprep.subr.mxu0 0.0
      %4872 = vmatpush1.msra.mxu0 0.0
      %4873 = vmatprep.subr.mxu0 0.0
      %4874 = vmatpush1.msra.mxu0 0.0
      %4875 = vmatprep.subr.mxu0 0.0
      %4876 = vmatpush1.msra.mxu0 0.0
      %4877 = vmatprep.subr.mxu0 0.0
      %4878 = vmatpush1.msra.mxu0 0.0
      %4879 = vmatprep.subr.mxu0 0.0
      %4880 = vmatpush1.msra.mxu0 0.0
      %4881 = vmatprep.subr.mxu0 0.0
      %4882 = vmatpush1.msra.mxu0 0.0
      %4883 = vmatprep.subr.mxu0 0.0
      %4884 = vmatpush1.msra.mxu0 0.0
      %4885 = vmatprep.subr.mxu0 0.0
      %4886 = vmatpush1.msra.mxu0 0.0
      %4887 = vmatprep.subr.mxu0 0.0
      %4888 = vmatpush1.msra.mxu0 0.0
      %4889 = vmatprep.subr.mxu0 0.0
      %4890 = vmatpush1.msra.mxu0 0.0
      %4891 = vmatprep.mubr.f32.mxu0 0.0
      %4892 = vmatmul.mubr.f32.gmra.mrb[0].mxu0 %v4569
      %v4893 = vpop.f32.mrb[0].mxu0
      %v4894 = vadd.f32 0.0, %v4893
      %v4895 = vpop.f32.mrb[0].mxu0
      %4896 = vmatprep.mubr.f32.mxu0 0.0
      %4897 = vmatmul.mubr.f32.gmra.mrb[0].mxu0 %v4572
      %v4898 = vpop.f32.mrb[0].mxu0
      %v4899 = vadd.f32 0.0, %v4898
      %v4900 = vpop.f32.mrb[0].mxu0
      %4901 = vmatprep.mubr.f32.mxu0 0.0
      %4902 = vmatmul.mubr.f32.gmra.mrb[0].mxu0 %v4575
      %v4903 = vpop.f32.mrb[0].mxu0
      %v4904 = vadd.f32 0.0, %v4903
      %v4905 = vpop.f32.mrb[0].mxu0
      %4906 = vmatprep.mubr.f32.mxu0 0.0
      %4907 = vmatmul.mubr.f32.gmra.mrb[0].mxu0 %v4578
      %v4908 = vpop.f32.mrb[0].mxu0
      %v4909 = vadd.f32 0.0, %v4908
      %v4910 = vpop.f32.mrb[0].mxu0
      %4911 = vmatprep.mubr.f32.mxu0 0.0
      %4912 = vmatmul.mubr.f32.gmra.mrb[0].mxu0 %v4581
      %v4913 = vpop.f32.mrb[0].mxu0
      %v4914 = vadd.f32 0.0, %v4913
      %v4915 = vpop.f32.mrb[0].mxu0
      %4916 = vmatprep.mubr.f32.mxu0 0.0
      %4917 = vmatmul.mubr.f32.gmra.mrb[0].mxu0 %v4584
      %v4918 = vpop.f32.mrb[0].mxu0
      %v4919 = vadd.f32 0.0, %v4918
      %v4920 = vpop.f32.mrb[0].mxu0
      %4921 = vmatprep.mubr.f32.mxu0 0.0
      %4922 = vmatmul.mubr.f32.gmra.mrb[0].mxu0 %v4587
      %v4923 = vpop.f32.mrb[0].mxu0
      %v4924 = vadd.f32 0.0, %v4923
      %v4925 = vpop.f32.mrb[0].mxu0
      %4926 = vmatprep.mubr.f32.mxu0 0.0
      %4927 = vmatmul.mubr.f32.gmra.mrb[0].mxu0 %v4590
      %v4928 = vpop.f32.mrb[0].mxu0
      %v4929 = vadd.f32 0.0, %v4928
      %v4930 = vpop.f32.mrb[0].mxu0
      %4931 = vmatprep.mubr.f32.mxu0 0.0
      %4932 = vmatmul.mubr.f32.gmra.mrb[0].mxu0 %v4593
      %v4933 = vpop.f32.mrb[0].mxu0
      %v4934 = vadd.f32 0.0, %v4933
      %v4935 = vpop.f32.mrb[0].mxu0
      %4936 = vmatprep.mubr.f32.mxu0 0.0
      %4937 = vmatmul.mubr.f32.gmra.mrb[0].mxu0 %v4596
      %v4938 = vpop.f32.mrb[0].mxu0
      %v4939 = vadd.f32 0.0, %v4938
      %v4940 = vpop.f32.mrb[0].mxu0
      %4941 = vmatprep.mubr.f32.mxu0 0.0
      %4942 = vmatmul.mubr.f32.gmra.mrb[0].mxu0 %v4599
      %v4943 = vpop.f32.mrb[0].mxu0
      %v4944 = vadd.f32 0.0, %v4943
      %v4945 = vpop.f32.mrb[0].mxu0
      %4946 = vmatprep.mubr.f32.mxu0 0.0
      %4947 = vmatmul.mubr.f32.gmra.mrb[0].mxu0 %v4602
      %v4948 = vpop.f32.mrb[0].mxu0
      %v4949 = vadd.f32 0.0, %v4948
      %v4950 = vpop.f32.mrb[0].mxu0
      %4951 = vmatprep.mubr.f32.mxu0 0.0
      %4952 = vmatmul.mubr.f32.gmra.mrb[0].mxu0 %v4605
      %v4953 = vpop.f32.mrb[0].mxu0
      %v4954 = vadd.f32 0.0, %v4953
      %v4955 = vpop.f32.mrb[0].mxu0
      %4956 = vmatprep.mubr.f32.mxu0 0.0
      %4957 = vmatmul.mubr.f32.gmra.mrb[0].mxu0 %v4608
      %v4958 = vpop.f32.mrb[0].mxu0
      %v4959 = vadd.f32 0.0, %v4958
      %v4960 = vpop.f32.mrb[0].mxu0
      %4961 = vmatprep.mubr.f32.mxu0 0.0
      %4962 = vmatmul.mubr.f32.gmra.mrb[0].mxu0 %v4611
      %v4963 = vpop.f32.mrb[0].mxu0
      %v4964 = vadd.f32 0.0, %v4963
      %v4965 = vpop.f32.mrb[0].mxu0
      %4966 = vmatprep.mubr.f32.mxu0 0.0
      %4967 = vmatmul.mubr.f32.gmra.mrb[0].mxu0 %v4614
      %v4968 = vpop.f32.mrb[0].mxu0
      %v4969 = vadd.f32 0.0, %v4968
      %v4970 = vpop.f32.mrb[0].mxu0
      %4971 = vdwg.mxu0
      %vm4972 = vcmp.gt.f32.partialorder %v4894, 0.0
      %vm4973 = vcmp.gt.f32.partialorder %v4899, 0.0
      %vm4974 = vcmp.gt.f32.partialorder %v4904, 0.0
      %vm4975 = vcmp.gt.f32.partialorder %v4909, 0.0
      %vm4976 = vcmp.gt.f32.partialorder %v4914, 0.0
      %vm4977 = vcmp.gt.f32.partialorder %v4919, 0.0
      %vm4978 = vcmp.gt.f32.partialorder %v4924, 0.0
      %vm4979 = vcmp.gt.f32.partialorder %v4929, 0.0
      %vm4980 = vcmp.gt.f32.partialorder %v4934, 0.0
      %vm4981 = vcmp.gt.f32.partialorder %v4939, 0.0
      %vm4982 = vcmp.gt.f32.partialorder %v4944, 0.0
      %vm4983 = vcmp.gt.f32.partialorder %v4949, 0.0
      %vm4984 = vcmp.gt.f32.partialorder %v4954, 0.0
      %vm4985 = vcmp.gt.f32.partialorder %v4959, 0.0
      %vm4986 = vcmp.gt.f32.partialorder %v4964, 0.0
      %vm4987 = vcmp.gt.f32.partialorder %v4969, 0.0
      %v4988 = vmul.f32 %v4781, %v4894
      %v4989 = vmul.f32 %v4781, %v4899
      %v4990 = vmul.f32 %v4781, %v4904
      %v4991 = vmul.f32 %v4781, %v4909
      %v4992 = vmul.f32 %v4781, %v4914
      %v4993 = vmul.f32 %v4781, %v4919
      %v4994 = vmul.f32 %v4781, %v4924
      %v4995 = vmul.f32 %v4781, %v4929
      %v4996 = vmul.f32 %v4781, %v4934
      %v4997 = vmul.f32 %v4781, %v4939
      %v4998 = vmul.f32 %v4781, %v4944
      %v4999 = vmul.f32 %v4781, %v4949
      %v5000 = vmul.f32 %v4781, %v4954
      %v5001 = vmul.f32 %v4781, %v4959
      %v5002 = vmul.f32 %v4781, %v4964
      %v5003 = vmul.f32 %v4781, %v4969
      %v5004 = vsel %vm4972, %v4894, %v4988
      %v5005 = vsel %vm4973, %v4899, %v4989
      %v5006 = vsel %vm4974, %v4904, %v4990
      %v5007 = vsel %vm4975, %v4909, %v4991
      %v5008 = vsel %vm4976, %v4914, %v4992
      %v5009 = vsel %vm4977, %v4919, %v4993
      %v5010 = vsel %vm4978, %v4924, %v4994
      %v5011 = vsel %vm4979, %v4929, %v4995
      %v5012 = vsel %vm4980, %v4934, %v4996
      %v5013 = vsel %vm4981, %v4939, %v4997
      %v5014 = vsel %vm4982, %v4944, %v4998
      %v5015 = vsel %vm4983, %v4949, %v4999
      %v5016 = vsel %vm4984, %v4954, %v5000
      %v5017 = vsel %vm4985, %v4959, %v5001
      %v5018 = vsel %vm4986, %v4964, %v5002
      %v5019 = vsel %vm4987, %v4969, %v5003
      %5023 = vrot.lane.b32.xlu0 %v4546, 126
      %v5024 = vpop.permute.xlu0 %5023
      %5025 = vrot.lane.b32.xlu0 %v4547, 126
      %v5026 = vpop.permute.xlu0 %5025
      %5027 = vrot.lane.b32.xlu0 %v4548, 126
      %v5028 = vpop.permute.xlu0 %5027
      %v5031 = vsel %vm4616, %v5028, 0
      %5033 = vmatprep.subr.mxu0 0.0
      %5034 = vmatpush1.msra.mxu0 %v5024
      %5035 = vmatprep.subr.mxu0 0.0
      %5036 = vmatpush1.msra.mxu0 %v5026
      %5037 = vmatprep.subr.mxu0 0.0
      %5038 = vmatpush1.msra.mxu0 %v5031
      %5039 = vmatprep.subr.mxu0 0.0
      %5040 = vmatpush1.msra.mxu0 0.0
      %5041 = vmatprep.subr.mxu0 0.0
      %5042 = vmatpush1.msra.mxu0 0.0
      %5043 = vmatprep.subr.mxu0 0.0
      %5044 = vmatpush1.msra.mxu0 0.0
      %5045 = vmatprep.subr.mxu0 0.0
      %5046 = vmatpush1.msra.mxu0 0.0
      %5047 = vmatprep.subr.mxu0 0.0
      %5048 = vmatpush1.msra.mxu0 0.0
      %5049 = vmatprep.subr.mxu0 0.0
      %5050 = vmatpush1.msra.mxu0 0.0
      %5051 = vmatprep.subr.mxu0 0.0
      %5052 = vmatpush1.msra.mxu0 0.0
      %5053 = vmatprep.subr.mxu0 0.0
      %5054 = vmatpush1.msra.mxu0 0.0
      %5055 = vmatprep.subr.mxu0 0.0
      %5056 = vmatpush1.msra.mxu0 0.0
      %5057 = vmatprep.subr.mxu0 0.0
      %5058 = vmatpush1.msra.mxu0 0.0
      %5059 = vmatprep.subr.mxu0 0.0
      %5060 = vmatpush1.msra.mxu0 0.0
      %5061 = vmatprep.subr.mxu0 0.0
      %5062 = vmatpush1.msra.mxu0 0.0
      %5063 = vmatprep.subr.mxu0 0.0
      %5064 = vmatpush1.msra.mxu0 0.0
      %5065 = vmatprep.subr.mxu0 0.0
      %5066 = vmatpush1.msra.mxu0 0.0
      %5067 = vmatprep.subr.mxu0 0.0
      %5068 = vmatpush1.msra.mxu0 0.0
      %5069 = vmatprep.subr.mxu0 0.0
      %5070 = vmatpush1.msra.mxu0 0.0
      %5071 = vmatprep.subr.mxu0 0.0
      %5072 = vmatpush1.msra.mxu0 0.0
      %5073 = vmatprep.subr.mxu0 0.0
      %5074 = vmatpush1.msra.mxu0 0.0
      %5075 = vmatprep.subr.mxu0 0.0
      %5076 = vmatpush1.msra.mxu0 0.0
      %5077 = vmatprep.subr.mxu0 0.0
      %5078 = vmatpush1.msra.mxu0 0.0
      %5079 = vmatprep.subr.mxu0 0.0
      %5080 = vmatpush1.msra.mxu0 0.0
      %5081 = vmatprep.subr.mxu0 0.0
      %5082 = vmatpush1.msra.mxu0 0.0
      %5083 = vmatprep.subr.mxu0 0.0
      %5084 = vmatpush1.msra.mxu0 0.0
      %5085 = vmatprep.subr.mxu0 0.0
      %5086 = vmatpush1.msra.mxu0 0.0
      %5087 = vmatprep.subr.mxu0 0.0
      %5088 = vmatpush1.msra.mxu0 0.0
      %5089 = vmatprep.subr.mxu0 0.0
      %5090 = vmatpush1.msra.mxu0 0.0
      %5091 = vmatprep.subr.mxu0 0.0
      %5092 = vmatpush1.msra.mxu0 0.0
      %5093 = vmatprep.subr.mxu0 0.0
      %5094 = vmatpush1.msra.mxu0 0.0
      %5095 = vmatprep.subr.mxu0 0.0
      %5096 = vmatpush1.msra.mxu0 0.0
      %5097 = vmatprep.mubr.f32.mxu0 0.0
      %5098 = vmatmul.mubr.f32.gmra.mrb[0].mxu0 %v4569
      %v5099 = vpop.f32.mrb[0].mxu0
      %v5100 = vadd.f32 0.0, %v5099
      %v5101 = vpop.f32.mrb[0].mxu0
      %5102 = vmatprep.mubr.f32.mxu0 0.0
      %5103 = vmatmul.mubr.f32.gmra.mrb[0].mxu0 %v4572
      %v5104 = vpop.f32.mrb[0].mxu0
      %v5105 = vadd.f32 0.0, %v5104
      %v5106 = vpop.f32.mrb[0].mxu0
      %5107 = vmatprep.mubr.f32.mxu0 0.0
      %5108 = vmatmul.mubr.f32.gmra.mrb[0].mxu0 %v4575
      %v5109 = vpop.f32.mrb[0].mxu0
      %v5110 = vadd.f32 0.0, %v5109
      %v5111 = vpop.f32.mrb[0].mxu0
      %5112 = vmatprep.mubr.f32.mxu0 0.0
      %5113 = vmatmul.mubr.f32.gmra.mrb[0].mxu0 %v4578
      %v5114 = vpop.f32.mrb[0].mxu0
      %v5115 = vadd.f32 0.0, %v5114
      %v5116 = vpop.f32.mrb[0].mxu0
      %5117 = vmatprep.mubr.f32.mxu0 0.0
      %5118 = vmatmul.mubr.f32.gmra.mrb[0].mxu0 %v4581
      %v5119 = vpop.f32.mrb[0].mxu0
      %v5120 = vadd.f32 0.0, %v5119
      %v5121 = vpop.f32.mrb[0].mxu0
      %5122 = vmatprep.mubr.f32.mxu0 0.0
      %5123 = vmatmul.mubr.f32.gmra.mrb[0].mxu0 %v4584
      %v5124 = vpop.f32.mrb[0].mxu0
      %v5125 = vadd.f32 0.0, %v5124
      %v5126 = vpop.f32.mrb[0].mxu0
      %5127 = vmatprep.mubr.f32.mxu0 0.0
      %5128 = vmatmul.mubr.f32.gmra.mrb[0].mxu0 %v4587
      %v5129 = vpop.f32.mrb[0].mxu0
      %v5130 = vadd.f32 0.0, %v5129
      %v5131 = vpop.f32.mrb[0].mxu0
      %5132 = vmatprep.mubr.f32.mxu0 0.0
      %5133 = vmatmul.mubr.f32.gmra.mrb[0].mxu0 %v4590
      %v5134 = vpop.f32.mrb[0].mxu0
      %v5135 = vadd.f32 0.0, %v5134
      %v5136 = vpop.f32.mrb[0].mxu0
      %5137 = vmatprep.mubr.f32.mxu0 0.0
      %5138 = vmatmul.mubr.f32.gmra.mrb[0].mxu0 %v4593
      %v5139 = vpop.f32.mrb[0].mxu0
      %v5140 = vadd.f32 0.0, %v5139
      %v5141 = vpop.f32.mrb[0].mxu0
      %5142 = vmatprep.mubr.f32.mxu0 0.0
      %5143 = vmatmul.mubr.f32.gmra.mrb[0].mxu0 %v4596
      %v5144 = vpop.f32.mrb[0].mxu0
      %v5145 = vadd.f32 0.0, %v5144
      %v5146 = vpop.f32.mrb[0].mxu0
      %5147 = vmatprep.mubr.f32.mxu0 0.0
      %5148 = vmatmul.mubr.f32.gmra.mrb[0].mxu0 %v4599
      %v5149 = vpop.f32.mrb[0].mxu0
      %v5150 = vadd.f32 0.0, %v5149
      %v5151 = vpop.f32.mrb[0].mxu0
      %5152 = vmatprep.mubr.f32.mxu0 0.0
      %5153 = vmatmul.mubr.f32.gmra.mrb[0].mxu0 %v4602
      %v5154 = vpop.f32.mrb[0].mxu0
      %v5155 = vadd.f32 0.0, %v5154
      %v5156 = vpop.f32.mrb[0].mxu0
      %5157 = vmatprep.mubr.f32.mxu0 0.0
      %5158 = vmatmul.mubr.f32.gmra.mrb[0].mxu0 %v4605
      %v5159 = vpop.f32.mrb[0].mxu0
      %v5160 = vadd.f32 0.0, %v5159
      %v5161 = vpop.f32.mrb[0].mxu0
      %5162 = vmatprep.mubr.f32.mxu0 0.0
      %5163 = vmatmul.mubr.f32.gmra.mrb[0].mxu0 %v4608
      %v5164 = vpop.f32.mrb[0].mxu0
      %v5165 = vadd.f32 0.0, %v5164
      %v5166 = vpop.f32.mrb[0].mxu0
      %5167 = vmatprep.mubr.f32.mxu0 0.0
      %5168 = vmatmul.mubr.f32.gmra.mrb[0].mxu0 %v4611
      %v5169 = vpop.f32.mrb[0].mxu0
      %v5170 = vadd.f32 0.0, %v5169
      %v5171 = vpop.f32.mrb[0].mxu0
      %5172 = vmatprep.mubr.f32.mxu0 0.0
      %5173 = vmatmul.mubr.f32.gmra.mrb[0].mxu0 %v4614
      %v5174 = vpop.f32.mrb[0].mxu0
      %v5175 = vadd.f32 0.0, %v5174
      %v5176 = vpop.f32.mrb[0].mxu0
      %5177 = vdwg.mxu0
      %vm5178 = vcmp.gt.f32.partialorder %v5100, 0.0
      %vm5179 = vcmp.gt.f32.partialorder %v5105, 0.0
      %vm5180 = vcmp.gt.f32.partialorder %v5110, 0.0
      %vm5181 = vcmp.gt.f32.partialorder %v5115, 0.0
      %vm5182 = vcmp.gt.f32.partialorder %v5120, 0.0
      %vm5183 = vcmp.gt.f32.partialorder %v5125, 0.0
      %vm5184 = vcmp.gt.f32.partialorder %v5130, 0.0
      %vm5185 = vcmp.gt.f32.partialorder %v5135, 0.0
      %vm5186 = vcmp.gt.f32.partialorder %v5140, 0.0
      %vm5187 = vcmp.gt.f32.partialorder %v5145, 0.0
      %vm5188 = vcmp.gt.f32.partialorder %v5150, 0.0
      %vm5189 = vcmp.gt.f32.partialorder %v5155, 0.0
      %vm5190 = vcmp.gt.f32.partialorder %v5160, 0.0
      %vm5191 = vcmp.gt.f32.partialorder %v5165, 0.0
      %vm5192 = vcmp.gt.f32.partialorder %v5170, 0.0
      %vm5193 = vcmp.gt.f32.partialorder %v5175, 0.0
      %v5194 = vmul.f32 %v4781, %v5100
      %v5195 = vmul.f32 %v4781, %v5105
      %v5196 = vmul.f32 %v4781, %v5110
      %v5197 = vmul.f32 %v4781, %v5115
      %v5198 = vmul.f32 %v4781, %v5120
      %v5199 = vmul.f32 %v4781, %v5125
      %v5200 = vmul.f32 %v4781, %v5130
      %v5201 = vmul.f32 %v4781, %v5135
      %v5202 = vmul.f32 %v4781, %v5140
      %v5203 = vmul.f32 %v4781, %v5145
      %v5204 = vmul.f32 %v4781, %v5150
      %v5205 = vmul.f32 %v4781, %v5155
      %v5206 = vmul.f32 %v4781, %v5160
      %v5207 = vmul.f32 %v4781, %v5165
      %v5208 = vmul.f32 %v4781, %v5170
      %v5209 = vmul.f32 %v4781, %v5175
      %v5210 = vsel %vm5178, %v5100, %v5194
      %v5211 = vsel %vm5179, %v5105, %v5195
      %v5212 = vsel %vm5180, %v5110, %v5196
      %v5213 = vsel %vm5181, %v5115, %v5197
      %v5214 = vsel %vm5182, %v5120, %v5198
      %v5215 = vsel %vm5183, %v5125, %v5199
      %v5216 = vsel %vm5184, %v5130, %v5200
      %v5217 = vsel %vm5185, %v5135, %v5201
      %v5218 = vsel %vm5186, %v5140, %v5202
      %v5219 = vsel %vm5187, %v5145, %v5203
      %v5220 = vsel %vm5188, %v5150, %v5204
      %v5221 = vsel %vm5189, %v5155, %v5205
      %v5222 = vsel %vm5190, %v5160, %v5206
      %v5223 = vsel %vm5191, %v5165, %v5207
      %v5224 = vsel %vm5192, %v5170, %v5208
      %v5225 = vsel %vm5193, %v5175, %v5209
      %s5226 = scalar_lea.vmem %s5, 128
      %v5227 = vld [vmem:[%s5226] sm:$0xff]
      %v5228 = vld [vmem:[%s5226 + $0x8] sm:$0xff]
      %v5229 = vld [vmem:[%s5226 + $0x10] sm:$0xff]
      %v5230 = vld [vmem:[%s5226 + $0x18] sm:$0xff]
      %v5231 = vld [vmem:[%s5226 + $0x20] sm:$0xff]
      %v5232 = vld [vmem:[%s5226 + $0x28] sm:$0xff]
      %v5233 = vld [vmem:[%s5226 + $0x30] sm:$0xff]
      %v5234 = vld [vmem:[%s5226 + $0x38] sm:$0xff]
      %v5235 = vld [vmem:[%s5226 + $0x40] sm:$0xff]
      %v5236 = vld [vmem:[%s5226 + $0x48] sm:$0xff]
      %v5237 = vld [vmem:[%s5226 + $0x50] sm:$0xff]
      %v5238 = vld [vmem:[%s5226 + $0x58] sm:$0xff]
      %v5239 = vld [vmem:[%s5226 + $0x60] sm:$0xff]
      %v5240 = vld [vmem:[%s5226 + $0x68] sm:$0xff]
      %v5241 = vld [vmem:[%s5226 + $0x70] sm:$0xff]
      %v5242 = vld [vmem:[%s5226 + $0x78] sm:$0xff]
      %v5244 = vsel %vm4567, %v5227, 0
      %v5247 = vsel %vm4567, %v5228, 0
      %v5250 = vsel %vm4567, %v5229, 0
      %v5253 = vsel %vm4567, %v5230, 0
      %v5256 = vsel %vm4567, %v5231, 0
      %v5259 = vsel %vm4567, %v5232, 0
      %v5262 = vsel %vm4567, %v5233, 0
      %v5265 = vsel %vm4567, %v5234, 0
      %v5268 = vsel %vm4567, %v5235, 0
      %v5271 = vsel %vm4567, %v5236, 0
      %v5274 = vsel %vm4567, %v5237, 0
      %v5277 = vsel %vm4567, %v5238, 0
      %v5280 = vsel %vm4567, %v5239, 0
      %v5283 = vsel %vm4567, %v5240, 0
      %v5286 = vsel %vm4567, %v5241, 0
      %v5289 = vsel %vm4567, %v5242, 0
      %5291 = vmatprep.subr.mxu0 0.0
      %5292 = vmatpush1.msra.mxu0 %v3382
      %5293 = vmatprep.subr.mxu0 0.0
      %5294 = vmatpush1.msra.mxu0 %v3383
      %5295 = vmatprep.subr.mxu0 0.0
      %5296 = vmatpush1.msra.mxu0 %v4618
      %5297 = vmatprep.subr.mxu0 0.0
      %5298 = vmatpush1.msra.mxu0 0.0
      %5299 = vmatprep.subr.mxu0 0.0
      %5300 = vmatpush1.msra.mxu0 0.0
      %5301 = vmatprep.subr.mxu0 0.0
      %5302 = vmatpush1.msra.mxu0 0.0
      %5303 = vmatprep.subr.mxu0 0.0
      %5304 = vmatpush1.msra.mxu0 0.0
      %5305 = vmatprep.subr.mxu0 0.0
      %5306 = vmatpush1.msra.mxu0 0.0
      %5307 = vmatprep.subr.mxu0 0.0
      %5308 = vmatpush1.msra.mxu0 0.0
      %5309 = vmatprep.subr.mxu0 0.0
      %5310 = vmatpush1.msra.mxu0 0.0
      %5311 = vmatprep.subr.mxu0 0.0
      %5312 = vmatpush1.msra.mxu0 0.0
      %5313 = vmatprep.subr.mxu0 0.0
      %5314 = vmatpush1.msra.mxu0 0.0
      %5315 = vmatprep.subr.mxu0 0.0
      %5316 = vmatpush1.msra.mxu0 0.0
      %5317 = vmatprep.subr.mxu0 0.0
      %5318 = vmatpush1.msra.mxu0 0.0
      %5319 = vmatprep.subr.mxu0 0.0
      %5320 = vmatpush1.msra.mxu0 0.0
      %5321 = vmatprep.subr.mxu0 0.0
      %5322 = vmatpush1.msra.mxu0 0.0
      %5323 = vmatprep.subr.mxu0 0.0
      %5324 = vmatpush1.msra.mxu0 0.0
      %5325 = vmatprep.subr.mxu0 0.0
      %5326 = vmatpush1.msra.mxu0 0.0
      %5327 = vmatprep.subr.mxu0 0.0
      %5328 = vmatpush1.msra.mxu0 0.0
      %5329 = vmatprep.subr.mxu0 0.0
      %5330 = vmatpush1.msra.mxu0 0.0
      %5331 = vmatprep.subr.mxu0 0.0
      %5332 = vmatpush1.msra.mxu0 0.0
      %5333 = vmatprep.subr.mxu0 0.0
      %5334 = vmatpush1.msra.mxu0 0.0
      %5335 = vmatprep.subr.mxu0 0.0
      %5336 = vmatpush1.msra.mxu0 0.0
      %5337 = vmatprep.subr.mxu0 0.0
      %5338 = vmatpush1.msra.mxu0 0.0
      %5339 = vmatprep.subr.mxu0 0.0
      %5340 = vmatpush1.msra.mxu0 0.0
      %5341 = vmatprep.subr.mxu0 0.0
      %5342 = vmatpush1.msra.mxu0 0.0
      %5343 = vmatprep.subr.mxu0 0.0
      %5344 = vmatpush1.msra.mxu0 0.0
      %5345 = vmatprep.subr.mxu0 0.0
      %5346 = vmatpush1.msra.mxu0 0.0
      %5347 = vmatprep.subr.mxu0 0.0
      %5348 = vmatpush1.msra.mxu0 0.0
      %5349 = vmatprep.subr.mxu0 0.0
      %5350 = vmatpush1.msra.mxu0 0.0
      %5351 = vmatprep.subr.mxu0 0.0
      %5352 = vmatpush1.msra.mxu0 0.0
      %5353 = vmatprep.subr.mxu0 0.0
      %5354 = vmatpush1.msra.mxu0 0.0
      %5355 = vmatprep.mubr.f32.mxu0 0.0
      %5356 = vmatmul.mubr.f32.gmra.mrb[0].mxu0 %v5244
      %v5357 = vpop.f32.mrb[0].mxu0
      %v5358 = vadd.f32 0.0, %v5357
      %v5359 = vpop.f32.mrb[0].mxu0
      %5360 = vmatprep.mubr.f32.mxu0 0.0
      %5361 = vmatmul.mubr.f32.gmra.mrb[0].mxu0 %v5247
      %v5362 = vpop.f32.mrb[0].mxu0
      %v5363 = vadd.f32 0.0, %v5362
      %v5364 = vpop.f32.mrb[0].mxu0
      %5365 = vmatprep.mubr.f32.mxu0 0.0
      %5366 = vmatmul.mubr.f32.gmra.mrb[0].mxu0 %v5250
      %v5367 = vpop.f32.mrb[0].mxu0
      %v5368 = vadd.f32 0.0, %v5367
      %v5369 = vpop.f32.mrb[0].mxu0
      %5370 = vmatprep.mubr.f32.mxu0 0.0
      %5371 = vmatmul.mubr.f32.gmra.mrb[0].mxu0 %v5253
      %v5372 = vpop.f32.mrb[0].mxu0
      %v5373 = vadd.f32 0.0, %v5372
      %v5374 = vpop.f32.mrb[0].mxu0
      %5375 = vmatprep.mubr.f32.mxu0 0.0
      %5376 = vmatmul.mubr.f32.gmra.mrb[0].mxu0 %v5256
      %v5377 = vpop.f32.mrb[0].mxu0
      %v5378 = vadd.f32 0.0, %v5377
      %v5379 = vpop.f32.mrb[0].mxu0
      %5380 = vmatprep.mubr.f32.mxu0 0.0
      %5381 = vmatmul.mubr.f32.gmra.mrb[0].mxu0 %v5259
      %v5382 = vpop.f32.mrb[0].mxu0
      %v5383 = vadd.f32 0.0, %v5382
      %v5384 = vpop.f32.mrb[0].mxu0
      %5385 = vmatprep.mubr.f32.mxu0 0.0
      %5386 = vmatmul.mubr.f32.gmra.mrb[0].mxu0 %v5262
      %v5387 = vpop.f32.mrb[0].mxu0
      %v5388 = vadd.f32 0.0, %v5387
      %v5389 = vpop.f32.mrb[0].mxu0
      %5390 = vmatprep.mubr.f32.mxu0 0.0
      %5391 = vmatmul.mubr.f32.gmra.mrb[0].mxu0 %v5265
      %v5392 = vpop.f32.mrb[0].mxu0
      %v5393 = vadd.f32 0.0, %v5392
      %v5394 = vpop.f32.mrb[0].mxu0
      %5395 = vmatprep.mubr.f32.mxu0 0.0
      %5396 = vmatmul.mubr.f32.gmra.mrb[0].mxu0 %v5268
      %v5397 = vpop.f32.mrb[0].mxu0
      %v5398 = vadd.f32 0.0, %v5397
      %v5399 = vpop.f32.mrb[0].mxu0
      %5400 = vmatprep.mubr.f32.mxu0 0.0
      %5401 = vmatmul.mubr.f32.gmra.mrb[0].mxu0 %v5271
      %v5402 = vpop.f32.mrb[0].mxu0
      %v5403 = vadd.f32 0.0, %v5402
      %v5404 = vpop.f32.mrb[0].mxu0
      %5405 = vmatprep.mubr.f32.mxu0 0.0
      %5406 = vmatmul.mubr.f32.gmra.mrb[0].mxu0 %v5274
      %v5407 = vpop.f32.mrb[0].mxu0
      %v5408 = vadd.f32 0.0, %v5407
      %v5409 = vpop.f32.mrb[0].mxu0
      %5410 = vmatprep.mubr.f32.mxu0 0.0
      %5411 = vmatmul.mubr.f32.gmra.mrb[0].mxu0 %v5277
      %v5412 = vpop.f32.mrb[0].mxu0
      %v5413 = vadd.f32 0.0, %v5412
      %v5414 = vpop.f32.mrb[0].mxu0
      %5415 = vmatprep.mubr.f32.mxu0 0.0
      %5416 = vmatmul.mubr.f32.gmra.mrb[0].mxu0 %v5280
      %v5417 = vpop.f32.mrb[0].mxu0
      %v5418 = vadd.f32 0.0, %v5417
      %v5419 = vpop.f32.mrb[0].mxu0
      %5420 = vmatprep.mubr.f32.mxu0 0.0
      %5421 = vmatmul.mubr.f32.gmra.mrb[0].mxu0 %v5283
      %v5422 = vpop.f32.mrb[0].mxu0
      %v5423 = vadd.f32 0.0, %v5422
      %v5424 = vpop.f32.mrb[0].mxu0
      %5425 = vmatprep.mubr.f32.mxu0 0.0
      %5426 = vmatmul.mubr.f32.gmra.mrb[0].mxu0 %v5286
      %v5427 = vpop.f32.mrb[0].mxu0
      %v5428 = vadd.f32 0.0, %v5427
      %v5429 = vpop.f32.mrb[0].mxu0
      %5430 = vmatprep.mubr.f32.mxu0 0.0
      %5431 = vmatmul.mubr.f32.gmra.mrb[0].mxu0 %v5289
      %v5432 = vpop.f32.mrb[0].mxu0
      %v5433 = vadd.f32 0.0, %v5432
      %v5434 = vpop.f32.mrb[0].mxu0
      %5435 = vdwg.mxu0
      %vm5436 = vcmp.gt.f32.partialorder %v5358, 0.0
      %vm5437 = vcmp.gt.f32.partialorder %v5363, 0.0
      %vm5438 = vcmp.gt.f32.partialorder %v5368, 0.0
      %vm5439 = vcmp.gt.f32.partialorder %v5373, 0.0
      %vm5440 = vcmp.gt.f32.partialorder %v5378, 0.0
      %vm5441 = vcmp.gt.f32.partialorder %v5383, 0.0
      %vm5442 = vcmp.gt.f32.partialorder %v5388, 0.0
      %vm5443 = vcmp.gt.f32.partialorder %v5393, 0.0
      %vm5444 = vcmp.gt.f32.partialorder %v5398, 0.0
      %vm5445 = vcmp.gt.f32.partialorder %v5403, 0.0
      %vm5446 = vcmp.gt.f32.partialorder %v5408, 0.0
      %vm5447 = vcmp.gt.f32.partialorder %v5413, 0.0
      %vm5448 = vcmp.gt.f32.partialorder %v5418, 0.0
      %vm5449 = vcmp.gt.f32.partialorder %v5423, 0.0
      %vm5450 = vcmp.gt.f32.partialorder %v5428, 0.0
      %vm5451 = vcmp.gt.f32.partialorder %v5433, 0.0
      %v5452 = vmul.f32 %v4781, %v5358
      %v5453 = vmul.f32 %v4781, %v5363
      %v5454 = vmul.f32 %v4781, %v5368
      %v5455 = vmul.f32 %v4781, %v5373
      %v5456 = vmul.f32 %v4781, %v5378
      %v5457 = vmul.f32 %v4781, %v5383
      %v5458 = vmul.f32 %v4781, %v5388
      %v5459 = vmul.f32 %v4781, %v5393
      %v5460 = vmul.f32 %v4781, %v5398
      %v5461 = vmul.f32 %v4781, %v5403
      %v5462 = vmul.f32 %v4781, %v5408
      %v5463 = vmul.f32 %v4781, %v5413
      %v5464 = vmul.f32 %v4781, %v5418
      %v5465 = vmul.f32 %v4781, %v5423
      %v5466 = vmul.f32 %v4781, %v5428
      %v5467 = vmul.f32 %v4781, %v5433
      %v5468 = vsel %vm5436, %v5358, %v5452
      %v5469 = vsel %vm5437, %v5363, %v5453
      %v5470 = vsel %vm5438, %v5368, %v5454
      %v5471 = vsel %vm5439, %v5373, %v5455
      %v5472 = vsel %vm5440, %v5378, %v5456
      %v5473 = vsel %vm5441, %v5383, %v5457
      %v5474 = vsel %vm5442, %v5388, %v5458
      %v5475 = vsel %vm5443, %v5393, %v5459
      %v5476 = vsel %vm5444, %v5398, %v5460
      %v5477 = vsel %vm5445, %v5403, %v5461
      %v5478 = vsel %vm5446, %v5408, %v5462
      %v5479 = vsel %vm5447, %v5413, %v5463
      %v5480 = vsel %vm5448, %v5418, %v5464
      %v5481 = vsel %vm5449, %v5423, %v5465
      %v5482 = vsel %vm5450, %v5428, %v5466
      %v5483 = vsel %vm5451, %v5433, %v5467
      %5484 = vmatprep.subr.mxu0 0.0
      %5485 = vmatpush1.msra.mxu0 %v4818
      %5486 = vmatprep.subr.mxu0 0.0
      %5487 = vmatpush1.msra.mxu0 %v4820
      %5488 = vmatprep.subr.mxu0 0.0
      %5489 = vmatpush1.msra.mxu0 %v4825
      %5490 = vmatprep.subr.mxu0 0.0
      %5491 = vmatpush1.msra.mxu0 0.0
      %5492 = vmatprep.subr.mxu0 0.0
      %5493 = vmatpush1.msra.mxu0 0.0
      %5494 = vmatprep.subr.mxu0 0.0
      %5495 = vmatpush1.msra.mxu0 0.0
      %5496 = vmatprep.subr.mxu0 0.0
      %5497 = vmatpush1.msra.mxu0 0.0
      %5498 = vmatprep.subr.mxu0 0.0
      %5499 = vmatpush1.msra.mxu0 0.0
      %5500 = vmatprep.subr.mxu0 0.0
      %5501 = vmatpush1.msra.mxu0 0.0
      %5502 = vmatprep.subr.mxu0 0.0
      %5503 = vmatpush1.msra.mxu0 0.0
      %5504 = vmatprep.subr.mxu0 0.0
      %5505 = vmatpush1.msra.mxu0 0.0
      %5506 = vmatprep.subr.mxu0 0.0
      %5507 = vmatpush1.msra.mxu0 0.0
      %5508 = vmatprep.subr.mxu0 0.0
      %5509 = vmatpush1.msra.mxu0 0.0
      %5510 = vmatprep.subr.mxu0 0.0
      %5511 = vmatpush1.msra.mxu0 0.0
      %5512 = vmatprep.subr.mxu0 0.0
      %5513 = vmatpush1.msra.mxu0 0.0
      %5514 = vmatprep.subr.mxu0 0.0
      %5515 = vmatpush1.msra.mxu0 0.0
      %5516 = vmatprep.subr.mxu0 0.0
      %5517 = vmatpush1.msra.mxu0 0.0
      %5518 = vmatprep.subr.mxu0 0.0
      %5519 = vmatpush1.msra.mxu0 0.0
      %5520 = vmatprep.subr.mxu0 0.0
      %5521 = vmatpush1.msra.mxu0 0.0
      %5522 = vmatprep.subr.mxu0 0.0
      %5523 = vmatpush1.msra.mxu0 0.0
      %5524 = vmatprep.subr.mxu0 0.0
      %5525 = vmatpush1.msra.mxu0 0.0
      %5526 = vmatprep.subr.mxu0 0.0
      %5527 = vmatpush1.msra.mxu0 0.0
      %5528 = vmatprep.subr.mxu0 0.0
      %5529 = vmatpush1.msra.mxu0 0.0
      %5530 = vmatprep.subr.mxu0 0.0
      %5531 = vmatpush1.msra.mxu0 0.0
      %5532 = vmatprep.subr.mxu0 0.0
      %5533 = vmatpush1.msra.mxu0 0.0
      %5534 = vmatprep.subr.mxu0 0.0
      %5535 = vmatpush1.msra.mxu0 0.0
      %5536 = vmatprep.subr.mxu0 0.0
      %5537 = vmatpush1.msra.mxu0 0.0
      %5538 = vmatprep.subr.mxu0 0.0
      %5539 = vmatpush1.msra.mxu0 0.0
      %5540 = vmatprep.subr.mxu0 0.0
      %5541 = vmatpush1.msra.mxu0 0.0
      %5542 = vmatprep.subr.mxu0 0.0
      %5543 = vmatpush1.msra.mxu0 0.0
      %5544 = vmatprep.subr.mxu0 0.0
      %5545 = vmatpush1.msra.mxu0 0.0
      %5546 = vmatprep.subr.mxu0 0.0
      %5547 = vmatpush1.msra.mxu0 0.0
      %5548 = vmatprep.mubr.f32.mxu0 0.0
      %5549 = vmatmul.mubr.f32.gmra.mrb[0].mxu0 %v5244
      %v5550 = vpop.f32.mrb[0].mxu0
      %v5551 = vadd.f32 0.0, %v5550
      %v5552 = vpop.f32.mrb[0].mxu0
      %5553 = vmatprep.mubr.f32.mxu0 0.0
      %5554 = vmatmul.mubr.f32.gmra.mrb[0].mxu0 %v5247
      %v5555 = vpop.f32.mrb[0].mxu0
      %v5556 = vadd.f32 0.0, %v5555
      %v5557 = vpop.f32.mrb[0].mxu0
      %5558 = vmatprep.mubr.f32.mxu0 0.0
      %5559 = vmatmul.mubr.f32.gmra.mrb[0].mxu0 %v5250
      %v5560 = vpop.f32.mrb[0].mxu0
      %v5561 = vadd.f32 0.0, %v5560
      %v5562 = vpop.f32.mrb[0].mxu0
      %5563 = vmatprep.mubr.f32.mxu0 0.0
      %5564 = vmatmul.mubr.f32.gmra.mrb[0].mxu0 %v5253
      %v5565 = vpop.f32.mrb[0].mxu0
      %v5566 = vadd.f32 0.0, %v5565
      %v5567 = vpop.f32.mrb[0].mxu0
      %5568 = vmatprep.mubr.f32.mxu0 0.0
      %5569 = vmatmul.mubr.f32.gmra.mrb[0].mxu0 %v5256
      %v5570 = vpop.f32.mrb[0].mxu0
      %v5571 = vadd.f32 0.0, %v5570
      %v5572 = vpop.f32.mrb[0].mxu0
      %5573 = vmatprep.mubr.f32.mxu0 0.0
      %5574 = vmatmul.mubr.f32.gmra.mrb[0].mxu0 %v5259
      %v5575 = vpop.f32.mrb[0].mxu0
      %v5576 = vadd.f32 0.0, %v5575
      %v5577 = vpop.f32.mrb[0].mxu0
      %5578 = vmatprep.mubr.f32.mxu0 0.0
      %5579 = vmatmul.mubr.f32.gmra.mrb[0].mxu0 %v5262
      %v5580 = vpop.f32.mrb[0].mxu0
      %v5581 = vadd.f32 0.0, %v5580
      %v5582 = vpop.f32.mrb[0].mxu0
      %5583 = vmatprep.mubr.f32.mxu0 0.0
      %5584 = vmatmul.mubr.f32.gmra.mrb[0].mxu0 %v5265
      %v5585 = vpop.f32.mrb[0].mxu0
      %v5586 = vadd.f32 0.0, %v5585
      %v5587 = vpop.f32.mrb[0].mxu0
      %5588 = vmatprep.mubr.f32.mxu0 0.0
      %5589 = vmatmul.mubr.f32.gmra.mrb[0].mxu0 %v5268
      %v5590 = vpop.f32.mrb[0].mxu0
      %v5591 = vadd.f32 0.0, %v5590
      %v5592 = vpop.f32.mrb[0].mxu0
      %5593 = vmatprep.mubr.f32.mxu0 0.0
      %5594 = vmatmul.mubr.f32.gmra.mrb[0].mxu0 %v5271
      %v5595 = vpop.f32.mrb[0].mxu0
      %v5596 = vadd.f32 0.0, %v5595
      %v5597 = vpop.f32.mrb[0].mxu0
      %5598 = vmatprep.mubr.f32.mxu0 0.0
      %5599 = vmatmul.mubr.f32.gmra.mrb[0].mxu0 %v5274
      %v5600 = vpop.f32.mrb[0].mxu0
      %v5601 = vadd.f32 0.0, %v5600
      %v5602 = vpop.f32.mrb[0].mxu0
      %5603 = vmatprep.mubr.f32.mxu0 0.0
      %5604 = vmatmul.mubr.f32.gmra.mrb[0].mxu0 %v5277
      %v5605 = vpop.f32.mrb[0].mxu0
      %v5606 = vadd.f32 0.0, %v5605
      %v5607 = vpop.f32.mrb[0].mxu0
      %5608 = vmatprep.mubr.f32.mxu0 0.0
      %5609 = vmatmul.mubr.f32.gmra.mrb[0].mxu0 %v5280
      %v5610 = vpop.f32.mrb[0].mxu0
      %v5611 = vadd.f32 0.0, %v5610
      %v5612 = vpop.f32.mrb[0].mxu0
      %5613 = vmatprep.mubr.f32.mxu0 0.0
      %5614 = vmatmul.mubr.f32.gmra.mrb[0].mxu0 %v5283
      %v5615 = vpop.f32.mrb[0].mxu0
      %v5616 = vadd.f32 0.0, %v5615
      %v5617 = vpop.f32.mrb[0].mxu0
      %5618 = vmatprep.mubr.f32.mxu0 0.0
      %5619 = vmatmul.mubr.f32.gmra.mrb[0].mxu0 %v5286
      %v5620 = vpop.f32.mrb[0].mxu0
      %v5621 = vadd.f32 0.0, %v5620
      %v5622 = vpop.f32.mrb[0].mxu0
      %5623 = vmatprep.mubr.f32.mxu0 0.0
      %5624 = vmatmul.mubr.f32.gmra.mrb[0].mxu0 %v5289
      %v5625 = vpop.f32.mrb[0].mxu0
      %v5626 = vadd.f32 0.0, %v5625
      %v5627 = vpop.f32.mrb[0].mxu0
      %5628 = vdwg.mxu0
      %vm5629 = vcmp.gt.f32.partialorder %v5551, 0.0
      %vm5630 = vcmp.gt.f32.partialorder %v5556, 0.0
      %vm5631 = vcmp.gt.f32.partialorder %v5561, 0.0
      %vm5632 = vcmp.gt.f32.partialorder %v5566, 0.0
      %vm5633 = vcmp.gt.f32.partialorder %v5571, 0.0
      %vm5634 = vcmp.gt.f32.partialorder %v5576, 0.0
      %vm5635 = vcmp.gt.f32.partialorder %v5581, 0.0
      %vm5636 = vcmp.gt.f32.partialorder %v5586, 0.0
      %vm5637 = vcmp.gt.f32.partialorder %v5591, 0.0
      %vm5638 = vcmp.gt.f32.partialorder %v5596, 0.0
      %vm5639 = vcmp.gt.f32.partialorder %v5601, 0.0
      %vm5640 = vcmp.gt.f32.partialorder %v5606, 0.0
      %vm5641 = vcmp.gt.f32.partialorder %v5611, 0.0
      %vm5642 = vcmp.gt.f32.partialorder %v5616, 0.0
      %vm5643 = vcmp.gt.f32.partialorder %v5621, 0.0
      %vm5644 = vcmp.gt.f32.partialorder %v5626, 0.0
      %v5645 = vmul.f32 %v4781, %v5551
      %v5646 = vmul.f32 %v4781, %v5556
      %v5647 = vmul.f32 %v4781, %v5561
      %v5648 = vmul.f32 %v4781, %v5566
      %v5649 = vmul.f32 %v4781, %v5571
      %v5650 = vmul.f32 %v4781, %v5576
      %v5651 = vmul.f32 %v4781, %v5581
      %v5652 = vmul.f32 %v4781, %v5586
      %v5653 = vmul.f32 %v4781, %v5591
      %v5654 = vmul.f32 %v4781, %v5596
      %v5655 = vmul.f32 %v4781, %v5601
      %v5656 = vmul.f32 %v4781, %v5606
      %v5657 = vmul.f32 %v4781, %v5611
      %v5658 = vmul.f32 %v4781, %v5616
      %v5659 = vmul.f32 %v4781, %v5621
      %v5660 = vmul.f32 %v4781, %v5626
      %v5661 = vsel %vm5629, %v5551, %v5645
      %v5662 = vsel %vm5630, %v5556, %v5646
      %v5663 = vsel %vm5631, %v5561, %v5647
      %v5664 = vsel %vm5632, %v5566, %v5648
      %v5665 = vsel %vm5633, %v5571, %v5649
      %v5666 = vsel %vm5634, %v5576, %v5650
      %v5667 = vsel %vm5635, %v5581, %v5651
      %v5668 = vsel %vm5636, %v5586, %v5652
      %v5669 = vsel %vm5637, %v5591, %v5653
      %v5670 = vsel %vm5638, %v5596, %v5654
      %v5671 = vsel %vm5639, %v5601, %v5655
      %v5672 = vsel %vm5640, %v5606, %v5656
      %v5673 = vsel %vm5641, %v5611, %v5657
      %v5674 = vsel %vm5642, %v5616, %v5658
      %v5675 = vsel %vm5643, %v5621, %v5659
      %v5676 = vsel %vm5644, %v5626, %v5660
      %5677 = vmatprep.subr.mxu0 0.0
      %5678 = vmatpush1.msra.mxu0 %v5024
      %5679 = vmatprep.subr.mxu0 0.0
      %5680 = vmatpush1.msra.mxu0 %v5026
      %5681 = vmatprep.subr.mxu0 0.0
      %5682 = vmatpush1.msra.mxu0 %v5031
      %5683 = vmatprep.subr.mxu0 0.0
      %5684 = vmatpush1.msra.mxu0 0.0
      %5685 = vmatprep.subr.mxu0 0.0
      %5686 = vmatpush1.msra.mxu0 0.0
      %5687 = vmatprep.subr.mxu0 0.0
      %5688 = vmatpush1.msra.mxu0 0.0
      %5689 = vmatprep.subr.mxu0 0.0
      %5690 = vmatpush1.msra.mxu0 0.0
      %5691 = vmatprep.subr.mxu0 0.0
      %5692 = vmatpush1.msra.mxu0 0.0
      %5693 = vmatprep.subr.mxu0 0.0
      %5694 = vmatpush1.msra.mxu0 0.0
      %5695 = vmatprep.subr.mxu0 0.0
      %5696 = vmatpush1.msra.mxu0 0.0
      %5697 = vmatprep.subr.mxu0 0.0
      %5698 = vmatpush1.msra.mxu0 0.0
      %5699 = vmatprep.subr.mxu0 0.0
      %5700 = vmatpush1.msra.mxu0 0.0
      %5701 = vmatprep.subr.mxu0 0.0
      %5702 = vmatpush1.msra.mxu0 0.0
      %5703 = vmatprep.subr.mxu0 0.0
      %5704 = vmatpush1.msra.mxu0 0.0
      %5705 = vmatprep.subr.mxu0 0.0
      %5706 = vmatpush1.msra.mxu0 0.0
      %5707 = vmatprep.subr.mxu0 0.0
      %5708 = vmatpush1.msra.mxu0 0.0
      %5709 = vmatprep.subr.mxu0 0.0
      %5710 = vmatpush1.msra.mxu0 0.0
      %5711 = vmatprep.subr.mxu0 0.0
      %5712 = vmatpush1.msra.mxu0 0.0
      %5713 = vmatprep.subr.mxu0 0.0
      %5714 = vmatpush1.msra.mxu0 0.0
      %5715 = vmatprep.subr.mxu0 0.0
      %5716 = vmatpush1.msra.mxu0 0.0
      %5717 = vmatprep.subr.mxu0 0.0
      %5718 = vmatpush1.msra.mxu0 0.0
      %5719 = vmatprep.subr.mxu0 0.0
      %5720 = vmatpush1.msra.mxu0 0.0
      %5721 = vmatprep.subr.mxu0 0.0
      %5722 = vmatpush1.msra.mxu0 0.0
      %5723 = vmatprep.subr.mxu0 0.0
      %5724 = vmatpush1.msra.mxu0 0.0
      %5725 = vmatprep.subr.mxu0 0.0
      %5726 = vmatpush1.msra.mxu0 0.0
      %5727 = vmatprep.subr.mxu0 0.0
      %5728 = vmatpush1.msra.mxu0 0.0
      %5729 = vmatprep.subr.mxu0 0.0
      %5730 = vmatpush1.msra.mxu0 0.0
      %5731 = vmatprep.subr.mxu0 0.0
      %5732 = vmatpush1.msra.mxu0 0.0
      %5733 = vmatprep.subr.mxu0 0.0
      %5734 = vmatpush1.msra.mxu0 0.0
      %5735 = vmatprep.subr.mxu0 0.0
      %5736 = vmatpush1.msra.mxu0 0.0
      %5737 = vmatprep.subr.mxu0 0.0
      %5738 = vmatpush1.msra.mxu0 0.0
      %5739 = vmatprep.subr.mxu0 0.0
      %5740 = vmatpush1.msra.mxu0 0.0
      %5741 = vmatprep.mubr.f32.mxu0 0.0
      %5742 = vmatmul.mubr.f32.gmra.mrb[0].mxu0 %v5244
      %v5743 = vpop.f32.mrb[0].mxu0
      %v5744 = vadd.f32 0.0, %v5743
      %v5745 = vpop.f32.mrb[0].mxu0
      %5746 = vmatprep.mubr.f32.mxu0 0.0
      %5747 = vmatmul.mubr.f32.gmra.mrb[0].mxu0 %v5247
      %v5748 = vpop.f32.mrb[0].mxu0
      %v5749 = vadd.f32 0.0, %v5748
      %v5750 = vpop.f32.mrb[0].mxu0
      %5751 = vmatprep.mubr.f32.mxu0 0.0
      %5752 = vmatmul.mubr.f32.gmra.mrb[0].mxu0 %v5250
      %v5753 = vpop.f32.mrb[0].mxu0
      %v5754 = vadd.f32 0.0, %v5753
      %v5755 = vpop.f32.mrb[0].mxu0
      %5756 = vmatprep.mubr.f32.mxu0 0.0
      %5757 = vmatmul.mubr.f32.gmra.mrb[0].mxu0 %v5253
      %v5758 = vpop.f32.mrb[0].mxu0
      %v5759 = vadd.f32 0.0, %v5758
      %v5760 = vpop.f32.mrb[0].mxu0
      %5761 = vmatprep.mubr.f32.mxu0 0.0
      %5762 = vmatmul.mubr.f32.gmra.mrb[0].mxu0 %v5256
      %v5763 = vpop.f32.mrb[0].mxu0
      %v5764 = vadd.f32 0.0, %v5763
      %v5765 = vpop.f32.mrb[0].mxu0
      %5766 = vmatprep.mubr.f32.mxu0 0.0
      %5767 = vmatmul.mubr.f32.gmra.mrb[0].mxu0 %v5259
      %v5768 = vpop.f32.mrb[0].mxu0
      %v5769 = vadd.f32 0.0, %v5768
      %v5770 = vpop.f32.mrb[0].mxu0
      %5771 = vmatprep.mubr.f32.mxu0 0.0
      %5772 = vmatmul.mubr.f32.gmra.mrb[0].mxu0 %v5262
      %v5773 = vpop.f32.mrb[0].mxu0
      %v5774 = vadd.f32 0.0, %v5773
      %v5775 = vpop.f32.mrb[0].mxu0
      %5776 = vmatprep.mubr.f32.mxu0 0.0
      %5777 = vmatmul.mubr.f32.gmra.mrb[0].mxu0 %v5265
      %v5778 = vpop.f32.mrb[0].mxu0
      %v5779 = vadd.f32 0.0, %v5778
      %v5780 = vpop.f32.mrb[0].mxu0
      %5781 = vmatprep.mubr.f32.mxu0 0.0
      %5782 = vmatmul.mubr.f32.gmra.mrb[0].mxu0 %v5268
      %v5783 = vpop.f32.mrb[0].mxu0
      %v5784 = vadd.f32 0.0, %v5783
      %v5785 = vpop.f32.mrb[0].mxu0
      %5786 = vmatprep.mubr.f32.mxu0 0.0
      %5787 = vmatmul.mubr.f32.gmra.mrb[0].mxu0 %v5271
      %v5788 = vpop.f32.mrb[0].mxu0
      %v5789 = vadd.f32 0.0, %v5788
      %v5790 = vpop.f32.mrb[0].mxu0
      %5791 = vmatprep.mubr.f32.mxu0 0.0
      %5792 = vmatmul.mubr.f32.gmra.mrb[0].mxu0 %v5274
      %v5793 = vpop.f32.mrb[0].mxu0
      %v5794 = vadd.f32 0.0, %v5793
      %v5795 = vpop.f32.mrb[0].mxu0
      %5796 = vmatprep.mubr.f32.mxu0 0.0
      %5797 = vmatmul.mubr.f32.gmra.mrb[0].mxu0 %v5277
      %v5798 = vpop.f32.mrb[0].mxu0
      %v5799 = vadd.f32 0.0, %v5798
      %v5800 = vpop.f32.mrb[0].mxu0
      %5801 = vmatprep.mubr.f32.mxu0 0.0
      %5802 = vmatmul.mubr.f32.gmra.mrb[0].mxu0 %v5280
      %v5803 = vpop.f32.mrb[0].mxu0
      %v5804 = vadd.f32 0.0, %v5803
      %v5805 = vpop.f32.mrb[0].mxu0
      %5806 = vmatprep.mubr.f32.mxu0 0.0
      %5807 = vmatmul.mubr.f32.gmra.mrb[0].mxu0 %v5283
      %v5808 = vpop.f32.mrb[0].mxu0
      %v5809 = vadd.f32 0.0, %v5808
      %v5810 = vpop.f32.mrb[0].mxu0
      %5811 = vmatprep.mubr.f32.mxu0 0.0
      %5812 = vmatmul.mubr.f32.gmra.mrb[0].mxu0 %v5286
      %v5813 = vpop.f32.mrb[0].mxu0
      %v5814 = vadd.f32 0.0, %v5813
      %v5815 = vpop.f32.mrb[0].mxu0
      %5816 = vmatprep.mubr.f32.mxu0 0.0
      %5817 = vmatmul.mubr.f32.gmra.mrb[0].mxu0 %v5289
      %v5818 = vpop.f32.mrb[0].mxu0
      %v5819 = vadd.f32 0.0, %v5818
      %v5820 = vpop.f32.mrb[0].mxu0
      %5821 = vdwg.mxu0
      %vm5822 = vcmp.gt.f32.partialorder %v5744, 0.0
      %vm5823 = vcmp.gt.f32.partialorder %v5749, 0.0
      %vm5824 = vcmp.gt.f32.partialorder %v5754, 0.0
      %vm5825 = vcmp.gt.f32.partialorder %v5759, 0.0
      %vm5826 = vcmp.gt.f32.partialorder %v5764, 0.0
      %vm5827 = vcmp.gt.f32.partialorder %v5769, 0.0
      %vm5828 = vcmp.gt.f32.partialorder %v5774, 0.0
      %vm5829 = vcmp.gt.f32.partialorder %v5779, 0.0
      %vm5830 = vcmp.gt.f32.partialorder %v5784, 0.0
      %vm5831 = vcmp.gt.f32.partialorder %v5789, 0.0
      %vm5832 = vcmp.gt.f32.partialorder %v5794, 0.0
      %vm5833 = vcmp.gt.f32.partialorder %v5799, 0.0
      %vm5834 = vcmp.gt.f32.partialorder %v5804, 0.0
      %vm5835 = vcmp.gt.f32.partialorder %v5809, 0.0
      %vm5836 = vcmp.gt.f32.partialorder %v5814, 0.0
      %vm5837 = vcmp.gt.f32.partialorder %v5819, 0.0
      %v5838 = vmul.f32 %v4781, %v5744
      %v5839 = vmul.f32 %v4781, %v5749
      %v5840 = vmul.f32 %v4781, %v5754
      %v5841 = vmul.f32 %v4781, %v5759
      %v5842 = vmul.f32 %v4781, %v5764
      %v5843 = vmul.f32 %v4781, %v5769
      %v5844 = vmul.f32 %v4781, %v5774
      %v5845 = vmul.f32 %v4781, %v5779
      %v5846 = vmul.f32 %v4781, %v5784
      %v5847 = vmul.f32 %v4781, %v5789
      %v5848 = vmul.f32 %v4781, %v5794
      %v5849 = vmul.f32 %v4781, %v5799
      %v5850 = vmul.f32 %v4781, %v5804
      %v5851 = vmul.f32 %v4781, %v5809
      %v5852 = vmul.f32 %v4781, %v5814
      %v5853 = vmul.f32 %v4781, %v5819
      %v5854 = vsel %vm5822, %v5744, %v5838
      %v5855 = vsel %vm5823, %v5749, %v5839
      %v5856 = vsel %vm5824, %v5754, %v5840
      %v5857 = vsel %vm5825, %v5759, %v5841
      %v5858 = vsel %vm5826, %v5764, %v5842
      %v5859 = vsel %vm5827, %v5769, %v5843
      %v5860 = vsel %vm5828, %v5774, %v5844
      %v5861 = vsel %vm5829, %v5779, %v5845
      %v5862 = vsel %vm5830, %v5784, %v5846
      %v5863 = vsel %vm5831, %v5789, %v5847
      %v5864 = vsel %vm5832, %v5794, %v5848
      %v5865 = vsel %vm5833, %v5799, %v5849
      %v5866 = vsel %vm5834, %v5804, %v5850
      %v5867 = vsel %vm5835, %v5809, %v5851
      %v5868 = vsel %vm5836, %v5814, %v5852
      %v5869 = vsel %vm5837, %v5819, %v5853
      %s5870 = scalar_lea.vmem %s5, 256
      %v5871 = vld [vmem:[%s5870] sm:$0xff]
      %v5872 = vld [vmem:[%s5870 + $0x8] sm:$0xff]
      %v5873 = vld [vmem:[%s5870 + $0x10] sm:$0xff]
      %v5874 = vld [vmem:[%s5870 + $0x18] sm:$0xff]
      %v5875 = vld [vmem:[%s5870 + $0x20] sm:$0xff]
      %v5876 = vld [vmem:[%s5870 + $0x28] sm:$0xff]
      %v5877 = vld [vmem:[%s5870 + $0x30] sm:$0xff]
      %v5878 = vld [vmem:[%s5870 + $0x38] sm:$0xff]
      %v5879 = vld [vmem:[%s5870 + $0x40] sm:$0xff]
      %v5880 = vld [vmem:[%s5870 + $0x48] sm:$0xff]
      %v5881 = vld [vmem:[%s5870 + $0x50] sm:$0xff]
      %v5882 = vld [vmem:[%s5870 + $0x58] sm:$0xff]
      %v5883 = vld [vmem:[%s5870 + $0x60] sm:$0xff]
      %v5884 = vld [vmem:[%s5870 + $0x68] sm:$0xff]
      %v5885 = vld [vmem:[%s5870 + $0x70] sm:$0xff]
      %v5886 = vld [vmem:[%s5870 + $0x78] sm:$0xff]
      %v5888 = vsel %vm4567, %v5871, 0
      %v5891 = vsel %vm4567, %v5872, 0
      %v5894 = vsel %vm4567, %v5873, 0
      %v5897 = vsel %vm4567, %v5874, 0
      %v5900 = vsel %vm4567, %v5875, 0
      %v5903 = vsel %vm4567, %v5876, 0
      %v5906 = vsel %vm4567, %v5877, 0
      %v5909 = vsel %vm4567, %v5878, 0
      %v5912 = vsel %vm4567, %v5879, 0
      %v5915 = vsel %vm4567, %v5880, 0
      %v5918 = vsel %vm4567, %v5881, 0
      %v5921 = vsel %vm4567, %v5882, 0
      %v5924 = vsel %vm4567, %v5883, 0
      %v5927 = vsel %vm4567, %v5884, 0
      %v5930 = vsel %vm4567, %v5885, 0
      %v5933 = vsel %vm4567, %v5886, 0
      %5935 = vmatprep.subr.mxu0 0.0
      %5936 = vmatpush1.msra.mxu0 %v3382
      %5937 = vmatprep.subr.mxu0 0.0
      %5938 = vmatpush1.msra.mxu0 %v3383
      %5939 = vmatprep.subr.mxu0 0.0
      %5940 = vmatpush1.msra.mxu0 %v4618
      %5941 = vmatprep.subr.mxu0 0.0
      %5942 = vmatpush1.msra.mxu0 0.0
      %5943 = vmatprep.subr.mxu0 0.0
      %5944 = vmatpush1.msra.mxu0 0.0
      %5945 = vmatprep.subr.mxu0 0.0
      %5946 = vmatpush1.msra.mxu0 0.0
      %5947 = vmatprep.subr.mxu0 0.0
      %5948 = vmatpush1.msra.mxu0 0.0
      %5949 = vmatprep.subr.mxu0 0.0
      %5950 = vmatpush1.msra.mxu0 0.0
      %5951 = vmatprep.subr.mxu0 0.0
      %5952 = vmatpush1.msra.mxu0 0.0
      %5953 = vmatprep.subr.mxu0 0.0
      %5954 = vmatpush1.msra.mxu0 0.0
      %5955 = vmatprep.subr.mxu0 0.0
      %5956 = vmatpush1.msra.mxu0 0.0
      %5957 = vmatprep.subr.mxu0 0.0
      %5958 = vmatpush1.msra.mxu0 0.0
      %5959 = vmatprep.subr.mxu0 0.0
      %5960 = vmatpush1.msra.mxu0 0.0
      %5961 = vmatprep.subr.mxu0 0.0
      %5962 = vmatpush1.msra.mxu0 0.0
      %5963 = vmatprep.subr.mxu0 0.0
      %5964 = vmatpush1.msra.mxu0 0.0
      %5965 = vmatprep.subr.mxu0 0.0
      %5966 = vmatpush1.msra.mxu0 0.0
      %5967 = vmatprep.subr.mxu0 0.0
      %5968 = vmatpush1.msra.mxu0 0.0
      %5969 = vmatprep.subr.mxu0 0.0
      %5970 = vmatpush1.msra.mxu0 0.0
      %5971 = vmatprep.subr.mxu0 0.0
      %5972 = vmatpush1.msra.mxu0 0.0
      %5973 = vmatprep.subr.mxu0 0.0
      %5974 = vmatpush1.msra.mxu0 0.0
      %5975 = vmatprep.subr.mxu0 0.0
      %5976 = vmatpush1.msra.mxu0 0.0
      %5977 = vmatprep.subr.mxu0 0.0
      %5978 = vmatpush1.msra.mxu0 0.0
      %5979 = vmatprep.subr.mxu0 0.0
      %5980 = vmatpush1.msra.mxu0 0.0
      %5981 = vmatprep.subr.mxu0 0.0
      %5982 = vmatpush1.msra.mxu0 0.0
      %5983 = vmatprep.subr.mxu0 0.0
      %5984 = vmatpush1.msra.mxu0 0.0
      %5985 = vmatprep.subr.mxu0 0.0
      %5986 = vmatpush1.msra.mxu0 0.0
      %5987 = vmatprep.subr.mxu0 0.0
      %5988 = vmatpush1.msra.mxu0 0.0
      %5989 = vmatprep.subr.mxu0 0.0
      %5990 = vmatpush1.msra.mxu0 0.0
      %5991 = vmatprep.subr.mxu0 0.0
      %5992 = vmatpush1.msra.mxu0 0.0
      %5993 = vmatprep.subr.mxu0 0.0
      %5994 = vmatpush1.msra.mxu0 0.0
      %5995 = vmatprep.subr.mxu0 0.0
      %5996 = vmatpush1.msra.mxu0 0.0
      %5997 = vmatprep.subr.mxu0 0.0
      %5998 = vmatpush1.msra.mxu0 0.0
      %5999 = vmatprep.mubr.f32.mxu0 0.0
      %6000 = vmatmul.mubr.f32.gmra.mrb[0].mxu0 %v5888
      %v6001 = vpop.f32.mrb[0].mxu0
      %v6002 = vadd.f32 0.0, %v6001
      %v6003 = vpop.f32.mrb[0].mxu0
      %6004 = vmatprep.mubr.f32.mxu0 0.0
      %6005 = vmatmul.mubr.f32.gmra.mrb[0].mxu0 %v5891
      %v6006 = vpop.f32.mrb[0].mxu0
      %v6007 = vadd.f32 0.0, %v6006
      %v6008 = vpop.f32.mrb[0].mxu0
      %6009 = vmatprep.mubr.f32.mxu0 0.0
      %6010 = vmatmul.mubr.f32.gmra.mrb[0].mxu0 %v5894
      %v6011 = vpop.f32.mrb[0].mxu0
      %v6012 = vadd.f32 0.0, %v6011
      %v6013 = vpop.f32.mrb[0].mxu0
      %6014 = vmatprep.mubr.f32.mxu0 0.0
      %6015 = vmatmul.mubr.f32.gmra.mrb[0].mxu0 %v5897
      %v6016 = vpop.f32.mrb[0].mxu0
      %v6017 = vadd.f32 0.0, %v6016
      %v6018 = vpop.f32.mrb[0].mxu0
      %6019 = vmatprep.mubr.f32.mxu0 0.0
      %6020 = vmatmul.mubr.f32.gmra.mrb[0].mxu0 %v5900
      %v6021 = vpop.f32.mrb[0].mxu0
      %v6022 = vadd.f32 0.0, %v6021
      %v6023 = vpop.f32.mrb[0].mxu0
      %6024 = vmatprep.mubr.f32.mxu0 0.0
      %6025 = vmatmul.mubr.f32.gmra.mrb[0].mxu0 %v5903
      %v6026 = vpop.f32.mrb[0].mxu0
      %v6027 = vadd.f32 0.0, %v6026
      %v6028 = vpop.f32.mrb[0].mxu0
      %6029 = vmatprep.mubr.f32.mxu0 0.0
      %6030 = vmatmul.mubr.f32.gmra.mrb[0].mxu0 %v5906
      %v6031 = vpop.f32.mrb[0].mxu0
      %v6032 = vadd.f32 0.0, %v6031
      %v6033 = vpop.f32.mrb[0].mxu0
      %6034 = vmatprep.mubr.f32.mxu0 0.0
      %6035 = vmatmul.mubr.f32.gmra.mrb[0].mxu0 %v5909
      %v6036 = vpop.f32.mrb[0].mxu0
      %v6037 = vadd.f32 0.0, %v6036
      %v6038 = vpop.f32.mrb[0].mxu0
      %6039 = vmatprep.mubr.f32.mxu0 0.0
      %6040 = vmatmul.mubr.f32.gmra.mrb[0].mxu0 %v5912
      %v6041 = vpop.f32.mrb[0].mxu0
      %v6042 = vadd.f32 0.0, %v6041
      %v6043 = vpop.f32.mrb[0].mxu0
      %6044 = vmatprep.mubr.f32.mxu0 0.0
      %6045 = vmatmul.mubr.f32.gmra.mrb[0].mxu0 %v5915
      %v6046 = vpop.f32.mrb[0].mxu0
      %v6047 = vadd.f32 0.0, %v6046
      %v6048 = vpop.f32.mrb[0].mxu0
      %6049 = vmatprep.mubr.f32.mxu0 0.0
      %6050 = vmatmul.mubr.f32.gmra.mrb[0].mxu0 %v5918
      %v6051 = vpop.f32.mrb[0].mxu0
      %v6052 = vadd.f32 0.0, %v6051
      %v6053 = vpop.f32.mrb[0].mxu0
      %6054 = vmatprep.mubr.f32.mxu0 0.0
      %6055 = vmatmul.mubr.f32.gmra.mrb[0].mxu0 %v5921
      %v6056 = vpop.f32.mrb[0].mxu0
      %v6057 = vadd.f32 0.0, %v6056
      %v6058 = vpop.f32.mrb[0].mxu0
      %6059 = vmatprep.mubr.f32.mxu0 0.0
      %6060 = vmatmul.mubr.f32.gmra.mrb[0].mxu0 %v5924
      %v6061 = vpop.f32.mrb[0].mxu0
      %v6062 = vadd.f32 0.0, %v6061
      %v6063 = vpop.f32.mrb[0].mxu0
      %6064 = vmatprep.mubr.f32.mxu0 0.0
      %6065 = vmatmul.mubr.f32.gmra.mrb[0].mxu0 %v5927
      %v6066 = vpop.f32.mrb[0].mxu0
      %v6067 = vadd.f32 0.0, %v6066
      %v6068 = vpop.f32.mrb[0].mxu0
      %6069 = vmatprep.mubr.f32.mxu0 0.0
      %6070 = vmatmul.mubr.f32.gmra.mrb[0].mxu0 %v5930
      %v6071 = vpop.f32.mrb[0].mxu0
      %v6072 = vadd.f32 0.0, %v6071
      %v6073 = vpop.f32.mrb[0].mxu0
      %6074 = vmatprep.mubr.f32.mxu0 0.0
      %6075 = vmatmul.mubr.f32.gmra.mrb[0].mxu0 %v5933
      %v6076 = vpop.f32.mrb[0].mxu0
      %v6077 = vadd.f32 0.0, %v6076
      %v6078 = vpop.f32.mrb[0].mxu0
      %6079 = vdwg.mxu0
      %vm6080 = vcmp.gt.f32.partialorder %v6002, 0.0
      %vm6081 = vcmp.gt.f32.partialorder %v6007, 0.0
      %vm6082 = vcmp.gt.f32.partialorder %v6012, 0.0
      %vm6083 = vcmp.gt.f32.partialorder %v6017, 0.0
      %vm6084 = vcmp.gt.f32.partialorder %v6022, 0.0
      %vm6085 = vcmp.gt.f32.partialorder %v6027, 0.0
      %vm6086 = vcmp.gt.f32.partialorder %v6032, 0.0
      %vm6087 = vcmp.gt.f32.partialorder %v6037, 0.0
      %vm6088 = vcmp.gt.f32.partialorder %v6042, 0.0
      %vm6089 = vcmp.gt.f32.partialorder %v6047, 0.0
      %vm6090 = vcmp.gt.f32.partialorder %v6052, 0.0
      %vm6091 = vcmp.gt.f32.partialorder %v6057, 0.0
      %vm6092 = vcmp.gt.f32.partialorder %v6062, 0.0
      %vm6093 = vcmp.gt.f32.partialorder %v6067, 0.0
      %vm6094 = vcmp.gt.f32.partialorder %v6072, 0.0
      %vm6095 = vcmp.gt.f32.partialorder %v6077, 0.0
      %v6096 = vmul.f32 %v4781, %v6002
      %v6097 = vmul.f32 %v4781, %v6007
      %v6098 = vmul.f32 %v4781, %v6012
      %v6099 = vmul.f32 %v4781, %v6017
      %v6100 = vmul.f32 %v4781, %v6022
      %v6101 = vmul.f32 %v4781, %v6027
      %v6102 = vmul.f32 %v4781, %v6032
      %v6103 = vmul.f32 %v4781, %v6037
      %v6104 = vmul.f32 %v4781, %v6042
      %v6105 = vmul.f32 %v4781, %v6047
      %v6106 = vmul.f32 %v4781, %v6052
      %v6107 = vmul.f32 %v4781, %v6057
      %v6108 = vmul.f32 %v4781, %v6062
      %v6109 = vmul.f32 %v4781, %v6067
      %v6110 = vmul.f32 %v4781, %v6072
      %v6111 = vmul.f32 %v4781, %v6077
      %v6112 = vsel %vm6080, %v6002, %v6096
      %v6113 = vsel %vm6081, %v6007, %v6097
      %v6114 = vsel %vm6082, %v6012, %v6098
      %v6115 = vsel %vm6083, %v6017, %v6099
      %v6116 = vsel %vm6084, %v6022, %v6100
      %v6117 = vsel %vm6085, %v6027, %v6101
      %v6118 = vsel %vm6086, %v6032, %v6102
      %v6119 = vsel %vm6087, %v6037, %v6103
      %v6120 = vsel %vm6088, %v6042, %v6104
      %v6121 = vsel %vm6089, %v6047, %v6105
      %v6122 = vsel %vm6090, %v6052, %v6106
      %v6123 = vsel %vm6091, %v6057, %v6107
      %v6124 = vsel %vm6092, %v6062, %v6108
      %v6125 = vsel %vm6093, %v6067, %v6109
      %v6126 = vsel %vm6094, %v6072, %v6110
      %v6127 = vsel %vm6095, %v6077, %v6111
      %6128 = vmatprep.subr.mxu0 0.0
      %6129 = vmatpush1.msra.mxu0 %v4818
      %6130 = vmatprep.subr.mxu0 0.0
      %6131 = vmatpush1.msra.mxu0 %v4820
      %6132 = vmatprep.subr.mxu0 0.0
      %6133 = vmatpush1.msra.mxu0 %v4825
      %6134 = vmatprep.subr.mxu0 0.0
      %6135 = vmatpush1.msra.mxu0 0.0
      %6136 = vmatprep.subr.mxu0 0.0
      %6137 = vmatpush1.msra.mxu0 0.0
      %6138 = vmatprep.subr.mxu0 0.0
      %6139 = vmatpush1.msra.mxu0 0.0
      %6140 = vmatprep.subr.mxu0 0.0
      %6141 = vmatpush1.msra.mxu0 0.0
      %6142 = vmatprep.subr.mxu0 0.0
      %6143 = vmatpush1.msra.mxu0 0.0
      %6144 = vmatprep.subr.mxu0 0.0
      %6145 = vmatpush1.msra.mxu0 0.0
      %6146 = vmatprep.subr.mxu0 0.0
      %6147 = vmatpush1.msra.mxu0 0.0
      %6148 = vmatprep.subr.mxu0 0.0
      %6149 = vmatpush1.msra.mxu0 0.0
      %6150 = vmatprep.subr.mxu0 0.0
      %6151 = vmatpush1.msra.mxu0 0.0
      %6152 = vmatprep.subr.mxu0 0.0
      %6153 = vmatpush1.msra.mxu0 0.0
      %6154 = vmatprep.subr.mxu0 0.0
      %6155 = vmatpush1.msra.mxu0 0.0
      %6156 = vmatprep.subr.mxu0 0.0
      %6157 = vmatpush1.msra.mxu0 0.0
      %6158 = vmatprep.subr.mxu0 0.0
      %6159 = vmatpush1.msra.mxu0 0.0
      %6160 = vmatprep.subr.mxu0 0.0
      %6161 = vmatpush1.msra.mxu0 0.0
      %6162 = vmatprep.subr.mxu0 0.0
      %6163 = vmatpush1.msra.mxu0 0.0
      %6164 = vmatprep.subr.mxu0 0.0
      %6165 = vmatpush1.msra.mxu0 0.0
      %6166 = vmatprep.subr.mxu0 0.0
      %6167 = vmatpush1.msra.mxu0 0.0
      %6168 = vmatprep.subr.mxu0 0.0
      %6169 = vmatpush1.msra.mxu0 0.0
      %6170 = vmatprep.subr.mxu0 0.0
      %6171 = vmatpush1.msra.mxu0 0.0
      %6172 = vmatprep.subr.mxu0 0.0
      %6173 = vmatpush1.msra.mxu0 0.0
      %6174 = vmatprep.subr.mxu0 0.0
      %6175 = vmatpush1.msra.mxu0 0.0
      %6176 = vmatprep.subr.mxu0 0.0
      %6177 = vmatpush1.msra.mxu0 0.0
      %6178 = vmatprep.subr.mxu0 0.0
      %6179 = vmatpush1.msra.mxu0 0.0
      %6180 = vmatprep.subr.mxu0 0.0
      %6181 = vmatpush1.msra.mxu0 0.0
      %6182 = vmatprep.subr.mxu0 0.0
      %6183 = vmatpush1.msra.mxu0 0.0
      %6184 = vmatprep.subr.mxu0 0.0
      %6185 = vmatpush1.msra.mxu0 0.0
      %6186 = vmatprep.subr.mxu0 0.0
      %6187 = vmatpush1.msra.mxu0 0.0
      %6188 = vmatprep.subr.mxu0 0.0
      %6189 = vmatpush1.msra.mxu0 0.0
      %6190 = vmatprep.subr.mxu0 0.0
      %6191 = vmatpush1.msra.mxu0 0.0
      %6192 = vmatprep.mubr.f32.mxu0 0.0
      %6193 = vmatmul.mubr.f32.gmra.mrb[0].mxu0 %v5888
      %v6194 = vpop.f32.mrb[0].mxu0
      %v6195 = vadd.f32 0.0, %v6194
      %v6196 = vpop.f32.mrb[0].mxu0
      %6197 = vmatprep.mubr.f32.mxu0 0.0
      %6198 = vmatmul.mubr.f32.gmra.mrb[0].mxu0 %v5891
      %v6199 = vpop.f32.mrb[0].mxu0
      %v6200 = vadd.f32 0.0, %v6199
      %v6201 = vpop.f32.mrb[0].mxu0
      %6202 = vmatprep.mubr.f32.mxu0 0.0
      %6203 = vmatmul.mubr.f32.gmra.mrb[0].mxu0 %v5894
      %v6204 = vpop.f32.mrb[0].mxu0
      %v6205 = vadd.f32 0.0, %v6204
      %v6206 = vpop.f32.mrb[0].mxu0
      %6207 = vmatprep.mubr.f32.mxu0 0.0
      %6208 = vmatmul.mubr.f32.gmra.mrb[0].mxu0 %v5897
      %v6209 = vpop.f32.mrb[0].mxu0
      %v6210 = vadd.f32 0.0, %v6209
      %v6211 = vpop.f32.mrb[0].mxu0
      %6212 = vmatprep.mubr.f32.mxu0 0.0
      %6213 = vmatmul.mubr.f32.gmra.mrb[0].mxu0 %v5900
      %v6214 = vpop.f32.mrb[0].mxu0
      %v6215 = vadd.f32 0.0, %v6214
      %v6216 = vpop.f32.mrb[0].mxu0
      %6217 = vmatprep.mubr.f32.mxu0 0.0
      %6218 = vmatmul.mubr.f32.gmra.mrb[0].mxu0 %v5903
      %v6219 = vpop.f32.mrb[0].mxu0
      %v6220 = vadd.f32 0.0, %v6219
      %v6221 = vpop.f32.mrb[0].mxu0
      %6222 = vmatprep.mubr.f32.mxu0 0.0
      %6223 = vmatmul.mubr.f32.gmra.mrb[0].mxu0 %v5906
      %v6224 = vpop.f32.mrb[0].mxu0
      %v6225 = vadd.f32 0.0, %v6224
      %v6226 = vpop.f32.mrb[0].mxu0
      %6227 = vmatprep.mubr.f32.mxu0 0.0
      %6228 = vmatmul.mubr.f32.gmra.mrb[0].mxu0 %v5909
      %v6229 = vpop.f32.mrb[0].mxu0
      %v6230 = vadd.f32 0.0, %v6229
      %v6231 = vpop.f32.mrb[0].mxu0
      %6232 = vmatprep.mubr.f32.mxu0 0.0
      %6233 = vmatmul.mubr.f32.gmra.mrb[0].mxu0 %v5912
      %v6234 = vpop.f32.mrb[0].mxu0
      %v6235 = vadd.f32 0.0, %v6234
      %v6236 = vpop.f32.mrb[0].mxu0
      %6237 = vmatprep.mubr.f32.mxu0 0.0
      %6238 = vmatmul.mubr.f32.gmra.mrb[0].mxu0 %v5915
      %v6239 = vpop.f32.mrb[0].mxu0
      %v6240 = vadd.f32 0.0, %v6239
      %v6241 = vpop.f32.mrb[0].mxu0
      %6242 = vmatprep.mubr.f32.mxu0 0.0
      %6243 = vmatmul.mubr.f32.gmra.mrb[0].mxu0 %v5918
      %v6244 = vpop.f32.mrb[0].mxu0
      %v6245 = vadd.f32 0.0, %v6244
      %v6246 = vpop.f32.mrb[0].mxu0
      %6247 = vmatprep.mubr.f32.mxu0 0.0
      %6248 = vmatmul.mubr.f32.gmra.mrb[0].mxu0 %v5921
      %v6249 = vpop.f32.mrb[0].mxu0
      %v6250 = vadd.f32 0.0, %v6249
      %v6251 = vpop.f32.mrb[0].mxu0
      %6252 = vmatprep.mubr.f32.mxu0 0.0
      %6253 = vmatmul.mubr.f32.gmra.mrb[0].mxu0 %v5924
      %v6254 = vpop.f32.mrb[0].mxu0
      %v6255 = vadd.f32 0.0, %v6254
      %v6256 = vpop.f32.mrb[0].mxu0
      %6257 = vmatprep.mubr.f32.mxu0 0.0
      %6258 = vmatmul.mubr.f32.gmra.mrb[0].mxu0 %v5927
      %v6259 = vpop.f32.mrb[0].mxu0
      %v6260 = vadd.f32 0.0, %v6259
      %v6261 = vpop.f32.mrb[0].mxu0
      %6262 = vmatprep.mubr.f32.mxu0 0.0
      %6263 = vmatmul.mubr.f32.gmra.mrb[0].mxu0 %v5930
      %v6264 = vpop.f32.mrb[0].mxu0
      %v6265 = vadd.f32 0.0, %v6264
      %v6266 = vpop.f32.mrb[0].mxu0
      %6267 = vmatprep.mubr.f32.mxu0 0.0
      %6268 = vmatmul.mubr.f32.gmra.mrb[0].mxu0 %v5933
      %v6269 = vpop.f32.mrb[0].mxu0
      %v6270 = vadd.f32 0.0, %v6269
      %v6271 = vpop.f32.mrb[0].mxu0
      %6272 = vdwg.mxu0
      %vm6273 = vcmp.gt.f32.partialorder %v6195, 0.0
      %vm6274 = vcmp.gt.f32.partialorder %v6200, 0.0
      %vm6275 = vcmp.gt.f32.partialorder %v6205, 0.0
      %vm6276 = vcmp.gt.f32.partialorder %v6210, 0.0
      %vm6277 = vcmp.gt.f32.partialorder %v6215, 0.0
      %vm6278 = vcmp.gt.f32.partialorder %v6220, 0.0
      %vm6279 = vcmp.gt.f32.partialorder %v6225, 0.0
      %vm6280 = vcmp.gt.f32.partialorder %v6230, 0.0
      %vm6281 = vcmp.gt.f32.partialorder %v6235, 0.0
      %vm6282 = vcmp.gt.f32.partialorder %v6240, 0.0
      %vm6283 = vcmp.gt.f32.partialorder %v6245, 0.0
      %vm6284 = vcmp.gt.f32.partialorder %v6250, 0.0
      %vm6285 = vcmp.gt.f32.partialorder %v6255, 0.0
      %vm6286 = vcmp.gt.f32.partialorder %v6260, 0.0
      %vm6287 = vcmp.gt.f32.partialorder %v6265, 0.0
      %vm6288 = vcmp.gt.f32.partialorder %v6270, 0.0
      %v6289 = vmul.f32 %v4781, %v6195
      %v6290 = vmul.f32 %v4781, %v6200
      %v6291 = vmul.f32 %v4781, %v6205
      %v6292 = vmul.f32 %v4781, %v6210
      %v6293 = vmul.f32 %v4781, %v6215
      %v6294 = vmul.f32 %v4781, %v6220
      %v6295 = vmul.f32 %v4781, %v6225
      %v6296 = vmul.f32 %v4781, %v6230
      %v6297 = vmul.f32 %v4781, %v6235
      %v6298 = vmul.f32 %v4781, %v6240
      %v6299 = vmul.f32 %v4781, %v6245
      %v6300 = vmul.f32 %v4781, %v6250
      %v6301 = vmul.f32 %v4781, %v6255
      %v6302 = vmul.f32 %v4781, %v6260
      %v6303 = vmul.f32 %v4781, %v6265
      %v6304 = vmul.f32 %v4781, %v6270
      %v6305 = vsel %vm6273, %v6195, %v6289
      %v6306 = vsel %vm6274, %v6200, %v6290
      %v6307 = vsel %vm6275, %v6205, %v6291
      %v6308 = vsel %vm6276, %v6210, %v6292
      %v6309 = vsel %vm6277, %v6215, %v6293
      %v6310 = vsel %vm6278, %v6220, %v6294
      %v6311 = vsel %vm6279, %v6225, %v6295
      %v6312 = vsel %vm6280, %v6230, %v6296
      %v6313 = vsel %vm6281, %v6235, %v6297
      %v6314 = vsel %vm6282, %v6240, %v6298
      %v6315 = vsel %vm6283, %v6245, %v6299
      %v6316 = vsel %vm6284, %v6250, %v6300
      %v6317 = vsel %vm6285, %v6255, %v6301
      %v6318 = vsel %vm6286, %v6260, %v6302
      %v6319 = vsel %vm6287, %v6265, %v6303
      %v6320 = vsel %vm6288, %v6270, %v6304
      %6321 = vmatprep.subr.mxu0 0.0
      %6322 = vmatpush1.msra.mxu0 %v5024
      %6323 = vmatprep.subr.mxu0 0.0
      %6324 = vmatpush1.msra.mxu0 %v5026
      %6325 = vmatprep.subr.mxu0 0.0
      %6326 = vmatpush1.msra.mxu0 %v5031
      %6327 = vmatprep.subr.mxu0 0.0
      %6328 = vmatpush1.msra.mxu0 0.0
      %6329 = vmatprep.subr.mxu0 0.0
      %6330 = vmatpush1.msra.mxu0 0.0
      %6331 = vmatprep.subr.mxu0 0.0
      %6332 = vmatpush1.msra.mxu0 0.0
      %6333 = vmatprep.subr.mxu0 0.0
      %6334 = vmatpush1.msra.mxu0 0.0
      %6335 = vmatprep.subr.mxu0 0.0
      %6336 = vmatpush1.msra.mxu0 0.0
      %6337 = vmatprep.subr.mxu0 0.0
      %6338 = vmatpush1.msra.mxu0 0.0
      %6339 = vmatprep.subr.mxu0 0.0
      %6340 = vmatpush1.msra.mxu0 0.0
      %6341 = vmatprep.subr.mxu0 0.0
      %6342 = vmatpush1.msra.mxu0 0.0
      %6343 = vmatprep.subr.mxu0 0.0
      %6344 = vmatpush1.msra.mxu0 0.0
      %6345 = vmatprep.subr.mxu0 0.0
      %6346 = vmatpush1.msra.mxu0 0.0
      %6347 = vmatprep.subr.mxu0 0.0
      %6348 = vmatpush1.msra.mxu0 0.0
      %6349 = vmatprep.subr.mxu0 0.0
      %6350 = vmatpush1.msra.mxu0 0.0
      %6351 = vmatprep.subr.mxu0 0.0
      %6352 = vmatpush1.msra.mxu0 0.0
      %6353 = vmatprep.subr.mxu0 0.0
      %6354 = vmatpush1.msra.mxu0 0.0
      %6355 = vmatprep.subr.mxu0 0.0
      %6356 = vmatpush1.msra.mxu0 0.0
      %6357 = vmatprep.subr.mxu0 0.0
      %6358 = vmatpush1.msra.mxu0 0.0
      %6359 = vmatprep.subr.mxu0 0.0
      %6360 = vmatpush1.msra.mxu0 0.0
      %6361 = vmatprep.subr.mxu0 0.0
      %6362 = vmatpush1.msra.mxu0 0.0
      %6363 = vmatprep.subr.mxu0 0.0
      %6364 = vmatpush1.msra.mxu0 0.0
      %6365 = vmatprep.subr.mxu0 0.0
      %6366 = vmatpush1.msra.mxu0 0.0
      %6367 = vmatprep.subr.mxu0 0.0
      %6368 = vmatpush1.msra.mxu0 0.0
      %6369 = vmatprep.subr.mxu0 0.0
      %6370 = vmatpush1.msra.mxu0 0.0
      %6371 = vmatprep.subr.mxu0 0.0
      %6372 = vmatpush1.msra.mxu0 0.0
      %6373 = vmatprep.subr.mxu0 0.0
      %6374 = vmatpush1.msra.mxu0 0.0
      %6375 = vmatprep.subr.mxu0 0.0
      %6376 = vmatpush1.msra.mxu0 0.0
      %6377 = vmatprep.subr.mxu0 0.0
      %6378 = vmatpush1.msra.mxu0 0.0
      %6379 = vmatprep.subr.mxu0 0.0
      %6380 = vmatpush1.msra.mxu0 0.0
      %6381 = vmatprep.subr.mxu0 0.0
      %6382 = vmatpush1.msra.mxu0 0.0
      %6383 = vmatprep.subr.mxu0 0.0
      %6384 = vmatpush1.msra.mxu0 0.0
      %6385 = vmatprep.mubr.f32.mxu0 0.0
      %6386 = vmatmul.mubr.f32.gmra.mrb[0].mxu0 %v5888
      %v6387 = vpop.f32.mrb[0].mxu0
      %v6388 = vadd.f32 0.0, %v6387
      %v6389 = vpop.f32.mrb[0].mxu0
      %6390 = vmatprep.mubr.f32.mxu0 0.0
      %6391 = vmatmul.mubr.f32.gmra.mrb[0].mxu0 %v5891
      %v6392 = vpop.f32.mrb[0].mxu0
      %v6393 = vadd.f32 0.0, %v6392
      %v6394 = vpop.f32.mrb[0].mxu0
      %6395 = vmatprep.mubr.f32.mxu0 0.0
      %6396 = vmatmul.mubr.f32.gmra.mrb[0].mxu0 %v5894
      %v6397 = vpop.f32.mrb[0].mxu0
      %v6398 = vadd.f32 0.0, %v6397
      %v6399 = vpop.f32.mrb[0].mxu0
      %6400 = vmatprep.mubr.f32.mxu0 0.0
      %6401 = vmatmul.mubr.f32.gmra.mrb[0].mxu0 %v5897
      %v6402 = vpop.f32.mrb[0].mxu0
      %v6403 = vadd.f32 0.0, %v6402
      %v6404 = vpop.f32.mrb[0].mxu0
      %6405 = vmatprep.mubr.f32.mxu0 0.0
      %6406 = vmatmul.mubr.f32.gmra.mrb[0].mxu0 %v5900
      %v6407 = vpop.f32.mrb[0].mxu0
      %v6408 = vadd.f32 0.0, %v6407
      %v6409 = vpop.f32.mrb[0].mxu0
      %6410 = vmatprep.mubr.f32.mxu0 0.0
      %6411 = vmatmul.mubr.f32.gmra.mrb[0].mxu0 %v5903
      %v6412 = vpop.f32.mrb[0].mxu0
      %v6413 = vadd.f32 0.0, %v6412
      %v6414 = vpop.f32.mrb[0].mxu0
      %6415 = vmatprep.mubr.f32.mxu0 0.0
      %6416 = vmatmul.mubr.f32.gmra.mrb[0].mxu0 %v5906
      %v6417 = vpop.f32.mrb[0].mxu0
      %v6418 = vadd.f32 0.0, %v6417
      %v6419 = vpop.f32.mrb[0].mxu0
      %6420 = vmatprep.mubr.f32.mxu0 0.0
      %6421 = vmatmul.mubr.f32.gmra.mrb[0].mxu0 %v5909
      %v6422 = vpop.f32.mrb[0].mxu0
      %v6423 = vadd.f32 0.0, %v6422
      %v6424 = vpop.f32.mrb[0].mxu0
      %6425 = vmatprep.mubr.f32.mxu0 0.0
      %6426 = vmatmul.mubr.f32.gmra.mrb[0].mxu0 %v5912
      %v6427 = vpop.f32.mrb[0].mxu0
      %v6428 = vadd.f32 0.0, %v6427
      %v6429 = vpop.f32.mrb[0].mxu0
      %6430 = vmatprep.mubr.f32.mxu0 0.0
      %6431 = vmatmul.mubr.f32.gmra.mrb[0].mxu0 %v5915
      %v6432 = vpop.f32.mrb[0].mxu0
      %v6433 = vadd.f32 0.0, %v6432
      %v6434 = vpop.f32.mrb[0].mxu0
      %6435 = vmatprep.mubr.f32.mxu0 0.0
      %6436 = vmatmul.mubr.f32.gmra.mrb[0].mxu0 %v5918
      %v6437 = vpop.f32.mrb[0].mxu0
      %v6438 = vadd.f32 0.0, %v6437
      %v6439 = vpop.f32.mrb[0].mxu0
      %6440 = vmatprep.mubr.f32.mxu0 0.0
      %6441 = vmatmul.mubr.f32.gmra.mrb[0].mxu0 %v5921
      %v6442 = vpop.f32.mrb[0].mxu0
      %v6443 = vadd.f32 0.0, %v6442
      %v6444 = vpop.f32.mrb[0].mxu0
      %6445 = vmatprep.mubr.f32.mxu0 0.0
      %6446 = vmatmul.mubr.f32.gmra.mrb[0].mxu0 %v5924
      %v6447 = vpop.f32.mrb[0].mxu0
      %v6448 = vadd.f32 0.0, %v6447
      %v6449 = vpop.f32.mrb[0].mxu0
      %6450 = vmatprep.mubr.f32.mxu0 0.0
      %6451 = vmatmul.mubr.f32.gmra.mrb[0].mxu0 %v5927
      %v6452 = vpop.f32.mrb[0].mxu0
      %v6453 = vadd.f32 0.0, %v6452
      %v6454 = vpop.f32.mrb[0].mxu0
      %6455 = vmatprep.mubr.f32.mxu0 0.0
      %6456 = vmatmul.mubr.f32.gmra.mrb[0].mxu0 %v5930
      %v6457 = vpop.f32.mrb[0].mxu0
      %v6458 = vadd.f32 0.0, %v6457
      %v6459 = vpop.f32.mrb[0].mxu0
      %6460 = vmatprep.mubr.f32.mxu0 0.0
      %6461 = vmatmul.mubr.f32.gmra.mrb[0].mxu0 %v5933
      %v6462 = vpop.f32.mrb[0].mxu0
      %v6463 = vadd.f32 0.0, %v6462
      %v6464 = vpop.f32.mrb[0].mxu0
      %6465 = vdwg.mxu0
      %vm6466 = vcmp.gt.f32.partialorder %v6388, 0.0
      %vm6467 = vcmp.gt.f32.partialorder %v6393, 0.0
      %vm6468 = vcmp.gt.f32.partialorder %v6398, 0.0
      %vm6469 = vcmp.gt.f32.partialorder %v6403, 0.0
      %vm6470 = vcmp.gt.f32.partialorder %v6408, 0.0
      %vm6471 = vcmp.gt.f32.partialorder %v6413, 0.0
      %vm6472 = vcmp.gt.f32.partialorder %v6418, 0.0
      %vm6473 = vcmp.gt.f32.partialorder %v6423, 0.0
      %vm6474 = vcmp.gt.f32.partialorder %v6428, 0.0
      %vm6475 = vcmp.gt.f32.partialorder %v6433, 0.0
      %vm6476 = vcmp.gt.f32.partialorder %v6438, 0.0
      %vm6477 = vcmp.gt.f32.partialorder %v6443, 0.0
      %vm6478 = vcmp.gt.f32.partialorder %v6448, 0.0
      %vm6479 = vcmp.gt.f32.partialorder %v6453, 0.0
      %vm6480 = vcmp.gt.f32.partialorder %v6458, 0.0
      %vm6481 = vcmp.gt.f32.partialorder %v6463, 0.0
      %v6482 = vmul.f32 %v4781, %v6388
      %v6483 = vmul.f32 %v4781, %v6393
      %v6484 = vmul.f32 %v4781, %v6398
      %v6485 = vmul.f32 %v4781, %v6403
      %v6486 = vmul.f32 %v4781, %v6408
      %v6487 = vmul.f32 %v4781, %v6413
      %v6488 = vmul.f32 %v4781, %v6418
      %v6489 = vmul.f32 %v4781, %v6423
      %v6490 = vmul.f32 %v4781, %v6428
      %v6491 = vmul.f32 %v4781, %v6433
      %v6492 = vmul.f32 %v4781, %v6438
      %v6493 = vmul.f32 %v4781, %v6443
      %v6494 = vmul.f32 %v4781, %v6448
      %v6495 = vmul.f32 %v4781, %v6453
      %v6496 = vmul.f32 %v4781, %v6458
      %v6497 = vmul.f32 %v4781, %v6463
      %v6498 = vsel %vm6466, %v6388, %v6482
      %v6499 = vsel %vm6467, %v6393, %v6483
      %v6500 = vsel %vm6468, %v6398, %v6484
      %v6501 = vsel %vm6469, %v6403, %v6485
      %v6502 = vsel %vm6470, %v6408, %v6486
      %v6503 = vsel %vm6471, %v6413, %v6487
      %v6504 = vsel %vm6472, %v6418, %v6488
      %v6505 = vsel %vm6473, %v6423, %v6489
      %v6506 = vsel %vm6474, %v6428, %v6490
      %v6507 = vsel %vm6475, %v6433, %v6491
      %v6508 = vsel %vm6476, %v6438, %v6492
      %v6509 = vsel %vm6477, %v6443, %v6493
      %v6510 = vsel %vm6478, %v6448, %v6494
      %v6511 = vsel %vm6479, %v6453, %v6495
      %v6512 = vsel %vm6480, %v6458, %v6496
      %v6513 = vsel %vm6481, %v6463, %v6497
      %v6514 = vld [vmem:[%s7] sm:$0xff]
      %v6515 = vld [vmem:[%s7 + $0x8] sm:$0x1]
      %v6516 = vld [vmem:[%s8] sm:$0x1]
      %6518 = vset.pattern.permute.xlu0 0
      %6519 = vperm.xlu0 %6518, %v4798
      %v6520 = vpop.permute.xlu0 %6519
      %6523 = vset.pattern.permute.xlu0 0
      %6524 = vperm.xlu0 %6523, %v4799
      %v6525 = vpop.permute.xlu0 %6524
      %6528 = vset.pattern.permute.xlu0 0
      %6529 = vperm.xlu0 %6528, %v4800
      %v6530 = vpop.permute.xlu0 %6529
      %6533 = vset.pattern.permute.xlu0 0
      %6534 = vperm.xlu0 %6533, %v4801
      %v6535 = vpop.permute.xlu0 %6534
      %6538 = vset.pattern.permute.xlu0 0
      %6539 = vperm.xlu0 %6538, %v4802
      %v6540 = vpop.permute.xlu0 %6539
      %6543 = vset.pattern.permute.xlu0 0
      %6544 = vperm.xlu0 %6543, %v4803
      %v6545 = vpop.permute.xlu0 %6544
      %6548 = vset.pattern.permute.xlu0 0
      %6549 = vperm.xlu0 %6548, %v4804
      %v6550 = vpop.permute.xlu0 %6549
      %6553 = vset.pattern.permute.xlu0 0
      %6554 = vperm.xlu0 %6553, %v4805
      %v6555 = vpop.permute.xlu0 %6554
      %6558 = vset.pattern.permute.xlu0 0
      %6559 = vperm.xlu0 %6558, %v4806
      %v6560 = vpop.permute.xlu0 %6559
      %6563 = vset.pattern.permute.xlu0 0
      %6564 = vperm.xlu0 %6563, %v4807
      %v6565 = vpop.permute.xlu0 %6564
      %6568 = vset.pattern.permute.xlu0 0
      %6569 = vperm.xlu0 %6568, %v4808
      %v6570 = vpop.permute.xlu0 %6569
      %6573 = vset.pattern.permute.xlu0 0
      %6574 = vperm.xlu0 %6573, %v4809
      %v6575 = vpop.permute.xlu0 %6574
      %6578 = vset.pattern.permute.xlu0 0
      %6579 = vperm.xlu0 %6578, %v4810
      %v6580 = vpop.permute.xlu0 %6579
      %6583 = vset.pattern.permute.xlu0 0
      %6584 = vperm.xlu0 %6583, %v4811
      %v6585 = vpop.permute.xlu0 %6584
      %6588 = vset.pattern.permute.xlu0 0
      %6589 = vperm.xlu0 %6588, %v4812
      %v6590 = vpop.permute.xlu0 %6589
      %6593 = vset.pattern.permute.xlu0 0
      %6594 = vperm.xlu0 %6593, %v4813
      %v6595 = vpop.permute.xlu0 %6594
      %v6597 = vlaneseq
      %v6598 = vshrl.u32 %v6597, 7
      %v6599 = vsub.s32 0, %v6598
      %v6600 = vrot.slane %v6514, %v6599
      %v6601 = vmul.f32 %v6520, %v6600
      %v6602 = vmul.f32 %v6525, %v6600
      %v6603 = vmul.f32 %v6530, %v6600
      %v6604 = vmul.f32 %v6535, %v6600
      %v6605 = vmul.f32 %v6540, %v6600
      %v6606 = vmul.f32 %v6545, %v6600
      %v6607 = vmul.f32 %v6550, %v6600
      %v6608 = vmul.f32 %v6555, %v6600
      %v6609 = vmul.f32 %v6560, %v6600
      %v6610 = vmul.f32 %v6565, %v6600
      %v6611 = vmul.f32 %v6570, %v6600
      %v6612 = vmul.f32 %v6575, %v6600
      %v6613 = vmul.f32 %v6580, %v6600
      %v6614 = vmul.f32 %v6585, %v6600
      %v6615 = vmul.f32 %v6590, %v6600
      %v6616 = vmul.f32 %v6595, %v6600
      %v6618 = vlaneseq
      %v6619 = vshrl.u32 %v6618, 7
      %v6620 = vsub.s32 0, %v6619
      %v6621 = vrot.slane %v6516, %v6620
      %v6623 = vadd.f32 %v6621, %v6601
      %v6624 = vadd.f32 %v6621, %v6602
      %v6625 = vadd.f32 %v6621, %v6603
      %v6626 = vadd.f32 %v6621, %v6604
      %v6627 = vadd.f32 %v6621, %v6605
      %v6628 = vadd.f32 %v6621, %v6606
      %v6629 = vadd.f32 %v6621, %v6607
      %v6630 = vadd.f32 %v6621, %v6608
      %v6631 = vadd.f32 %v6621, %v6609
      %v6632 = vadd.f32 %v6621, %v6610
      %v6633 = vadd.f32 %v6621, %v6611
      %v6634 = vadd.f32 %v6621, %v6612
      %v6635 = vadd.f32 %v6621, %v6613
      %v6636 = vadd.f32 %v6621, %v6614
      %v6637 = vadd.f32 %v6621, %v6615
      %v6638 = vadd.f32 %v6621, %v6616
      %6640 = vset.pattern.permute.xlu0 0
      %6641 = vperm.xlu0 %6640, %v5004
      %v6642 = vpop.permute.xlu0 %6641
      %6645 = vset.pattern.permute.xlu0 0
      %6646 = vperm.xlu0 %6645, %v5005
      %v6647 = vpop.permute.xlu0 %6646
      %6650 = vset.pattern.permute.xlu0 0
      %6651 = vperm.xlu0 %6650, %v5006
      %v6652 = vpop.permute.xlu0 %6651
      %6655 = vset.pattern.permute.xlu0 0
      %6656 = vperm.xlu0 %6655, %v5007
      %v6657 = vpop.permute.xlu0 %6656
      %6660 = vset.pattern.permute.xlu0 0
      %6661 = vperm.xlu0 %6660, %v5008
      %v6662 = vpop.permute.xlu0 %6661
      %6665 = vset.pattern.permute.xlu0 0
      %6666 = vperm.xlu0 %6665, %v5009
      %v6667 = vpop.permute.xlu0 %6666
      %6670 = vset.pattern.permute.xlu0 0
      %6671 = vperm.xlu0 %6670, %v5010
      %v6672 = vpop.permute.xlu0 %6671
      %6675 = vset.pattern.permute.xlu0 0
      %6676 = vperm.xlu0 %6675, %v5011
      %v6677 = vpop.permute.xlu0 %6676
      %6680 = vset.pattern.permute.xlu0 0
      %6681 = vperm.xlu0 %6680, %v5012
      %v6682 = vpop.permute.xlu0 %6681
      %6685 = vset.pattern.permute.xlu0 0
      %6686 = vperm.xlu0 %6685, %v5013
      %v6687 = vpop.permute.xlu0 %6686
      %6690 = vset.pattern.permute.xlu0 0
      %6691 = vperm.xlu0 %6690, %v5014
      %v6692 = vpop.permute.xlu0 %6691
      %6695 = vset.pattern.permute.xlu0 0
      %6696 = vperm.xlu0 %6695, %v5015
      %v6697 = vpop.permute.xlu0 %6696
      %6700 = vset.pattern.permute.xlu0 0
      %6701 = vperm.xlu0 %6700, %v5016
      %v6702 = vpop.permute.xlu0 %6701
      %6705 = vset.pattern.permute.xlu0 0
      %6706 = vperm.xlu0 %6705, %v5017
      %v6707 = vpop.permute.xlu0 %6706
      %6710 = vset.pattern.permute.xlu0 0
      %6711 = vperm.xlu0 %6710, %v5018
      %v6712 = vpop.permute.xlu0 %6711
      %6715 = vset.pattern.permute.xlu0 0
      %6716 = vperm.xlu0 %6715, %v5019
      %v6717 = vpop.permute.xlu0 %6716
      %v6719 = vlaneseq
      %v6720 = vshrl.u32 %v6719, 7
      %v6721 = vsub.s32 1, %v6720
      %v6722 = vrot.slane %v6514, %v6721
      %v6723 = vmul.f32 %v6642, %v6722
      %v6724 = vmul.f32 %v6647, %v6722
      %v6725 = vmul.f32 %v6652, %v6722
      %v6726 = vmul.f32 %v6657, %v6722
      %v6727 = vmul.f32 %v6662, %v6722
      %v6728 = vmul.f32 %v6667, %v6722
      %v6729 = vmul.f32 %v6672, %v6722
      %v6730 = vmul.f32 %v6677, %v6722
      %v6731 = vmul.f32 %v6682, %v6722
      %v6732 = vmul.f32 %v6687, %v6722
      %v6733 = vmul.f32 %v6692, %v6722
      %v6734 = vmul.f32 %v6697, %v6722
      %v6735 = vmul.f32 %v6702, %v6722
      %v6736 = vmul.f32 %v6707, %v6722
      %v6737 = vmul.f32 %v6712, %v6722
      %v6738 = vmul.f32 %v6717, %v6722
      %v6739 = vadd.f32 %v6623, %v6723
      %v6740 = vadd.f32 %v6624, %v6724
      %v6741 = vadd.f32 %v6625, %v6725
      %v6742 = vadd.f32 %v6626, %v6726
      %v6743 = vadd.f32 %v6627, %v6727
      %v6744 = vadd.f32 %v6628, %v6728
      %v6745 = vadd.f32 %v6629, %v6729
      %v6746 = vadd.f32 %v6630, %v6730
      %v6747 = vadd.f32 %v6631, %v6731
      %v6748 = vadd.f32 %v6632, %v6732
      %v6749 = vadd.f32 %v6633, %v6733
      %v6750 = vadd.f32 %v6634, %v6734
      %v6751 = vadd.f32 %v6635, %v6735
      %v6752 = vadd.f32 %v6636, %v6736
      %v6753 = vadd.f32 %v6637, %v6737
      %v6754 = vadd.f32 %v6638, %v6738
      %6756 = vset.pattern.permute.xlu0 0
      %6757 = vperm.xlu0 %6756, %v5210
      %v6758 = vpop.permute.xlu0 %6757
      %6761 = vset.pattern.permute.xlu0 0
      %6762 = vperm.xlu0 %6761, %v5211
      %v6763 = vpop.permute.xlu0 %6762
      %6766 = vset.pattern.permute.xlu0 0
      %6767 = vperm.xlu0 %6766, %v5212
      %v6768 = vpop.permute.xlu0 %6767
      %6771 = vset.pattern.permute.xlu0 0
      %6772 = vperm.xlu0 %6771, %v5213
      %v6773 = vpop.permute.xlu0 %6772
      %6776 = vset.pattern.permute.xlu0 0
      %6777 = vperm.xlu0 %6776, %v5214
      %v6778 = vpop.permute.xlu0 %6777
      %6781 = vset.pattern.permute.xlu0 0
      %6782 = vperm.xlu0 %6781, %v5215
      %v6783 = vpop.permute.xlu0 %6782
      %6786 = vset.pattern.permute.xlu0 0
      %6787 = vperm.xlu0 %6786, %v5216
      %v6788 = vpop.permute.xlu0 %6787
      %6791 = vset.pattern.permute.xlu0 0
      %6792 = vperm.xlu0 %6791, %v5217
      %v6793 = vpop.permute.xlu0 %6792
      %6796 = vset.pattern.permute.xlu0 0
      %6797 = vperm.xlu0 %6796, %v5218
      %v6798 = vpop.permute.xlu0 %6797
      %6801 = vset.pattern.permute.xlu0 0
      %6802 = vperm.xlu0 %6801, %v5219
      %v6803 = vpop.permute.xlu0 %6802
      %6806 = vset.pattern.permute.xlu0 0
      %6807 = vperm.xlu0 %6806, %v5220
      %v6808 = vpop.permute.xlu0 %6807
      %6811 = vset.pattern.permute.xlu0 0
      %6812 = vperm.xlu0 %6811, %v5221
      %v6813 = vpop.permute.xlu0 %6812
      %6816 = vset.pattern.permute.xlu0 0
      %6817 = vperm.xlu0 %6816, %v5222
      %v6818 = vpop.permute.xlu0 %6817
      %6821 = vset.pattern.permute.xlu0 0
      %6822 = vperm.xlu0 %6821, %v5223
      %v6823 = vpop.permute.xlu0 %6822
      %6826 = vset.pattern.permute.xlu0 0
      %6827 = vperm.xlu0 %6826, %v5224
      %v6828 = vpop.permute.xlu0 %6827
      %6831 = vset.pattern.permute.xlu0 0
      %6832 = vperm.xlu0 %6831, %v5225
      %v6833 = vpop.permute.xlu0 %6832
      %v6835 = vlaneseq
      %v6836 = vshrl.u32 %v6835, 7
      %v6837 = vsub.s32 2, %v6836
      %v6838 = vrot.slane %v6514, %v6837
      %v6839 = vmul.f32 %v6758, %v6838
      %v6840 = vmul.f32 %v6763, %v6838
      %v6841 = vmul.f32 %v6768, %v6838
      %v6842 = vmul.f32 %v6773, %v6838
      %v6843 = vmul.f32 %v6778, %v6838
      %v6844 = vmul.f32 %v6783, %v6838
      %v6845 = vmul.f32 %v6788, %v6838
      %v6846 = vmul.f32 %v6793, %v6838
      %v6847 = vmul.f32 %v6798, %v6838
      %v6848 = vmul.f32 %v6803, %v6838
      %v6849 = vmul.f32 %v6808, %v6838
      %v6850 = vmul.f32 %v6813, %v6838
      %v6851 = vmul.f32 %v6818, %v6838
      %v6852 = vmul.f32 %v6823, %v6838
      %v6853 = vmul.f32 %v6828, %v6838
      %v6854 = vmul.f32 %v6833, %v6838
      %v6855 = vadd.f32 %v6739, %v6839
      %v6856 = vadd.f32 %v6740, %v6840
      %v6857 = vadd.f32 %v6741, %v6841
      %v6858 = vadd.f32 %v6742, %v6842
      %v6859 = vadd.f32 %v6743, %v6843
      %v6860 = vadd.f32 %v6744, %v6844
      %v6861 = vadd.f32 %v6745, %v6845
      %v6862 = vadd.f32 %v6746, %v6846
      %v6863 = vadd.f32 %v6747, %v6847
      %v6864 = vadd.f32 %v6748, %v6848
      %v6865 = vadd.f32 %v6749, %v6849
      %v6866 = vadd.f32 %v6750, %v6850
      %v6867 = vadd.f32 %v6751, %v6851
      %v6868 = vadd.f32 %v6752, %v6852
      %v6869 = vadd.f32 %v6753, %v6853
      %v6870 = vadd.f32 %v6754, %v6854
      %6872 = vset.pattern.permute.xlu0 0
      %6873 = vperm.xlu0 %6872, %v5468
      %v6874 = vpop.permute.xlu0 %6873
      %6877 = vset.pattern.permute.xlu0 0
      %6878 = vperm.xlu0 %6877, %v5469
      %v6879 = vpop.permute.xlu0 %6878
      %6882 = vset.pattern.permute.xlu0 0
      %6883 = vperm.xlu0 %6882, %v5470
      %v6884 = vpop.permute.xlu0 %6883
      %6887 = vset.pattern.permute.xlu0 0
      %6888 = vperm.xlu0 %6887, %v5471
      %v6889 = vpop.permute.xlu0 %6888
      %6892 = vset.pattern.permute.xlu0 0
      %6893 = vperm.xlu0 %6892, %v5472
      %v6894 = vpop.permute.xlu0 %6893
      %6897 = vset.pattern.permute.xlu0 0
      %6898 = vperm.xlu0 %6897, %v5473
      %v6899 = vpop.permute.xlu0 %6898
      %6902 = vset.pattern.permute.xlu0 0
      %6903 = vperm.xlu0 %6902, %v5474
      %v6904 = vpop.permute.xlu0 %6903
      %6907 = vset.pattern.permute.xlu0 0
      %6908 = vperm.xlu0 %6907, %v5475
      %v6909 = vpop.permute.xlu0 %6908
      %6912 = vset.pattern.permute.xlu0 0
      %6913 = vperm.xlu0 %6912, %v5476
      %v6914 = vpop.permute.xlu0 %6913
      %6917 = vset.pattern.permute.xlu0 0
      %6918 = vperm.xlu0 %6917, %v5477
      %v6919 = vpop.permute.xlu0 %6918
      %6922 = vset.pattern.permute.xlu0 0
      %6923 = vperm.xlu0 %6922, %v5478
      %v6924 = vpop.permute.xlu0 %6923
      %6927 = vset.pattern.permute.xlu0 0
      %6928 = vperm.xlu0 %6927, %v5479
      %v6929 = vpop.permute.xlu0 %6928
      %6932 = vset.pattern.permute.xlu0 0
      %6933 = vperm.xlu0 %6932, %v5480
      %v6934 = vpop.permute.xlu0 %6933
      %6937 = vset.pattern.permute.xlu0 0
      %6938 = vperm.xlu0 %6937, %v5481
      %v6939 = vpop.permute.xlu0 %6938
      %6942 = vset.pattern.permute.xlu0 0
      %6943 = vperm.xlu0 %6942, %v5482
      %v6944 = vpop.permute.xlu0 %6943
      %6947 = vset.pattern.permute.xlu0 0
      %6948 = vperm.xlu0 %6947, %v5483
      %v6949 = vpop.permute.xlu0 %6948
      %v6951 = vlaneseq
      %v6952 = vshrl.u32 %v6951, 7
      %v6953 = vsub.s32 3, %v6952
      %v6954 = vrot.slane %v6514, %v6953
      %v6955 = vmul.f32 %v6874, %v6954
      %v6956 = vmul.f32 %v6879, %v6954
      %v6957 = vmul.f32 %v6884, %v6954
      %v6958 = vmul.f32 %v6889, %v6954
      %v6959 = vmul.f32 %v6894, %v6954
      %v6960 = vmul.f32 %v6899, %v6954
      %v6961 = vmul.f32 %v6904, %v6954
      %v6962 = vmul.f32 %v6909, %v6954
      %v6963 = vmul.f32 %v6914, %v6954
      %v6964 = vmul.f32 %v6919, %v6954
      %v6965 = vmul.f32 %v6924, %v6954
      %v6966 = vmul.f32 %v6929, %v6954
      %v6967 = vmul.f32 %v6934, %v6954
      %v6968 = vmul.f32 %v6939, %v6954
      %v6969 = vmul.f32 %v6944, %v6954
      %v6970 = vmul.f32 %v6949, %v6954
      %v6971 = vadd.f32 %v6855, %v6955
      %v6972 = vadd.f32 %v6856, %v6956
      %v6973 = vadd.f32 %v6857, %v6957
      %v6974 = vadd.f32 %v6858, %v6958
      %v6975 = vadd.f32 %v6859, %v6959
      %v6976 = vadd.f32 %v6860, %v6960
      %v6977 = vadd.f32 %v6861, %v6961
      %v6978 = vadd.f32 %v6862, %v6962
      %v6979 = vadd.f32 %v6863, %v6963
      %v6980 = vadd.f32 %v6864, %v6964
      %v6981 = vadd.f32 %v6865, %v6965
      %v6982 = vadd.f32 %v6866, %v6966
      %v6983 = vadd.f32 %v6867, %v6967
      %v6984 = vadd.f32 %v6868, %v6968
      %v6985 = vadd.f32 %v6869, %v6969
      %v6986 = vadd.f32 %v6870, %v6970
      %6988 = vset.pattern.permute.xlu0 0
      %6989 = vperm.xlu0 %6988, %v5661
      %v6990 = vpop.permute.xlu0 %6989
      %6993 = vset.pattern.permute.xlu0 0
      %6994 = vperm.xlu0 %6993, %v5662
      %v6995 = vpop.permute.xlu0 %6994
      %6998 = vset.pattern.permute.xlu0 0
      %6999 = vperm.xlu0 %6998, %v5663
      %v7000 = vpop.permute.xlu0 %6999
      %7003 = vset.pattern.permute.xlu0 0
      %7004 = vperm.xlu0 %7003, %v5664
      %v7005 = vpop.permute.xlu0 %7004
      %7008 = vset.pattern.permute.xlu0 0
      %7009 = vperm.xlu0 %7008, %v5665
      %v7010 = vpop.permute.xlu0 %7009
      %7013 = vset.pattern.permute.xlu0 0
      %7014 = vperm.xlu0 %7013, %v5666
      %v7015 = vpop.permute.xlu0 %7014
      %7018 = vset.pattern.permute.xlu0 0
      %7019 = vperm.xlu0 %7018, %v5667
      %v7020 = vpop.permute.xlu0 %7019
      %7023 = vset.pattern.permute.xlu0 0
      %7024 = vperm.xlu0 %7023, %v5668
      %v7025 = vpop.permute.xlu0 %7024
      %7028 = vset.pattern.permute.xlu0 0
      %7029 = vperm.xlu0 %7028, %v5669
      %v7030 = vpop.permute.xlu0 %7029
      %7033 = vset.pattern.permute.xlu0 0
      %7034 = vperm.xlu0 %7033, %v5670
      %v7035 = vpop.permute.xlu0 %7034
      %7038 = vset.pattern.permute.xlu0 0
      %7039 = vperm.xlu0 %7038, %v5671
      %v7040 = vpop.permute.xlu0 %7039
      %7043 = vset.pattern.permute.xlu0 0
      %7044 = vperm.xlu0 %7043, %v5672
      %v7045 = vpop.permute.xlu0 %7044
      %7048 = vset.pattern.permute.xlu0 0
      %7049 = vperm.xlu0 %7048, %v5673
      %v7050 = vpop.permute.xlu0 %7049
      %7053 = vset.pattern.permute.xlu0 0
      %7054 = vperm.xlu0 %7053, %v5674
      %v7055 = vpop.permute.xlu0 %7054
      %7058 = vset.pattern.permute.xlu0 0
      %7059 = vperm.xlu0 %7058, %v5675
      %v7060 = vpop.permute.xlu0 %7059
      %7063 = vset.pattern.permute.xlu0 0
      %7064 = vperm.xlu0 %7063, %v5676
      %v7065 = vpop.permute.xlu0 %7064
      %v7067 = vlaneseq
      %v7068 = vshrl.u32 %v7067, 7
      %v7069 = vsub.s32 4, %v7068
      %v7070 = vrot.slane %v6514, %v7069
      %v7071 = vmul.f32 %v6990, %v7070
      %v7072 = vmul.f32 %v6995, %v7070
      %v7073 = vmul.f32 %v7000, %v7070
      %v7074 = vmul.f32 %v7005, %v7070
      %v7075 = vmul.f32 %v7010, %v7070
      %v7076 = vmul.f32 %v7015, %v7070
      %v7077 = vmul.f32 %v7020, %v7070
      %v7078 = vmul.f32 %v7025, %v7070
      %v7079 = vmul.f32 %v7030, %v7070
      %v7080 = vmul.f32 %v7035, %v7070
      %v7081 = vmul.f32 %v7040, %v7070
      %v7082 = vmul.f32 %v7045, %v7070
      %v7083 = vmul.f32 %v7050, %v7070
      %v7084 = vmul.f32 %v7055, %v7070
      %v7085 = vmul.f32 %v7060, %v7070
      %v7086 = vmul.f32 %v7065, %v7070
      %v7087 = vadd.f32 %v6971, %v7071
      %v7088 = vadd.f32 %v6972, %v7072
      %v7089 = vadd.f32 %v6973, %v7073
      %v7090 = vadd.f32 %v6974, %v7074
      %v7091 = vadd.f32 %v6975, %v7075
      %v7092 = vadd.f32 %v6976, %v7076
      %v7093 = vadd.f32 %v6977, %v7077
      %v7094 = vadd.f32 %v6978, %v7078
      %v7095 = vadd.f32 %v6979, %v7079
      %v7096 = vadd.f32 %v6980, %v7080
      %v7097 = vadd.f32 %v6981, %v7081
      %v7098 = vadd.f32 %v6982, %v7082
      %v7099 = vadd.f32 %v6983, %v7083
      %v7100 = vadd.f32 %v6984, %v7084
      %v7101 = vadd.f32 %v6985, %v7085
      %v7102 = vadd.f32 %v6986, %v7086
      %7104 = vset.pattern.permute.xlu0 0
      %7105 = vperm.xlu0 %7104, %v5854
      %v7106 = vpop.permute.xlu0 %7105
      %7109 = vset.pattern.permute.xlu0 0
      %7110 = vperm.xlu0 %7109, %v5855
      %v7111 = vpop.permute.xlu0 %7110
      %7114 = vset.pattern.permute.xlu0 0
      %7115 = vperm.xlu0 %7114, %v5856
      %v7116 = vpop.permute.xlu0 %7115
      %7119 = vset.pattern.permute.xlu0 0
      %7120 = vperm.xlu0 %7119, %v5857
      %v7121 = vpop.permute.xlu0 %7120
      %7124 = vset.pattern.permute.xlu0 0
      %7125 = vperm.xlu0 %7124, %v5858
      %v7126 = vpop.permute.xlu0 %7125
      %7129 = vset.pattern.permute.xlu0 0
      %7130 = vperm.xlu0 %7129, %v5859
      %v7131 = vpop.permute.xlu0 %7130
      %7134 = vset.pattern.permute.xlu0 0
      %7135 = vperm.xlu0 %7134, %v5860
      %v7136 = vpop.permute.xlu0 %7135
      %7139 = vset.pattern.permute.xlu0 0
      %7140 = vperm.xlu0 %7139, %v5861
      %v7141 = vpop.permute.xlu0 %7140
      %7144 = vset.pattern.permute.xlu0 0
      %7145 = vperm.xlu0 %7144, %v5862
      %v7146 = vpop.permute.xlu0 %7145
      %7149 = vset.pattern.permute.xlu0 0
      %7150 = vperm.xlu0 %7149, %v5863
      %v7151 = vpop.permute.xlu0 %7150
      %7154 = vset.pattern.permute.xlu0 0
      %7155 = vperm.xlu0 %7154, %v5864
      %v7156 = vpop.permute.xlu0 %7155
      %7159 = vset.pattern.permute.xlu0 0
      %7160 = vperm.xlu0 %7159, %v5865
      %v7161 = vpop.permute.xlu0 %7160
      %7164 = vset.pattern.permute.xlu0 0
      %7165 = vperm.xlu0 %7164, %v5866
      %v7166 = vpop.permute.xlu0 %7165
      %7169 = vset.pattern.permute.xlu0 0
      %7170 = vperm.xlu0 %7169, %v5867
      %v7171 = vpop.permute.xlu0 %7170
      %7174 = vset.pattern.permute.xlu0 0
      %7175 = vperm.xlu0 %7174, %v5868
      %v7176 = vpop.permute.xlu0 %7175
      %7179 = vset.pattern.permute.xlu0 0
      %7180 = vperm.xlu0 %7179, %v5869
      %v7181 = vpop.permute.xlu0 %7180
      %v7183 = vlaneseq
      %v7184 = vshrl.u32 %v7183, 7
      %v7185 = vsub.s32 5, %v7184
      %v7186 = vrot.slane %v6514, %v7185
      %v7187 = vmul.f32 %v7106, %v7186
      %v7188 = vmul.f32 %v7111, %v7186
      %v7189 = vmul.f32 %v7116, %v7186
      %v7190 = vmul.f32 %v7121, %v7186
      %v7191 = vmul.f32 %v7126, %v7186
      %v7192 = vmul.f32 %v7131, %v7186
      %v7193 = vmul.f32 %v7136, %v7186
      %v7194 = vmul.f32 %v7141, %v7186
      %v7195 = vmul.f32 %v7146, %v7186
      %v7196 = vmul.f32 %v7151, %v7186
      %v7197 = vmul.f32 %v7156, %v7186
      %v7198 = vmul.f32 %v7161, %v7186
      %v7199 = vmul.f32 %v7166, %v7186
      %v7200 = vmul.f32 %v7171, %v7186
      %v7201 = vmul.f32 %v7176, %v7186
      %v7202 = vmul.f32 %v7181, %v7186
      %v7203 = vadd.f32 %v7087, %v7187
      %v7204 = vadd.f32 %v7088, %v7188
      %v7205 = vadd.f32 %v7089, %v7189
      %v7206 = vadd.f32 %v7090, %v7190
      %v7207 = vadd.f32 %v7091, %v7191
      %v7208 = vadd.f32 %v7092, %v7192
      %v7209 = vadd.f32 %v7093, %v7193
      %v7210 = vadd.f32 %v7094, %v7194
      %v7211 = vadd.f32 %v7095, %v7195
      %v7212 = vadd.f32 %v7096, %v7196
      %v7213 = vadd.f32 %v7097, %v7197
      %v7214 = vadd.f32 %v7098, %v7198
      %v7215 = vadd.f32 %v7099, %v7199
      %v7216 = vadd.f32 %v7100, %v7200
      %v7217 = vadd.f32 %v7101, %v7201
      %v7218 = vadd.f32 %v7102, %v7202
      %7220 = vset.pattern.permute.xlu0 0
      %7221 = vperm.xlu0 %7220, %v6112
      %v7222 = vpop.permute.xlu0 %7221
      %7225 = vset.pattern.permute.xlu0 0
      %7226 = vperm.xlu0 %7225, %v6113
      %v7227 = vpop.permute.xlu0 %7226
      %7230 = vset.pattern.permute.xlu0 0
      %7231 = vperm.xlu0 %7230, %v6114
      %v7232 = vpop.permute.xlu0 %7231
      %7235 = vset.pattern.permute.xlu0 0
      %7236 = vperm.xlu0 %7235, %v6115
      %v7237 = vpop.permute.xlu0 %7236
      %7240 = vset.pattern.permute.xlu0 0
      %7241 = vperm.xlu0 %7240, %v6116
      %v7242 = vpop.permute.xlu0 %7241
      %7245 = vset.pattern.permute.xlu0 0
      %7246 = vperm.xlu0 %7245, %v6117
      %v7247 = vpop.permute.xlu0 %7246
      %7250 = vset.pattern.permute.xlu0 0
      %7251 = vperm.xlu0 %7250, %v6118
      %v7252 = vpop.permute.xlu0 %7251
      %7255 = vset.pattern.permute.xlu0 0
      %7256 = vperm.xlu0 %7255, %v6119
      %v7257 = vpop.permute.xlu0 %7256
      %7260 = vset.pattern.permute.xlu0 0
      %7261 = vperm.xlu0 %7260, %v6120
      %v7262 = vpop.permute.xlu0 %7261
      %7265 = vset.pattern.permute.xlu0 0
      %7266 = vperm.xlu0 %7265, %v6121
      %v7267 = vpop.permute.xlu0 %7266
      %7270 = vset.pattern.permute.xlu0 0
      %7271 = vperm.xlu0 %7270, %v6122
      %v7272 = vpop.permute.xlu0 %7271
      %7275 = vset.pattern.permute.xlu0 0
      %7276 = vperm.xlu0 %7275, %v6123
      %v7277 = vpop.permute.xlu0 %7276
      %7280 = vset.pattern.permute.xlu0 0
      %7281 = vperm.xlu0 %7280, %v6124
      %v7282 = vpop.permute.xlu0 %7281
      %7285 = vset.pattern.permute.xlu0 0
      %7286 = vperm.xlu0 %7285, %v6125
      %v7287 = vpop.permute.xlu0 %7286
      %7290 = vset.pattern.permute.xlu0 0
      %7291 = vperm.xlu0 %7290, %v6126
      %v7292 = vpop.permute.xlu0 %7291
      %7295 = vset.pattern.permute.xlu0 0
      %7296 = vperm.xlu0 %7295, %v6127
      %v7297 = vpop.permute.xlu0 %7296
      %v7299 = vlaneseq
      %v7300 = vshrl.u32 %v7299, 7
      %v7301 = vsub.s32 6, %v7300
      %v7302 = vrot.slane %v6514, %v7301
      %v7303 = vmul.f32 %v7222, %v7302
      %v7304 = vmul.f32 %v7227, %v7302
      %v7305 = vmul.f32 %v7232, %v7302
      %v7306 = vmul.f32 %v7237, %v7302
      %v7307 = vmul.f32 %v7242, %v7302
      %v7308 = vmul.f32 %v7247, %v7302
      %v7309 = vmul.f32 %v7252, %v7302
      %v7310 = vmul.f32 %v7257, %v7302
      %v7311 = vmul.f32 %v7262, %v7302
      %v7312 = vmul.f32 %v7267, %v7302
      %v7313 = vmul.f32 %v7272, %v7302
      %v7314 = vmul.f32 %v7277, %v7302
      %v7315 = vmul.f32 %v7282, %v7302
      %v7316 = vmul.f32 %v7287, %v7302
      %v7317 = vmul.f32 %v7292, %v7302
      %v7318 = vmul.f32 %v7297, %v7302
      %v7319 = vadd.f32 %v7203, %v7303
      %v7320 = vadd.f32 %v7204, %v7304
      %v7321 = vadd.f32 %v7205, %v7305
      %v7322 = vadd.f32 %v7206, %v7306
      %v7323 = vadd.f32 %v7207, %v7307
      %v7324 = vadd.f32 %v7208, %v7308
      %v7325 = vadd.f32 %v7209, %v7309
      %v7326 = vadd.f32 %v7210, %v7310
      %v7327 = vadd.f32 %v7211, %v7311
      %v7328 = vadd.f32 %v7212, %v7312
      %v7329 = vadd.f32 %v7213, %v7313
      %v7330 = vadd.f32 %v7214, %v7314
      %v7331 = vadd.f32 %v7215, %v7315
      %v7332 = vadd.f32 %v7216, %v7316
      %v7333 = vadd.f32 %v7217, %v7317
      %v7334 = vadd.f32 %v7218, %v7318
      %7336 = vset.pattern.permute.xlu0 0
      %7337 = vperm.xlu0 %7336, %v6305
      %v7338 = vpop.permute.xlu0 %7337
      %7341 = vset.pattern.permute.xlu0 0
      %7342 = vperm.xlu0 %7341, %v6306
      %v7343 = vpop.permute.xlu0 %7342
      %7346 = vset.pattern.permute.xlu0 0
      %7347 = vperm.xlu0 %7346, %v6307
      %v7348 = vpop.permute.xlu0 %7347
      %7351 = vset.pattern.permute.xlu0 0
      %7352 = vperm.xlu0 %7351, %v6308
      %v7353 = vpop.permute.xlu0 %7352
      %7356 = vset.pattern.permute.xlu0 0
      %7357 = vperm.xlu0 %7356, %v6309
      %v7358 = vpop.permute.xlu0 %7357
      %7361 = vset.pattern.permute.xlu0 0
      %7362 = vperm.xlu0 %7361, %v6310
      %v7363 = vpop.permute.xlu0 %7362
      %7366 = vset.pattern.permute.xlu0 0
      %7367 = vperm.xlu0 %7366, %v6311
      %v7368 = vpop.permute.xlu0 %7367
      %7371 = vset.pattern.permute.xlu0 0
      %7372 = vperm.xlu0 %7371, %v6312
      %v7373 = vpop.permute.xlu0 %7372
      %7376 = vset.pattern.permute.xlu0 0
      %7377 = vperm.xlu0 %7376, %v6313
      %v7378 = vpop.permute.xlu0 %7377
      %7381 = vset.pattern.permute.xlu0 0
      %7382 = vperm.xlu0 %7381, %v6314
      %v7383 = vpop.permute.xlu0 %7382
      %7386 = vset.pattern.permute.xlu0 0
      %7387 = vperm.xlu0 %7386, %v6315
      %v7388 = vpop.permute.xlu0 %7387
      %7391 = vset.pattern.permute.xlu0 0
      %7392 = vperm.xlu0 %7391, %v6316
      %v7393 = vpop.permute.xlu0 %7392
      %7396 = vset.pattern.permute.xlu0 0
      %7397 = vperm.xlu0 %7396, %v6317
      %v7398 = vpop.permute.xlu0 %7397
      %7401 = vset.pattern.permute.xlu0 0
      %7402 = vperm.xlu0 %7401, %v6318
      %v7403 = vpop.permute.xlu0 %7402
      %7406 = vset.pattern.permute.xlu0 0
      %7407 = vperm.xlu0 %7406, %v6319
      %v7408 = vpop.permute.xlu0 %7407
      %7411 = vset.pattern.permute.xlu0 0
      %7412 = vperm.xlu0 %7411, %v6320
      %v7413 = vpop.permute.xlu0 %7412
      %v7415 = vlaneseq
      %v7416 = vshrl.u32 %v7415, 7
      %v7417 = vsub.s32 7, %v7416
      %v7418 = vrot.slane %v6514, %v7417
      %v7419 = vmul.f32 %v7338, %v7418
      %v7420 = vmul.f32 %v7343, %v7418
      %v7421 = vmul.f32 %v7348, %v7418
      %v7422 = vmul.f32 %v7353, %v7418
      %v7423 = vmul.f32 %v7358, %v7418
      %v7424 = vmul.f32 %v7363, %v7418
      %v7425 = vmul.f32 %v7368, %v7418
      %v7426 = vmul.f32 %v7373, %v7418
      %v7427 = vmul.f32 %v7378, %v7418
      %v7428 = vmul.f32 %v7383, %v7418
      %v7429 = vmul.f32 %v7388, %v7418
      %v7430 = vmul.f32 %v7393, %v7418
      %v7431 = vmul.f32 %v7398, %v7418
      %v7432 = vmul.f32 %v7403, %v7418
      %v7433 = vmul.f32 %v7408, %v7418
      %v7434 = vmul.f32 %v7413, %v7418
      %v7435 = vadd.f32 %v7319, %v7419
      %v7436 = vadd.f32 %v7320, %v7420
      %v7437 = vadd.f32 %v7321, %v7421
      %v7438 = vadd.f32 %v7322, %v7422
      %v7439 = vadd.f32 %v7323, %v7423
      %v7440 = vadd.f32 %v7324, %v7424
      %v7441 = vadd.f32 %v7325, %v7425
      %v7442 = vadd.f32 %v7326, %v7426
      %v7443 = vadd.f32 %v7327, %v7427
      %v7444 = vadd.f32 %v7328, %v7428
      %v7445 = vadd.f32 %v7329, %v7429
      %v7446 = vadd.f32 %v7330, %v7430
      %v7447 = vadd.f32 %v7331, %v7431
      %v7448 = vadd.f32 %v7332, %v7432
      %v7449 = vadd.f32 %v7333, %v7433
      %v7450 = vadd.f32 %v7334, %v7434
      %7452 = vset.pattern.permute.xlu0 0
      %7453 = vperm.xlu0 %7452, %v6498
      %v7454 = vpop.permute.xlu0 %7453
      %7457 = vset.pattern.permute.xlu0 0
      %7458 = vperm.xlu0 %7457, %v6499
      %v7459 = vpop.permute.xlu0 %7458
      %7462 = vset.pattern.permute.xlu0 0
      %7463 = vperm.xlu0 %7462, %v6500
      %v7464 = vpop.permute.xlu0 %7463
      %7467 = vset.pattern.permute.xlu0 0
      %7468 = vperm.xlu0 %7467, %v6501
      %v7469 = vpop.permute.xlu0 %7468
      %7472 = vset.pattern.permute.xlu0 0
      %7473 = vperm.xlu0 %7472, %v6502
      %v7474 = vpop.permute.xlu0 %7473
      %7477 = vset.pattern.permute.xlu0 0
      %7478 = vperm.xlu0 %7477, %v6503
      %v7479 = vpop.permute.xlu0 %7478
      %7482 = vset.pattern.permute.xlu0 0
      %7483 = vperm.xlu0 %7482, %v6504
      %v7484 = vpop.permute.xlu0 %7483
      %7487 = vset.pattern.permute.xlu0 0
      %7488 = vperm.xlu0 %7487, %v6505
      %v7489 = vpop.permute.xlu0 %7488
      %7492 = vset.pattern.permute.xlu0 0
      %7493 = vperm.xlu0 %7492, %v6506
      %v7494 = vpop.permute.xlu0 %7493
      %7497 = vset.pattern.permute.xlu0 0
      %7498 = vperm.xlu0 %7497, %v6507
      %v7499 = vpop.permute.xlu0 %7498
      %7502 = vset.pattern.permute.xlu0 0
      %7503 = vperm.xlu0 %7502, %v6508
      %v7504 = vpop.permute.xlu0 %7503
      %7507 = vset.pattern.permute.xlu0 0
      %7508 = vperm.xlu0 %7507, %v6509
      %v7509 = vpop.permute.xlu0 %7508
      %7512 = vset.pattern.permute.xlu0 0
      %7513 = vperm.xlu0 %7512, %v6510
      %v7514 = vpop.permute.xlu0 %7513
      %7517 = vset.pattern.permute.xlu0 0
      %7518 = vperm.xlu0 %7517, %v6511
      %v7519 = vpop.permute.xlu0 %7518
      %7522 = vset.pattern.permute.xlu0 0
      %7523 = vperm.xlu0 %7522, %v6512
      %v7524 = vpop.permute.xlu0 %7523
      %7527 = vset.pattern.permute.xlu0 0
      %7528 = vperm.xlu0 %7527, %v6513
      %v7529 = vpop.permute.xlu0 %7528
      %v7531 = vlaneseq
      %v7532 = vshrl.u32 %v7531, 7
      %v7533 = vsub.s32 0, %v7532
      %v7534 = vrot.slane %v6515, %v7533
      %v7535 = vmul.f32 %v7454, %v7534
      %v7536 = vmul.f32 %v7459, %v7534
      %v7537 = vmul.f32 %v7464, %v7534
      %v7538 = vmul.f32 %v7469, %v7534
      %v7539 = vmul.f32 %v7474, %v7534
      %v7540 = vmul.f32 %v7479, %v7534
      %v7541 = vmul.f32 %v7484, %v7534
      %v7542 = vmul.f32 %v7489, %v7534
      %v7543 = vmul.f32 %v7494, %v7534
      %v7544 = vmul.f32 %v7499, %v7534
      %v7545 = vmul.f32 %v7504, %v7534
      %v7546 = vmul.f32 %v7509, %v7534
      %v7547 = vmul.f32 %v7514, %v7534
      %v7548 = vmul.f32 %v7519, %v7534
      %v7549 = vmul.f32 %v7524, %v7534
      %v7550 = vmul.f32 %v7529, %v7534
      %v7551 = vadd.f32 %v7435, %v7535
      %v7552 = vadd.f32 %v7436, %v7536
      %v7553 = vadd.f32 %v7437, %v7537
      %v7554 = vadd.f32 %v7438, %v7538
      %v7555 = vadd.f32 %v7439, %v7539
      %v7556 = vadd.f32 %v7440, %v7540
      %v7557 = vadd.f32 %v7441, %v7541
      %v7558 = vadd.f32 %v7442, %v7542
      %v7559 = vadd.f32 %v7443, %v7543
      %v7560 = vadd.f32 %v7444, %v7544
      %v7561 = vadd.f32 %v7445, %v7545
      %v7562 = vadd.f32 %v7446, %v7546
      %v7563 = vadd.f32 %v7447, %v7547
      %v7564 = vadd.f32 %v7448, %v7548
      %v7565 = vadd.f32 %v7449, %v7549
      %v7566 = vadd.f32 %v7450, %v7550
      %v7567 = vld [vmem:[%s10] sm:$0xff]
      %v7568 = vld [vmem:[%s10 + $0x8] sm:$0xff]
      %v7569 = vld [vmem:[%s10 + $0x10] sm:$0xff]
      %v7570 = vld [vmem:[%s10 + $0x18] sm:$0xff]
      %v7571 = vld [vmem:[%s10 + $0x20] sm:$0xff]
      %v7572 = vld [vmem:[%s10 + $0x28] sm:$0xff]
      %v7573 = vld [vmem:[%s10 + $0x30] sm:$0xff]
      %v7574 = vld [vmem:[%s10 + $0x38] sm:$0xff]
      %v7575 = vld [vmem:[%s10 + $0x40] sm:$0xff]
      %v7576 = vld [vmem:[%s10 + $0x48] sm:$0xff]
      %v7577 = vld [vmem:[%s10 + $0x50] sm:$0xff]
      %v7578 = vld [vmem:[%s10 + $0x58] sm:$0xff]
      %v7579 = vld [vmem:[%s10 + $0x60] sm:$0xff]
      %v7580 = vld [vmem:[%s10 + $0x68] sm:$0xff]
      %v7581 = vld [vmem:[%s10 + $0x70] sm:$0xff]
      %v7582 = vld [vmem:[%s10 + $0x78] sm:$0xff]
      %7599 = vrot.lane.b32.xlu0 %v7551, 124
      %v7600 = vpop.permute.xlu0 %7599
      %7601 = vrot.lane.b32.xlu0 %v7552, 124
      %v7602 = vpop.permute.xlu0 %7601
      %7603 = vrot.lane.b32.xlu0 %v7553, 124
      %v7604 = vpop.permute.xlu0 %7603
      %7605 = vrot.lane.b32.xlu0 %v7554, 124
      %v7606 = vpop.permute.xlu0 %7605
      %7607 = vrot.lane.b32.xlu0 %v7555, 124
      %v7608 = vpop.permute.xlu0 %7607
      %7609 = vrot.lane.b32.xlu0 %v7556, 124
      %v7610 = vpop.permute.xlu0 %7609
      %7611 = vrot.lane.b32.xlu0 %v7557, 124
      %v7612 = vpop.permute.xlu0 %7611
      %7613 = vrot.lane.b32.xlu0 %v7558, 124
      %v7614 = vpop.permute.xlu0 %7613
      %7615 = vrot.lane.b32.xlu0 %v7559, 124
      %v7616 = vpop.permute.xlu0 %7615
      %7617 = vrot.lane.b32.xlu0 %v7560, 124
      %v7618 = vpop.permute.xlu0 %7617
      %7619 = vrot.lane.b32.xlu0 %v7561, 124
      %v7620 = vpop.permute.xlu0 %7619
      %7621 = vrot.lane.b32.xlu0 %v7562, 124
      %v7622 = vpop.permute.xlu0 %7621
      %7623 = vrot.lane.b32.xlu0 %v7563, 124
      %v7624 = vpop.permute.xlu0 %7623
      %7625 = vrot.lane.b32.xlu0 %v7564, 124
      %v7626 = vpop.permute.xlu0 %7625
      %7627 = vrot.lane.b32.xlu0 %v7565, 124
      %v7628 = vpop.permute.xlu0 %7627
      %7629 = vrot.lane.b32.xlu0 %v7566, 124
      %v7630 = vpop.permute.xlu0 %7629
      %vm7631 = vcmask 15360
      %v7632 = vsel %vm7631, %v7551, 0
      %v7634 = vsel %vm7631, %v7552, 0
      %v7636 = vsel %vm7631, %v7553, 0
      %v7638 = vsel %vm7631, %v7554, 0
      %v7640 = vsel %vm7631, %v7555, 0
      %v7642 = vsel %vm7631, %v7556, 0
      %v7644 = vsel %vm7631, %v7557, 0
      %v7646 = vsel %vm7631, %v7558, 0
      %v7648 = vsel %vm7631, %v7559, 0
      %v7650 = vsel %vm7631, %v7560, 0
      %v7652 = vsel %vm7631, %v7561, 0
      %v7654 = vsel %vm7631, %v7562, 0
      %v7656 = vsel %vm7631, %v7563, 0
      %v7658 = vsel %vm7631, %v7564, 0
      %v7660 = vsel %vm7631, %v7565, 0
      %v7662 = vsel %vm7631, %v7566, 0
      %v7664 = vsel %vm7631, %v7600, 0
      %v7666 = vsel %vm7631, %v7602, 0
      %v7668 = vsel %vm7631, %v7604, 0
      %v7670 = vsel %vm7631, %v7606, 0
      %v7672 = vsel %vm7631, %v7608, 0
      %v7674 = vsel %vm7631, %v7610, 0
      %v7676 = vsel %vm7631, %v7612, 0
      %v7678 = vsel %vm7631, %v7614, 0
      %v7680 = vsel %vm7631, %v7616, 0
      %v7682 = vsel %vm7631, %v7618, 0
      %v7684 = vsel %vm7631, %v7620, 0
      %v7686 = vsel %vm7631, %v7622, 0
      %v7688 = vsel %vm7631, %v7624, 0
      %v7690 = vsel %vm7631, %v7626, 0
      %v7692 = vsel %vm7631, %v7628, 0
      %v7694 = vsel %vm7631, %v7630, 0
      %7696 = vmatprep.subr.mxu0 0.0
      %7697 = vmatpush1.xpose.msra.mxu0 %v7664
      %7698 = vmatprep.subr.mxu0 0.0
      %7699 = vmatpush1.xpose.msra.mxu0 %v7666
      %7700 = vmatprep.subr.mxu0 0.0
      %7701 = vmatpush1.xpose.msra.mxu0 %v7668
      %7702 = vmatprep.subr.mxu0 0.0
      %7703 = vmatpush1.xpose.msra.mxu0 %v7670
      %7704 = vmatprep.subr.mxu0 0.0
      %7705 = vmatpush1.xpose.msra.mxu0 %v7672
      %7706 = vmatprep.subr.mxu0 0.0
      %7707 = vmatpush1.xpose.msra.mxu0 %v7674
      %7708 = vmatprep.subr.mxu0 0.0
      %7709 = vmatpush1.xpose.msra.mxu0 %v7676
      %7710 = vmatprep.subr.mxu0 0.0
      %7711 = vmatpush1.xpose.msra.mxu0 %v7678
      %7712 = vmatprep.subr.mxu0 0.0
      %7713 = vmatpush1.xpose.msra.mxu0 %v7680
      %7714 = vmatprep.subr.mxu0 0.0
      %7715 = vmatpush1.xpose.msra.mxu0 %v7682
      %7716 = vmatprep.subr.mxu0 0.0
      %7717 = vmatpush1.xpose.msra.mxu0 %v7684
      %7718 = vmatprep.subr.mxu0 0.0
      %7719 = vmatpush1.xpose.msra.mxu0 %v7686
      %7720 = vmatprep.subr.mxu0 0.0
      %7721 = vmatpush1.xpose.msra.mxu0 %v7688
      %7722 = vmatprep.subr.mxu0 0.0
      %7723 = vmatpush1.xpose.msra.mxu0 %v7690
      %7724 = vmatprep.subr.mxu0 0.0
      %7725 = vmatpush1.xpose.msra.mxu0 %v7692
      %7726 = vmatprep.subr.mxu0 0.0
      %7727 = vmatpush1.xpose.msra.mxu0 %v7694
      %7728 = vmatprep.subr.mxu0 0.0
      %7729 = vmatpush1.xpose.msra.mxu0 0.0
      %7730 = vmatprep.subr.mxu0 0.0
      %7731 = vmatpush1.xpose.msra.mxu0 0.0
      %7732 = vmatprep.subr.mxu0 0.0
      %7733 = vmatpush1.xpose.msra.mxu0 0.0
      %7734 = vmatprep.subr.mxu0 0.0
      %7735 = vmatpush1.xpose.msra.mxu0 0.0
      %7736 = vmatprep.subr.mxu0 0.0
      %7737 = vmatpush1.xpose.msra.mxu0 0.0
      %7738 = vmatprep.subr.mxu0 0.0
      %7739 = vmatpush1.xpose.msra.mxu0 0.0
      %7740 = vmatprep.subr.mxu0 0.0
      %7741 = vmatpush1.xpose.msra.mxu0 0.0
      %7742 = vmatprep.subr.mxu0 0.0
      %7743 = vmatpush1.xpose.msra.mxu0 0.0
      %7744 = vmatprep.subr.mxu0 0.0
      %7745 = vmatpush1.xpose.msra.mxu0 0.0
      %7746 = vmatprep.subr.mxu0 0.0
      %7747 = vmatpush1.xpose.msra.mxu0 0.0
      %7748 = vmatprep.subr.mxu0 0.0
      %7749 = vmatpush1.xpose.msra.mxu0 0.0
      %7750 = vmatprep.subr.mxu0 0.0
      %7751 = vmatpush1.xpose.msra.mxu0 0.0
      %7752 = vmatprep.subr.mxu0 0.0
      %7753 = vmatpush1.xpose.msra.mxu0 0.0
      %7754 = vmatprep.subr.mxu0 0.0
      %7755 = vmatpush1.xpose.msra.mxu0 0.0
      %7756 = vmatprep.subr.mxu0 0.0
      %7757 = vmatpush1.xpose.msra.mxu0 0.0
      %7758 = vmatprep.subr.mxu0 0.0
      %7759 = vmatpush1.xpose.msra.mxu0 0.0
      %7760 = vmatprep.mubr.f32.mxu0 0.0
      %7761 = vmatmul.mubr.f32.gmra.mrb[0].mxu0 %v7632
      %v7762 = vpop.f32.mrb[0].mxu0
      %v7763 = vadd.f32 0.0, %v7762
      %v7764 = vpop.f32.mrb[0].mxu0
      %7765 = vmatprep.mubr.f32.mxu0 0.0
      %7766 = vmatmul.mubr.f32.gmra.mrb[0].mxu0 %v7634
      %v7767 = vpop.f32.mrb[0].mxu0
      %v7768 = vadd.f32 0.0, %v7767
      %v7769 = vpop.f32.mrb[0].mxu0
      %7770 = vmatprep.mubr.f32.mxu0 0.0
      %7771 = vmatmul.mubr.f32.gmra.mrb[0].mxu0 %v7636
      %v7772 = vpop.f32.mrb[0].mxu0
      %v7773 = vadd.f32 0.0, %v7772
      %v7774 = vpop.f32.mrb[0].mxu0
      %7775 = vmatprep.mubr.f32.mxu0 0.0
      %7776 = vmatmul.mubr.f32.gmra.mrb[0].mxu0 %v7638
      %v7777 = vpop.f32.mrb[0].mxu0
      %v7778 = vadd.f32 0.0, %v7777
      %v7779 = vpop.f32.mrb[0].mxu0
      %7780 = vmatprep.mubr.f32.mxu0 0.0
      %7781 = vmatmul.mubr.f32.gmra.mrb[0].mxu0 %v7640
      %v7782 = vpop.f32.mrb[0].mxu0
      %v7783 = vadd.f32 0.0, %v7782
      %v7784 = vpop.f32.mrb[0].mxu0
      %7785 = vmatprep.mubr.f32.mxu0 0.0
      %7786 = vmatmul.mubr.f32.gmra.mrb[0].mxu0 %v7642
      %v7787 = vpop.f32.mrb[0].mxu0
      %v7788 = vadd.f32 0.0, %v7787
      %v7789 = vpop.f32.mrb[0].mxu0
      %7790 = vmatprep.mubr.f32.mxu0 0.0
      %7791 = vmatmul.mubr.f32.gmra.mrb[0].mxu0 %v7644
      %v7792 = vpop.f32.mrb[0].mxu0
      %v7793 = vadd.f32 0.0, %v7792
      %v7794 = vpop.f32.mrb[0].mxu0
      %7795 = vmatprep.mubr.f32.mxu0 0.0
      %7796 = vmatmul.mubr.f32.gmra.mrb[0].mxu0 %v7646
      %v7797 = vpop.f32.mrb[0].mxu0
      %v7798 = vadd.f32 0.0, %v7797
      %v7799 = vpop.f32.mrb[0].mxu0
      %7800 = vmatprep.mubr.f32.mxu0 0.0
      %7801 = vmatmul.mubr.f32.gmra.mrb[0].mxu0 %v7648
      %v7802 = vpop.f32.mrb[0].mxu0
      %v7803 = vadd.f32 0.0, %v7802
      %v7804 = vpop.f32.mrb[0].mxu0
      %7805 = vmatprep.mubr.f32.mxu0 0.0
      %7806 = vmatmul.mubr.f32.gmra.mrb[0].mxu0 %v7650
      %v7807 = vpop.f32.mrb[0].mxu0
      %v7808 = vadd.f32 0.0, %v7807
      %v7809 = vpop.f32.mrb[0].mxu0
      %7810 = vmatprep.mubr.f32.mxu0 0.0
      %7811 = vmatmul.mubr.f32.gmra.mrb[0].mxu0 %v7652
      %v7812 = vpop.f32.mrb[0].mxu0
      %v7813 = vadd.f32 0.0, %v7812
      %v7814 = vpop.f32.mrb[0].mxu0
      %7815 = vmatprep.mubr.f32.mxu0 0.0
      %7816 = vmatmul.mubr.f32.gmra.mrb[0].mxu0 %v7654
      %v7817 = vpop.f32.mrb[0].mxu0
      %v7818 = vadd.f32 0.0, %v7817
      %v7819 = vpop.f32.mrb[0].mxu0
      %7820 = vmatprep.mubr.f32.mxu0 0.0
      %7821 = vmatmul.mubr.f32.gmra.mrb[0].mxu0 %v7656
      %v7822 = vpop.f32.mrb[0].mxu0
      %v7823 = vadd.f32 0.0, %v7822
      %v7824 = vpop.f32.mrb[0].mxu0
      %7825 = vmatprep.mubr.f32.mxu0 0.0
      %7826 = vmatmul.mubr.f32.gmra.mrb[0].mxu0 %v7658
      %v7827 = vpop.f32.mrb[0].mxu0
      %v7828 = vadd.f32 0.0, %v7827
      %v7829 = vpop.f32.mrb[0].mxu0
      %7830 = vmatprep.mubr.f32.mxu0 0.0
      %7831 = vmatmul.mubr.f32.gmra.mrb[0].mxu0 %v7660
      %v7832 = vpop.f32.mrb[0].mxu0
      %v7833 = vadd.f32 0.0, %v7832
      %v7834 = vpop.f32.mrb[0].mxu0
      %7835 = vmatprep.mubr.f32.mxu0 0.0
      %7836 = vmatmul.mubr.f32.gmra.mrb[0].mxu0 %v7662
      %v7837 = vpop.f32.mrb[0].mxu0
      %v7838 = vadd.f32 0.0, %v7837
      %v7839 = vpop.f32.mrb[0].mxu0
      %7840 = vdwg.mxu0
      %v7841 = vmul.f32 %v7763, 0.70710677
      %v7842 = vmul.f32 %v7768, 0.70710677
      %v7843 = vmul.f32 %v7773, 0.70710677
      %v7844 = vmul.f32 %v7778, 0.70710677
      %v7845 = vmul.f32 %v7783, 0.70710677
      %v7846 = vmul.f32 %v7788, 0.70710677
      %v7847 = vmul.f32 %v7793, 0.70710677
      %v7848 = vmul.f32 %v7798, 0.70710677
      %v7849 = vmul.f32 %v7803, 0.70710677
      %v7850 = vmul.f32 %v7808, 0.70710677
      %v7851 = vmul.f32 %v7813, 0.70710677
      %v7852 = vmul.f32 %v7818, 0.70710677
      %v7853 = vmul.f32 %v7823, 0.70710677
      %v7854 = vmul.f32 %v7828, 0.70710677
      %v7855 = vmul.f32 %v7833, 0.70710677
      %v7856 = vmul.f32 %v7838, 0.70710677
      %7857 = vmax.xlane.f32.xlu0 %v7841
      %v7858 = vpop.xlane.xlu0 %7857
      %7859 = vmax.xlane.f32.xlu0 %v7842
      %v7860 = vpop.xlane.xlu0 %7859
      %7861 = vmax.xlane.f32.xlu0 %v7843
      %v7862 = vpop.xlane.xlu0 %7861
      %7863 = vmax.xlane.f32.xlu0 %v7844
      %v7864 = vpop.xlane.xlu0 %7863
      %7865 = vmax.xlane.f32.xlu0 %v7845
      %v7866 = vpop.xlane.xlu0 %7865
      %7867 = vmax.xlane.f32.xlu0 %v7846
      %v7868 = vpop.xlane.xlu0 %7867
      %7869 = vmax.xlane.f32.xlu0 %v7847
      %v7870 = vpop.xlane.xlu0 %7869
      %7871 = vmax.xlane.f32.xlu0 %v7848
      %v7872 = vpop.xlane.xlu0 %7871
      %7873 = vmax.xlane.f32.xlu0 %v7849
      %v7874 = vpop.xlane.xlu0 %7873
      %7875 = vmax.xlane.f32.xlu0 %v7850
      %v7876 = vpop.xlane.xlu0 %7875
      %7877 = vmax.xlane.f32.xlu0 %v7851
      %v7878 = vpop.xlane.xlu0 %7877
      %7879 = vmax.xlane.f32.xlu0 %v7852
      %v7880 = vpop.xlane.xlu0 %7879
      %7881 = vmax.xlane.f32.xlu0 %v7853
      %v7882 = vpop.xlane.xlu0 %7881
      %7883 = vmax.xlane.f32.xlu0 %v7854
      %v7884 = vpop.xlane.xlu0 %7883
      %7885 = vmax.xlane.f32.xlu0 %v7855
      %v7886 = vpop.xlane.xlu0 %7885
      %7887 = vmax.xlane.f32.xlu0 %v7856
      %v7888 = vpop.xlane.xlu0 %7887
      %v7889 = vsub.f32 %v7841, %v7858
      %v7890 = vsub.f32 %v7842, %v7860
      %v7891 = vsub.f32 %v7843, %v7862
      %v7892 = vsub.f32 %v7844, %v7864
      %v7893 = vsub.f32 %v7845, %v7866
      %v7894 = vsub.f32 %v7846, %v7868
      %v7895 = vsub.f32 %v7847, %v7870
      %v7896 = vsub.f32 %v7848, %v7872
      %v7897 = vsub.f32 %v7849, %v7874
      %v7898 = vsub.f32 %v7850, %v7876
      %v7899 = vsub.f32 %v7851, %v7878
      %v7900 = vsub.f32 %v7852, %v7880
      %v7901 = vsub.f32 %v7853, %v7882
      %v7902 = vsub.f32 %v7854, %v7884
      %v7903 = vsub.f32 %v7855, %v7886
      %v7904 = vsub.f32 %v7856, %v7888
      %v7905 = vmul.f32 %v7889, 1.442695
      %v7906 = vpow.pop %v7905
      %v7907 = vmul.f32 %v7890, 1.442695
      %v7908 = vpow.pop %v7907
      %v7909 = vmul.f32 %v7891, 1.442695
      %v7910 = vpow.pop %v7909
      %v7911 = vmul.f32 %v7892, 1.442695
      %v7912 = vpow.pop %v7911
      %v7913 = vmul.f32 %v7893, 1.442695
      %v7914 = vpow.pop %v7913
      %v7915 = vmul.f32 %v7894, 1.442695
      %v7916 = vpow.pop %v7915
      %v7917 = vmul.f32 %v7895, 1.442695
      %v7918 = vpow.pop %v7917
      %v7919 = vmul.f32 %v7896, 1.442695
      %v7920 = vpow.pop %v7919
      %v7921 = vmul.f32 %v7897, 1.442695
      %v7922 = vpow.pop %v7921
      %v7923 = vmul.f32 %v7898, 1.442695
      %v7924 = vpow.pop %v7923
      %v7925 = vmul.f32 %v7899, 1.442695
      %v7926 = vpow.pop %v7925
      %v7927 = vmul.f32 %v7900, 1.442695
      %v7928 = vpow.pop %v7927
      %v7929 = vmul.f32 %v7901, 1.442695
      %v7930 = vpow.pop %v7929
      %v7931 = vmul.f32 %v7902, 1.442695
      %v7932 = vpow.pop %v7931
      %v7933 = vmul.f32 %v7903, 1.442695
      %v7934 = vpow.pop %v7933
      %v7935 = vmul.f32 %v7904, 1.442695
      %v7936 = vpow.pop %v7935
      %7937 = vadd.xlane.f32.xlu0 %v7906
      %v7938 = vpop.xlane.xlu0 %7937
      %7939 = vadd.xlane.f32.xlu0 %v7908
      %v7940 = vpop.xlane.xlu0 %7939
      %7941 = vadd.xlane.f32.xlu0 %v7910
      %v7942 = vpop.xlane.xlu0 %7941
      %7943 = vadd.xlane.f32.xlu0 %v7912
      %v7944 = vpop.xlane.xlu0 %7943
      %7945 = vadd.xlane.f32.xlu0 %v7914
      %v7946 = vpop.xlane.xlu0 %7945
      %7947 = vadd.xlane.f32.xlu0 %v7916
      %v7948 = vpop.xlane.xlu0 %7947
      %7949 = vadd.xlane.f32.xlu0 %v7918
      %v7950 = vpop.xlane.xlu0 %7949
      %7951 = vadd.xlane.f32.xlu0 %v7920
      %v7952 = vpop.xlane.xlu0 %7951
      %7953 = vadd.xlane.f32.xlu0 %v7922
      %v7954 = vpop.xlane.xlu0 %7953
      %7955 = vadd.xlane.f32.xlu0 %v7924
      %v7956 = vpop.xlane.xlu0 %7955
      %7957 = vadd.xlane.f32.xlu0 %v7926
      %v7958 = vpop.xlane.xlu0 %7957
      %7959 = vadd.xlane.f32.xlu0 %v7928
      %v7960 = vpop.xlane.xlu0 %7959
      %7961 = vadd.xlane.f32.xlu0 %v7930
      %v7962 = vpop.xlane.xlu0 %7961
      %7963 = vadd.xlane.f32.xlu0 %v7932
      %v7964 = vpop.xlane.xlu0 %7963
      %7965 = vadd.xlane.f32.xlu0 %v7934
      %v7966 = vpop.xlane.xlu0 %7965
      %7967 = vadd.xlane.f32.xlu0 %v7936
      %v7968 = vpop.xlane.xlu0 %7967
      %v7969 = vrcp.pop %v7938
      %v7970 = vrcp.pop %v7940
      %v7971 = vrcp.pop %v7942
      %v7972 = vrcp.pop %v7944
      %v7973 = vrcp.pop %v7946
      %v7974 = vrcp.pop %v7948
      %v7975 = vrcp.pop %v7950
      %v7976 = vrcp.pop %v7952
      %v7977 = vrcp.pop %v7954
      %v7978 = vrcp.pop %v7956
      %v7979 = vrcp.pop %v7958
      %v7980 = vrcp.pop %v7960
      %v7981 = vrcp.pop %v7962
      %v7982 = vrcp.pop %v7964
      %v7983 = vrcp.pop %v7966
      %v7984 = vrcp.pop %v7968
      %v7985 = vmul.f32 %v7906, %v7969
      %v7986 = vmul.f32 %v7908, %v7970
      %v7987 = vmul.f32 %v7910, %v7971
      %v7988 = vmul.f32 %v7912, %v7972
      %v7989 = vmul.f32 %v7914, %v7973
      %v7990 = vmul.f32 %v7916, %v7974
      %v7991 = vmul.f32 %v7918, %v7975
      %v7992 = vmul.f32 %v7920, %v7976
      %v7993 = vmul.f32 %v7922, %v7977
      %v7994 = vmul.f32 %v7924, %v7978
      %v7995 = vmul.f32 %v7926, %v7979
      %v7996 = vmul.f32 %v7928, %v7980
      %v7997 = vmul.f32 %v7930, %v7981
      %v7998 = vmul.f32 %v7932, %v7982
      %v7999 = vmul.f32 %v7934, %v7983
      %v8000 = vmul.f32 %v7936, %v7984
      %8001 = vrot.lane.b32.xlu0 %v7551, 120
      %v8002 = vpop.permute.xlu0 %8001
      %8003 = vrot.lane.b32.xlu0 %v7552, 120
      %v8004 = vpop.permute.xlu0 %8003
      %8005 = vrot.lane.b32.xlu0 %v7553, 120
      %v8006 = vpop.permute.xlu0 %8005
      %8007 = vrot.lane.b32.xlu0 %v7554, 120
      %v8008 = vpop.permute.xlu0 %8007
      %8009 = vrot.lane.b32.xlu0 %v7555, 120
      %v8010 = vpop.permute.xlu0 %8009
      %8011 = vrot.lane.b32.xlu0 %v7556, 120
      %v8012 = vpop.permute.xlu0 %8011
      %8013 = vrot.lane.b32.xlu0 %v7557, 120
      %v8014 = vpop.permute.xlu0 %8013
      %8015 = vrot.lane.b32.xlu0 %v7558, 120
      %v8016 = vpop.permute.xlu0 %8015
      %8017 = vrot.lane.b32.xlu0 %v7559, 120
      %v8018 = vpop.permute.xlu0 %8017
      %8019 = vrot.lane.b32.xlu0 %v7560, 120
      %v8020 = vpop.permute.xlu0 %8019
      %8021 = vrot.lane.b32.xlu0 %v7561, 120
      %v8022 = vpop.permute.xlu0 %8021
      %8023 = vrot.lane.b32.xlu0 %v7562, 120
      %v8024 = vpop.permute.xlu0 %8023
      %8025 = vrot.lane.b32.xlu0 %v7563, 120
      %v8026 = vpop.permute.xlu0 %8025
      %8027 = vrot.lane.b32.xlu0 %v7564, 120
      %v8028 = vpop.permute.xlu0 %8027
      %8029 = vrot.lane.b32.xlu0 %v7565, 120
      %v8030 = vpop.permute.xlu0 %8029
      %8031 = vrot.lane.b32.xlu0 %v7566, 120
      %v8032 = vpop.permute.xlu0 %8031
      %8049 = vmatprep.subr.mxu0 0.0
      %8050 = vmatpush1.msra.mxu0 %v8002
      %8051 = vmatprep.subr.mxu0 0.0
      %8052 = vmatpush1.msra.mxu0 %v8004
      %8053 = vmatprep.subr.mxu0 0.0
      %8054 = vmatpush1.msra.mxu0 %v8006
      %8055 = vmatprep.subr.mxu0 0.0
      %8056 = vmatpush1.msra.mxu0 %v8008
      %8057 = vmatprep.subr.mxu0 0.0
      %8058 = vmatpush1.msra.mxu0 %v8010
      %8059 = vmatprep.subr.mxu0 0.0
      %8060 = vmatpush1.msra.mxu0 %v8012
      %8061 = vmatprep.subr.mxu0 0.0
      %8062 = vmatpush1.msra.mxu0 %v8014
      %8063 = vmatprep.subr.mxu0 0.0
      %8064 = vmatpush1.msra.mxu0 %v8016
      %8065 = vmatprep.subr.mxu0 0.0
      %8066 = vmatpush1.msra.mxu0 %v8018
      %8067 = vmatprep.subr.mxu0 0.0
      %8068 = vmatpush1.msra.mxu0 %v8020
      %8069 = vmatprep.subr.mxu0 0.0
      %8070 = vmatpush1.msra.mxu0 %v8022
      %8071 = vmatprep.subr.mxu0 0.0
      %8072 = vmatpush1.msra.mxu0 %v8024
      %8073 = vmatprep.subr.mxu0 0.0
      %8074 = vmatpush1.msra.mxu0 %v8026
      %8075 = vmatprep.subr.mxu0 0.0
      %8076 = vmatpush1.msra.mxu0 %v8028
      %8077 = vmatprep.subr.mxu0 0.0
      %8078 = vmatpush1.msra.mxu0 %v8030
      %8079 = vmatprep.subr.mxu0 0.0
      %8080 = vmatpush1.msra.mxu0 %v8032
      %8081 = vmatprep.subr.mxu0 0.0
      %8082 = vmatpush1.msra.mxu0 0.0
      %8083 = vmatprep.subr.mxu0 0.0
      %8084 = vmatpush1.msra.mxu0 0.0
      %8085 = vmatprep.subr.mxu0 0.0
      %8086 = vmatpush1.msra.mxu0 0.0
      %8087 = vmatprep.subr.mxu0 0.0
      %8088 = vmatpush1.msra.mxu0 0.0
      %8089 = vmatprep.subr.mxu0 0.0
      %8090 = vmatpush1.msra.mxu0 0.0
      %8091 = vmatprep.subr.mxu0 0.0
      %8092 = vmatpush1.msra.mxu0 0.0
      %8093 = vmatprep.subr.mxu0 0.0
      %8094 = vmatpush1.msra.mxu0 0.0
      %8095 = vmatprep.subr.mxu0 0.0
      %8096 = vmatpush1.msra.mxu0 0.0
      %8097 = vmatprep.subr.mxu0 0.0
      %8098 = vmatpush1.msra.mxu0 0.0
      %8099 = vmatprep.subr.mxu0 0.0
      %8100 = vmatpush1.msra.mxu0 0.0
      %8101 = vmatprep.subr.mxu0 0.0
      %8102 = vmatpush1.msra.mxu0 0.0
      %8103 = vmatprep.subr.mxu0 0.0
      %8104 = vmatpush1.msra.mxu0 0.0
      %8105 = vmatprep.subr.mxu0 0.0
      %8106 = vmatpush1.msra.mxu0 0.0
      %8107 = vmatprep.subr.mxu0 0.0
      %8108 = vmatpush1.msra.mxu0 0.0
      %8109 = vmatprep.subr.mxu0 0.0
      %8110 = vmatpush1.msra.mxu0 0.0
      %8111 = vmatprep.subr.mxu0 0.0
      %8112 = vmatpush1.msra.mxu0 0.0
      %8113 = vmatprep.mubr.f32.mxu0 0.0
      %8114 = vmatmul.mubr.f32.gmra.mrb[0].mxu0 %v7985
      %v8115 = vpop.f32.mrb[0].mxu0
      %v8116 = vadd.f32 0.0, %v8115
      %v8117 = vpop.f32.mrb[0].mxu0
      %8118 = vmatprep.mubr.f32.mxu0 0.0
      %8119 = vmatmul.mubr.f32.gmra.mrb[0].mxu0 %v7986
      %v8120 = vpop.f32.mrb[0].mxu0
      %v8121 = vadd.f32 0.0, %v8120
      %v8122 = vpop.f32.mrb[0].mxu0
      %8123 = vmatprep.mubr.f32.mxu0 0.0
      %8124 = vmatmul.mubr.f32.gmra.mrb[0].mxu0 %v7987
      %v8125 = vpop.f32.mrb[0].mxu0
      %v8126 = vadd.f32 0.0, %v8125
      %v8127 = vpop.f32.mrb[0].mxu0
      %8128 = vmatprep.mubr.f32.mxu0 0.0
      %8129 = vmatmul.mubr.f32.gmra.mrb[0].mxu0 %v7988
      %v8130 = vpop.f32.mrb[0].mxu0
      %v8131 = vadd.f32 0.0, %v8130
      %v8132 = vpop.f32.mrb[0].mxu0
      %8133 = vmatprep.mubr.f32.mxu0 0.0
      %8134 = vmatmul.mubr.f32.gmra.mrb[0].mxu0 %v7989
      %v8135 = vpop.f32.mrb[0].mxu0
      %v8136 = vadd.f32 0.0, %v8135
      %v8137 = vpop.f32.mrb[0].mxu0
      %8138 = vmatprep.mubr.f32.mxu0 0.0
      %8139 = vmatmul.mubr.f32.gmra.mrb[0].mxu0 %v7990
      %v8140 = vpop.f32.mrb[0].mxu0
      %v8141 = vadd.f32 0.0, %v8140
      %v8142 = vpop.f32.mrb[0].mxu0
      %8143 = vmatprep.mubr.f32.mxu0 0.0
      %8144 = vmatmul.mubr.f32.gmra.mrb[0].mxu0 %v7991
      %v8145 = vpop.f32.mrb[0].mxu0
      %v8146 = vadd.f32 0.0, %v8145
      %v8147 = vpop.f32.mrb[0].mxu0
      %8148 = vmatprep.mubr.f32.mxu0 0.0
      %8149 = vmatmul.mubr.f32.gmra.mrb[0].mxu0 %v7992
      %v8150 = vpop.f32.mrb[0].mxu0
      %v8151 = vadd.f32 0.0, %v8150
      %v8152 = vpop.f32.mrb[0].mxu0
      %8153 = vmatprep.mubr.f32.mxu0 0.0
      %8154 = vmatmul.mubr.f32.gmra.mrb[0].mxu0 %v7993
      %v8155 = vpop.f32.mrb[0].mxu0
      %v8156 = vadd.f32 0.0, %v8155
      %v8157 = vpop.f32.mrb[0].mxu0
      %8158 = vmatprep.mubr.f32.mxu0 0.0
      %8159 = vmatmul.mubr.f32.gmra.mrb[0].mxu0 %v7994
      %v8160 = vpop.f32.mrb[0].mxu0
      %v8161 = vadd.f32 0.0, %v8160
      %v8162 = vpop.f32.mrb[0].mxu0
      %8163 = vmatprep.mubr.f32.mxu0 0.0
      %8164 = vmatmul.mubr.f32.gmra.mrb[0].mxu0 %v7995
      %v8165 = vpop.f32.mrb[0].mxu0
      %v8166 = vadd.f32 0.0, %v8165
      %v8167 = vpop.f32.mrb[0].mxu0
      %8168 = vmatprep.mubr.f32.mxu0 0.0
      %8169 = vmatmul.mubr.f32.gmra.mrb[0].mxu0 %v7996
      %v8170 = vpop.f32.mrb[0].mxu0
      %v8171 = vadd.f32 0.0, %v8170
      %v8172 = vpop.f32.mrb[0].mxu0
      %8173 = vmatprep.mubr.f32.mxu0 0.0
      %8174 = vmatmul.mubr.f32.gmra.mrb[0].mxu0 %v7997
      %v8175 = vpop.f32.mrb[0].mxu0
      %v8176 = vadd.f32 0.0, %v8175
      %v8177 = vpop.f32.mrb[0].mxu0
      %8178 = vmatprep.mubr.f32.mxu0 0.0
      %8179 = vmatmul.mubr.f32.gmra.mrb[0].mxu0 %v7998
      %v8180 = vpop.f32.mrb[0].mxu0
      %v8181 = vadd.f32 0.0, %v8180
      %v8182 = vpop.f32.mrb[0].mxu0
      %8183 = vmatprep.mubr.f32.mxu0 0.0
      %8184 = vmatmul.mubr.f32.gmra.mrb[0].mxu0 %v7999
      %v8185 = vpop.f32.mrb[0].mxu0
      %v8186 = vadd.f32 0.0, %v8185
      %v8187 = vpop.f32.mrb[0].mxu0
      %8188 = vmatprep.mubr.f32.mxu0 0.0
      %8189 = vmatmul.mubr.f32.gmra.mrb[0].mxu0 %v8000
      %v8190 = vpop.f32.mrb[0].mxu0
      %v8191 = vadd.f32 0.0, %v8190
      %v8192 = vpop.f32.mrb[0].mxu0
      %8193 = vdwg.mxu0
      %v8194 = vld [vmem:[%s9] sm:$0xff]
      %v8195 = vld [vmem:[%s9 + $0x8] sm:$0xff]
      %v8196 = vld [vmem:[%s9 + $0x10] sm:$0xff]
      %v8197 = vld [vmem:[%s9 + $0x18] sm:$0xff]
      %v8198 = vld [vmem:[%s9 + $0x20] sm:$0xff]
      %v8199 = vld [vmem:[%s9 + $0x28] sm:$0xff]
      %v8200 = vld [vmem:[%s9 + $0x30] sm:$0xff]
      %v8201 = vld [vmem:[%s9 + $0x38] sm:$0xff]
      %v8202 = vld [vmem:[%s9 + $0x40] sm:$0xff]
      %v8203 = vld [vmem:[%s9 + $0x48] sm:$0xff]
      %v8204 = vld [vmem:[%s9 + $0x50] sm:$0xff]
      %v8205 = vld [vmem:[%s9 + $0x58] sm:$0xff]
      %v8206 = vld [vmem:[%s9 + $0x60] sm:$0xff]
      %v8207 = vld [vmem:[%s9 + $0x68] sm:$0xff]
      %v8208 = vld [vmem:[%s9 + $0x70] sm:$0xff]
      %v8209 = vld [vmem:[%s9 + $0x78] sm:$0xff]
      %8210 = vmatprep.subr.mxu0 0.0
      %8211 = vmatpush1.msra.mxu0 %v8116
      %8212 = vmatprep.subr.mxu0 0.0
      %8213 = vmatpush1.msra.mxu0 %v8121
      %8214 = vmatprep.subr.mxu0 0.0
      %8215 = vmatpush1.msra.mxu0 %v8126
      %8216 = vmatprep.subr.mxu0 0.0
      %8217 = vmatpush1.msra.mxu0 %v8131
      %8218 = vmatprep.subr.mxu0 0.0
      %8219 = vmatpush1.msra.mxu0 %v8136
      %8220 = vmatprep.subr.mxu0 0.0
      %8221 = vmatpush1.msra.mxu0 %v8141
      %8222 = vmatprep.subr.mxu0 0.0
      %8223 = vmatpush1.msra.mxu0 %v8146
      %8224 = vmatprep.subr.mxu0 0.0
      %8225 = vmatpush1.msra.mxu0 %v8151
      %8226 = vmatprep.subr.mxu0 0.0
      %8227 = vmatpush1.msra.mxu0 %v8156
      %8228 = vmatprep.subr.mxu0 0.0
      %8229 = vmatpush1.msra.mxu0 %v8161
      %8230 = vmatprep.subr.mxu0 0.0
      %8231 = vmatpush1.msra.mxu0 %v8166
      %8232 = vmatprep.subr.mxu0 0.0
      %8233 = vmatpush1.msra.mxu0 %v8171
      %8234 = vmatprep.subr.mxu0 0.0
      %8235 = vmatpush1.msra.mxu0 %v8176
      %8236 = vmatprep.subr.mxu0 0.0
      %8237 = vmatpush1.msra.mxu0 %v8181
      %8238 = vmatprep.subr.mxu0 0.0
      %8239 = vmatpush1.msra.mxu0 %v8186
      %8240 = vmatprep.subr.mxu0 0.0
      %8241 = vmatpush1.msra.mxu0 %v8191
      %8242 = vmatprep.subr.mxu0 0.0
      %8243 = vmatpush1.msra.mxu0 0.0
      %8244 = vmatprep.subr.mxu0 0.0
      %8245 = vmatpush1.msra.mxu0 0.0
      %8246 = vmatprep.subr.mxu0 0.0
      %8247 = vmatpush1.msra.mxu0 0.0
      %8248 = vmatprep.subr.mxu0 0.0
      %8249 = vmatpush1.msra.mxu0 0.0
      %8250 = vmatprep.subr.mxu0 0.0
      %8251 = vmatpush1.msra.mxu0 0.0
      %8252 = vmatprep.subr.mxu0 0.0
      %8253 = vmatpush1.msra.mxu0 0.0
      %8254 = vmatprep.subr.mxu0 0.0
      %8255 = vmatpush1.msra.mxu0 0.0
      %8256 = vmatprep.subr.mxu0 0.0
      %8257 = vmatpush1.msra.mxu0 0.0
      %8258 = vmatprep.subr.mxu0 0.0
      %8259 = vmatpush1.msra.mxu0 0.0
      %8260 = vmatprep.subr.mxu0 0.0
      %8261 = vmatpush1.msra.mxu0 0.0
      %8262 = vmatprep.subr.mxu0 0.0
      %8263 = vmatpush1.msra.mxu0 0.0
      %8264 = vmatprep.subr.mxu0 0.0
      %8265 = vmatpush1.msra.mxu0 0.0
      %8266 = vmatprep.subr.mxu0 0.0
      %8267 = vmatpush1.msra.mxu0 0.0
      %8268 = vmatprep.subr.mxu0 0.0
      %8269 = vmatpush1.msra.mxu0 0.0
      %8270 = vmatprep.subr.mxu0 0.0
      %8271 = vmatpush1.msra.mxu0 0.0
      %8272 = vmatprep.subr.mxu0 0.0
      %8273 = vmatpush1.msra.mxu0 0.0
      %8274 = vmatprep.mubr.f32.mxu0 0.0
      %8275 = vmatmul.mubr.f32.gmra.mrb[0].mxu0 %v8194
      %v8276 = vpop.f32.mrb[0].mxu0
      %v8277 = vadd.f32 0.0, %v8276
      %v8278 = vpop.f32.mrb[0].mxu0
      %8279 = vmatprep.mubr.f32.mxu0 0.0
      %8280 = vmatmul.mubr.f32.gmra.mrb[0].mxu0 %v8195
      %v8281 = vpop.f32.mrb[0].mxu0
      %v8282 = vadd.f32 0.0, %v8281
      %v8283 = vpop.f32.mrb[0].mxu0
      %8284 = vmatprep.mubr.f32.mxu0 0.0
      %8285 = vmatmul.mubr.f32.gmra.mrb[0].mxu0 %v8196
      %v8286 = vpop.f32.mrb[0].mxu0
      %v8287 = vadd.f32 0.0, %v8286
      %v8288 = vpop.f32.mrb[0].mxu0
      %8289 = vmatprep.mubr.f32.mxu0 0.0
      %8290 = vmatmul.mubr.f32.gmra.mrb[0].mxu0 %v8197
      %v8291 = vpop.f32.mrb[0].mxu0
      %v8292 = vadd.f32 0.0, %v8291
      %v8293 = vpop.f32.mrb[0].mxu0
      %8294 = vmatprep.mubr.f32.mxu0 0.0
      %8295 = vmatmul.mubr.f32.gmra.mrb[0].mxu0 %v8198
      %v8296 = vpop.f32.mrb[0].mxu0
      %v8297 = vadd.f32 0.0, %v8296
      %v8298 = vpop.f32.mrb[0].mxu0
      %8299 = vmatprep.mubr.f32.mxu0 0.0
      %8300 = vmatmul.mubr.f32.gmra.mrb[0].mxu0 %v8199
      %v8301 = vpop.f32.mrb[0].mxu0
      %v8302 = vadd.f32 0.0, %v8301
      %v8303 = vpop.f32.mrb[0].mxu0
      %8304 = vmatprep.mubr.f32.mxu0 0.0
      %8305 = vmatmul.mubr.f32.gmra.mrb[0].mxu0 %v8200
      %v8306 = vpop.f32.mrb[0].mxu0
      %v8307 = vadd.f32 0.0, %v8306
      %v8308 = vpop.f32.mrb[0].mxu0
      %8309 = vmatprep.mubr.f32.mxu0 0.0
      %8310 = vmatmul.mubr.f32.gmra.mrb[0].mxu0 %v8201
      %v8311 = vpop.f32.mrb[0].mxu0
      %v8312 = vadd.f32 0.0, %v8311
      %v8313 = vpop.f32.mrb[0].mxu0
      %8314 = vmatprep.mubr.f32.mxu0 0.0
      %8315 = vmatmul.mubr.f32.gmra.mrb[0].mxu0 %v8202
      %v8316 = vpop.f32.mrb[0].mxu0
      %v8317 = vadd.f32 0.0, %v8316
      %v8318 = vpop.f32.mrb[0].mxu0
      %8319 = vmatprep.mubr.f32.mxu0 0.0
      %8320 = vmatmul.mubr.f32.gmra.mrb[0].mxu0 %v8203
      %v8321 = vpop.f32.mrb[0].mxu0
      %v8322 = vadd.f32 0.0, %v8321
      %v8323 = vpop.f32.mrb[0].mxu0
      %8324 = vmatprep.mubr.f32.mxu0 0.0
      %8325 = vmatmul.mubr.f32.gmra.mrb[0].mxu0 %v8204
      %v8326 = vpop.f32.mrb[0].mxu0
      %v8327 = vadd.f32 0.0, %v8326
      %v8328 = vpop.f32.mrb[0].mxu0
      %8329 = vmatprep.mubr.f32.mxu0 0.0
      %8330 = vmatmul.mubr.f32.gmra.mrb[0].mxu0 %v8205
      %v8331 = vpop.f32.mrb[0].mxu0
      %v8332 = vadd.f32 0.0, %v8331
      %v8333 = vpop.f32.mrb[0].mxu0
      %8334 = vmatprep.mubr.f32.mxu0 0.0
      %8335 = vmatmul.mubr.f32.gmra.mrb[0].mxu0 %v8206
      %v8336 = vpop.f32.mrb[0].mxu0
      %v8337 = vadd.f32 0.0, %v8336
      %v8338 = vpop.f32.mrb[0].mxu0
      %8339 = vmatprep.mubr.f32.mxu0 0.0
      %8340 = vmatmul.mubr.f32.gmra.mrb[0].mxu0 %v8207
      %v8341 = vpop.f32.mrb[0].mxu0
      %v8342 = vadd.f32 0.0, %v8341
      %v8343 = vpop.f32.mrb[0].mxu0
      %8344 = vmatprep.mubr.f32.mxu0 0.0
      %8345 = vmatmul.mubr.f32.gmra.mrb[0].mxu0 %v8208
      %v8346 = vpop.f32.mrb[0].mxu0
      %v8347 = vadd.f32 0.0, %v8346
      %v8348 = vpop.f32.mrb[0].mxu0
      %8349 = vmatprep.mubr.f32.mxu0 0.0
      %8350 = vmatmul.mubr.f32.gmra.mrb[0].mxu0 %v8209
      %v8351 = vpop.f32.mrb[0].mxu0
      %v8352 = vadd.f32 0.0, %v8351
      %v8353 = vpop.f32.mrb[0].mxu0
      %8354 = vdwg.mxu0
      %v8355 = vadd.f32 %v7567, %v8277
      %v8356 = vadd.f32 %v7568, %v8282
      %v8357 = vadd.f32 %v7569, %v8287
      %v8358 = vadd.f32 %v7570, %v8292
      %v8359 = vadd.f32 %v7571, %v8297
      %v8360 = vadd.f32 %v7572, %v8302
      %v8361 = vadd.f32 %v7573, %v8307
      %v8362 = vadd.f32 %v7574, %v8312
      %v8363 = vadd.f32 %v7575, %v8317
      %v8364 = vadd.f32 %v7576, %v8322
      %v8365 = vadd.f32 %v7577, %v8327
      %v8366 = vadd.f32 %v7578, %v8332
      %v8367 = vadd.f32 %v7579, %v8337
      %v8368 = vadd.f32 %v7580, %v8342
      %v8369 = vadd.f32 %v7581, %v8347
      %v8370 = vadd.f32 %v7582, %v8352
      %s8371 = scalar_lea.vmem %s9, 128
      %v8372 = vld [vmem:[%s8371] sm:$0xff]
      %v8373 = vld [vmem:[%s8371 + $0x8] sm:$0xff]
      %v8374 = vld [vmem:[%s8371 + $0x10] sm:$0xff]
      %v8375 = vld [vmem:[%s8371 + $0x18] sm:$0xff]
      %v8376 = vld [vmem:[%s8371 + $0x20] sm:$0xff]
      %v8377 = vld [vmem:[%s8371 + $0x28] sm:$0xff]
      %v8378 = vld [vmem:[%s8371 + $0x30] sm:$0xff]
      %v8379 = vld [vmem:[%s8371 + $0x38] sm:$0xff]
      %v8380 = vld [vmem:[%s8371 + $0x40] sm:$0xff]
      %v8381 = vld [vmem:[%s8371 + $0x48] sm:$0xff]
      %v8382 = vld [vmem:[%s8371 + $0x50] sm:$0xff]
      %v8383 = vld [vmem:[%s8371 + $0x58] sm:$0xff]
      %v8384 = vld [vmem:[%s8371 + $0x60] sm:$0xff]
      %v8385 = vld [vmem:[%s8371 + $0x68] sm:$0xff]
      %v8386 = vld [vmem:[%s8371 + $0x70] sm:$0xff]
      %v8387 = vld [vmem:[%s8371 + $0x78] sm:$0xff]
      %8404 = vrot.lane.b32.xlu0 %v8116, 127
      %v8405 = vpop.permute.xlu0 %8404
      %8406 = vrot.lane.b32.xlu0 %v8121, 127
      %v8407 = vpop.permute.xlu0 %8406
      %8408 = vrot.lane.b32.xlu0 %v8126, 127
      %v8409 = vpop.permute.xlu0 %8408
      %8410 = vrot.lane.b32.xlu0 %v8131, 127
      %v8411 = vpop.permute.xlu0 %8410
      %8412 = vrot.lane.b32.xlu0 %v8136, 127
      %v8413 = vpop.permute.xlu0 %8412
      %8414 = vrot.lane.b32.xlu0 %v8141, 127
      %v8415 = vpop.permute.xlu0 %8414
      %8416 = vrot.lane.b32.xlu0 %v8146, 127
      %v8417 = vpop.permute.xlu0 %8416
      %8418 = vrot.lane.b32.xlu0 %v8151, 127
      %v8419 = vpop.permute.xlu0 %8418
      %8420 = vrot.lane.b32.xlu0 %v8156, 127
      %v8421 = vpop.permute.xlu0 %8420
      %8422 = vrot.lane.b32.xlu0 %v8161, 127
      %v8423 = vpop.permute.xlu0 %8422
      %8424 = vrot.lane.b32.xlu0 %v8166, 127
      %v8425 = vpop.permute.xlu0 %8424
      %8426 = vrot.lane.b32.xlu0 %v8171, 127
      %v8427 = vpop.permute.xlu0 %8426
      %8428 = vrot.lane.b32.xlu0 %v8176, 127
      %v8429 = vpop.permute.xlu0 %8428
      %8430 = vrot.lane.b32.xlu0 %v8181, 127
      %v8431 = vpop.permute.xlu0 %8430
      %8432 = vrot.lane.b32.xlu0 %v8186, 127
      %v8433 = vpop.permute.xlu0 %8432
      %8434 = vrot.lane.b32.xlu0 %v8191, 127
      %v8435 = vpop.permute.xlu0 %8434
      %8452 = vmatprep.subr.mxu0 0.0
      %8453 = vmatpush1.msra.mxu0 %v8405
      %8454 = vmatprep.subr.mxu0 0.0
      %8455 = vmatpush1.msra.mxu0 %v8407
      %8456 = vmatprep.subr.mxu0 0.0
      %8457 = vmatpush1.msra.mxu0 %v8409
      %8458 = vmatprep.subr.mxu0 0.0
      %8459 = vmatpush1.msra.mxu0 %v8411
      %8460 = vmatprep.subr.mxu0 0.0
      %8461 = vmatpush1.msra.mxu0 %v8413
      %8462 = vmatprep.subr.mxu0 0.0
      %8463 = vmatpush1.msra.mxu0 %v8415
      %8464 = vmatprep.subr.mxu0 0.0
      %8465 = vmatpush1.msra.mxu0 %v8417
      %8466 = vmatprep.subr.mxu0 0.0
      %8467 = vmatpush1.msra.mxu0 %v8419
      %8468 = vmatprep.subr.mxu0 0.0
      %8469 = vmatpush1.msra.mxu0 %v8421
      %8470 = vmatprep.subr.mxu0 0.0
      %8471 = vmatpush1.msra.mxu0 %v8423
      %8472 = vmatprep.subr.mxu0 0.0
      %8473 = vmatpush1.msra.mxu0 %v8425
      %8474 = vmatprep.subr.mxu0 0.0
      %8475 = vmatpush1.msra.mxu0 %v8427
      %8476 = vmatprep.subr.mxu0 0.0
      %8477 = vmatpush1.msra.mxu0 %v8429
      %8478 = vmatprep.subr.mxu0 0.0
      %8479 = vmatpush1.msra.mxu0 %v8431
      %8480 = vmatprep.subr.mxu0 0.0
      %8481 = vmatpush1.msra.mxu0 %v8433
      %8482 = vmatprep.subr.mxu0 0.0
      %8483 = vmatpush1.msra.mxu0 %v8435
      %8484 = vmatprep.subr.mxu0 0.0
      %8485 = vmatpush1.msra.mxu0 0.0
      %8486 = vmatprep.subr.mxu0 0.0
      %8487 = vmatpush1.msra.mxu0 0.0
      %8488 = vmatprep.subr.mxu0 0.0
      %8489 = vmatpush1.msra.mxu0 0.0
      %8490 = vmatprep.subr.mxu0 0.0
      %8491 = vmatpush1.msra.mxu0 0.0
      %8492 = vmatprep.subr.mxu0 0.0
      %8493 = vmatpush1.msra.mxu0 0.0
      %8494 = vmatprep.subr.mxu0 0.0
      %8495 = vmatpush1.msra.mxu0 0.0
      %8496 = vmatprep.subr.mxu0 0.0
      %8497 = vmatpush1.msra.mxu0 0.0
      %8498 = vmatprep.subr.mxu0 0.0
      %8499 = vmatpush1.msra.mxu0 0.0
      %8500 = vmatprep.subr.mxu0 0.0
      %8501 = vmatpush1.msra.mxu0 0.0
      %8502 = vmatprep.subr.mxu0 0.0
      %8503 = vmatpush1.msra.mxu0 0.0
      %8504 = vmatprep.subr.mxu0 0.0
      %8505 = vmatpush1.msra.mxu0 0.0
      %8506 = vmatprep.subr.mxu0 0.0
      %8507 = vmatpush1.msra.mxu0 0.0
      %8508 = vmatprep.subr.mxu0 0.0
      %8509 = vmatpush1.msra.mxu0 0.0
      %8510 = vmatprep.subr.mxu0 0.0
      %8511 = vmatpush1.msra.mxu0 0.0
      %8512 = vmatprep.subr.mxu0 0.0
      %8513 = vmatpush1.msra.mxu0 0.0
      %8514 = vmatprep.subr.mxu0 0.0
      %8515 = vmatpush1.msra.mxu0 0.0
      %8516 = vmatprep.mubr.f32.mxu0 0.0
      %8517 = vmatmul.mubr.f32.gmra.mrb[0].mxu0 %v8372
      %v8518 = vpop.f32.mrb[0].mxu0
      %v8519 = vadd.f32 0.0, %v8518
      %v8520 = vpop.f32.mrb[0].mxu0
      %8521 = vmatprep.mubr.f32.mxu0 0.0
      %8522 = vmatmul.mubr.f32.gmra.mrb[0].mxu0 %v8373
      %v8523 = vpop.f32.mrb[0].mxu0
      %v8524 = vadd.f32 0.0, %v8523
      %v8525 = vpop.f32.mrb[0].mxu0
      %8526 = vmatprep.mubr.f32.mxu0 0.0
      %8527 = vmatmul.mubr.f32.gmra.mrb[0].mxu0 %v8374
      %v8528 = vpop.f32.mrb[0].mxu0
      %v8529 = vadd.f32 0.0, %v8528
      %v8530 = vpop.f32.mrb[0].mxu0
      %8531 = vmatprep.mubr.f32.mxu0 0.0
      %8532 = vmatmul.mubr.f32.gmra.mrb[0].mxu0 %v8375
      %v8533 = vpop.f32.mrb[0].mxu0
      %v8534 = vadd.f32 0.0, %v8533
      %v8535 = vpop.f32.mrb[0].mxu0
      %8536 = vmatprep.mubr.f32.mxu0 0.0
      %8537 = vmatmul.mubr.f32.gmra.mrb[0].mxu0 %v8376
      %v8538 = vpop.f32.mrb[0].mxu0
      %v8539 = vadd.f32 0.0, %v8538
      %v8540 = vpop.f32.mrb[0].mxu0
      %8541 = vmatprep.mubr.f32.mxu0 0.0
      %8542 = vmatmul.mubr.f32.gmra.mrb[0].mxu0 %v8377
      %v8543 = vpop.f32.mrb[0].mxu0
      %v8544 = vadd.f32 0.0, %v8543
      %v8545 = vpop.f32.mrb[0].mxu0
      %8546 = vmatprep.mubr.f32.mxu0 0.0
      %8547 = vmatmul.mubr.f32.gmra.mrb[0].mxu0 %v8378
      %v8548 = vpop.f32.mrb[0].mxu0
      %v8549 = vadd.f32 0.0, %v8548
      %v8550 = vpop.f32.mrb[0].mxu0
      %8551 = vmatprep.mubr.f32.mxu0 0.0
      %8552 = vmatmul.mubr.f32.gmra.mrb[0].mxu0 %v8379
      %v8553 = vpop.f32.mrb[0].mxu0
      %v8554 = vadd.f32 0.0, %v8553
      %v8555 = vpop.f32.mrb[0].mxu0
      %8556 = vmatprep.mubr.f32.mxu0 0.0
      %8557 = vmatmul.mubr.f32.gmra.mrb[0].mxu0 %v8380
      %v8558 = vpop.f32.mrb[0].mxu0
      %v8559 = vadd.f32 0.0, %v8558
      %v8560 = vpop.f32.mrb[0].mxu0
      %8561 = vmatprep.mubr.f32.mxu0 0.0
      %8562 = vmatmul.mubr.f32.gmra.mrb[0].mxu0 %v8381
      %v8563 = vpop.f32.mrb[0].mxu0
      %v8564 = vadd.f32 0.0, %v8563
      %v8565 = vpop.f32.mrb[0].mxu0
      %8566 = vmatprep.mubr.f32.mxu0 0.0
      %8567 = vmatmul.mubr.f32.gmra.mrb[0].mxu0 %v8382
      %v8568 = vpop.f32.mrb[0].mxu0
      %v8569 = vadd.f32 0.0, %v8568
      %v8570 = vpop.f32.mrb[0].mxu0
      %8571 = vmatprep.mubr.f32.mxu0 0.0
      %8572 = vmatmul.mubr.f32.gmra.mrb[0].mxu0 %v8383
      %v8573 = vpop.f32.mrb[0].mxu0
      %v8574 = vadd.f32 0.0, %v8573
      %v8575 = vpop.f32.mrb[0].mxu0
      %8576 = vmatprep.mubr.f32.mxu0 0.0
      %8577 = vmatmul.mubr.f32.gmra.mrb[0].mxu0 %v8384
      %v8578 = vpop.f32.mrb[0].mxu0
      %v8579 = vadd.f32 0.0, %v8578
      %v8580 = vpop.f32.mrb[0].mxu0
      %8581 = vmatprep.mubr.f32.mxu0 0.0
      %8582 = vmatmul.mubr.f32.gmra.mrb[0].mxu0 %v8385
      %v8583 = vpop.f32.mrb[0].mxu0
      %v8584 = vadd.f32 0.0, %v8583
      %v8585 = vpop.f32.mrb[0].mxu0
      %8586 = vmatprep.mubr.f32.mxu0 0.0
      %8587 = vmatmul.mubr.f32.gmra.mrb[0].mxu0 %v8386
      %v8588 = vpop.f32.mrb[0].mxu0
      %v8589 = vadd.f32 0.0, %v8588
      %v8590 = vpop.f32.mrb[0].mxu0
      %8591 = vmatprep.mubr.f32.mxu0 0.0
      %8592 = vmatmul.mubr.f32.gmra.mrb[0].mxu0 %v8387
      %v8593 = vpop.f32.mrb[0].mxu0
      %v8594 = vadd.f32 0.0, %v8593
      %v8595 = vpop.f32.mrb[0].mxu0
      %8596 = vdwg.mxu0
      %v8597 = vadd.f32 %v8355, %v8519
      %v8598 = vadd.f32 %v8356, %v8524
      %v8599 = vadd.f32 %v8357, %v8529
      %v8600 = vadd.f32 %v8358, %v8534
      %v8601 = vadd.f32 %v8359, %v8539
      %v8602 = vadd.f32 %v8360, %v8544
      %v8603 = vadd.f32 %v8361, %v8549
      %v8604 = vadd.f32 %v8362, %v8554
      %v8605 = vadd.f32 %v8363, %v8559
      %v8606 = vadd.f32 %v8364, %v8564
      %v8607 = vadd.f32 %v8365, %v8569
      %v8608 = vadd.f32 %v8366, %v8574
      %v8609 = vadd.f32 %v8367, %v8579
      %v8610 = vadd.f32 %v8368, %v8584
      %v8611 = vadd.f32 %v8369, %v8589
      %v8612 = vadd.f32 %v8370, %v8594
      %8613 = vrot.lane.b32.xlu0 %v7551, 126
      %v8614 = vpop.permute.xlu0 %8613
      %8615 = vrot.lane.b32.xlu0 %v7552, 126
      %v8616 = vpop.permute.xlu0 %8615
      %8617 = vrot.lane.b32.xlu0 %v7553, 126
      %v8618 = vpop.permute.xlu0 %8617
      %8619 = vrot.lane.b32.xlu0 %v7554, 126
      %v8620 = vpop.permute.xlu0 %8619
      %8621 = vrot.lane.b32.xlu0 %v7555, 126
      %v8622 = vpop.permute.xlu0 %8621
      %8623 = vrot.lane.b32.xlu0 %v7556, 126
      %v8624 = vpop.permute.xlu0 %8623
      %8625 = vrot.lane.b32.xlu0 %v7557, 126
      %v8626 = vpop.permute.xlu0 %8625
      %8627 = vrot.lane.b32.xlu0 %v7558, 126
      %v8628 = vpop.permute.xlu0 %8627
      %8629 = vrot.lane.b32.xlu0 %v7559, 126
      %v8630 = vpop.permute.xlu0 %8629
      %8631 = vrot.lane.b32.xlu0 %v7560, 126
      %v8632 = vpop.permute.xlu0 %8631
      %8633 = vrot.lane.b32.xlu0 %v7561, 126
      %v8634 = vpop.permute.xlu0 %8633
      %8635 = vrot.lane.b32.xlu0 %v7562, 126
      %v8636 = vpop.permute.xlu0 %8635
      %8637 = vrot.lane.b32.xlu0 %v7563, 126
      %v8638 = vpop.permute.xlu0 %8637
      %8639 = vrot.lane.b32.xlu0 %v7564, 126
      %v8640 = vpop.permute.xlu0 %8639
      %8641 = vrot.lane.b32.xlu0 %v7565, 126
      %v8642 = vpop.permute.xlu0 %8641
      %8643 = vrot.lane.b32.xlu0 %v7566, 126
      %v8644 = vpop.permute.xlu0 %8643
      %8645 = vrot.lane.b32.xlu0 %v7551, 122
      %v8646 = vpop.permute.xlu0 %8645
      %8647 = vrot.lane.b32.xlu0 %v7552, 122
      %v8648 = vpop.permute.xlu0 %8647
      %8649 = vrot.lane.b32.xlu0 %v7553, 122
      %v8650 = vpop.permute.xlu0 %8649
      %8651 = vrot.lane.b32.xlu0 %v7554, 122
      %v8652 = vpop.permute.xlu0 %8651
      %8653 = vrot.lane.b32.xlu0 %v7555, 122
      %v8654 = vpop.permute.xlu0 %8653
      %8655 = vrot.lane.b32.xlu0 %v7556, 122
      %v8656 = vpop.permute.xlu0 %8655
      %8657 = vrot.lane.b32.xlu0 %v7557, 122
      %v8658 = vpop.permute.xlu0 %8657
      %8659 = vrot.lane.b32.xlu0 %v7558, 122
      %v8660 = vpop.permute.xlu0 %8659
      %8661 = vrot.lane.b32.xlu0 %v7559, 122
      %v8662 = vpop.permute.xlu0 %8661
      %8663 = vrot.lane.b32.xlu0 %v7560, 122
      %v8664 = vpop.permute.xlu0 %8663
      %8665 = vrot.lane.b32.xlu0 %v7561, 122
      %v8666 = vpop.permute.xlu0 %8665
      %8667 = vrot.lane.b32.xlu0 %v7562, 122
      %v8668 = vpop.permute.xlu0 %8667
      %8669 = vrot.lane.b32.xlu0 %v7563, 122
      %v8670 = vpop.permute.xlu0 %8669
      %8671 = vrot.lane.b32.xlu0 %v7564, 122
      %v8672 = vpop.permute.xlu0 %8671
      %8673 = vrot.lane.b32.xlu0 %v7565, 122
      %v8674 = vpop.permute.xlu0 %8673
      %8675 = vrot.lane.b32.xlu0 %v7566, 122
      %v8676 = vpop.permute.xlu0 %8675
      %v8677 = vsel %vm7631, %v8614, 0
      %v8679 = vsel %vm7631, %v8616, 0
      %v8681 = vsel %vm7631, %v8618, 0
      %v8683 = vsel %vm7631, %v8620, 0
      %v8685 = vsel %vm7631, %v8622, 0
      %v8687 = vsel %vm7631, %v8624, 0
      %v8689 = vsel %vm7631, %v8626, 0
      %v8691 = vsel %vm7631, %v8628, 0
      %v8693 = vsel %vm7631, %v8630, 0
      %v8695 = vsel %vm7631, %v8632, 0
      %v8697 = vsel %vm7631, %v8634, 0
      %v8699 = vsel %vm7631, %v8636, 0
      %v8701 = vsel %vm7631, %v8638, 0
      %v8703 = vsel %vm7631, %v8640, 0
      %v8705 = vsel %vm7631, %v8642, 0
      %v8707 = vsel %vm7631, %v8644, 0
      %v8709 = vsel %vm7631, %v8646, 0
      %v8711 = vsel %vm7631, %v8648, 0
      %v8713 = vsel %vm7631, %v8650, 0
      %v8715 = vsel %vm7631, %v8652, 0
      %v8717 = vsel %vm7631, %v8654, 0
      %v8719 = vsel %vm7631, %v8656, 0
      %v8721 = vsel %vm7631, %v8658, 0
      %v8723 = vsel %vm7631, %v8660, 0
      %v8725 = vsel %vm7631, %v8662, 0
      %v8727 = vsel %vm7631, %v8664, 0
      %v8729 = vsel %vm7631, %v8666, 0
      %v8731 = vsel %vm7631, %v8668, 0
      %v8733 = vsel %vm7631, %v8670, 0
      %v8735 = vsel %vm7631, %v8672, 0
      %v8737 = vsel %vm7631, %v8674, 0
      %v8739 = vsel %vm7631, %v8676, 0
      %8741 = vmatprep.subr.mxu0 0.0
      %8742 = vmatpush1.xpose.msra.mxu0 %v8709
      %8743 = vmatprep.subr.mxu0 0.0
      %8744 = vmatpush1.xpose.msra.mxu0 %v8711
      %8745 = vmatprep.subr.mxu0 0.0
      %8746 = vmatpush1.xpose.msra.mxu0 %v8713
      %8747 = vmatprep.subr.mxu0 0.0
      %8748 = vmatpush1.xpose.msra.mxu0 %v8715
      %8749 = vmatprep.subr.mxu0 0.0
      %8750 = vmatpush1.xpose.msra.mxu0 %v8717
      %8751 = vmatprep.subr.mxu0 0.0
      %8752 = vmatpush1.xpose.msra.mxu0 %v8719
      %8753 = vmatprep.subr.mxu0 0.0
      %8754 = vmatpush1.xpose.msra.mxu0 %v8721
      %8755 = vmatprep.subr.mxu0 0.0
      %8756 = vmatpush1.xpose.msra.mxu0 %v8723
      %8757 = vmatprep.subr.mxu0 0.0
      %8758 = vmatpush1.xpose.msra.mxu0 %v8725
      %8759 = vmatprep.subr.mxu0 0.0
      %8760 = vmatpush1.xpose.msra.mxu0 %v8727
      %8761 = vmatprep.subr.mxu0 0.0
      %8762 = vmatpush1.xpose.msra.mxu0 %v8729
      %8763 = vmatprep.subr.mxu0 0.0
      %8764 = vmatpush1.xpose.msra.mxu0 %v8731
      %8765 = vmatprep.subr.mxu0 0.0
      %8766 = vmatpush1.xpose.msra.mxu0 %v8733
      %8767 = vmatprep.subr.mxu0 0.0
      %8768 = vmatpush1.xpose.msra.mxu0 %v8735
      %8769 = vmatprep.subr.mxu0 0.0
      %8770 = vmatpush1.xpose.msra.mxu0 %v8737
      %8771 = vmatprep.subr.mxu0 0.0
      %8772 = vmatpush1.xpose.msra.mxu0 %v8739
      %8773 = vmatprep.subr.mxu0 0.0
      %8774 = vmatpush1.xpose.msra.mxu0 0.0
      %8775 = vmatprep.subr.mxu0 0.0
      %8776 = vmatpush1.xpose.msra.mxu0 0.0
      %8777 = vmatprep.subr.mxu0 0.0
      %8778 = vmatpush1.xpose.msra.mxu0 0.0
      %8779 = vmatprep.subr.mxu0 0.0
      %8780 = vmatpush1.xpose.msra.mxu0 0.0
      %8781 = vmatprep.subr.mxu0 0.0
      %8782 = vmatpush1.xpose.msra.mxu0 0.0
      %8783 = vmatprep.subr.mxu0 0.0
      %8784 = vmatpush1.xpose.msra.mxu0 0.0
      %8785 = vmatprep.subr.mxu0 0.0
      %8786 = vmatpush1.xpose.msra.mxu0 0.0
      %8787 = vmatprep.subr.mxu0 0.0
      %8788 = vmatpush1.xpose.msra.mxu0 0.0
      %8789 = vmatprep.subr.mxu0 0.0
      %8790 = vmatpush1.xpose.msra.mxu0 0.0
      %8791 = vmatprep.subr.mxu0 0.0
      %8792 = vmatpush1.xpose.msra.mxu0 0.0
      %8793 = vmatprep.subr.mxu0 0.0
      %8794 = vmatpush1.xpose.msra.mxu0 0.0
      %8795 = vmatprep.subr.mxu0 0.0
      %8796 = vmatpush1.xpose.msra.mxu0 0.0
      %8797 = vmatprep.subr.mxu0 0.0
      %8798 = vmatpush1.xpose.msra.mxu0 0.0
      %8799 = vmatprep.subr.mxu0 0.0
      %8800 = vmatpush1.xpose.msra.mxu0 0.0
      %8801 = vmatprep.subr.mxu0 0.0
      %8802 = vmatpush1.xpose.msra.mxu0 0.0
      %8803 = vmatprep.subr.mxu0 0.0
      %8804 = vmatpush1.xpose.msra.mxu0 0.0
      %8805 = vmatprep.mubr.f32.mxu0 0.0
      %8806 = vmatmul.mubr.f32.gmra.mrb[0].mxu0 %v8677
      %v8807 = vpop.f32.mrb[0].mxu0
      %v8808 = vadd.f32 0.0, %v8807
      %v8809 = vpop.f32.mrb[0].mxu0
      %8810 = vmatprep.mubr.f32.mxu0 0.0
      %8811 = vmatmul.mubr.f32.gmra.mrb[0].mxu0 %v8679
      %v8812 = vpop.f32.mrb[0].mxu0
      %v8813 = vadd.f32 0.0, %v8812
      %v8814 = vpop.f32.mrb[0].mxu0
      %8815 = vmatprep.mubr.f32.mxu0 0.0
      %8816 = vmatmul.mubr.f32.gmra.mrb[0].mxu0 %v8681
      %v8817 = vpop.f32.mrb[0].mxu0
      %v8818 = vadd.f32 0.0, %v8817
      %v8819 = vpop.f32.mrb[0].mxu0
      %8820 = vmatprep.mubr.f32.mxu0 0.0
      %8821 = vmatmul.mubr.f32.gmra.mrb[0].mxu0 %v8683
      %v8822 = vpop.f32.mrb[0].mxu0
      %v8823 = vadd.f32 0.0, %v8822
      %v8824 = vpop.f32.mrb[0].mxu0
      %8825 = vmatprep.mubr.f32.mxu0 0.0
      %8826 = vmatmul.mubr.f32.gmra.mrb[0].mxu0 %v8685
      %v8827 = vpop.f32.mrb[0].mxu0
      %v8828 = vadd.f32 0.0, %v8827
      %v8829 = vpop.f32.mrb[0].mxu0
      %8830 = vmatprep.mubr.f32.mxu0 0.0
      %8831 = vmatmul.mubr.f32.gmra.mrb[0].mxu0 %v8687
      %v8832 = vpop.f32.mrb[0].mxu0
      %v8833 = vadd.f32 0.0, %v8832
      %v8834 = vpop.f32.mrb[0].mxu0
      %8835 = vmatprep.mubr.f32.mxu0 0.0
      %8836 = vmatmul.mubr.f32.gmra.mrb[0].mxu0 %v8689
      %v8837 = vpop.f32.mrb[0].mxu0
      %v8838 = vadd.f32 0.0, %v8837
      %v8839 = vpop.f32.mrb[0].mxu0
      %8840 = vmatprep.mubr.f32.mxu0 0.0
      %8841 = vmatmul.mubr.f32.gmra.mrb[0].mxu0 %v8691
      %v8842 = vpop.f32.mrb[0].mxu0
      %v8843 = vadd.f32 0.0, %v8842
      %v8844 = vpop.f32.mrb[0].mxu0
      %8845 = vmatprep.mubr.f32.mxu0 0.0
      %8846 = vmatmul.mubr.f32.gmra.mrb[0].mxu0 %v8693
      %v8847 = vpop.f32.mrb[0].mxu0
      %v8848 = vadd.f32 0.0, %v8847
      %v8849 = vpop.f32.mrb[0].mxu0
      %8850 = vmatprep.mubr.f32.mxu0 0.0
      %8851 = vmatmul.mubr.f32.gmra.mrb[0].mxu0 %v8695
      %v8852 = vpop.f32.mrb[0].mxu0
      %v8853 = vadd.f32 0.0, %v8852
      %v8854 = vpop.f32.mrb[0].mxu0
      %8855 = vmatprep.mubr.f32.mxu0 0.0
      %8856 = vmatmul.mubr.f32.gmra.mrb[0].mxu0 %v8697
      %v8857 = vpop.f32.mrb[0].mxu0
      %v8858 = vadd.f32 0.0, %v8857
      %v8859 = vpop.f32.mrb[0].mxu0
      %8860 = vmatprep.mubr.f32.mxu0 0.0
      %8861 = vmatmul.mubr.f32.gmra.mrb[0].mxu0 %v8699
      %v8862 = vpop.f32.mrb[0].mxu0
      %v8863 = vadd.f32 0.0, %v8862
      %v8864 = vpop.f32.mrb[0].mxu0
      %8865 = vmatprep.mubr.f32.mxu0 0.0
      %8866 = vmatmul.mubr.f32.gmra.mrb[0].mxu0 %v8701
      %v8867 = vpop.f32.mrb[0].mxu0
      %v8868 = vadd.f32 0.0, %v8867
      %v8869 = vpop.f32.mrb[0].mxu0
      %8870 = vmatprep.mubr.f32.mxu0 0.0
      %8871 = vmatmul.mubr.f32.gmra.mrb[0].mxu0 %v8703
      %v8872 = vpop.f32.mrb[0].mxu0
      %v8873 = vadd.f32 0.0, %v8872
      %v8874 = vpop.f32.mrb[0].mxu0
      %8875 = vmatprep.mubr.f32.mxu0 0.0
      %8876 = vmatmul.mubr.f32.gmra.mrb[0].mxu0 %v8705
      %v8877 = vpop.f32.mrb[0].mxu0
      %v8878 = vadd.f32 0.0, %v8877
      %v8879 = vpop.f32.mrb[0].mxu0
      %8880 = vmatprep.mubr.f32.mxu0 0.0
      %8881 = vmatmul.mubr.f32.gmra.mrb[0].mxu0 %v8707
      %v8882 = vpop.f32.mrb[0].mxu0
      %v8883 = vadd.f32 0.0, %v8882
      %v8884 = vpop.f32.mrb[0].mxu0
      %8885 = vdwg.mxu0
      %v8886 = vmul.f32 %v8808, 0.70710677
      %v8887 = vmul.f32 %v8813, 0.70710677
      %v8888 = vmul.f32 %v8818, 0.70710677
      %v8889 = vmul.f32 %v8823, 0.70710677
      %v8890 = vmul.f32 %v8828, 0.70710677
      %v8891 = vmul.f32 %v8833, 0.70710677
      %v8892 = vmul.f32 %v8838, 0.70710677
      %v8893 = vmul.f32 %v8843, 0.70710677
      %v8894 = vmul.f32 %v8848, 0.70710677
      %v8895 = vmul.f32 %v8853, 0.70710677
      %v8896 = vmul.f32 %v8858, 0.70710677
      %v8897 = vmul.f32 %v8863, 0.70710677
      %v8898 = vmul.f32 %v8868, 0.70710677
      %v8899 = vmul.f32 %v8873, 0.70710677
      %v8900 = vmul.f32 %v8878, 0.70710677
      %v8901 = vmul.f32 %v8883, 0.70710677
      %8902 = vmax.xlane.f32.xlu0 %v8886
      %v8903 = vpop.xlane.xlu0 %8902
      %8904 = vmax.xlane.f32.xlu0 %v8887
      %v8905 = vpop.xlane.xlu0 %8904
      %8906 = vmax.xlane.f32.xlu0 %v8888
      %v8907 = vpop.xlane.xlu0 %8906
      %8908 = vmax.xlane.f32.xlu0 %v8889
      %v8909 = vpop.xlane.xlu0 %8908
      %8910 = vmax.xlane.f32.xlu0 %v8890
      %v8911 = vpop.xlane.xlu0 %8910
      %8912 = vmax.xlane.f32.xlu0 %v8891
      %v8913 = vpop.xlane.xlu0 %8912
      %8914 = vmax.xlane.f32.xlu0 %v8892
      %v8915 = vpop.xlane.xlu0 %8914
      %8916 = vmax.xlane.f32.xlu0 %v8893
      %v8917 = vpop.xlane.xlu0 %8916
      %8918 = vmax.xlane.f32.xlu0 %v8894
      %v8919 = vpop.xlane.xlu0 %8918
      %8920 = vmax.xlane.f32.xlu0 %v8895
      %v8921 = vpop.xlane.xlu0 %8920
      %8922 = vmax.xlane.f32.xlu0 %v8896
      %v8923 = vpop.xlane.xlu0 %8922
      %8924 = vmax.xlane.f32.xlu0 %v8897
      %v8925 = vpop.xlane.xlu0 %8924
      %8926 = vmax.xlane.f32.xlu0 %v8898
      %v8927 = vpop.xlane.xlu0 %8926
      %8928 = vmax.xlane.f32.xlu0 %v8899
      %v8929 = vpop.xlane.xlu0 %8928
      %8930 = vmax.xlane.f32.xlu0 %v8900
      %v8931 = vpop.xlane.xlu0 %8930
      %8932 = vmax.xlane.f32.xlu0 %v8901
      %v8933 = vpop.xlane.xlu0 %8932
      %v8934 = vsub.f32 %v8886, %v8903
      %v8935 = vsub.f32 %v8887, %v8905
      %v8936 = vsub.f32 %v8888, %v8907
      %v8937 = vsub.f32 %v8889, %v8909
      %v8938 = vsub.f32 %v8890, %v8911
      %v8939 = vsub.f32 %v8891, %v8913
      %v8940 = vsub.f32 %v8892, %v8915
      %v8941 = vsub.f32 %v8893, %v8917
      %v8942 = vsub.f32 %v8894, %v8919
      %v8943 = vsub.f32 %v8895, %v8921
      %v8944 = vsub.f32 %v8896, %v8923
      %v8945 = vsub.f32 %v8897, %v8925
      %v8946 = vsub.f32 %v8898, %v8927
      %v8947 = vsub.f32 %v8899, %v8929
      %v8948 = vsub.f32 %v8900, %v8931
      %v8949 = vsub.f32 %v8901, %v8933
      %v8950 = vmul.f32 %v8934, 1.442695
      %v8951 = vpow.pop %v8950
      %v8952 = vmul.f32 %v8935, 1.442695
      %v8953 = vpow.pop %v8952
      %v8954 = vmul.f32 %v8936, 1.442695
      %v8955 = vpow.pop %v8954
      %v8956 = vmul.f32 %v8937, 1.442695
      %v8957 = vpow.pop %v8956
      %v8958 = vmul.f32 %v8938, 1.442695
      %v8959 = vpow.pop %v8958
      %v8960 = vmul.f32 %v8939, 1.442695
      %v8961 = vpow.pop %v8960
      %v8962 = vmul.f32 %v8940, 1.442695
      %v8963 = vpow.pop %v8962
      %v8964 = vmul.f32 %v8941, 1.442695
      %v8965 = vpow.pop %v8964
      %v8966 = vmul.f32 %v8942, 1.442695
      %v8967 = vpow.pop %v8966
      %v8968 = vmul.f32 %v8943, 1.442695
      %v8969 = vpow.pop %v8968
      %v8970 = vmul.f32 %v8944, 1.442695
      %v8971 = vpow.pop %v8970
      %v8972 = vmul.f32 %v8945, 1.442695
      %v8973 = vpow.pop %v8972
      %v8974 = vmul.f32 %v8946, 1.442695
      %v8975 = vpow.pop %v8974
      %v8976 = vmul.f32 %v8947, 1.442695
      %v8977 = vpow.pop %v8976
      %v8978 = vmul.f32 %v8948, 1.442695
      %v8979 = vpow.pop %v8978
      %v8980 = vmul.f32 %v8949, 1.442695
      %v8981 = vpow.pop %v8980
      %8982 = vadd.xlane.f32.xlu0 %v8951
      %v8983 = vpop.xlane.xlu0 %8982
      %8984 = vadd.xlane.f32.xlu0 %v8953
      %v8985 = vpop.xlane.xlu0 %8984
      %8986 = vadd.xlane.f32.xlu0 %v8955
      %v8987 = vpop.xlane.xlu0 %8986
      %8988 = vadd.xlane.f32.xlu0 %v8957
      %v8989 = vpop.xlane.xlu0 %8988
      %8990 = vadd.xlane.f32.xlu0 %v8959
      %v8991 = vpop.xlane.xlu0 %8990
      %8992 = vadd.xlane.f32.xlu0 %v8961
      %v8993 = vpop.xlane.xlu0 %8992
      %8994 = vadd.xlane.f32.xlu0 %v8963
      %v8995 = vpop.xlane.xlu0 %8994
      %8996 = vadd.xlane.f32.xlu0 %v8965
      %v8997 = vpop.xlane.xlu0 %8996
      %8998 = vadd.xlane.f32.xlu0 %v8967
      %v8999 = vpop.xlane.xlu0 %8998
      %9000 = vadd.xlane.f32.xlu0 %v8969
      %v9001 = vpop.xlane.xlu0 %9000
      %9002 = vadd.xlane.f32.xlu0 %v8971
      %v9003 = vpop.xlane.xlu0 %9002
      %9004 = vadd.xlane.f32.xlu0 %v8973
      %v9005 = vpop.xlane.xlu0 %9004
      %9006 = vadd.xlane.f32.xlu0 %v8975
      %v9007 = vpop.xlane.xlu0 %9006
      %9008 = vadd.xlane.f32.xlu0 %v8977
      %v9009 = vpop.xlane.xlu0 %9008
      %9010 = vadd.xlane.f32.xlu0 %v8979
      %v9011 = vpop.xlane.xlu0 %9010
      %9012 = vadd.xlane.f32.xlu0 %v8981
      %v9013 = vpop.xlane.xlu0 %9012
      %v9014 = vrcp.pop %v8983
      %v9015 = vrcp.pop %v8985
      %v9016 = vrcp.pop %v8987
      %v9017 = vrcp.pop %v8989
      %v9018 = vrcp.pop %v8991
      %v9019 = vrcp.pop %v8993
      %v9020 = vrcp.pop %v8995
      %v9021 = vrcp.pop %v8997
      %v9022 = vrcp.pop %v8999
      %v9023 = vrcp.pop %v9001
      %v9024 = vrcp.pop %v9003
      %v9025 = vrcp.pop %v9005
      %v9026 = vrcp.pop %v9007
      %v9027 = vrcp.pop %v9009
      %v9028 = vrcp.pop %v9011
      %v9029 = vrcp.pop %v9013
      %v9030 = vmul.f32 %v8951, %v9014
      %v9031 = vmul.f32 %v8953, %v9015
      %v9032 = vmul.f32 %v8955, %v9016
      %v9033 = vmul.f32 %v8957, %v9017
      %v9034 = vmul.f32 %v8959, %v9018
      %v9035 = vmul.f32 %v8961, %v9019
      %v9036 = vmul.f32 %v8963, %v9020
      %v9037 = vmul.f32 %v8965, %v9021
      %v9038 = vmul.f32 %v8967, %v9022
      %v9039 = vmul.f32 %v8969, %v9023
      %v9040 = vmul.f32 %v8971, %v9024
      %v9041 = vmul.f32 %v8973, %v9025
      %v9042 = vmul.f32 %v8975, %v9026
      %v9043 = vmul.f32 %v8977, %v9027
      %v9044 = vmul.f32 %v8979, %v9028
      %v9045 = vmul.f32 %v8981, %v9029
      %9046 = vrot.lane.b32.xlu0 %v7551, 118
      %v9047 = vpop.permute.xlu0 %9046
      %9048 = vrot.lane.b32.xlu0 %v7552, 118
      %v9049 = vpop.permute.xlu0 %9048
      %9050 = vrot.lane.b32.xlu0 %v7553, 118
      %v9051 = vpop.permute.xlu0 %9050
      %9052 = vrot.lane.b32.xlu0 %v7554, 118
      %v9053 = vpop.permute.xlu0 %9052
      %9054 = vrot.lane.b32.xlu0 %v7555, 118
      %v9055 = vpop.permute.xlu0 %9054
      %9056 = vrot.lane.b32.xlu0 %v7556, 118
      %v9057 = vpop.permute.xlu0 %9056
      %9058 = vrot.lane.b32.xlu0 %v7557, 118
      %v9059 = vpop.permute.xlu0 %9058
      %9060 = vrot.lane.b32.xlu0 %v7558, 118
      %v9061 = vpop.permute.xlu0 %9060
      %9062 = vrot.lane.b32.xlu0 %v7559, 118
      %v9063 = vpop.permute.xlu0 %9062
      %9064 = vrot.lane.b32.xlu0 %v7560, 118
      %v9065 = vpop.permute.xlu0 %9064
      %9066 = vrot.lane.b32.xlu0 %v7561, 118
      %v9067 = vpop.permute.xlu0 %9066
      %9068 = vrot.lane.b32.xlu0 %v7562, 118
      %v9069 = vpop.permute.xlu0 %9068
      %9070 = vrot.lane.b32.xlu0 %v7563, 118
      %v9071 = vpop.permute.xlu0 %9070
      %9072 = vrot.lane.b32.xlu0 %v7564, 118
      %v9073 = vpop.permute.xlu0 %9072
      %9074 = vrot.lane.b32.xlu0 %v7565, 118
      %v9075 = vpop.permute.xlu0 %9074
      %9076 = vrot.lane.b32.xlu0 %v7566, 118
      %v9077 = vpop.permute.xlu0 %9076
      %9094 = vmatprep.subr.mxu0 0.0
      %9095 = vmatpush1.msra.mxu0 %v9047
      %9096 = vmatprep.subr.mxu0 0.0
      %9097 = vmatpush1.msra.mxu0 %v9049
      %9098 = vmatprep.subr.mxu0 0.0
      %9099 = vmatpush1.msra.mxu0 %v9051
      %9100 = vmatprep.subr.mxu0 0.0
      %9101 = vmatpush1.msra.mxu0 %v9053
      %9102 = vmatprep.subr.mxu0 0.0
      %9103 = vmatpush1.msra.mxu0 %v9055
      %9104 = vmatprep.subr.mxu0 0.0
      %9105 = vmatpush1.msra.mxu0 %v9057
      %9106 = vmatprep.subr.mxu0 0.0
      %9107 = vmatpush1.msra.mxu0 %v9059
      %9108 = vmatprep.subr.mxu0 0.0
      %9109 = vmatpush1.msra.mxu0 %v9061
      %9110 = vmatprep.subr.mxu0 0.0
      %9111 = vmatpush1.msra.mxu0 %v9063
      %9112 = vmatprep.subr.mxu0 0.0
      %9113 = vmatpush1.msra.mxu0 %v9065
      %9114 = vmatprep.subr.mxu0 0.0
      %9115 = vmatpush1.msra.mxu0 %v9067
      %9116 = vmatprep.subr.mxu0 0.0
      %9117 = vmatpush1.msra.mxu0 %v9069
      %9118 = vmatprep.subr.mxu0 0.0
      %9119 = vmatpush1.msra.mxu0 %v9071
      %9120 = vmatprep.subr.mxu0 0.0
      %9121 = vmatpush1.msra.mxu0 %v9073
      %9122 = vmatprep.subr.mxu0 0.0
      %9123 = vmatpush1.msra.mxu0 %v9075
      %9124 = vmatprep.subr.mxu0 0.0
      %9125 = vmatpush1.msra.mxu0 %v9077
      %9126 = vmatprep.subr.mxu0 0.0
      %9127 = vmatpush1.msra.mxu0 0.0
      %9128 = vmatprep.subr.mxu0 0.0
      %9129 = vmatpush1.msra.mxu0 0.0
      %9130 = vmatprep.subr.mxu0 0.0
      %9131 = vmatpush1.msra.mxu0 0.0
      %9132 = vmatprep.subr.mxu0 0.0
      %9133 = vmatpush1.msra.mxu0 0.0
      %9134 = vmatprep.subr.mxu0 0.0
      %9135 = vmatpush1.msra.mxu0 0.0
      %9136 = vmatprep.subr.mxu0 0.0
      %9137 = vmatpush1.msra.mxu0 0.0
      %9138 = vmatprep.subr.mxu0 0.0
      %9139 = vmatpush1.msra.mxu0 0.0
      %9140 = vmatprep.subr.mxu0 0.0
      %9141 = vmatpush1.msra.mxu0 0.0
      %9142 = vmatprep.subr.mxu0 0.0
      %9143 = vmatpush1.msra.mxu0 0.0
      %9144 = vmatprep.subr.mxu0 0.0
      %9145 = vmatpush1.msra.mxu0 0.0
      %9146 = vmatprep.subr.mxu0 0.0
      %9147 = vmatpush1.msra.mxu0 0.0
      %9148 = vmatprep.subr.mxu0 0.0
      %9149 = vmatpush1.msra.mxu0 0.0
      %9150 = vmatprep.subr.mxu0 0.0
      %9151 = vmatpush1.msra.mxu0 0.0
      %9152 = vmatprep.subr.mxu0 0.0
      %9153 = vmatpush1.msra.mxu0 0.0
      %9154 = vmatprep.subr.mxu0 0.0
      %9155 = vmatpush1.msra.mxu0 0.0
      %9156 = vmatprep.subr.mxu0 0.0
      %9157 = vmatpush1.msra.mxu0 0.0
      %9158 = vmatprep.mubr.f32.mxu0 0.0
      %9159 = vmatmul.mubr.f32.gmra.mrb[0].mxu0 %v9030
      %v9160 = vpop.f32.mrb[0].mxu0
      %v9161 = vadd.f32 0.0, %v9160
      %v9162 = vpop.f32.mrb[0].mxu0
      %9163 = vmatprep.mubr.f32.mxu0 0.0
      %9164 = vmatmul.mubr.f32.gmra.mrb[0].mxu0 %v9031
      %v9165 = vpop.f32.mrb[0].mxu0
      %v9166 = vadd.f32 0.0, %v9165
      %v9167 = vpop.f32.mrb[0].mxu0
      %9168 = vmatprep.mubr.f32.mxu0 0.0
      %9169 = vmatmul.mubr.f32.gmra.mrb[0].mxu0 %v9032
      %v9170 = vpop.f32.mrb[0].mxu0
      %v9171 = vadd.f32 0.0, %v9170
      %v9172 = vpop.f32.mrb[0].mxu0
      %9173 = vmatprep.mubr.f32.mxu0 0.0
      %9174 = vmatmul.mubr.f32.gmra.mrb[0].mxu0 %v9033
      %v9175 = vpop.f32.mrb[0].mxu0
      %v9176 = vadd.f32 0.0, %v9175
      %v9177 = vpop.f32.mrb[0].mxu0
      %9178 = vmatprep.mubr.f32.mxu0 0.0
      %9179 = vmatmul.mubr.f32.gmra.mrb[0].mxu0 %v9034
      %v9180 = vpop.f32.mrb[0].mxu0
      %v9181 = vadd.f32 0.0, %v9180
      %v9182 = vpop.f32.mrb[0].mxu0
      %9183 = vmatprep.mubr.f32.mxu0 0.0
      %9184 = vmatmul.mubr.f32.gmra.mrb[0].mxu0 %v9035
      %v9185 = vpop.f32.mrb[0].mxu0
      %v9186 = vadd.f32 0.0, %v9185
      %v9187 = vpop.f32.mrb[0].mxu0
      %9188 = vmatprep.mubr.f32.mxu0 0.0
      %9189 = vmatmul.mubr.f32.gmra.mrb[0].mxu0 %v9036
      %v9190 = vpop.f32.mrb[0].mxu0
      %v9191 = vadd.f32 0.0, %v9190
      %v9192 = vpop.f32.mrb[0].mxu0
      %9193 = vmatprep.mubr.f32.mxu0 0.0
      %9194 = vmatmul.mubr.f32.gmra.mrb[0].mxu0 %v9037
      %v9195 = vpop.f32.mrb[0].mxu0
      %v9196 = vadd.f32 0.0, %v9195
      %v9197 = vpop.f32.mrb[0].mxu0
      %9198 = vmatprep.mubr.f32.mxu0 0.0
      %9199 = vmatmul.mubr.f32.gmra.mrb[0].mxu0 %v9038
      %v9200 = vpop.f32.mrb[0].mxu0
      %v9201 = vadd.f32 0.0, %v9200
      %v9202 = vpop.f32.mrb[0].mxu0
      %9203 = vmatprep.mubr.f32.mxu0 0.0
      %9204 = vmatmul.mubr.f32.gmra.mrb[0].mxu0 %v9039
      %v9205 = vpop.f32.mrb[0].mxu0
      %v9206 = vadd.f32 0.0, %v9205
      %v9207 = vpop.f32.mrb[0].mxu0
      %9208 = vmatprep.mubr.f32.mxu0 0.0
      %9209 = vmatmul.mubr.f32.gmra.mrb[0].mxu0 %v9040
      %v9210 = vpop.f32.mrb[0].mxu0
      %v9211 = vadd.f32 0.0, %v9210
      %v9212 = vpop.f32.mrb[0].mxu0
      %9213 = vmatprep.mubr.f32.mxu0 0.0
      %9214 = vmatmul.mubr.f32.gmra.mrb[0].mxu0 %v9041
      %v9215 = vpop.f32.mrb[0].mxu0
      %v9216 = vadd.f32 0.0, %v9215
      %v9217 = vpop.f32.mrb[0].mxu0
      %9218 = vmatprep.mubr.f32.mxu0 0.0
      %9219 = vmatmul.mubr.f32.gmra.mrb[0].mxu0 %v9042
      %v9220 = vpop.f32.mrb[0].mxu0
      %v9221 = vadd.f32 0.0, %v9220
      %v9222 = vpop.f32.mrb[0].mxu0
      %9223 = vmatprep.mubr.f32.mxu0 0.0
      %9224 = vmatmul.mubr.f32.gmra.mrb[0].mxu0 %v9043
      %v9225 = vpop.f32.mrb[0].mxu0
      %v9226 = vadd.f32 0.0, %v9225
      %v9227 = vpop.f32.mrb[0].mxu0
      %9228 = vmatprep.mubr.f32.mxu0 0.0
      %9229 = vmatmul.mubr.f32.gmra.mrb[0].mxu0 %v9044
      %v9230 = vpop.f32.mrb[0].mxu0
      %v9231 = vadd.f32 0.0, %v9230
      %v9232 = vpop.f32.mrb[0].mxu0
      %9233 = vmatprep.mubr.f32.mxu0 0.0
      %9234 = vmatmul.mubr.f32.gmra.mrb[0].mxu0 %v9045
      %v9235 = vpop.f32.mrb[0].mxu0
      %v9236 = vadd.f32 0.0, %v9235
      %v9237 = vpop.f32.mrb[0].mxu0
      %9238 = vdwg.mxu0
      %s9239 = scalar_lea.vmem %s9, 256
      %v9240 = vld [vmem:[%s9239] sm:$0xff]
      %v9241 = vld [vmem:[%s9239 + $0x8] sm:$0xff]
      %v9242 = vld [vmem:[%s9239 + $0x10] sm:$0xff]
      %v9243 = vld [vmem:[%s9239 + $0x18] sm:$0xff]
      %v9244 = vld [vmem:[%s9239 + $0x20] sm:$0xff]
      %v9245 = vld [vmem:[%s9239 + $0x28] sm:$0xff]
      %v9246 = vld [vmem:[%s9239 + $0x30] sm:$0xff]
      %v9247 = vld [vmem:[%s9239 + $0x38] sm:$0xff]
      %v9248 = vld [vmem:[%s9239 + $0x40] sm:$0xff]
      %v9249 = vld [vmem:[%s9239 + $0x48] sm:$0xff]
      %v9250 = vld [vmem:[%s9239 + $0x50] sm:$0xff]
      %v9251 = vld [vmem:[%s9239 + $0x58] sm:$0xff]
      %v9252 = vld [vmem:[%s9239 + $0x60] sm:$0xff]
      %v9253 = vld [vmem:[%s9239 + $0x68] sm:$0xff]
      %v9254 = vld [vmem:[%s9239 + $0x70] sm:$0xff]
      %v9255 = vld [vmem:[%s9239 + $0x78] sm:$0xff]
      %9256 = vmatprep.subr.mxu0 0.0
      %9257 = vmatpush1.msra.mxu0 %v9161
      %9258 = vmatprep.subr.mxu0 0.0
      %9259 = vmatpush1.msra.mxu0 %v9166
      %9260 = vmatprep.subr.mxu0 0.0
      %9261 = vmatpush1.msra.mxu0 %v9171
      %9262 = vmatprep.subr.mxu0 0.0
      %9263 = vmatpush1.msra.mxu0 %v9176
      %9264 = vmatprep.subr.mxu0 0.0
      %9265 = vmatpush1.msra.mxu0 %v9181
      %9266 = vmatprep.subr.mxu0 0.0
      %9267 = vmatpush1.msra.mxu0 %v9186
      %9268 = vmatprep.subr.mxu0 0.0
      %9269 = vmatpush1.msra.mxu0 %v9191
      %9270 = vmatprep.subr.mxu0 0.0
      %9271 = vmatpush1.msra.mxu0 %v9196
      %9272 = vmatprep.subr.mxu0 0.0
      %9273 = vmatpush1.msra.mxu0 %v9201
      %9274 = vmatprep.subr.mxu0 0.0
      %9275 = vmatpush1.msra.mxu0 %v9206
      %9276 = vmatprep.subr.mxu0 0.0
      %9277 = vmatpush1.msra.mxu0 %v9211
      %9278 = vmatprep.subr.mxu0 0.0
      %9279 = vmatpush1.msra.mxu0 %v9216
      %9280 = vmatprep.subr.mxu0 0.0
      %9281 = vmatpush1.msra.mxu0 %v9221
      %9282 = vmatprep.subr.mxu0 0.0
      %9283 = vmatpush1.msra.mxu0 %v9226
      %9284 = vmatprep.subr.mxu0 0.0
      %9285 = vmatpush1.msra.mxu0 %v9231
      %9286 = vmatprep.subr.mxu0 0.0
      %9287 = vmatpush1.msra.mxu0 %v9236
      %9288 = vmatprep.subr.mxu0 0.0
      %9289 = vmatpush1.msra.mxu0 0.0
      %9290 = vmatprep.subr.mxu0 0.0
      %9291 = vmatpush1.msra.mxu0 0.0
      %9292 = vmatprep.subr.mxu0 0.0
      %9293 = vmatpush1.msra.mxu0 0.0
      %9294 = vmatprep.subr.mxu0 0.0
      %9295 = vmatpush1.msra.mxu0 0.0
      %9296 = vmatprep.subr.mxu0 0.0
      %9297 = vmatpush1.msra.mxu0 0.0
      %9298 = vmatprep.subr.mxu0 0.0
      %9299 = vmatpush1.msra.mxu0 0.0
      %9300 = vmatprep.subr.mxu0 0.0
      %9301 = vmatpush1.msra.mxu0 0.0
      %9302 = vmatprep.subr.mxu0 0.0
      %9303 = vmatpush1.msra.mxu0 0.0
      %9304 = vmatprep.subr.mxu0 0.0
      %9305 = vmatpush1.msra.mxu0 0.0
      %9306 = vmatprep.subr.mxu0 0.0
      %9307 = vmatpush1.msra.mxu0 0.0
      %9308 = vmatprep.subr.mxu0 0.0
      %9309 = vmatpush1.msra.mxu0 0.0
      %9310 = vmatprep.subr.mxu0 0.0
      %9311 = vmatpush1.msra.mxu0 0.0
      %9312 = vmatprep.subr.mxu0 0.0
      %9313 = vmatpush1.msra.mxu0 0.0
      %9314 = vmatprep.subr.mxu0 0.0
      %9315 = vmatpush1.msra.mxu0 0.0
      %9316 = vmatprep.subr.mxu0 0.0
      %9317 = vmatpush1.msra.mxu0 0.0
      %9318 = vmatprep.subr.mxu0 0.0
      %9319 = vmatpush1.msra.mxu0 0.0
      %9320 = vmatprep.mubr.f32.mxu0 0.0
      %9321 = vmatmul.mubr.f32.gmra.mrb[0].mxu0 %v9240
      %v9322 = vpop.f32.mrb[0].mxu0
      %v9323 = vadd.f32 0.0, %v9322
      %v9324 = vpop.f32.mrb[0].mxu0
      %9325 = vmatprep.mubr.f32.mxu0 0.0
      %9326 = vmatmul.mubr.f32.gmra.mrb[0].mxu0 %v9241
      %v9327 = vpop.f32.mrb[0].mxu0
      %v9328 = vadd.f32 0.0, %v9327
      %v9329 = vpop.f32.mrb[0].mxu0
      %9330 = vmatprep.mubr.f32.mxu0 0.0
      %9331 = vmatmul.mubr.f32.gmra.mrb[0].mxu0 %v9242
      %v9332 = vpop.f32.mrb[0].mxu0
      %v9333 = vadd.f32 0.0, %v9332
      %v9334 = vpop.f32.mrb[0].mxu0
      %9335 = vmatprep.mubr.f32.mxu0 0.0
      %9336 = vmatmul.mubr.f32.gmra.mrb[0].mxu0 %v9243
      %v9337 = vpop.f32.mrb[0].mxu0
      %v9338 = vadd.f32 0.0, %v9337
      %v9339 = vpop.f32.mrb[0].mxu0
      %9340 = vmatprep.mubr.f32.mxu0 0.0
      %9341 = vmatmul.mubr.f32.gmra.mrb[0].mxu0 %v9244
      %v9342 = vpop.f32.mrb[0].mxu0
      %v9343 = vadd.f32 0.0, %v9342
      %v9344 = vpop.f32.mrb[0].mxu0
      %9345 = vmatprep.mubr.f32.mxu0 0.0
      %9346 = vmatmul.mubr.f32.gmra.mrb[0].mxu0 %v9245
      %v9347 = vpop.f32.mrb[0].mxu0
      %v9348 = vadd.f32 0.0, %v9347
      %v9349 = vpop.f32.mrb[0].mxu0
      %9350 = vmatprep.mubr.f32.mxu0 0.0
      %9351 = vmatmul.mubr.f32.gmra.mrb[0].mxu0 %v9246
      %v9352 = vpop.f32.mrb[0].mxu0
      %v9353 = vadd.f32 0.0, %v9352
      %v9354 = vpop.f32.mrb[0].mxu0
      %9355 = vmatprep.mubr.f32.mxu0 0.0
      %9356 = vmatmul.mubr.f32.gmra.mrb[0].mxu0 %v9247
      %v9357 = vpop.f32.mrb[0].mxu0
      %v9358 = vadd.f32 0.0, %v9357
      %v9359 = vpop.f32.mrb[0].mxu0
      %9360 = vmatprep.mubr.f32.mxu0 0.0
      %9361 = vmatmul.mubr.f32.gmra.mrb[0].mxu0 %v9248
      %v9362 = vpop.f32.mrb[0].mxu0
      %v9363 = vadd.f32 0.0, %v9362
      %v9364 = vpop.f32.mrb[0].mxu0
      %9365 = vmatprep.mubr.f32.mxu0 0.0
      %9366 = vmatmul.mubr.f32.gmra.mrb[0].mxu0 %v9249
      %v9367 = vpop.f32.mrb[0].mxu0
      %v9368 = vadd.f32 0.0, %v9367
      %v9369 = vpop.f32.mrb[0].mxu0
      %9370 = vmatprep.mubr.f32.mxu0 0.0
      %9371 = vmatmul.mubr.f32.gmra.mrb[0].mxu0 %v9250
      %v9372 = vpop.f32.mrb[0].mxu0
      %v9373 = vadd.f32 0.0, %v9372
      %v9374 = vpop.f32.mrb[0].mxu0
      %9375 = vmatprep.mubr.f32.mxu0 0.0
      %9376 = vmatmul.mubr.f32.gmra.mrb[0].mxu0 %v9251
      %v9377 = vpop.f32.mrb[0].mxu0
      %v9378 = vadd.f32 0.0, %v9377
      %v9379 = vpop.f32.mrb[0].mxu0
      %9380 = vmatprep.mubr.f32.mxu0 0.0
      %9381 = vmatmul.mubr.f32.gmra.mrb[0].mxu0 %v9252
      %v9382 = vpop.f32.mrb[0].mxu0
      %v9383 = vadd.f32 0.0, %v9382
      %v9384 = vpop.f32.mrb[0].mxu0
      %9385 = vmatprep.mubr.f32.mxu0 0.0
      %9386 = vmatmul.mubr.f32.gmra.mrb[0].mxu0 %v9253
      %v9387 = vpop.f32.mrb[0].mxu0
      %v9388 = vadd.f32 0.0, %v9387
      %v9389 = vpop.f32.mrb[0].mxu0
      %9390 = vmatprep.mubr.f32.mxu0 0.0
      %9391 = vmatmul.mubr.f32.gmra.mrb[0].mxu0 %v9254
      %v9392 = vpop.f32.mrb[0].mxu0
      %v9393 = vadd.f32 0.0, %v9392
      %v9394 = vpop.f32.mrb[0].mxu0
      %9395 = vmatprep.mubr.f32.mxu0 0.0
      %9396 = vmatmul.mubr.f32.gmra.mrb[0].mxu0 %v9255
      %v9397 = vpop.f32.mrb[0].mxu0
      %v9398 = vadd.f32 0.0, %v9397
      %v9399 = vpop.f32.mrb[0].mxu0
      %9400 = vdwg.mxu0
      %v9401 = vadd.f32 %v8597, %v9323
      %v9402 = vadd.f32 %v8598, %v9328
      %v9403 = vadd.f32 %v8599, %v9333
      %v9404 = vadd.f32 %v8600, %v9338
      %v9405 = vadd.f32 %v8601, %v9343
      %v9406 = vadd.f32 %v8602, %v9348
      %v9407 = vadd.f32 %v8603, %v9353
      %v9408 = vadd.f32 %v8604, %v9358
      %v9409 = vadd.f32 %v8605, %v9363
      %v9410 = vadd.f32 %v8606, %v9368
      %v9411 = vadd.f32 %v8607, %v9373
      %v9412 = vadd.f32 %v8608, %v9378
      %v9413 = vadd.f32 %v8609, %v9383
      %v9414 = vadd.f32 %v8610, %v9388
      %v9415 = vadd.f32 %v8611, %v9393
      %v9416 = vadd.f32 %v8612, %v9398
      %s9417 = scalar_lea.vmem %s9, 384
      %v9418 = vld [vmem:[%s9417] sm:$0xff]
      %v9419 = vld [vmem:[%s9417 + $0x8] sm:$0xff]
      %v9420 = vld [vmem:[%s9417 + $0x10] sm:$0xff]
      %v9421 = vld [vmem:[%s9417 + $0x18] sm:$0xff]
      %v9422 = vld [vmem:[%s9417 + $0x20] sm:$0xff]
      %v9423 = vld [vmem:[%s9417 + $0x28] sm:$0xff]
      %v9424 = vld [vmem:[%s9417 + $0x30] sm:$0xff]
      %v9425 = vld [vmem:[%s9417 + $0x38] sm:$0xff]
      %v9426 = vld [vmem:[%s9417 + $0x40] sm:$0xff]
      %v9427 = vld [vmem:[%s9417 + $0x48] sm:$0xff]
      %v9428 = vld [vmem:[%s9417 + $0x50] sm:$0xff]
      %v9429 = vld [vmem:[%s9417 + $0x58] sm:$0xff]
      %v9430 = vld [vmem:[%s9417 + $0x60] sm:$0xff]
      %v9431 = vld [vmem:[%s9417 + $0x68] sm:$0xff]
      %v9432 = vld [vmem:[%s9417 + $0x70] sm:$0xff]
      %v9433 = vld [vmem:[%s9417 + $0x78] sm:$0xff]
      %9450 = vrot.lane.b32.xlu0 %v9161, 127
      %v9451 = vpop.permute.xlu0 %9450
      %9452 = vrot.lane.b32.xlu0 %v9166, 127
      %v9453 = vpop.permute.xlu0 %9452
      %9454 = vrot.lane.b32.xlu0 %v9171, 127
      %v9455 = vpop.permute.xlu0 %9454
      %9456 = vrot.lane.b32.xlu0 %v9176, 127
      %v9457 = vpop.permute.xlu0 %9456
      %9458 = vrot.lane.b32.xlu0 %v9181, 127
      %v9459 = vpop.permute.xlu0 %9458
      %9460 = vrot.lane.b32.xlu0 %v9186, 127
      %v9461 = vpop.permute.xlu0 %9460
      %9462 = vrot.lane.b32.xlu0 %v9191, 127
      %v9463 = vpop.permute.xlu0 %9462
      %9464 = vrot.lane.b32.xlu0 %v9196, 127
      %v9465 = vpop.permute.xlu0 %9464
      %9466 = vrot.lane.b32.xlu0 %v9201, 127
      %v9467 = vpop.permute.xlu0 %9466
      %9468 = vrot.lane.b32.xlu0 %v9206, 127
      %v9469 = vpop.permute.xlu0 %9468
      %9470 = vrot.lane.b32.xlu0 %v9211, 127
      %v9471 = vpop.permute.xlu0 %9470
      %9472 = vrot.lane.b32.xlu0 %v9216, 127
      %v9473 = vpop.permute.xlu0 %9472
      %9474 = vrot.lane.b32.xlu0 %v9221, 127
      %v9475 = vpop.permute.xlu0 %9474
      %9476 = vrot.lane.b32.xlu0 %v9226, 127
      %v9477 = vpop.permute.xlu0 %9476
      %9478 = vrot.lane.b32.xlu0 %v9231, 127
      %v9479 = vpop.permute.xlu0 %9478
      %9480 = vrot.lane.b32.xlu0 %v9236, 127
      %v9481 = vpop.permute.xlu0 %9480
      %9498 = vmatprep.subr.mxu0 0.0
      %9499 = vmatpush1.msra.mxu0 %v9451
      %9500 = vmatprep.subr.mxu0 0.0
      %9501 = vmatpush1.msra.mxu0 %v9453
      %9502 = vmatprep.subr.mxu0 0.0
      %9503 = vmatpush1.msra.mxu0 %v9455
      %9504 = vmatprep.subr.mxu0 0.0
      %9505 = vmatpush1.msra.mxu0 %v9457
      %9506 = vmatprep.subr.mxu0 0.0
      %9507 = vmatpush1.msra.mxu0 %v9459
      %9508 = vmatprep.subr.mxu0 0.0
      %9509 = vmatpush1.msra.mxu0 %v9461
      %9510 = vmatprep.subr.mxu0 0.0
      %9511 = vmatpush1.msra.mxu0 %v9463
      %9512 = vmatprep.subr.mxu0 0.0
      %9513 = vmatpush1.msra.mxu0 %v9465
      %9514 = vmatprep.subr.mxu0 0.0
      %9515 = vmatpush1.msra.mxu0 %v9467
      %9516 = vmatprep.subr.mxu0 0.0
      %9517 = vmatpush1.msra.mxu0 %v9469
      %9518 = vmatprep.subr.mxu0 0.0
      %9519 = vmatpush1.msra.mxu0 %v9471
      %9520 = vmatprep.subr.mxu0 0.0
      %9521 = vmatpush1.msra.mxu0 %v9473
      %9522 = vmatprep.subr.mxu0 0.0
      %9523 = vmatpush1.msra.mxu0 %v9475
      %9524 = vmatprep.subr.mxu0 0.0
      %9525 = vmatpush1.msra.mxu0 %v9477
      %9526 = vmatprep.subr.mxu0 0.0
      %9527 = vmatpush1.msra.mxu0 %v9479
      %9528 = vmatprep.subr.mxu0 0.0
      %9529 = vmatpush1.msra.mxu0 %v9481
      %9530 = vmatprep.subr.mxu0 0.0
      %9531 = vmatpush1.msra.mxu0 0.0
      %9532 = vmatprep.subr.mxu0 0.0
      %9533 = vmatpush1.msra.mxu0 0.0
      %9534 = vmatprep.subr.mxu0 0.0
      %9535 = vmatpush1.msra.mxu0 0.0
      %9536 = vmatprep.subr.mxu0 0.0
      %9537 = vmatpush1.msra.mxu0 0.0
      %9538 = vmatprep.subr.mxu0 0.0
      %9539 = vmatpush1.msra.mxu0 0.0
      %9540 = vmatprep.subr.mxu0 0.0
      %9541 = vmatpush1.msra.mxu0 0.0
      %9542 = vmatprep.subr.mxu0 0.0
      %9543 = vmatpush1.msra.mxu0 0.0
      %9544 = vmatprep.subr.mxu0 0.0
      %9545 = vmatpush1.msra.mxu0 0.0
      %9546 = vmatprep.subr.mxu0 0.0
      %9547 = vmatpush1.msra.mxu0 0.0
      %9548 = vmatprep.subr.mxu0 0.0
      %9549 = vmatpush1.msra.mxu0 0.0
      %9550 = vmatprep.subr.mxu0 0.0
      %9551 = vmatpush1.msra.mxu0 0.0
      %9552 = vmatprep.subr.mxu0 0.0
      %9553 = vmatpush1.msra.mxu0 0.0
      %9554 = vmatprep.subr.mxu0 0.0
      %9555 = vmatpush1.msra.mxu0 0.0
      %9556 = vmatprep.subr.mxu0 0.0
      %9557 = vmatpush1.msra.mxu0 0.0
      %9558 = vmatprep.subr.mxu0 0.0
      %9559 = vmatpush1.msra.mxu0 0.0
      %9560 = vmatprep.subr.mxu0 0.0
      %9561 = vmatpush1.msra.mxu0 0.0
      %9562 = vmatprep.mubr.f32.mxu0 0.0
      %9563 = vmatmul.mubr.f32.gmra.mrb[0].mxu0 %v9418
      %v9564 = vpop.f32.mrb[0].mxu0
      %v9565 = vadd.f32 0.0, %v9564
      %v9566 = vpop.f32.mrb[0].mxu0
      %9567 = vmatprep.mubr.f32.mxu0 0.0
      %9568 = vmatmul.mubr.f32.gmra.mrb[0].mxu0 %v9419
      %v9569 = vpop.f32.mrb[0].mxu0
      %v9570 = vadd.f32 0.0, %v9569
      %v9571 = vpop.f32.mrb[0].mxu0
      %9572 = vmatprep.mubr.f32.mxu0 0.0
      %9573 = vmatmul.mubr.f32.gmra.mrb[0].mxu0 %v9420
      %v9574 = vpop.f32.mrb[0].mxu0
      %v9575 = vadd.f32 0.0, %v9574
      %v9576 = vpop.f32.mrb[0].mxu0
      %9577 = vmatprep.mubr.f32.mxu0 0.0
      %9578 = vmatmul.mubr.f32.gmra.mrb[0].mxu0 %v9421
      %v9579 = vpop.f32.mrb[0].mxu0
      %v9580 = vadd.f32 0.0, %v9579
      %v9581 = vpop.f32.mrb[0].mxu0
      %9582 = vmatprep.mubr.f32.mxu0 0.0
      %9583 = vmatmul.mubr.f32.gmra.mrb[0].mxu0 %v9422
      %v9584 = vpop.f32.mrb[0].mxu0
      %v9585 = vadd.f32 0.0, %v9584
      %v9586 = vpop.f32.mrb[0].mxu0
      %9587 = vmatprep.mubr.f32.mxu0 0.0
      %9588 = vmatmul.mubr.f32.gmra.mrb[0].mxu0 %v9423
      %v9589 = vpop.f32.mrb[0].mxu0
      %v9590 = vadd.f32 0.0, %v9589
      %v9591 = vpop.f32.mrb[0].mxu0
      %9592 = vmatprep.mubr.f32.mxu0 0.0
      %9593 = vmatmul.mubr.f32.gmra.mrb[0].mxu0 %v9424
      %v9594 = vpop.f32.mrb[0].mxu0
      %v9595 = vadd.f32 0.0, %v9594
      %v9596 = vpop.f32.mrb[0].mxu0
      %9597 = vmatprep.mubr.f32.mxu0 0.0
      %9598 = vmatmul.mubr.f32.gmra.mrb[0].mxu0 %v9425
      %v9599 = vpop.f32.mrb[0].mxu0
      %v9600 = vadd.f32 0.0, %v9599
      %v9601 = vpop.f32.mrb[0].mxu0
      %9602 = vmatprep.mubr.f32.mxu0 0.0
      %9603 = vmatmul.mubr.f32.gmra.mrb[0].mxu0 %v9426
      %v9604 = vpop.f32.mrb[0].mxu0
      %v9605 = vadd.f32 0.0, %v9604
      %v9606 = vpop.f32.mrb[0].mxu0
      %9607 = vmatprep.mubr.f32.mxu0 0.0
      %9608 = vmatmul.mubr.f32.gmra.mrb[0].mxu0 %v9427
      %v9609 = vpop.f32.mrb[0].mxu0
      %v9610 = vadd.f32 0.0, %v9609
      %v9611 = vpop.f32.mrb[0].mxu0
      %9612 = vmatprep.mubr.f32.mxu0 0.0
      %9613 = vmatmul.mubr.f32.gmra.mrb[0].mxu0 %v9428
      %v9614 = vpop.f32.mrb[0].mxu0
      %v9615 = vadd.f32 0.0, %v9614
      %v9616 = vpop.f32.mrb[0].mxu0
      %9617 = vmatprep.mubr.f32.mxu0 0.0
      %9618 = vmatmul.mubr.f32.gmra.mrb[0].mxu0 %v9429
      %v9619 = vpop.f32.mrb[0].mxu0
      %v9620 = vadd.f32 0.0, %v9619
      %v9621 = vpop.f32.mrb[0].mxu0
      %9622 = vmatprep.mubr.f32.mxu0 0.0
      %9623 = vmatmul.mubr.f32.gmra.mrb[0].mxu0 %v9430
      %v9624 = vpop.f32.mrb[0].mxu0
      %v9625 = vadd.f32 0.0, %v9624
      %v9626 = vpop.f32.mrb[0].mxu0
      %9627 = vmatprep.mubr.f32.mxu0 0.0
      %9628 = vmatmul.mubr.f32.gmra.mrb[0].mxu0 %v9431
      %v9629 = vpop.f32.mrb[0].mxu0
      %v9630 = vadd.f32 0.0, %v9629
      %v9631 = vpop.f32.mrb[0].mxu0
      %9632 = vmatprep.mubr.f32.mxu0 0.0
      %9633 = vmatmul.mubr.f32.gmra.mrb[0].mxu0 %v9432
      %v9634 = vpop.f32.mrb[0].mxu0
      %v9635 = vadd.f32 0.0, %v9634
      %v9636 = vpop.f32.mrb[0].mxu0
      %9637 = vmatprep.mubr.f32.mxu0 0.0
      %9638 = vmatmul.mubr.f32.gmra.mrb[0].mxu0 %v9433
      %v9639 = vpop.f32.mrb[0].mxu0
      %v9640 = vadd.f32 0.0, %v9639
      %v9641 = vpop.f32.mrb[0].mxu0
      %9642 = vdwg.mxu0
      %v9643 = vadd.f32 %v9401, %v9565
      %v9644 = vadd.f32 %v9402, %v9570
      %v9645 = vadd.f32 %v9403, %v9575
      %v9646 = vadd.f32 %v9404, %v9580
      %v9647 = vadd.f32 %v9405, %v9585
      %v9648 = vadd.f32 %v9406, %v9590
      %v9649 = vadd.f32 %v9407, %v9595
      %v9650 = vadd.f32 %v9408, %v9600
      %v9651 = vadd.f32 %v9409, %v9605
      %v9652 = vadd.f32 %v9410, %v9610
      %v9653 = vadd.f32 %v9411, %v9615
      %v9654 = vadd.f32 %v9412, %v9620
      %v9655 = vadd.f32 %v9413, %v9625
      %v9656 = vadd.f32 %v9414, %v9630
      %v9657 = vadd.f32 %v9415, %v9635
      %v9658 = vadd.f32 %v9416, %v9640
      %v9659 = vld [vmem:[%s11] sm:$0xff]
      %v9660 = vld [vmem:[%s11 + $0x8] sm:$0xff]
      %v9661 = vld [vmem:[%s11 + $0x10] sm:$0xff]
      %v9662 = vld [vmem:[%s11 + $0x18] sm:$0xff]
      %v9663 = vld [vmem:[%s11 + $0x20] sm:$0xff]
      %v9664 = vld [vmem:[%s11 + $0x28] sm:$0xff]
      %v9665 = vld [vmem:[%s11 + $0x30] sm:$0xff]
      %v9666 = vld [vmem:[%s11 + $0x38] sm:$0xff]
      %v9667 = vld [vmem:[%s11 + $0x40] sm:$0xff]
      %v9668 = vld [vmem:[%s11 + $0x48] sm:$0xff]
      %v9669 = vld [vmem:[%s11 + $0x50] sm:$0xff]
      %v9670 = vld [vmem:[%s11 + $0x58] sm:$0xff]
      %v9671 = vld [vmem:[%s11 + $0x60] sm:$0xff]
      %v9672 = vld [vmem:[%s11 + $0x68] sm:$0xff]
      %v9673 = vld [vmem:[%s11 + $0x70] sm:$0xff]
      %v9674 = vld [vmem:[%s11 + $0x78] sm:$0xff]
      %v9675 = vld [vmem:[%s12] sm:$0xff]
      %v9676 = vld [vmem:[%s12 + $0x8] sm:$0xff]
      %v9677 = vld [vmem:[%s12 + $0x10] sm:$0xff]
      %v9678 = vld [vmem:[%s12 + $0x18] sm:$0xff]
      %v9679 = vld [vmem:[%s12 + $0x20] sm:$0xff]
      %v9680 = vld [vmem:[%s12 + $0x28] sm:$0xff]
      %v9681 = vld [vmem:[%s12 + $0x30] sm:$0xff]
      %v9682 = vld [vmem:[%s12 + $0x38] sm:$0xff]
      %v9683 = vld [vmem:[%s12 + $0x40] sm:$0xff]
      %v9684 = vld [vmem:[%s12 + $0x48] sm:$0xff]
      %v9685 = vld [vmem:[%s12 + $0x50] sm:$0xff]
      %v9686 = vld [vmem:[%s12 + $0x58] sm:$0xff]
      %v9687 = vld [vmem:[%s12 + $0x60] sm:$0xff]
      %v9688 = vld [vmem:[%s12 + $0x68] sm:$0xff]
      %v9689 = vld [vmem:[%s12 + $0x70] sm:$0xff]
      %v9690 = vld [vmem:[%s12 + $0x78] sm:$0xff]
      %9691 = vmatprep.subr.mxu0 0.0
      %9692 = vmatpush1.msra.mxu0 %v9643
      %9693 = vmatprep.subr.mxu0 0.0
      %9694 = vmatpush1.msra.mxu0 %v9644
      %9695 = vmatprep.subr.mxu0 0.0
      %9696 = vmatpush1.msra.mxu0 %v9645
      %9697 = vmatprep.subr.mxu0 0.0
      %9698 = vmatpush1.msra.mxu0 %v9646
      %9699 = vmatprep.subr.mxu0 0.0
      %9700 = vmatpush1.msra.mxu0 %v9647
      %9701 = vmatprep.subr.mxu0 0.0
      %9702 = vmatpush1.msra.mxu0 %v9648
      %9703 = vmatprep.subr.mxu0 0.0
      %9704 = vmatpush1.msra.mxu0 %v9649
      %9705 = vmatprep.subr.mxu0 0.0
      %9706 = vmatpush1.msra.mxu0 %v9650
      %9707 = vmatprep.subr.mxu0 0.0
      %9708 = vmatpush1.msra.mxu0 %v9651
      %9709 = vmatprep.subr.mxu0 0.0
      %9710 = vmatpush1.msra.mxu0 %v9652
      %9711 = vmatprep.subr.mxu0 0.0
      %9712 = vmatpush1.msra.mxu0 %v9653
      %9713 = vmatprep.subr.mxu0 0.0
      %9714 = vmatpush1.msra.mxu0 %v9654
      %9715 = vmatprep.subr.mxu0 0.0
      %9716 = vmatpush1.msra.mxu0 %v9655
      %9717 = vmatprep.subr.mxu0 0.0
      %9718 = vmatpush1.msra.mxu0 %v9656
      %9719 = vmatprep.subr.mxu0 0.0
      %9720 = vmatpush1.msra.mxu0 %v9657
      %9721 = vmatprep.subr.mxu0 0.0
      %9722 = vmatpush1.msra.mxu0 %v9658
      %9723 = vmatprep.subr.mxu0 0.0
      %9724 = vmatpush1.msra.mxu0 0.0
      %9725 = vmatprep.subr.mxu0 0.0
      %9726 = vmatpush1.msra.mxu0 0.0
      %9727 = vmatprep.subr.mxu0 0.0
      %9728 = vmatpush1.msra.mxu0 0.0
      %9729 = vmatprep.subr.mxu0 0.0
      %9730 = vmatpush1.msra.mxu0 0.0
      %9731 = vmatprep.subr.mxu0 0.0
      %9732 = vmatpush1.msra.mxu0 0.0
      %9733 = vmatprep.subr.mxu0 0.0
      %9734 = vmatpush1.msra.mxu0 0.0
      %9735 = vmatprep.subr.mxu0 0.0
      %9736 = vmatpush1.msra.mxu0 0.0
      %9737 = vmatprep.subr.mxu0 0.0
      %9738 = vmatpush1.msra.mxu0 0.0
      %9739 = vmatprep.subr.mxu0 0.0
      %9740 = vmatpush1.msra.mxu0 0.0
      %9741 = vmatprep.subr.mxu0 0.0
      %9742 = vmatpush1.msra.mxu0 0.0
      %9743 = vmatprep.subr.mxu0 0.0
      %9744 = vmatpush1.msra.mxu0 0.0
      %9745 = vmatprep.subr.mxu0 0.0
      %9746 = vmatpush1.msra.mxu0 0.0
      %9747 = vmatprep.subr.mxu0 0.0
      %9748 = vmatpush1.msra.mxu0 0.0
      %9749 = vmatprep.subr.mxu0 0.0
      %9750 = vmatpush1.msra.mxu0 0.0
      %9751 = vmatprep.subr.mxu0 0.0
      %9752 = vmatpush1.msra.mxu0 0.0
      %9753 = vmatprep.subr.mxu0 0.0
      %9754 = vmatpush1.msra.mxu0 0.0
      %9755 = vmatprep.mubr.f32.mxu0 0.0
      %9756 = vmatmul.mubr.f32.gmra.mrb[0].mxu0 %v9659
      %v9757 = vpop.f32.mrb[0].mxu0
      %v9758 = vadd.f32 %v9675, %v9757
      %v9759 = vpop.f32.mrb[0].mxu0
      %9760 = vmatprep.mubr.f32.mxu0 0.0
      %9761 = vmatmul.mubr.f32.gmra.mrb[0].mxu0 %v9660
      %v9762 = vpop.f32.mrb[0].mxu0
      %v9763 = vadd.f32 %v9676, %v9762
      %v9764 = vpop.f32.mrb[0].mxu0
      %9765 = vmatprep.mubr.f32.mxu0 0.0
      %9766 = vmatmul.mubr.f32.gmra.mrb[0].mxu0 %v9661
      %v9767 = vpop.f32.mrb[0].mxu0
      %v9768 = vadd.f32 %v9677, %v9767
      %v9769 = vpop.f32.mrb[0].mxu0
      %9770 = vmatprep.mubr.f32.mxu0 0.0
      %9771 = vmatmul.mubr.f32.gmra.mrb[0].mxu0 %v9662
      %v9772 = vpop.f32.mrb[0].mxu0
      %v9773 = vadd.f32 %v9678, %v9772
      %v9774 = vpop.f32.mrb[0].mxu0
      %9775 = vmatprep.mubr.f32.mxu0 0.0
      %9776 = vmatmul.mubr.f32.gmra.mrb[0].mxu0 %v9663
      %v9777 = vpop.f32.mrb[0].mxu0
      %v9778 = vadd.f32 %v9679, %v9777
      %v9779 = vpop.f32.mrb[0].mxu0
      %9780 = vmatprep.mubr.f32.mxu0 0.0
      %9781 = vmatmul.mubr.f32.gmra.mrb[0].mxu0 %v9664
      %v9782 = vpop.f32.mrb[0].mxu0
      %v9783 = vadd.f32 %v9680, %v9782
      %v9784 = vpop.f32.mrb[0].mxu0
      %9785 = vmatprep.mubr.f32.mxu0 0.0
      %9786 = vmatmul.mubr.f32.gmra.mrb[0].mxu0 %v9665
      %v9787 = vpop.f32.mrb[0].mxu0
      %v9788 = vadd.f32 %v9681, %v9787
      %v9789 = vpop.f32.mrb[0].mxu0
      %9790 = vmatprep.mubr.f32.mxu0 0.0
      %9791 = vmatmul.mubr.f32.gmra.mrb[0].mxu0 %v9666
      %v9792 = vpop.f32.mrb[0].mxu0
      %v9793 = vadd.f32 %v9682, %v9792
      %v9794 = vpop.f32.mrb[0].mxu0
      %9795 = vmatprep.mubr.f32.mxu0 0.0
      %9796 = vmatmul.mubr.f32.gmra.mrb[0].mxu0 %v9667
      %v9797 = vpop.f32.mrb[0].mxu0
      %v9798 = vadd.f32 %v9683, %v9797
      %v9799 = vpop.f32.mrb[0].mxu0
      %9800 = vmatprep.mubr.f32.mxu0 0.0
      %9801 = vmatmul.mubr.f32.gmra.mrb[0].mxu0 %v9668
      %v9802 = vpop.f32.mrb[0].mxu0
      %v9803 = vadd.f32 %v9684, %v9802
      %v9804 = vpop.f32.mrb[0].mxu0
      %9805 = vmatprep.mubr.f32.mxu0 0.0
      %9806 = vmatmul.mubr.f32.gmra.mrb[0].mxu0 %v9669
      %v9807 = vpop.f32.mrb[0].mxu0
      %v9808 = vadd.f32 %v9685, %v9807
      %v9809 = vpop.f32.mrb[0].mxu0
      %9810 = vmatprep.mubr.f32.mxu0 0.0
      %9811 = vmatmul.mubr.f32.gmra.mrb[0].mxu0 %v9670
      %v9812 = vpop.f32.mrb[0].mxu0
      %v9813 = vadd.f32 %v9686, %v9812
      %v9814 = vpop.f32.mrb[0].mxu0
      %9815 = vmatprep.mubr.f32.mxu0 0.0
      %9816 = vmatmul.mubr.f32.gmra.mrb[0].mxu0 %v9671
      %v9817 = vpop.f32.mrb[0].mxu0
      %v9818 = vadd.f32 %v9687, %v9817
      %v9819 = vpop.f32.mrb[0].mxu0
      %9820 = vmatprep.mubr.f32.mxu0 0.0
      %9821 = vmatmul.mubr.f32.gmra.mrb[0].mxu0 %v9672
      %v9822 = vpop.f32.mrb[0].mxu0
      %v9823 = vadd.f32 %v9688, %v9822
      %v9824 = vpop.f32.mrb[0].mxu0
      %9825 = vmatprep.mubr.f32.mxu0 0.0
      %9826 = vmatmul.mubr.f32.gmra.mrb[0].mxu0 %v9673
      %v9827 = vpop.f32.mrb[0].mxu0
      %v9828 = vadd.f32 %v9689, %v9827
      %v9829 = vpop.f32.mrb[0].mxu0
      %9830 = vmatprep.mubr.f32.mxu0 0.0
      %9831 = vmatmul.mubr.f32.gmra.mrb[0].mxu0 %v9674
      %v9832 = vpop.f32.mrb[0].mxu0
      %v9833 = vadd.f32 %v9690, %v9832
      %v9834 = vpop.f32.mrb[0].mxu0
      %9835 = vdwg.mxu0
      %vm9836 = vcmp.gt.f32.partialorder %v9758, 0.0
      %vm9837 = vcmp.gt.f32.partialorder %v9763, 0.0
      %vm9838 = vcmp.gt.f32.partialorder %v9768, 0.0
      %vm9839 = vcmp.gt.f32.partialorder %v9773, 0.0
      %vm9840 = vcmp.gt.f32.partialorder %v9778, 0.0
      %vm9841 = vcmp.gt.f32.partialorder %v9783, 0.0
      %vm9842 = vcmp.gt.f32.partialorder %v9788, 0.0
      %vm9843 = vcmp.gt.f32.partialorder %v9793, 0.0
      %vm9844 = vcmp.gt.f32.partialorder %v9798, 0.0
      %vm9845 = vcmp.gt.f32.partialorder %v9803, 0.0
      %vm9846 = vcmp.gt.f32.partialorder %v9808, 0.0
      %vm9847 = vcmp.gt.f32.partialorder %v9813, 0.0
      %vm9848 = vcmp.gt.f32.partialorder %v9818, 0.0
      %vm9849 = vcmp.gt.f32.partialorder %v9823, 0.0
      %vm9850 = vcmp.gt.f32.partialorder %v9828, 0.0
      %vm9851 = vcmp.gt.f32.partialorder %v9833, 0.0
      %v9852 = vmin.f32 %v9758, 0.0
      %v9853 = vmin.f32 %v9763, 0.0
      %v9854 = vmin.f32 %v9768, 0.0
      %v9855 = vmin.f32 %v9773, 0.0
      %v9856 = vmin.f32 %v9778, 0.0
      %v9857 = vmin.f32 %v9783, 0.0
      %v9858 = vmin.f32 %v9788, 0.0
      %v9859 = vmin.f32 %v9793, 0.0
      %v9860 = vmin.f32 %v9798, 0.0
      %v9861 = vmin.f32 %v9803, 0.0
      %v9862 = vmin.f32 %v9808, 0.0
      %v9863 = vmin.f32 %v9813, 0.0
      %v9864 = vmin.f32 %v9818, 0.0
      %v9865 = vmin.f32 %v9823, 0.0
      %v9866 = vmin.f32 %v9828, 0.0
      %v9867 = vmin.f32 %v9833, 0.0
      %v9868 = vmul.f32 %v9852, 1.442695
      %v9869 = vpow.pop %v9868
      %v9870 = vmul.f32 %v9853, 1.442695
      %v9871 = vpow.pop %v9870
      %v9872 = vmul.f32 %v9854, 1.442695
      %v9873 = vpow.pop %v9872
      %v9874 = vmul.f32 %v9855, 1.442695
      %v9875 = vpow.pop %v9874
      %v9876 = vmul.f32 %v9856, 1.442695
      %v9877 = vpow.pop %v9876
      %v9878 = vmul.f32 %v9857, 1.442695
      %v9879 = vpow.pop %v9878
      %v9880 = vmul.f32 %v9858, 1.442695
      %v9881 = vpow.pop %v9880
      %v9882 = vmul.f32 %v9859, 1.442695
      %v9883 = vpow.pop %v9882
      %v9884 = vmul.f32 %v9860, 1.442695
      %v9885 = vpow.pop %v9884
      %v9886 = vmul.f32 %v9861, 1.442695
      %v9887 = vpow.pop %v9886
      %v9888 = vmul.f32 %v9862, 1.442695
      %v9889 = vpow.pop %v9888
      %v9890 = vmul.f32 %v9863, 1.442695
      %v9891 = vpow.pop %v9890
      %v9892 = vmul.f32 %v9864, 1.442695
      %v9893 = vpow.pop %v9892
      %v9894 = vmul.f32 %v9865, 1.442695
      %v9895 = vpow.pop %v9894
      %v9896 = vmul.f32 %v9866, 1.442695
      %v9897 = vpow.pop %v9896
      %v9898 = vmul.f32 %v9867, 1.442695
      %v9899 = vpow.pop %v9898
      %v9900 = vsub.f32 %v9869, 1.0
      %v9901 = vsub.f32 %v9871, 1.0
      %v9902 = vsub.f32 %v9873, 1.0
      %v9903 = vsub.f32 %v9875, 1.0
      %v9904 = vsub.f32 %v9877, 1.0
      %v9905 = vsub.f32 %v9879, 1.0
      %v9906 = vsub.f32 %v9881, 1.0
      %v9907 = vsub.f32 %v9883, 1.0
      %v9908 = vsub.f32 %v9885, 1.0
      %v9909 = vsub.f32 %v9887, 1.0
      %v9910 = vsub.f32 %v9889, 1.0
      %v9911 = vsub.f32 %v9891, 1.0
      %v9912 = vsub.f32 %v9893, 1.0
      %v9913 = vsub.f32 %v9895, 1.0
      %v9914 = vsub.f32 %v9897, 1.0
      %v9915 = vsub.f32 %v9899, 1.0
      %v9916 = vsel %vm9836, %v9758, %v9900
      %v9917 = vsel %vm9837, %v9763, %v9901
      %v9918 = vsel %vm9838, %v9768, %v9902
      %v9919 = vsel %vm9839, %v9773, %v9903
      %v9920 = vsel %vm9840, %v9778, %v9904
      %v9921 = vsel %vm9841, %v9783, %v9905
      %v9922 = vsel %vm9842, %v9788, %v9906
      %v9923 = vsel %vm9843, %v9793, %v9907
      %v9924 = vsel %vm9844, %v9798, %v9908
      %v9925 = vsel %vm9845, %v9803, %v9909
      %v9926 = vsel %vm9846, %v9808, %v9910
      %v9927 = vsel %vm9847, %v9813, %v9911
      %v9928 = vsel %vm9848, %v9818, %v9912
      %v9929 = vsel %vm9849, %v9823, %v9913
      %v9930 = vsel %vm9850, %v9828, %v9914
      %v9931 = vsel %vm9851, %v9833, %v9915
      %v9932 = vadd.f32 %v9643, %v9916
      %v9933 = vadd.f32 %v9644, %v9917
      %v9934 = vadd.f32 %v9645, %v9918
      %v9935 = vadd.f32 %v9646, %v9919
      %v9936 = vadd.f32 %v9647, %v9920
      %v9937 = vadd.f32 %v9648, %v9921
      %v9938 = vadd.f32 %v9649, %v9922
      %v9939 = vadd.f32 %v9650, %v9923
      %v9940 = vadd.f32 %v9651, %v9924
      %v9941 = vadd.f32 %v9652, %v9925
      %v9942 = vadd.f32 %v9653, %v9926
      %v9943 = vadd.f32 %v9654, %v9927
      %v9944 = vadd.f32 %v9655, %v9928
      %v9945 = vadd.f32 %v9656, %v9929
      %v9946 = vadd.f32 %v9657, %v9930
      %v9947 = vadd.f32 %v9658, %v9931
      %v9948 = vld [vmem:[%s13] sm:$0xff]
      %v9949 = vld [vmem:[%s13 + $0x8] sm:$0xff]
      %v9950 = vld [vmem:[%s13 + $0x10] sm:$0xff]
      %v9951 = vld [vmem:[%s13 + $0x18] sm:$0xff]
      %v9952 = vld [vmem:[%s13 + $0x20] sm:$0xff]
      %v9953 = vld [vmem:[%s13 + $0x28] sm:$0xff]
      %v9954 = vld [vmem:[%s14] sm:$0xff]
      %v9955 = vld [vmem:[%s14 + $0x8] sm:$0xff]
      %v9956 = vld [vmem:[%s14 + $0x10] sm:$0xff]
      %v9957 = vld [vmem:[%s14 + $0x18] sm:$0xff]
      %v9958 = vld [vmem:[%s14 + $0x20] sm:$0xff]
      %v9959 = vld [vmem:[%s14 + $0x28] sm:$0xff]
      %9960 = vmatprep.subr.mxu0 0.0
      %9961 = vmatpush1.msra.mxu0 %v9932
      %9962 = vmatprep.subr.mxu0 0.0
      %9963 = vmatpush1.msra.mxu0 %v9933
      %9964 = vmatprep.subr.mxu0 0.0
      %9965 = vmatpush1.msra.mxu0 %v9934
      %9966 = vmatprep.subr.mxu0 0.0
      %9967 = vmatpush1.msra.mxu0 %v9935
      %9968 = vmatprep.subr.mxu0 0.0
      %9969 = vmatpush1.msra.mxu0 %v9936
      %9970 = vmatprep.subr.mxu0 0.0
      %9971 = vmatpush1.msra.mxu0 %v9937
      %9972 = vmatprep.subr.mxu0 0.0
      %9973 = vmatpush1.msra.mxu0 %v9938
      %9974 = vmatprep.subr.mxu0 0.0
      %9975 = vmatpush1.msra.mxu0 %v9939
      %9976 = vmatprep.subr.mxu0 0.0
      %9977 = vmatpush1.msra.mxu0 %v9940
      %9978 = vmatprep.subr.mxu0 0.0
      %9979 = vmatpush1.msra.mxu0 %v9941
      %9980 = vmatprep.subr.mxu0 0.0
      %9981 = vmatpush1.msra.mxu0 %v9942
      %9982 = vmatprep.subr.mxu0 0.0
      %9983 = vmatpush1.msra.mxu0 %v9943
      %9984 = vmatprep.subr.mxu0 0.0
      %9985 = vmatpush1.msra.mxu0 %v9944
      %9986 = vmatprep.subr.mxu0 0.0
      %9987 = vmatpush1.msra.mxu0 %v9945
      %9988 = vmatprep.subr.mxu0 0.0
      %9989 = vmatpush1.msra.mxu0 %v9946
      %9990 = vmatprep.subr.mxu0 0.0
      %9991 = vmatpush1.msra.mxu0 %v9947
      %9992 = vmatprep.subr.mxu0 0.0
      %9993 = vmatpush1.msra.mxu0 0.0
      %9994 = vmatprep.subr.mxu0 0.0
      %9995 = vmatpush1.msra.mxu0 0.0
      %9996 = vmatprep.subr.mxu0 0.0
      %9997 = vmatpush1.msra.mxu0 0.0
      %9998 = vmatprep.subr.mxu0 0.0
      %9999 = vmatpush1.msra.mxu0 0.0
      %10000 = vmatprep.subr.mxu0 0.0
      %10001 = vmatpush1.msra.mxu0 0.0
      %10002 = vmatprep.subr.mxu0 0.0
      %10003 = vmatpush1.msra.mxu0 0.0
      %10004 = vmatprep.subr.mxu0 0.0
      %10005 = vmatpush1.msra.mxu0 0.0
      %10006 = vmatprep.subr.mxu0 0.0
      %10007 = vmatpush1.msra.mxu0 0.0
      %10008 = vmatprep.subr.mxu0 0.0
      %10009 = vmatpush1.msra.mxu0 0.0
      %10010 = vmatprep.subr.mxu0 0.0
      %10011 = vmatpush1.msra.mxu0 0.0
      %10012 = vmatprep.subr.mxu0 0.0
      %10013 = vmatpush1.msra.mxu0 0.0
      %10014 = vmatprep.subr.mxu0 0.0
      %10015 = vmatpush1.msra.mxu0 0.0
      %10016 = vmatprep.subr.mxu0 0.0
      %10017 = vmatpush1.msra.mxu0 0.0
      %10018 = vmatprep.subr.mxu0 0.0
      %10019 = vmatpush1.msra.mxu0 0.0
      %10020 = vmatprep.subr.mxu0 0.0
      %10021 = vmatpush1.msra.mxu0 0.0
      %10022 = vmatprep.subr.mxu0 0.0
      %10023 = vmatpush1.msra.mxu0 0.0
      %10024 = vmatprep.mubr.f32.mxu0 0.0
      %10025 = vmatmul.mubr.f32.gmra.mrb[0].mxu0 %v9948
      %v10026 = vpop.f32.mrb[0].mxu0
      %v10027 = vadd.f32 %v9954, %v10026
      %v10028 = vpop.f32.mrb[0].mxu0
      %10029 = vmatprep.mubr.f32.mxu0 0.0
      %10030 = vmatmul.mubr.f32.gmra.mrb[0].mxu0 %v9949
      %v10031 = vpop.f32.mrb[0].mxu0
      %v10032 = vadd.f32 %v9955, %v10031
      %v10033 = vpop.f32.mrb[0].mxu0
      %10034 = vmatprep.mubr.f32.mxu0 0.0
      %10035 = vmatmul.mubr.f32.gmra.mrb[0].mxu0 %v9950
      %v10036 = vpop.f32.mrb[0].mxu0
      %v10037 = vadd.f32 %v9956, %v10036
      %v10038 = vpop.f32.mrb[0].mxu0
      %10039 = vmatprep.mubr.f32.mxu0 0.0
      %10040 = vmatmul.mubr.f32.gmra.mrb[0].mxu0 %v9951
      %v10041 = vpop.f32.mrb[0].mxu0
      %v10042 = vadd.f32 %v9957, %v10041
      %v10043 = vpop.f32.mrb[0].mxu0
      %10044 = vmatprep.mubr.f32.mxu0 0.0
      %10045 = vmatmul.mubr.f32.gmra.mrb[0].mxu0 %v9952
      %v10046 = vpop.f32.mrb[0].mxu0
      %v10047 = vadd.f32 %v9958, %v10046
      %v10048 = vpop.f32.mrb[0].mxu0
      %10049 = vmatprep.mubr.f32.mxu0 0.0
      %10050 = vmatmul.mubr.f32.gmra.mrb[0].mxu0 %v9953
      %v10051 = vpop.f32.mrb[0].mxu0
      %v10052 = vadd.f32 %v9959, %v10051
      %v10053 = vpop.f32.mrb[0].mxu0
      %10054 = vdwg.mxu0
      %vm10055 = vcmask 7168
      %10056 = vst.msk [vmem:[%s496] sm:$0xff] %vm10055, %v10027
      %10057 = vst.msk [vmem:[%s496 + $0x8] sm:$0xff] %vm10055, %v10032
      %10058 = vst.msk [vmem:[%s496 + $0x10] sm:$0xff] %vm10055, %v10037
      %10059 = vst.msk [vmem:[%s496 + $0x18] sm:$0xff] %vm10055, %v10042
      %10060 = vst.msk [vmem:[%s496 + $0x20] sm:$0xff] %vm10055, %v10047
      %10061 = vst.msk [vmem:[%s496 + $0x28] sm:$0xff] %vm10055, %v10052
      %p10062 = scmp.lt.s32.totalorder %s28, 1
      %s10063 = scalar_select %p10062, %s28, 1
      %s10064 = smul.addr %s10063, 6
      %s10065 = smul.addr %s10064, 8
      %s10066 = scalar_lea.vmem %s15, %s10065
      // Predicated region
      $region81: #{gmw_forward.1} parent=79 // pred_check
        %p10067 = pneg %p366
      $region82: #{gmw_forward.1} parent=79 // pred_check_branch
        %10069 = sbr.rel (%p10067) target = $region84
      $region83: #{gmw_forward.1} parent=79 // pred_region
        _
      $region84: #{gmw_forward.1} parent=79 // pred_fallthru
        _
    $region80: #{gmw_forward.1} parent=5 // pred_fallthru
      _
    %p10070 = scmp.le.s32.totalorder 2, %s23
    // Predicated region
    $region85: #{gmw_forward.1} parent=5 // pred_check
      %p10071 = pneg %p10070
    $region86: #{gmw_forward.1} parent=5 // pred_check_branch
      %10073 = sbr.rel (%p10071) target = $region88
    $region87: #{gmw_forward.1} parent=5 // pred_region
      %s10074 = ssub.s32 %s23, 2
      // Predicated region
      $region89: #{gmw_forward.1} parent=87 // pred_check
        %p10075 = pneg %p372
      $region90: #{gmw_forward.1} parent=87 // pred_check_branch
        %10077 = sbr.rel (%p10075) target = $region92
      $region91: #{gmw_forward.1} parent=87 // pred_region
        %p10078 = scmp.lt.s32.totalorder %s29, 1
        %s10079 = scalar_select %p10078, %s29, 1
        %s10080 = smul.addr %s10079, 6
        %s10081 = smul.addr %s10080, 8
        %s10082 = scalar_lea.vmem %s15, %s10081
      $region92: #{gmw_forward.1} parent=87 // pred_fallthru
        _
    $region88: #{gmw_forward.1} parent=5 // pred_fallthru
      _
  $region6: #{gmw_forward.1} parent=0 // loop_footer
    %s27 = sadd.s32 1, %s23
  $region7: #{gmw_forward.1} parent=0 // loop_footer_branch
    %22 = sbr.rel target = $region3
  $region8: #{gmw_forward.1} parent=0 // loop_exit
    _

</llo_original>
